<compile_context>
chip_gen: v5e
topology: v5e:2x2
jax: 0.10.0
libtpu: 0.0.40
codegen_flags: <defaults>
</compile_context>

<pallas_src>
import functools

import jax
import jax.numpy as jnp
from jax.experimental import pallas as pl
from jax.experimental.pallas import tpu as pltpu

LANES = 128   # every channel / feature dim padded to this (lane-dense GEMMs)
MAX_BL = 8    # batch-block cap (per-block live set ~ few MB -> fits all gens)


# ----------------------------- in-kernel helpers ----------------------------

def _pool2x2(y, bl, oh, ow, n):
    """2x2 max pool of a conv GEMM output.

    y: (bl*oh*ow, n), rows ordered (b, oh, ow); oh, ow even.
    Returns (bl*(oh//2), ow//2, n), rows ordered (b, oh2).
    Only last-dim-preserving reshapes + reductions over size-2 axes
    (no unaligned sublane slices).
    """
    oh2, ow2 = oh // 2, ow // 2
    # pool along ow: adjacent row pairs
    y = jnp.max(y.reshape(bl * oh * ow2, 2, n), axis=1)          # (bl*oh*ow2, n)
    # pool along oh: size-2 outer axis between the two oh-rows of each window
    y = jnp.max(y.reshape(bl * oh2, 2, ow2, n), axis=1)          # (bl*oh2, ow2, n)
    return y


# ------------------------------- Pallas kernel -------------------------------

def _fused_lenet_kernel(x_ref, w1_ref, b1_ref, w2_ref, b2_ref,
                        wf1_ref, bf1_ref, wf2_ref, bf2_ref,
                        wf3_ref, bf3_ref, o_ref):
    """Whole SimpleCNN forward for one batch block, entirely in VMEM.

    x_ref: (BL, 576, 128)   conv1 im2col patches (24*24 positions, 25 taps -> 128)
    o_ref: (BL, 128)        padded logits
    """
    BL = x_ref.shape[0]
    n = LANES

    # ---- conv1 (single lane-dense GEMM) + bias + ReLU + 2x2 pool ----
    x = x_ref[...].reshape(BL * 576, n)                          # rows (b, oh, ow)
    y1 = jnp.maximum(
        jnp.dot(x, w1_ref[...], preferred_element_type=jnp.float32) + b1_ref[...],
        0.0)                                                     # (BL*576, 128)
    a1 = _pool2x2(y1, BL, 24, 24, n).reshape(BL, 12, 12, n)      # (BL,12,12,128)

    # ---- conv2: in-kernel im2col, 25 taps of K=128 each ----
    m2 = BL * 8 * 8
    acc = jnp.zeros((m2, n), jnp.float32)
    for i in range(5):
        for j in range(5):
            patch = a1[:, i:i + 8, j:j + 8, :].reshape(m2, n)
            acc = acc + jnp.dot(patch, w2_ref[i * 5 + j],
                                preferred_element_type=jnp.float32)
    y2 = jnp.maximum(acc + b2_ref[...], 0.0)                     # (BL*64, 128)
    a2 = _pool2x2(y2, BL, 8, 8, n).reshape(BL, 4, 4, n)          # (BL,4,4,128)

    # ---- fc1 (16 K=128 dots; PyTorch (c,h,w) flatten order baked into wf1) ----
    h1 = jnp.zeros((BL, n), jnp.float32)
    for h in range(4):
        for w in range(4):
            h1 = h1 + jnp.dot(a2[:, h, w, :], wf1_ref[h * 4 + w],
                              preferred_element_type=jnp.float32)
    h1 = jnp.maximum(h1 + bf1_ref[...], 0.0)

    # ---- fc2 + ReLU, fc3 ----
    h2 = jnp.maximum(
        jnp.dot(h1, wf2_ref[...], preferred_element_type=jnp.float32) + bf2_ref[...],
        0.0)
    h3 = jnp.dot(h2, wf3_ref[...], preferred_element_type=jnp.float32) + bf3_ref[...]
    o_ref[...] = h3.astype(o_ref.dtype)


# ------------------------------ pallas_call glue -----------------------------

def _replicated(shape):
    nd = len(shape)
    return pl.BlockSpec(shape, lambda bi: (0,) * nd)


def fused_lenet(patches, p, *, BL):
    """patches: (Bp, 576, 128) conv1 im2col; p: prepared params -> (Bp, 128)."""
    Bp = patches.shape[0]
    n = LANES
    assert Bp % BL == 0
    nblk = Bp // BL

    flops = 2 * Bp * (576 * n * n + 64 * 25 * n * n + 16 * n * n + 2 * n * n)
    bytes_acc = 4 * (patches.size + sum(int(v.size) for v in p.values()) + Bp * n)

    return pl.pallas_call(
        _fused_lenet_kernel,
        out_shape=jax.ShapeDtypeStruct((Bp, n), jnp.float32),
        grid=(nblk,),
        in_specs=[
            pl.BlockSpec((BL, 576, n), lambda bi: (bi, 0, 0)),
            _replicated(p["w1"].shape), _replicated(p["b1"].shape),
            _replicated(p["w2"].shape), _replicated(p["b2"].shape),
            _replicated(p["wf1"].shape), _replicated(p["bf1"].shape),
            _replicated(p["wf2"].shape), _replicated(p["bf2"].shape),
            _replicated(p["wf3"].shape), _replicated(p["bf3"].shape),
        ],
        out_specs=pl.BlockSpec((BL, n), lambda bi: (bi, 0)),
        compiler_params=pltpu.CompilerParams(
            dimension_semantics=("parallel",),
            vmem_limit_bytes=48 * 1024 * 1024),
        cost_estimate=pl.CostEstimate(flops=flops, transcendentals=0,
                                      bytes_accessed=bytes_acc),
    )(patches, p["w1"], p["b1"], p["w2"], p["b2"],
      p["wf1"], p["bf1"], p["wf2"], p["bf2"], p["wf3"], p["bf3"])


# ------------------------ one-time parameter preparation ---------------------

def prepare_params(params, num_classes):
    """Repack PyTorch-layout weights into lane-dense (128-padded) NHWC form."""
    N = LANES
    f32 = jnp.float32

    # conv1: (6,1,5,5) -> rows tap=i*5+j (single input channel), padded to (128,128)
    w1 = jnp.transpose(params["w1"].astype(f32), (2, 3, 1, 0)).reshape(25, 6)
    w1 = jnp.zeros((N, N), f32).at[:25, :6].set(w1)

    # conv2: (16,6,5,5) -> (25, cin, cout), padded to (25,128,128)
    w2 = jnp.transpose(params["w2"].astype(f32), (2, 3, 1, 0)).reshape(25, 6, 16)
    w2 = jnp.zeros((25, N, N), f32).at[:, :6, :16].set(w2)

    def pad_bias(b):
        return jnp.zeros((1, N), f32).at[0, :b.shape[0]].set(b.astype(f32))

    # fc1: torch flatten order (c,h,w); regroup into one (128,128) block per (h,w)
    # so the kernel consumes NHWC pooled activations directly.
    wfc1 = params["wfc1"].astype(f32).reshape(120, 16, 4, 4)        # (n, c, h, w)
    wfc1 = jnp.transpose(wfc1, (2, 3, 1, 0)).reshape(16, 16, 120)   # (h*4+w, c, n)
    wf1 = jnp.zeros((16, N, N), f32).at[:, :16, :120].set(wfc1)

    wf2 = jnp.zeros((N, N), f32).at[:120, :84].set(params["wfc2"].astype(f32).T)
    wf3 = jnp.zeros((N, N), f32).at[:84, :num_classes].set(
        params["wfc3"].astype(f32).T)

    return {
        "w1": w1, "b1": pad_bias(params["b1"]),
        "w2": w2, "b2": pad_bias(params["b2"]),
        "wf1": wf1, "bf1": pad_bias(params["bfc1"]),
        "wf2": wf2, "bf2": pad_bias(params["bfc2"]),
        "wf3": wf3, "bf3": pad_bias(params["bfc3"]),
    }


# ---------------------------------- forward ----------------------------------

@functools.partial(jax.jit, static_argnames=("num_classes",))
def simple_cnn_forward(prepared, x, *, num_classes):
    """x: (B, 1, 28, 28) NCHW float32 -> (B, num_classes)."""
    B = x.shape[0]
    xh = jnp.transpose(x, (0, 2, 3, 1)).astype(jnp.float32)     # NCHW -> NHWC

    # conv1 im2col in the wrapper (input is tiny): (B, 24*24, 25) -> pad K to 128.
    K, OH, OW = 5, 24, 24
    cols = [xh[:, i:i + OH, j:j + OW, 0] for i in range(K) for j in range(K)]
    patches = jnp.stack(cols, axis=-1).reshape(B, OH * OW, K * K)
    patches = jnp.pad(patches, ((0, 0), (0, 0), (0, LANES - K * K)))

    # batch blocking: BL = B for small batches (block == full dims), else pad B
    # to a multiple of MAX_BL (multiple of 8 -> tiling-legal output blocks).
    if B <= MAX_BL:
        BL, Bp = B, B
    else:
        BL = MAX_BL
        Bp = ((B + BL - 1) // BL) * BL
        patches = jnp.pad(patches, ((0, Bp - B), (0, 0), (0, 0)))

    logits = fused_lenet(patches, prepared, BL=BL)               # (Bp, 128)
    return logits[:B, :num_classes]


# ---------------------------- deterministic params ---------------------------

def init_params(key, num_classes):
    """PyTorch-default-style uniform(-1/sqrt(fan_in), 1/sqrt(fan_in)) init."""
    def uni(k, shape, fan_in):
        bound = 1.0 / (fan_in ** 0.5)
        return jax.random.uniform(k, shape, jnp.float32, -bound, bound)

    ks = jax.random.split(key, 10)
    return {
        "w1": uni(ks[0], (6, 1, 5, 5), 1 * 25),
        "b1": uni(ks[1], (6,), 1 * 25),
        "w2": uni(ks[2], (16, 6, 5, 5), 6 * 25),
        "b2": uni(ks[3], (16,), 6 * 25),
        "wfc1": uni(ks[4], (120, 16 * 4 * 4), 16 * 4 * 4),
        "bfc1": uni(ks[5], (120,), 16 * 4 * 4),
        "wfc2": uni(ks[6], (84, 120), 120),
        "bfc2": uni(ks[7], (84,), 120),
        "wfc3": uni(ks[8], (num_classes, 84), 84),
        "bfc3": uni(ks[9], (num_classes,), 84),
    }


# ----------------------------- pure-JAX reference ----------------------------

def reference_forward(params, x):
    dn = ("NCHW", "OIHW", "NCHW")
    hp = jax.lax.Precision.HIGHEST

    def conv(x, w, b):
        y = jax.lax.conv_general_dilated(x, w, (1, 1), "VALID",
                                         dimension_numbers=dn, precision=hp)
        return jax.nn.relu(y + b.reshape(1, -1, 1, 1))

    def pool(x):
        return jax.lax.reduce_window(x, -jnp.inf, jax.lax.max,
                                     (1, 1, 2, 2), (1, 1, 2, 2), "VALID")

    x = pool(conv(x, params["w1"], params["b1"]))
    x = pool(conv(x, params["w2"], params["b2"]))
    x = x.reshape(x.shape[0], -1)
    x = jax.nn.relu(jnp.dot(x, params["wfc1"].T, precision=hp) + params["bfc1"])
    x = jax.nn.relu(jnp.dot(x, params["wfc2"].T, precision=hp) + params["bfc2"])
    x = jnp.dot(x, params["wfc3"].T, precision=hp) + params["bfc3"]
    return x


# ------------------------------------ main -----------------------------------

if __name__ == "__main__":
    num_classes = 10
    key = jax.random.PRNGKey(0)
    pkey, xkey = jax.random.split(key)

    params = init_params(pkey, num_classes)
    # fc1 expects 16*4*4 -> the architecture forces single-channel 28x28 input.
    x = jax.random.normal(xkey, (2, 1, 28, 28), jnp.float32)

    prepared = prepare_params(params, num_classes)   # one-time weight repack
    out = jax.block_until_ready(
        simple_cnn_forward(prepared, x, num_classes=num_classes))
    ref = jax.block_until_ready(reference_forward(params, x))

    assert out.shape == (2, num_classes), out.shape
    assert jnp.allclose(out, ref, atol=5e-3, rtol=5e-3), \
        f"max abs err = {jnp.max(jnp.abs(out - ref))}"
    print("KERNEL_OK")
</pallas_src>

<mosaic_0001>
module attributes {stable_mosaic.version = 11 : i64} {
  func.func @_fused_lenet_kernel(%arg0: i32, %arg1: memref<2x576x128xf32, #tpu.memory_space<vmem>>, %arg2: memref<128x128xf32, #tpu.memory_space<vmem>>, %arg3: memref<1x128xf32, #tpu.memory_space<vmem>>, %arg4: memref<25x128x128xf32, #tpu.memory_space<vmem>>, %arg5: memref<1x128xf32, #tpu.memory_space<vmem>>, %arg6: memref<16x128x128xf32, #tpu.memory_space<vmem>>, %arg7: memref<1x128xf32, #tpu.memory_space<vmem>>, %arg8: memref<128x128xf32, #tpu.memory_space<vmem>>, %arg9: memref<1x128xf32, #tpu.memory_space<vmem>>, %arg10: memref<128x128xf32, #tpu.memory_space<vmem>>, %arg11: memref<1x128xf32, #tpu.memory_space<vmem>>, %arg12: memref<2x128xf32, #tpu.memory_space<vmem>>) attributes {dimension_semantics = [#tpu.dimension_semantics<parallel>], iteration_bounds = array<i64: 1>, scalar_prefetch = 0 : i64, scratch_operands = 0 : i64, tpu.core_type = #tpu.core_type<tc>, window_params = [{transform_indices = @transform_0, window_bounds = array<i64: 2, 576, 128>}, {pipeline_mode = #tpu.pipeline_mode<synchronous>, transform_indices = @transform_1, window_bounds = array<i64: 128, 128>}, {pipeline_mode = #tpu.pipeline_mode<synchronous>, transform_indices = @transform_2, window_bounds = array<i64: 1, 128>}, {pipeline_mode = #tpu.pipeline_mode<synchronous>, transform_indices = @transform_3, window_bounds = array<i64: 25, 128, 128>}, {pipeline_mode = #tpu.pipeline_mode<synchronous>, transform_indices = @transform_4, window_bounds = array<i64: 1, 128>}, {pipeline_mode = #tpu.pipeline_mode<synchronous>, transform_indices = @transform_5, window_bounds = array<i64: 16, 128, 128>}, {pipeline_mode = #tpu.pipeline_mode<synchronous>, transform_indices = @transform_6, window_bounds = array<i64: 1, 128>}, {pipeline_mode = #tpu.pipeline_mode<synchronous>, transform_indices = @transform_7, window_bounds = array<i64: 128, 128>}, {pipeline_mode = #tpu.pipeline_mode<synchronous>, transform_indices = @transform_8, window_bounds = array<i64: 1, 128>}, {pipeline_mode = #tpu.pipeline_mode<synchronous>, transform_indices = @transform_9, window_bounds = array<i64: 128, 128>}, {pipeline_mode = #tpu.pipeline_mode<synchronous>, transform_indices = @transform_10, window_bounds = array<i64: 1, 128>}, {transform_indices = @transform_11, window_bounds = array<i64: 2, 128>}]} {
    %c0 = arith.constant 0 : index
    %c0_0 = arith.constant 0 : index
    %c0_1 = arith.constant 0 : index
    %0 = vector.load %arg1[%c0, %c0_0, %c0_1] : memref<2x576x128xf32, #tpu.memory_space<vmem>>, vector<2x576x128xf32>
    %1 = vector.shape_cast %0 : vector<2x576x128xf32> to vector<1152x128xf32>
    %c0_2 = arith.constant 0 : index
    %c0_3 = arith.constant 0 : index
    %2 = vector.load %arg2[%c0_2, %c0_3] : memref<128x128xf32, #tpu.memory_space<vmem>>, vector<128x128xf32>
    %cst = arith.constant dense<0.000000e+00> : vector<1152x128xf32>
    %3 = tpu.matmul %1, %2, %cst {dimension_numbers = #tpu.dot_dimension_numbers<[1], [0], [0], [1], [0, 0, 1, 1], [], []>} : vector<1152x128xf32>, vector<128x128xf32>, vector<1152x128xf32> -> vector<1152x128xf32>
    %c0_4 = arith.constant 0 : index
    %c0_5 = arith.constant 0 : index
    %4 = vector.load %arg3[%c0_4, %c0_5] : memref<1x128xf32, #tpu.memory_space<vmem>>, vector<1x128xf32>
    %5 = vector.broadcast %4 : vector<1x128xf32> to vector<1152x128xf32>
    %6 = arith.addf %3, %5 : vector<1152x128xf32>
    %cst_6 = arith.constant 0.000000e+00 : f32
    %7 = vector.broadcast %cst_6 : f32 to vector<1152x128xf32>
    %8 = arith.maximumf %6, %7 : vector<1152x128xf32>
    %9 = vector.shape_cast %8 : vector<1152x128xf32> to vector<576x2x128xf32>
    %cst_7 = arith.constant dense<0xFF800000> : vector<576x128xf32>
    %10 = vector.multi_reduction <maximumf>, %9, %cst_7 [1] : vector<576x2x128xf32> to vector<576x128xf32>
    %11 = vector.shape_cast %10 : vector<576x128xf32> to vector<24x2x12x128xf32>
    %cst_8 = arith.constant dense<0xFF800000> : vector<24x12x128xf32>
    %12 = vector.multi_reduction <maximumf>, %11, %cst_8 [1] : vector<24x2x12x128xf32> to vector<24x12x128xf32>
    %13 = vector.shape_cast %12 : vector<24x12x128xf32> to vector<2x12x12x128xf32>
    %cst_9 = arith.constant 0.000000e+00 : f32
    %14 = vector.broadcast %cst_9 : f32 to vector<128x128xf32>
    %15 = vector.extract_strided_slice %13 {offsets = [0, 0, 0, 0], sizes = [2, 8, 8, 128], strides = [1, 1, 1, 1]} : vector<2x12x12x128xf32> to vector<2x8x8x128xf32>
    %16 = vector.shape_cast %15 : vector<2x8x8x128xf32> to vector<128x128xf32>
    %c0_10 = arith.constant 0 : index
    %c0_11 = arith.constant 0 : index
    %c0_12 = arith.constant 0 : index
    %17 = vector.load %arg4[%c0_10, %c0_11, %c0_12] : memref<25x128x128xf32, #tpu.memory_space<vmem>>, vector<1x128x128xf32>
    %18 = vector.shape_cast %17 : vector<1x128x128xf32> to vector<128x128xf32>
    %cst_13 = arith.constant dense<0.000000e+00> : vector<128x128xf32>
    %19 = tpu.matmul %16, %18, %cst_13 {dimension_numbers = #tpu.dot_dimension_numbers<[1], [0], [0], [1], [0, 0, 1, 1], [], []>} : vector<128x128xf32>, vector<128x128xf32>, vector<128x128xf32> -> vector<128x128xf32>
    %20 = arith.addf %14, %19 : vector<128x128xf32>
    %21 = vector.extract_strided_slice %13 {offsets = [0, 0, 1, 0], sizes = [2, 8, 8, 128], strides = [1, 1, 1, 1]} : vector<2x12x12x128xf32> to vector<2x8x8x128xf32>
    %22 = vector.shape_cast %21 : vector<2x8x8x128xf32> to vector<128x128xf32>
    %c1 = arith.constant 1 : index
    %c0_14 = arith.constant 0 : index
    %c0_15 = arith.constant 0 : index
    %23 = vector.load %arg4[%c1, %c0_14, %c0_15] : memref<25x128x128xf32, #tpu.memory_space<vmem>>, vector<1x128x128xf32>
    %24 = vector.shape_cast %23 : vector<1x128x128xf32> to vector<128x128xf32>
    %cst_16 = arith.constant dense<0.000000e+00> : vector<128x128xf32>
    %25 = tpu.matmul %22, %24, %cst_16 {dimension_numbers = #tpu.dot_dimension_numbers<[1], [0], [0], [1], [0, 0, 1, 1], [], []>} : vector<128x128xf32>, vector<128x128xf32>, vector<128x128xf32> -> vector<128x128xf32>
    %26 = arith.addf %20, %25 : vector<128x128xf32>
    %27 = vector.extract_strided_slice %13 {offsets = [0, 0, 2, 0], sizes = [2, 8, 8, 128], strides = [1, 1, 1, 1]} : vector<2x12x12x128xf32> to vector<2x8x8x128xf32>
    %28 = vector.shape_cast %27 : vector<2x8x8x128xf32> to vector<128x128xf32>
    %c2 = arith.constant 2 : index
    %c0_17 = arith.constant 0 : index
    %c0_18 = arith.constant 0 : index
    %29 = vector.load %arg4[%c2, %c0_17, %c0_18] : memref<25x128x128xf32, #tpu.memory_space<vmem>>, vector<1x128x128xf32>
    %30 = vector.shape_cast %29 : vector<1x128x128xf32> to vector<128x128xf32>
    %cst_19 = arith.constant dense<0.000000e+00> : vector<128x128xf32>
    %31 = tpu.matmul %28, %30, %cst_19 {dimension_numbers = #tpu.dot_dimension_numbers<[1], [0], [0], [1], [0, 0, 1, 1], [], []>} : vector<128x128xf32>, vector<128x128xf32>, vector<128x128xf32> -> vector<128x128xf32>
    %32 = arith.addf %26, %31 : vector<128x128xf32>
    %33 = vector.extract_strided_slice %13 {offsets = [0, 0, 3, 0], sizes = [2, 8, 8, 128], strides = [1, 1, 1, 1]} : vector<2x12x12x128xf32> to vector<2x8x8x128xf32>
    %34 = vector.shape_cast %33 : vector<2x8x8x128xf32> to vector<128x128xf32>
    %c3 = arith.constant 3 : index
    %c0_20 = arith.constant 0 : index
    %c0_21 = arith.constant 0 : index
    %35 = vector.load %arg4[%c3, %c0_20, %c0_21] : memref<25x128x128xf32, #tpu.memory_space<vmem>>, vector<1x128x128xf32>
    %36 = vector.shape_cast %35 : vector<1x128x128xf32> to vector<128x128xf32>
    %cst_22 = arith.constant dense<0.000000e+00> : vector<128x128xf32>
    %37 = tpu.matmul %34, %36, %cst_22 {dimension_numbers = #tpu.dot_dimension_numbers<[1], [0], [0], [1], [0, 0, 1, 1], [], []>} : vector<128x128xf32>, vector<128x128xf32>, vector<128x128xf32> -> vector<128x128xf32>
    %38 = arith.addf %32, %37 : vector<128x128xf32>
    %39 = vector.extract_strided_slice %13 {offsets = [0, 0, 4, 0], sizes = [2, 8, 8, 128], strides = [1, 1, 1, 1]} : vector<2x12x12x128xf32> to vector<2x8x8x128xf32>
    %40 = vector.shape_cast %39 : vector<2x8x8x128xf32> to vector<128x128xf32>
    %c4 = arith.constant 4 : index
    %c0_23 = arith.constant 0 : index
    %c0_24 = arith.constant 0 : index
    %41 = vector.load %arg4[%c4, %c0_23, %c0_24] : memref<25x128x128xf32, #tpu.memory_space<vmem>>, vector<1x128x128xf32>
    %42 = vector.shape_cast %41 : vector<1x128x128xf32> to vector<128x128xf32>
    %cst_25 = arith.constant dense<0.000000e+00> : vector<128x128xf32>
    %43 = tpu.matmul %40, %42, %cst_25 {dimension_numbers = #tpu.dot_dimension_numbers<[1], [0], [0], [1], [0, 0, 1, 1], [], []>} : vector<128x128xf32>, vector<128x128xf32>, vector<128x128xf32> -> vector<128x128xf32>
    %44 = arith.addf %38, %43 : vector<128x128xf32>
    %45 = vector.extract_strided_slice %13 {offsets = [0, 1, 0, 0], sizes = [2, 8, 8, 128], strides = [1, 1, 1, 1]} : vector<2x12x12x128xf32> to vector<2x8x8x128xf32>
    %46 = vector.shape_cast %45 : vector<2x8x8x128xf32> to vector<128x128xf32>
    %c5 = arith.constant 5 : index
    %c0_26 = arith.constant 0 : index
    %c0_27 = arith.constant 0 : index
    %47 = vector.load %arg4[%c5, %c0_26, %c0_27] : memref<25x128x128xf32, #tpu.memory_space<vmem>>, vector<1x128x128xf32>
    %48 = vector.shape_cast %47 : vector<1x128x128xf32> to vector<128x128xf32>
    %cst_28 = arith.constant dense<0.000000e+00> : vector<128x128xf32>
    %49 = tpu.matmul %46, %48, %cst_28 {dimension_numbers = #tpu.dot_dimension_numbers<[1], [0], [0], [1], [0, 0, 1, 1], [], []>} : vector<128x128xf32>, vector<128x128xf32>, vector<128x128xf32> -> vector<128x128xf32>
    %50 = arith.addf %44, %49 : vector<128x128xf32>
    %51 = vector.extract_strided_slice %13 {offsets = [0, 1, 1, 0], sizes = [2, 8, 8, 128], strides = [1, 1, 1, 1]} : vector<2x12x12x128xf32> to vector<2x8x8x128xf32>
    %52 = vector.shape_cast %51 : vector<2x8x8x128xf32> to vector<128x128xf32>
    %c6 = arith.constant 6 : index
    %c0_29 = arith.constant 0 : index
    %c0_30 = arith.constant 0 : index
    %53 = vector.load %arg4[%c6, %c0_29, %c0_30] : memref<25x128x128xf32, #tpu.memory_space<vmem>>, vector<1x128x128xf32>
    %54 = vector.shape_cast %53 : vector<1x128x128xf32> to vector<128x128xf32>
    %cst_31 = arith.constant dense<0.000000e+00> : vector<128x128xf32>
    %55 = tpu.matmul %52, %54, %cst_31 {dimension_numbers = #tpu.dot_dimension_numbers<[1], [0], [0], [1], [0, 0, 1, 1], [], []>} : vector<128x128xf32>, vector<128x128xf32>, vector<128x128xf32> -> vector<128x128xf32>
    %56 = arith.addf %50, %55 : vector<128x128xf32>
    %57 = vector.extract_strided_slice %13 {offsets = [0, 1, 2, 0], sizes = [2, 8, 8, 128], strides = [1, 1, 1, 1]} : vector<2x12x12x128xf32> to vector<2x8x8x128xf32>
    %58 = vector.shape_cast %57 : vector<2x8x8x128xf32> to vector<128x128xf32>
    %c7 = arith.constant 7 : index
    %c0_32 = arith.constant 0 : index
    %c0_33 = arith.constant 0 : index
    %59 = vector.load %arg4[%c7, %c0_32, %c0_33] : memref<25x128x128xf32, #tpu.memory_space<vmem>>, vector<1x128x128xf32>
    %60 = vector.shape_cast %59 : vector<1x128x128xf32> to vector<128x128xf32>
    %cst_34 = arith.constant dense<0.000000e+00> : vector<128x128xf32>
    %61 = tpu.matmul %58, %60, %cst_34 {dimension_numbers = #tpu.dot_dimension_numbers<[1], [0], [0], [1], [0, 0, 1, 1], [], []>} : vector<128x128xf32>, vector<128x128xf32>, vector<128x128xf32> -> vector<128x128xf32>
    %62 = arith.addf %56, %61 : vector<128x128xf32>
    %63 = vector.extract_strided_slice %13 {offsets = [0, 1, 3, 0], sizes = [2, 8, 8, 128], strides = [1, 1, 1, 1]} : vector<2x12x12x128xf32> to vector<2x8x8x128xf32>
    %64 = vector.shape_cast %63 : vector<2x8x8x128xf32> to vector<128x128xf32>
    %c8 = arith.constant 8 : index
    %c0_35 = arith.constant 0 : index
    %c0_36 = arith.constant 0 : index
    %65 = vector.load %arg4[%c8, %c0_35, %c0_36] : memref<25x128x128xf32, #tpu.memory_space<vmem>>, vector<1x128x128xf32>
    %66 = vector.shape_cast %65 : vector<1x128x128xf32> to vector<128x128xf32>
    %cst_37 = arith.constant dense<0.000000e+00> : vector<128x128xf32>
    %67 = tpu.matmul %64, %66, %cst_37 {dimension_numbers = #tpu.dot_dimension_numbers<[1], [0], [0], [1], [0, 0, 1, 1], [], []>} : vector<128x128xf32>, vector<128x128xf32>, vector<128x128xf32> -> vector<128x128xf32>
    %68 = arith.addf %62, %67 : vector<128x128xf32>
    %69 = vector.extract_strided_slice %13 {offsets = [0, 1, 4, 0], sizes = [2, 8, 8, 128], strides = [1, 1, 1, 1]} : vector<2x12x12x128xf32> to vector<2x8x8x128xf32>
    %70 = vector.shape_cast %69 : vector<2x8x8x128xf32> to vector<128x128xf32>
    %c9 = arith.constant 9 : index
    %c0_38 = arith.constant 0 : index
    %c0_39 = arith.constant 0 : index
    %71 = vector.load %arg4[%c9, %c0_38, %c0_39] : memref<25x128x128xf32, #tpu.memory_space<vmem>>, vector<1x128x128xf32>
    %72 = vector.shape_cast %71 : vector<1x128x128xf32> to vector<128x128xf32>
    %cst_40 = arith.constant dense<0.000000e+00> : vector<128x128xf32>
    %73 = tpu.matmul %70, %72, %cst_40 {dimension_numbers = #tpu.dot_dimension_numbers<[1], [0], [0], [1], [0, 0, 1, 1], [], []>} : vector<128x128xf32>, vector<128x128xf32>, vector<128x128xf32> -> vector<128x128xf32>
    %74 = arith.addf %68, %73 : vector<128x128xf32>
    %75 = vector.extract_strided_slice %13 {offsets = [0, 2, 0, 0], sizes = [2, 8, 8, 128], strides = [1, 1, 1, 1]} : vector<2x12x12x128xf32> to vector<2x8x8x128xf32>
    %76 = vector.shape_cast %75 : vector<2x8x8x128xf32> to vector<128x128xf32>
    %c10 = arith.constant 10 : index
    %c0_41 = arith.constant 0 : index
    %c0_42 = arith.constant 0 : index
    %77 = vector.load %arg4[%c10, %c0_41, %c0_42] : memref<25x128x128xf32, #tpu.memory_space<vmem>>, vector<1x128x128xf32>
    %78 = vector.shape_cast %77 : vector<1x128x128xf32> to vector<128x128xf32>
    %cst_43 = arith.constant dense<0.000000e+00> : vector<128x128xf32>
    %79 = tpu.matmul %76, %78, %cst_43 {dimension_numbers = #tpu.dot_dimension_numbers<[1], [0], [0], [1], [0, 0, 1, 1], [], []>} : vector<128x128xf32>, vector<128x128xf32>, vector<128x128xf32> -> vector<128x128xf32>
    %80 = arith.addf %74, %79 : vector<128x128xf32>
    %81 = vector.extract_strided_slice %13 {offsets = [0, 2, 1, 0], sizes = [2, 8, 8, 128], strides = [1, 1, 1, 1]} : vector<2x12x12x128xf32> to vector<2x8x8x128xf32>
    %82 = vector.shape_cast %81 : vector<2x8x8x128xf32> to vector<128x128xf32>
    %c11 = arith.constant 11 : index
    %c0_44 = arith.constant 0 : index
    %c0_45 = arith.constant 0 : index
    %83 = vector.load %arg4[%c11, %c0_44, %c0_45] : memref<25x128x128xf32, #tpu.memory_space<vmem>>, vector<1x128x128xf32>
    %84 = vector.shape_cast %83 : vector<1x128x128xf32> to vector<128x128xf32>
    %cst_46 = arith.constant dense<0.000000e+00> : vector<128x128xf32>
    %85 = tpu.matmul %82, %84, %cst_46 {dimension_numbers = #tpu.dot_dimension_numbers<[1], [0], [0], [1], [0, 0, 1, 1], [], []>} : vector<128x128xf32>, vector<128x128xf32>, vector<128x128xf32> -> vector<128x128xf32>
    %86 = arith.addf %80, %85 : vector<128x128xf32>
    %87 = vector.extract_strided_slice %13 {offsets = [0, 2, 2, 0], sizes = [2, 8, 8, 128], strides = [1, 1, 1, 1]} : vector<2x12x12x128xf32> to vector<2x8x8x128xf32>
    %88 = vector.shape_cast %87 : vector<2x8x8x128xf32> to vector<128x128xf32>
    %c12 = arith.constant 12 : index
    %c0_47 = arith.constant 0 : index
    %c0_48 = arith.constant 0 : index
    %89 = vector.load %arg4[%c12, %c0_47, %c0_48] : memref<25x128x128xf32, #tpu.memory_space<vmem>>, vector<1x128x128xf32>
    %90 = vector.shape_cast %89 : vector<1x128x128xf32> to vector<128x128xf32>
    %cst_49 = arith.constant dense<0.000000e+00> : vector<128x128xf32>
    %91 = tpu.matmul %88, %90, %cst_49 {dimension_numbers = #tpu.dot_dimension_numbers<[1], [0], [0], [1], [0, 0, 1, 1], [], []>} : vector<128x128xf32>, vector<128x128xf32>, vector<128x128xf32> -> vector<128x128xf32>
    %92 = arith.addf %86, %91 : vector<128x128xf32>
    %93 = vector.extract_strided_slice %13 {offsets = [0, 2, 3, 0], sizes = [2, 8, 8, 128], strides = [1, 1, 1, 1]} : vector<2x12x12x128xf32> to vector<2x8x8x128xf32>
    %94 = vector.shape_cast %93 : vector<2x8x8x128xf32> to vector<128x128xf32>
    %c13 = arith.constant 13 : index
    %c0_50 = arith.constant 0 : index
    %c0_51 = arith.constant 0 : index
    %95 = vector.load %arg4[%c13, %c0_50, %c0_51] : memref<25x128x128xf32, #tpu.memory_space<vmem>>, vector<1x128x128xf32>
    %96 = vector.shape_cast %95 : vector<1x128x128xf32> to vector<128x128xf32>
    %cst_52 = arith.constant dense<0.000000e+00> : vector<128x128xf32>
    %97 = tpu.matmul %94, %96, %cst_52 {dimension_numbers = #tpu.dot_dimension_numbers<[1], [0], [0], [1], [0, 0, 1, 1], [], []>} : vector<128x128xf32>, vector<128x128xf32>, vector<128x128xf32> -> vector<128x128xf32>
    %98 = arith.addf %92, %97 : vector<128x128xf32>
    %99 = vector.extract_strided_slice %13 {offsets = [0, 2, 4, 0], sizes = [2, 8, 8, 128], strides = [1, 1, 1, 1]} : vector<2x12x12x128xf32> to vector<2x8x8x128xf32>
    %100 = vector.shape_cast %99 : vector<2x8x8x128xf32> to vector<128x128xf32>
    %c14 = arith.constant 14 : index
    %c0_53 = arith.constant 0 : index
    %c0_54 = arith.constant 0 : index
    %101 = vector.load %arg4[%c14, %c0_53, %c0_54] : memref<25x128x128xf32, #tpu.memory_space<vmem>>, vector<1x128x128xf32>
    %102 = vector.shape_cast %101 : vector<1x128x128xf32> to vector<128x128xf32>
    %cst_55 = arith.constant dense<0.000000e+00> : vector<128x128xf32>
    %103 = tpu.matmul %100, %102, %cst_55 {dimension_numbers = #tpu.dot_dimension_numbers<[1], [0], [0], [1], [0, 0, 1, 1], [], []>} : vector<128x128xf32>, vector<128x128xf32>, vector<128x128xf32> -> vector<128x128xf32>
    %104 = arith.addf %98, %103 : vector<128x128xf32>
    %105 = vector.extract_strided_slice %13 {offsets = [0, 3, 0, 0], sizes = [2, 8, 8, 128], strides = [1, 1, 1, 1]} : vector<2x12x12x128xf32> to vector<2x8x8x128xf32>
    %106 = vector.shape_cast %105 : vector<2x8x8x128xf32> to vector<128x128xf32>
    %c15 = arith.constant 15 : index
    %c0_56 = arith.constant 0 : index
    %c0_57 = arith.constant 0 : index
    %107 = vector.load %arg4[%c15, %c0_56, %c0_57] : memref<25x128x128xf32, #tpu.memory_space<vmem>>, vector<1x128x128xf32>
    %108 = vector.shape_cast %107 : vector<1x128x128xf32> to vector<128x128xf32>
    %cst_58 = arith.constant dense<0.000000e+00> : vector<128x128xf32>
    %109 = tpu.matmul %106, %108, %cst_58 {dimension_numbers = #tpu.dot_dimension_numbers<[1], [0], [0], [1], [0, 0, 1, 1], [], []>} : vector<128x128xf32>, vector<128x128xf32>, vector<128x128xf32> -> vector<128x128xf32>
    %110 = arith.addf %104, %109 : vector<128x128xf32>
    %111 = vector.extract_strided_slice %13 {offsets = [0, 3, 1, 0], sizes = [2, 8, 8, 128], strides = [1, 1, 1, 1]} : vector<2x12x12x128xf32> to vector<2x8x8x128xf32>
    %112 = vector.shape_cast %111 : vector<2x8x8x128xf32> to vector<128x128xf32>
    %c16 = arith.constant 16 : index
    %c0_59 = arith.constant 0 : index
    %c0_60 = arith.constant 0 : index
    %113 = vector.load %arg4[%c16, %c0_59, %c0_60] : memref<25x128x128xf32, #tpu.memory_space<vmem>>, vector<1x128x128xf32>
    %114 = vector.shape_cast %113 : vector<1x128x128xf32> to vector<128x128xf32>
    %cst_61 = arith.constant dense<0.000000e+00> : vector<128x128xf32>
    %115 = tpu.matmul %112, %114, %cst_61 {dimension_numbers = #tpu.dot_dimension_numbers<[1], [0], [0], [1], [0, 0, 1, 1], [], []>} : vector<128x128xf32>, vector<128x128xf32>, vector<128x128xf32> -> vector<128x128xf32>
    %116 = arith.addf %110, %115 : vector<128x128xf32>
    %117 = vector.extract_strided_slice %13 {offsets = [0, 3, 2, 0], sizes = [2, 8, 8, 128], strides = [1, 1, 1, 1]} : vector<2x12x12x128xf32> to vector<2x8x8x128xf32>
    %118 = vector.shape_cast %117 : vector<2x8x8x128xf32> to vector<128x128xf32>
    %c17 = arith.constant 17 : index
    %c0_62 = arith.constant 0 : index
    %c0_63 = arith.constant 0 : index
    %119 = vector.load %arg4[%c17, %c0_62, %c0_63] : memref<25x128x128xf32, #tpu.memory_space<vmem>>, vector<1x128x128xf32>
    %120 = vector.shape_cast %119 : vector<1x128x128xf32> to vector<128x128xf32>
    %cst_64 = arith.constant dense<0.000000e+00> : vector<128x128xf32>
    %121 = tpu.matmul %118, %120, %cst_64 {dimension_numbers = #tpu.dot_dimension_numbers<[1], [0], [0], [1], [0, 0, 1, 1], [], []>} : vector<128x128xf32>, vector<128x128xf32>, vector<128x128xf32> -> vector<128x128xf32>
    %122 = arith.addf %116, %121 : vector<128x128xf32>
    %123 = vector.extract_strided_slice %13 {offsets = [0, 3, 3, 0], sizes = [2, 8, 8, 128], strides = [1, 1, 1, 1]} : vector<2x12x12x128xf32> to vector<2x8x8x128xf32>
    %124 = vector.shape_cast %123 : vector<2x8x8x128xf32> to vector<128x128xf32>
    %c18 = arith.constant 18 : index
    %c0_65 = arith.constant 0 : index
    %c0_66 = arith.constant 0 : index
    %125 = vector.load %arg4[%c18, %c0_65, %c0_66] : memref<25x128x128xf32, #tpu.memory_space<vmem>>, vector<1x128x128xf32>
    %126 = vector.shape_cast %125 : vector<1x128x128xf32> to vector<128x128xf32>
    %cst_67 = arith.constant dense<0.000000e+00> : vector<128x128xf32>
    %127 = tpu.matmul %124, %126, %cst_67 {dimension_numbers = #tpu.dot_dimension_numbers<[1], [0], [0], [1], [0, 0, 1, 1], [], []>} : vector<128x128xf32>, vector<128x128xf32>, vector<128x128xf32> -> vector<128x128xf32>
    %128 = arith.addf %122, %127 : vector<128x128xf32>
    %129 = vector.extract_strided_slice %13 {offsets = [0, 3, 4, 0], sizes = [2, 8, 8, 128], strides = [1, 1, 1, 1]} : vector<2x12x12x128xf32> to vector<2x8x8x128xf32>
    %130 = vector.shape_cast %129 : vector<2x8x8x128xf32> to vector<128x128xf32>
    %c19 = arith.constant 19 : index
    %c0_68 = arith.constant 0 : index
    %c0_69 = arith.constant 0 : index
    %131 = vector.load %arg4[%c19, %c0_68, %c0_69] : memref<25x128x128xf32, #tpu.memory_space<vmem>>, vector<1x128x128xf32>
    %132 = vector.shape_cast %131 : vector<1x128x128xf32> to vector<128x128xf32>
    %cst_70 = arith.constant dense<0.000000e+00> : vector<128x128xf32>
    %133 = tpu.matmul %130, %132, %cst_70 {dimension_numbers = #tpu.dot_dimension_numbers<[1], [0], [0], [1], [0, 0, 1, 1], [], []>} : vector<128x128xf32>, vector<128x128xf32>, vector<128x128xf32> -> vector<128x128xf32>
    %134 = arith.addf %128, %133 : vector<128x128xf32>
    %135 = vector.extract_strided_slice %13 {offsets = [0, 4, 0, 0], sizes = [2, 8, 8, 128], strides = [1, 1, 1, 1]} : vector<2x12x12x128xf32> to vector<2x8x8x128xf32>
    %136 = vector.shape_cast %135 : vector<2x8x8x128xf32> to vector<128x128xf32>
    %c20 = arith.constant 20 : index
    %c0_71 = arith.constant 0 : index
    %c0_72 = arith.constant 0 : index
    %137 = vector.load %arg4[%c20, %c0_71, %c0_72] : memref<25x128x128xf32, #tpu.memory_space<vmem>>, vector<1x128x128xf32>
    %138 = vector.shape_cast %137 : vector<1x128x128xf32> to vector<128x128xf32>
    %cst_73 = arith.constant dense<0.000000e+00> : vector<128x128xf32>
    %139 = tpu.matmul %136, %138, %cst_73 {dimension_numbers = #tpu.dot_dimension_numbers<[1], [0], [0], [1], [0, 0, 1, 1], [], []>} : vector<128x128xf32>, vector<128x128xf32>, vector<128x128xf32> -> vector<128x128xf32>
    %140 = arith.addf %134, %139 : vector<128x128xf32>
    %141 = vector.extract_strided_slice %13 {offsets = [0, 4, 1, 0], sizes = [2, 8, 8, 128], strides = [1, 1, 1, 1]} : vector<2x12x12x128xf32> to vector<2x8x8x128xf32>
    %142 = vector.shape_cast %141 : vector<2x8x8x128xf32> to vector<128x128xf32>
    %c21 = arith.constant 21 : index
    %c0_74 = arith.constant 0 : index
    %c0_75 = arith.constant 0 : index
    %143 = vector.load %arg4[%c21, %c0_74, %c0_75] : memref<25x128x128xf32, #tpu.memory_space<vmem>>, vector<1x128x128xf32>
    %144 = vector.shape_cast %143 : vector<1x128x128xf32> to vector<128x128xf32>
    %cst_76 = arith.constant dense<0.000000e+00> : vector<128x128xf32>
    %145 = tpu.matmul %142, %144, %cst_76 {dimension_numbers = #tpu.dot_dimension_numbers<[1], [0], [0], [1], [0, 0, 1, 1], [], []>} : vector<128x128xf32>, vector<128x128xf32>, vector<128x128xf32> -> vector<128x128xf32>
    %146 = arith.addf %140, %145 : vector<128x128xf32>
    %147 = vector.extract_strided_slice %13 {offsets = [0, 4, 2, 0], sizes = [2, 8, 8, 128], strides = [1, 1, 1, 1]} : vector<2x12x12x128xf32> to vector<2x8x8x128xf32>
    %148 = vector.shape_cast %147 : vector<2x8x8x128xf32> to vector<128x128xf32>
    %c22 = arith.constant 22 : index
    %c0_77 = arith.constant 0 : index
    %c0_78 = arith.constant 0 : index
    %149 = vector.load %arg4[%c22, %c0_77, %c0_78] : memref<25x128x128xf32, #tpu.memory_space<vmem>>, vector<1x128x128xf32>
    %150 = vector.shape_cast %149 : vector<1x128x128xf32> to vector<128x128xf32>
    %cst_79 = arith.constant dense<0.000000e+00> : vector<128x128xf32>
    %151 = tpu.matmul %148, %150, %cst_79 {dimension_numbers = #tpu.dot_dimension_numbers<[1], [0], [0], [1], [0, 0, 1, 1], [], []>} : vector<128x128xf32>, vector<128x128xf32>, vector<128x128xf32> -> vector<128x128xf32>
    %152 = arith.addf %146, %151 : vector<128x128xf32>
    %153 = vector.extract_strided_slice %13 {offsets = [0, 4, 3, 0], sizes = [2, 8, 8, 128], strides = [1, 1, 1, 1]} : vector<2x12x12x128xf32> to vector<2x8x8x128xf32>
    %154 = vector.shape_cast %153 : vector<2x8x8x128xf32> to vector<128x128xf32>
    %c23 = arith.constant 23 : index
    %c0_80 = arith.constant 0 : index
    %c0_81 = arith.constant 0 : index
    %155 = vector.load %arg4[%c23, %c0_80, %c0_81] : memref<25x128x128xf32, #tpu.memory_space<vmem>>, vector<1x128x128xf32>
    %156 = vector.shape_cast %155 : vector<1x128x128xf32> to vector<128x128xf32>
    %cst_82 = arith.constant dense<0.000000e+00> : vector<128x128xf32>
    %157 = tpu.matmul %154, %156, %cst_82 {dimension_numbers = #tpu.dot_dimension_numbers<[1], [0], [0], [1], [0, 0, 1, 1], [], []>} : vector<128x128xf32>, vector<128x128xf32>, vector<128x128xf32> -> vector<128x128xf32>
    %158 = arith.addf %152, %157 : vector<128x128xf32>
    %159 = vector.extract_strided_slice %13 {offsets = [0, 4, 4, 0], sizes = [2, 8, 8, 128], strides = [1, 1, 1, 1]} : vector<2x12x12x128xf32> to vector<2x8x8x128xf32>
    %160 = vector.shape_cast %159 : vector<2x8x8x128xf32> to vector<128x128xf32>
    %c24 = arith.constant 24 : index
    %c0_83 = arith.constant 0 : index
    %c0_84 = arith.constant 0 : index
    %161 = vector.load %arg4[%c24, %c0_83, %c0_84] : memref<25x128x128xf32, #tpu.memory_space<vmem>>, vector<1x128x128xf32>
    %162 = vector.shape_cast %161 : vector<1x128x128xf32> to vector<128x128xf32>
    %cst_85 = arith.constant dense<0.000000e+00> : vector<128x128xf32>
    %163 = tpu.matmul %160, %162, %cst_85 {dimension_numbers = #tpu.dot_dimension_numbers<[1], [0], [0], [1], [0, 0, 1, 1], [], []>} : vector<128x128xf32>, vector<128x128xf32>, vector<128x128xf32> -> vector<128x128xf32>
    %164 = arith.addf %158, %163 : vector<128x128xf32>
    %c0_86 = arith.constant 0 : index
    %c0_87 = arith.constant 0 : index
    %165 = vector.load %arg5[%c0_86, %c0_87] : memref<1x128xf32, #tpu.memory_space<vmem>>, vector<1x128xf32>
    %166 = vector.broadcast %165 : vector<1x128xf32> to vector<128x128xf32>
    %167 = arith.addf %164, %166 : vector<128x128xf32>
    %cst_88 = arith.constant 0.000000e+00 : f32
    %168 = vector.broadcast %cst_88 : f32 to vector<128x128xf32>
    %169 = arith.maximumf %167, %168 : vector<128x128xf32>
    %170 = vector.shape_cast %169 : vector<128x128xf32> to vector<64x2x128xf32>
    %cst_89 = arith.constant dense<0xFF800000> : vector<64x128xf32>
    %171 = vector.multi_reduction <maximumf>, %170, %cst_89 [1] : vector<64x2x128xf32> to vector<64x128xf32>
    %172 = vector.shape_cast %171 : vector<64x128xf32> to vector<8x2x4x128xf32>
    %cst_90 = arith.constant dense<0xFF800000> : vector<8x4x128xf32>
    %173 = vector.multi_reduction <maximumf>, %172, %cst_90 [1] : vector<8x2x4x128xf32> to vector<8x4x128xf32>
    %174 = vector.shape_cast %173 : vector<8x4x128xf32> to vector<2x4x4x128xf32>
    %cst_91 = arith.constant 0.000000e+00 : f32
    %175 = vector.broadcast %cst_91 : f32 to vector<2x128xf32>
    %176 = vector.extract_strided_slice %174 {offsets = [0, 0, 0, 0], sizes = [2, 1, 1, 128], strides = [1, 1, 1, 1]} : vector<2x4x4x128xf32> to vector<2x1x1x128xf32>
    %177 = vector.shape_cast %176 : vector<2x1x1x128xf32> to vector<2x128xf32>
    %c0_92 = arith.constant 0 : index
    %c0_93 = arith.constant 0 : index
    %c0_94 = arith.constant 0 : index
    %178 = vector.load %arg6[%c0_92, %c0_93, %c0_94] : memref<16x128x128xf32, #tpu.memory_space<vmem>>, vector<1x128x128xf32>
    %179 = vector.shape_cast %178 : vector<1x128x128xf32> to vector<128x128xf32>
    %cst_95 = arith.constant dense<0.000000e+00> : vector<2x128xf32>
    %180 = tpu.matmul %177, %179, %cst_95 {dimension_numbers = #tpu.dot_dimension_numbers<[1], [0], [0], [1], [0, 0, 1, 1], [], []>} : vector<2x128xf32>, vector<128x128xf32>, vector<2x128xf32> -> vector<2x128xf32>
    %181 = arith.addf %175, %180 : vector<2x128xf32>
    %182 = vector.extract_strided_slice %174 {offsets = [0, 0, 1, 0], sizes = [2, 1, 1, 128], strides = [1, 1, 1, 1]} : vector<2x4x4x128xf32> to vector<2x1x1x128xf32>
    %183 = vector.shape_cast %182 : vector<2x1x1x128xf32> to vector<2x128xf32>
    %c1_96 = arith.constant 1 : index
    %c0_97 = arith.constant 0 : index
    %c0_98 = arith.constant 0 : index
    %184 = vector.load %arg6[%c1_96, %c0_97, %c0_98] : memref<16x128x128xf32, #tpu.memory_space<vmem>>, vector<1x128x128xf32>
    %185 = vector.shape_cast %184 : vector<1x128x128xf32> to vector<128x128xf32>
    %cst_99 = arith.constant dense<0.000000e+00> : vector<2x128xf32>
    %186 = tpu.matmul %183, %185, %cst_99 {dimension_numbers = #tpu.dot_dimension_numbers<[1], [0], [0], [1], [0, 0, 1, 1], [], []>} : vector<2x128xf32>, vector<128x128xf32>, vector<2x128xf32> -> vector<2x128xf32>
    %187 = arith.addf %181, %186 : vector<2x128xf32>
    %188 = vector.extract_strided_slice %174 {offsets = [0, 0, 2, 0], sizes = [2, 1, 1, 128], strides = [1, 1, 1, 1]} : vector<2x4x4x128xf32> to vector<2x1x1x128xf32>
    %189 = vector.shape_cast %188 : vector<2x1x1x128xf32> to vector<2x128xf32>
    %c2_100 = arith.constant 2 : index
    %c0_101 = arith.constant 0 : index
    %c0_102 = arith.constant 0 : index
    %190 = vector.load %arg6[%c2_100, %c0_101, %c0_102] : memref<16x128x128xf32, #tpu.memory_space<vmem>>, vector<1x128x128xf32>
    %191 = vector.shape_cast %190 : vector<1x128x128xf32> to vector<128x128xf32>
    %cst_103 = arith.constant dense<0.000000e+00> : vector<2x128xf32>
    %192 = tpu.matmul %189, %191, %cst_103 {dimension_numbers = #tpu.dot_dimension_numbers<[1], [0], [0], [1], [0, 0, 1, 1], [], []>} : vector<2x128xf32>, vector<128x128xf32>, vector<2x128xf32> -> vector<2x128xf32>
    %193 = arith.addf %187, %192 : vector<2x128xf32>
    %194 = vector.extract_strided_slice %174 {offsets = [0, 0, 3, 0], sizes = [2, 1, 1, 128], strides = [1, 1, 1, 1]} : vector<2x4x4x128xf32> to vector<2x1x1x128xf32>
    %195 = vector.shape_cast %194 : vector<2x1x1x128xf32> to vector<2x128xf32>
    %c3_104 = arith.constant 3 : index
    %c0_105 = arith.constant 0 : index
    %c0_106 = arith.constant 0 : index
    %196 = vector.load %arg6[%c3_104, %c0_105, %c0_106] : memref<16x128x128xf32, #tpu.memory_space<vmem>>, vector<1x128x128xf32>
    %197 = vector.shape_cast %196 : vector<1x128x128xf32> to vector<128x128xf32>
    %cst_107 = arith.constant dense<0.000000e+00> : vector<2x128xf32>
    %198 = tpu.matmul %195, %197, %cst_107 {dimension_numbers = #tpu.dot_dimension_numbers<[1], [0], [0], [1], [0, 0, 1, 1], [], []>} : vector<2x128xf32>, vector<128x128xf32>, vector<2x128xf32> -> vector<2x128xf32>
    %199 = arith.addf %193, %198 : vector<2x128xf32>
    %200 = vector.extract_strided_slice %174 {offsets = [0, 1, 0, 0], sizes = [2, 1, 1, 128], strides = [1, 1, 1, 1]} : vector<2x4x4x128xf32> to vector<2x1x1x128xf32>
    %201 = vector.shape_cast %200 : vector<2x1x1x128xf32> to vector<2x128xf32>
    %c4_108 = arith.constant 4 : index
    %c0_109 = arith.constant 0 : index
    %c0_110 = arith.constant 0 : index
    %202 = vector.load %arg6[%c4_108, %c0_109, %c0_110] : memref<16x128x128xf32, #tpu.memory_space<vmem>>, vector<1x128x128xf32>
    %203 = vector.shape_cast %202 : vector<1x128x128xf32> to vector<128x128xf32>
    %cst_111 = arith.constant dense<0.000000e+00> : vector<2x128xf32>
    %204 = tpu.matmul %201, %203, %cst_111 {dimension_numbers = #tpu.dot_dimension_numbers<[1], [0], [0], [1], [0, 0, 1, 1], [], []>} : vector<2x128xf32>, vector<128x128xf32>, vector<2x128xf32> -> vector<2x128xf32>
    %205 = arith.addf %199, %204 : vector<2x128xf32>
    %206 = vector.extract_strided_slice %174 {offsets = [0, 1, 1, 0], sizes = [2, 1, 1, 128], strides = [1, 1, 1, 1]} : vector<2x4x4x128xf32> to vector<2x1x1x128xf32>
    %207 = vector.shape_cast %206 : vector<2x1x1x128xf32> to vector<2x128xf32>
    %c5_112 = arith.constant 5 : index
    %c0_113 = arith.constant 0 : index
    %c0_114 = arith.constant 0 : index
    %208 = vector.load %arg6[%c5_112, %c0_113, %c0_114] : memref<16x128x128xf32, #tpu.memory_space<vmem>>, vector<1x128x128xf32>
    %209 = vector.shape_cast %208 : vector<1x128x128xf32> to vector<128x128xf32>
    %cst_115 = arith.constant dense<0.000000e+00> : vector<2x128xf32>
    %210 = tpu.matmul %207, %209, %cst_115 {dimension_numbers = #tpu.dot_dimension_numbers<[1], [0], [0], [1], [0, 0, 1, 1], [], []>} : vector<2x128xf32>, vector<128x128xf32>, vector<2x128xf32> -> vector<2x128xf32>
    %211 = arith.addf %205, %210 : vector<2x128xf32>
    %212 = vector.extract_strided_slice %174 {offsets = [0, 1, 2, 0], sizes = [2, 1, 1, 128], strides = [1, 1, 1, 1]} : vector<2x4x4x128xf32> to vector<2x1x1x128xf32>
    %213 = vector.shape_cast %212 : vector<2x1x1x128xf32> to vector<2x128xf32>
    %c6_116 = arith.constant 6 : index
    %c0_117 = arith.constant 0 : index
    %c0_118 = arith.constant 0 : index
    %214 = vector.load %arg6[%c6_116, %c0_117, %c0_118] : memref<16x128x128xf32, #tpu.memory_space<vmem>>, vector<1x128x128xf32>
    %215 = vector.shape_cast %214 : vector<1x128x128xf32> to vector<128x128xf32>
    %cst_119 = arith.constant dense<0.000000e+00> : vector<2x128xf32>
    %216 = tpu.matmul %213, %215, %cst_119 {dimension_numbers = #tpu.dot_dimension_numbers<[1], [0], [0], [1], [0, 0, 1, 1], [], []>} : vector<2x128xf32>, vector<128x128xf32>, vector<2x128xf32> -> vector<2x128xf32>
    %217 = arith.addf %211, %216 : vector<2x128xf32>
    %218 = vector.extract_strided_slice %174 {offsets = [0, 1, 3, 0], sizes = [2, 1, 1, 128], strides = [1, 1, 1, 1]} : vector<2x4x4x128xf32> to vector<2x1x1x128xf32>
    %219 = vector.shape_cast %218 : vector<2x1x1x128xf32> to vector<2x128xf32>
    %c7_120 = arith.constant 7 : index
    %c0_121 = arith.constant 0 : index
    %c0_122 = arith.constant 0 : index
    %220 = vector.load %arg6[%c7_120, %c0_121, %c0_122] : memref<16x128x128xf32, #tpu.memory_space<vmem>>, vector<1x128x128xf32>
    %221 = vector.shape_cast %220 : vector<1x128x128xf32> to vector<128x128xf32>
    %cst_123 = arith.constant dense<0.000000e+00> : vector<2x128xf32>
    %222 = tpu.matmul %219, %221, %cst_123 {dimension_numbers = #tpu.dot_dimension_numbers<[1], [0], [0], [1], [0, 0, 1, 1], [], []>} : vector<2x128xf32>, vector<128x128xf32>, vector<2x128xf32> -> vector<2x128xf32>
    %223 = arith.addf %217, %222 : vector<2x128xf32>
    %224 = vector.extract_strided_slice %174 {offsets = [0, 2, 0, 0], sizes = [2, 1, 1, 128], strides = [1, 1, 1, 1]} : vector<2x4x4x128xf32> to vector<2x1x1x128xf32>
    %225 = vector.shape_cast %224 : vector<2x1x1x128xf32> to vector<2x128xf32>
    %c8_124 = arith.constant 8 : index
    %c0_125 = arith.constant 0 : index
    %c0_126 = arith.constant 0 : index
    %226 = vector.load %arg6[%c8_124, %c0_125, %c0_126] : memref<16x128x128xf32, #tpu.memory_space<vmem>>, vector<1x128x128xf32>
    %227 = vector.shape_cast %226 : vector<1x128x128xf32> to vector<128x128xf32>
    %cst_127 = arith.constant dense<0.000000e+00> : vector<2x128xf32>
    %228 = tpu.matmul %225, %227, %cst_127 {dimension_numbers = #tpu.dot_dimension_numbers<[1], [0], [0], [1], [0, 0, 1, 1], [], []>} : vector<2x128xf32>, vector<128x128xf32>, vector<2x128xf32> -> vector<2x128xf32>
    %229 = arith.addf %223, %228 : vector<2x128xf32>
    %230 = vector.extract_strided_slice %174 {offsets = [0, 2, 1, 0], sizes = [2, 1, 1, 128], strides = [1, 1, 1, 1]} : vector<2x4x4x128xf32> to vector<2x1x1x128xf32>
    %231 = vector.shape_cast %230 : vector<2x1x1x128xf32> to vector<2x128xf32>
    %c9_128 = arith.constant 9 : index
    %c0_129 = arith.constant 0 : index
    %c0_130 = arith.constant 0 : index
    %232 = vector.load %arg6[%c9_128, %c0_129, %c0_130] : memref<16x128x128xf32, #tpu.memory_space<vmem>>, vector<1x128x128xf32>
    %233 = vector.shape_cast %232 : vector<1x128x128xf32> to vector<128x128xf32>
    %cst_131 = arith.constant dense<0.000000e+00> : vector<2x128xf32>
    %234 = tpu.matmul %231, %233, %cst_131 {dimension_numbers = #tpu.dot_dimension_numbers<[1], [0], [0], [1], [0, 0, 1, 1], [], []>} : vector<2x128xf32>, vector<128x128xf32>, vector<2x128xf32> -> vector<2x128xf32>
    %235 = arith.addf %229, %234 : vector<2x128xf32>
    %236 = vector.extract_strided_slice %174 {offsets = [0, 2, 2, 0], sizes = [2, 1, 1, 128], strides = [1, 1, 1, 1]} : vector<2x4x4x128xf32> to vector<2x1x1x128xf32>
    %237 = vector.shape_cast %236 : vector<2x1x1x128xf32> to vector<2x128xf32>
    %c10_132 = arith.constant 10 : index
    %c0_133 = arith.constant 0 : index
    %c0_134 = arith.constant 0 : index
    %238 = vector.load %arg6[%c10_132, %c0_133, %c0_134] : memref<16x128x128xf32, #tpu.memory_space<vmem>>, vector<1x128x128xf32>
    %239 = vector.shape_cast %238 : vector<1x128x128xf32> to vector<128x128xf32>
    %cst_135 = arith.constant dense<0.000000e+00> : vector<2x128xf32>
    %240 = tpu.matmul %237, %239, %cst_135 {dimension_numbers = #tpu.dot_dimension_numbers<[1], [0], [0], [1], [0, 0, 1, 1], [], []>} : vector<2x128xf32>, vector<128x128xf32>, vector<2x128xf32> -> vector<2x128xf32>
    %241 = arith.addf %235, %240 : vector<2x128xf32>
    %242 = vector.extract_strided_slice %174 {offsets = [0, 2, 3, 0], sizes = [2, 1, 1, 128], strides = [1, 1, 1, 1]} : vector<2x4x4x128xf32> to vector<2x1x1x128xf32>
    %243 = vector.shape_cast %242 : vector<2x1x1x128xf32> to vector<2x128xf32>
    %c11_136 = arith.constant 11 : index
    %c0_137 = arith.constant 0 : index
    %c0_138 = arith.constant 0 : index
    %244 = vector.load %arg6[%c11_136, %c0_137, %c0_138] : memref<16x128x128xf32, #tpu.memory_space<vmem>>, vector<1x128x128xf32>
    %245 = vector.shape_cast %244 : vector<1x128x128xf32> to vector<128x128xf32>
    %cst_139 = arith.constant dense<0.000000e+00> : vector<2x128xf32>
    %246 = tpu.matmul %243, %245, %cst_139 {dimension_numbers = #tpu.dot_dimension_numbers<[1], [0], [0], [1], [0, 0, 1, 1], [], []>} : vector<2x128xf32>, vector<128x128xf32>, vector<2x128xf32> -> vector<2x128xf32>
    %247 = arith.addf %241, %246 : vector<2x128xf32>
    %248 = vector.extract_strided_slice %174 {offsets = [0, 3, 0, 0], sizes = [2, 1, 1, 128], strides = [1, 1, 1, 1]} : vector<2x4x4x128xf32> to vector<2x1x1x128xf32>
    %249 = vector.shape_cast %248 : vector<2x1x1x128xf32> to vector<2x128xf32>
    %c12_140 = arith.constant 12 : index
    %c0_141 = arith.constant 0 : index
    %c0_142 = arith.constant 0 : index
    %250 = vector.load %arg6[%c12_140, %c0_141, %c0_142] : memref<16x128x128xf32, #tpu.memory_space<vmem>>, vector<1x128x128xf32>
    %251 = vector.shape_cast %250 : vector<1x128x128xf32> to vector<128x128xf32>
    %cst_143 = arith.constant dense<0.000000e+00> : vector<2x128xf32>
    %252 = tpu.matmul %249, %251, %cst_143 {dimension_numbers = #tpu.dot_dimension_numbers<[1], [0], [0], [1], [0, 0, 1, 1], [], []>} : vector<2x128xf32>, vector<128x128xf32>, vector<2x128xf32> -> vector<2x128xf32>
    %253 = arith.addf %247, %252 : vector<2x128xf32>
    %254 = vector.extract_strided_slice %174 {offsets = [0, 3, 1, 0], sizes = [2, 1, 1, 128], strides = [1, 1, 1, 1]} : vector<2x4x4x128xf32> to vector<2x1x1x128xf32>
    %255 = vector.shape_cast %254 : vector<2x1x1x128xf32> to vector<2x128xf32>
    %c13_144 = arith.constant 13 : index
    %c0_145 = arith.constant 0 : index
    %c0_146 = arith.constant 0 : index
    %256 = vector.load %arg6[%c13_144, %c0_145, %c0_146] : memref<16x128x128xf32, #tpu.memory_space<vmem>>, vector<1x128x128xf32>
    %257 = vector.shape_cast %256 : vector<1x128x128xf32> to vector<128x128xf32>
    %cst_147 = arith.constant dense<0.000000e+00> : vector<2x128xf32>
    %258 = tpu.matmul %255, %257, %cst_147 {dimension_numbers = #tpu.dot_dimension_numbers<[1], [0], [0], [1], [0, 0, 1, 1], [], []>} : vector<2x128xf32>, vector<128x128xf32>, vector<2x128xf32> -> vector<2x128xf32>
    %259 = arith.addf %253, %258 : vector<2x128xf32>
    %260 = vector.extract_strided_slice %174 {offsets = [0, 3, 2, 0], sizes = [2, 1, 1, 128], strides = [1, 1, 1, 1]} : vector<2x4x4x128xf32> to vector<2x1x1x128xf32>
    %261 = vector.shape_cast %260 : vector<2x1x1x128xf32> to vector<2x128xf32>
    %c14_148 = arith.constant 14 : index
    %c0_149 = arith.constant 0 : index
    %c0_150 = arith.constant 0 : index
    %262 = vector.load %arg6[%c14_148, %c0_149, %c0_150] : memref<16x128x128xf32, #tpu.memory_space<vmem>>, vector<1x128x128xf32>
    %263 = vector.shape_cast %262 : vector<1x128x128xf32> to vector<128x128xf32>
    %cst_151 = arith.constant dense<0.000000e+00> : vector<2x128xf32>
    %264 = tpu.matmul %261, %263, %cst_151 {dimension_numbers = #tpu.dot_dimension_numbers<[1], [0], [0], [1], [0, 0, 1, 1], [], []>} : vector<2x128xf32>, vector<128x128xf32>, vector<2x128xf32> -> vector<2x128xf32>
    %265 = arith.addf %259, %264 : vector<2x128xf32>
    %266 = vector.extract_strided_slice %174 {offsets = [0, 3, 3, 0], sizes = [2, 1, 1, 128], strides = [1, 1, 1, 1]} : vector<2x4x4x128xf32> to vector<2x1x1x128xf32>
    %267 = vector.shape_cast %266 : vector<2x1x1x128xf32> to vector<2x128xf32>
    %c15_152 = arith.constant 15 : index
    %c0_153 = arith.constant 0 : index
    %c0_154 = arith.constant 0 : index
    %268 = vector.load %arg6[%c15_152, %c0_153, %c0_154] : memref<16x128x128xf32, #tpu.memory_space<vmem>>, vector<1x128x128xf32>
    %269 = vector.shape_cast %268 : vector<1x128x128xf32> to vector<128x128xf32>
    %cst_155 = arith.constant dense<0.000000e+00> : vector<2x128xf32>
    %270 = tpu.matmul %267, %269, %cst_155 {dimension_numbers = #tpu.dot_dimension_numbers<[1], [0], [0], [1], [0, 0, 1, 1], [], []>} : vector<2x128xf32>, vector<128x128xf32>, vector<2x128xf32> -> vector<2x128xf32>
    %271 = arith.addf %265, %270 : vector<2x128xf32>
    %c0_156 = arith.constant 0 : index
    %c0_157 = arith.constant 0 : index
    %272 = vector.load %arg7[%c0_156, %c0_157] : memref<1x128xf32, #tpu.memory_space<vmem>>, vector<1x128xf32>
    %273 = vector.broadcast %272 : vector<1x128xf32> to vector<2x128xf32>
    %274 = arith.addf %271, %273 : vector<2x128xf32>
    %cst_158 = arith.constant 0.000000e+00 : f32
    %275 = vector.broadcast %cst_158 : f32 to vector<2x128xf32>
    %276 = arith.maximumf %274, %275 : vector<2x128xf32>
    %c0_159 = arith.constant 0 : index
    %c0_160 = arith.constant 0 : index
    %277 = vector.load %arg8[%c0_159, %c0_160] : memref<128x128xf32, #tpu.memory_space<vmem>>, vector<128x128xf32>
    %cst_161 = arith.constant dense<0.000000e+00> : vector<2x128xf32>
    %278 = tpu.matmul %276, %277, %cst_161 {dimension_numbers = #tpu.dot_dimension_numbers<[1], [0], [0], [1], [0, 0, 1, 1], [], []>} : vector<2x128xf32>, vector<128x128xf32>, vector<2x128xf32> -> vector<2x128xf32>
    %c0_162 = arith.constant 0 : index
    %c0_163 = arith.constant 0 : index
    %279 = vector.load %arg9[%c0_162, %c0_163] : memref<1x128xf32, #tpu.memory_space<vmem>>, vector<1x128xf32>
    %280 = vector.broadcast %279 : vector<1x128xf32> to vector<2x128xf32>
    %281 = arith.addf %278, %280 : vector<2x128xf32>
    %cst_164 = arith.constant 0.000000e+00 : f32
    %282 = vector.broadcast %cst_164 : f32 to vector<2x128xf32>
    %283 = arith.maximumf %281, %282 : vector<2x128xf32>
    %c0_165 = arith.constant 0 : index
    %c0_166 = arith.constant 0 : index
    %284 = vector.load %arg10[%c0_165, %c0_166] : memref<128x128xf32, #tpu.memory_space<vmem>>, vector<128x128xf32>
    %cst_167 = arith.constant dense<0.000000e+00> : vector<2x128xf32>
    %285 = tpu.matmul %283, %284, %cst_167 {dimension_numbers = #tpu.dot_dimension_numbers<[1], [0], [0], [1], [0, 0, 1, 1], [], []>} : vector<2x128xf32>, vector<128x128xf32>, vector<2x128xf32> -> vector<2x128xf32>
    %c0_168 = arith.constant 0 : index
    %c0_169 = arith.constant 0 : index
    %286 = vector.load %arg11[%c0_168, %c0_169] : memref<1x128xf32, #tpu.memory_space<vmem>>, vector<1x128xf32>
    %287 = vector.broadcast %286 : vector<1x128xf32> to vector<2x128xf32>
    %288 = arith.addf %285, %287 : vector<2x128xf32>
    %c0_170 = arith.constant 0 : index
    %c0_171 = arith.constant 0 : index
    %289 = vector.load %arg12[%c0_170, %c0_171] : memref<2x128xf32, #tpu.memory_space<vmem>>, vector<2x128xf32>
    tpu.vector_store %arg12[%c0_170, %c0_171], %288 {strides = array<i32>} : memref<2x128xf32, #tpu.memory_space<vmem>>, vector<2x128xf32>,
    return
  }
  func.func @transform_0(%arg0: i32) -> (i32, i32, i32) {
    %c0_i32 = arith.constant 0 : i32
    %c0_i32_0 = arith.constant 0 : i32
    %c0_i32_1 = arith.constant 0 : i32
    return %arg0, %c0_i32, %c0_i32_0 : i32, i32, i32
  }
  func.func @transform_1(%arg0: i32) -> (i32, i32) {
    %c0_i32 = arith.constant 0 : i32
    %c0_i32_0 = arith.constant 0 : i32
    %c0_i32_1 = arith.constant 0 : i32
    return %c0_i32, %c0_i32_0 : i32, i32
  }
  func.func @transform_2(%arg0: i32) -> (i32, i32) {
    %c0_i32 = arith.constant 0 : i32
    %c0_i32_0 = arith.constant 0 : i32
    %c0_i32_1 = arith.constant 0 : i32
    return %c0_i32, %c0_i32_0 : i32, i32
  }
  func.func @transform_3(%arg0: i32) -> (i32, i32, i32) {
    %c0_i32 = arith.constant 0 : i32
    %c0_i32_0 = arith.constant 0 : i32
    %c0_i32_1 = arith.constant 0 : i32
    %c0_i32_2 = arith.constant 0 : i32
    return %c0_i32, %c0_i32_0, %c0_i32_1 : i32, i32, i32
  }
  func.func @transform_4(%arg0: i32) -> (i32, i32) {
    %c0_i32 = arith.constant 0 : i32
    %c0_i32_0 = arith.constant 0 : i32
    %c0_i32_1 = arith.constant 0 : i32
    return %c0_i32, %c0_i32_0 : i32, i32
  }
  func.func @transform_5(%arg0: i32) -> (i32, i32, i32) {
    %c0_i32 = arith.constant 0 : i32
    %c0_i32_0 = arith.constant 0 : i32
    %c0_i32_1 = arith.constant 0 : i32
    %c0_i32_2 = arith.constant 0 : i32
    return %c0_i32, %c0_i32_0, %c0_i32_1 : i32, i32, i32
  }
  func.func @transform_6(%arg0: i32) -> (i32, i32) {
    %c0_i32 = arith.constant 0 : i32
    %c0_i32_0 = arith.constant 0 : i32
    %c0_i32_1 = arith.constant 0 : i32
    return %c0_i32, %c0_i32_0 : i32, i32
  }
  func.func @transform_7(%arg0: i32) -> (i32, i32) {
    %c0_i32 = arith.constant 0 : i32
    %c0_i32_0 = arith.constant 0 : i32
    %c0_i32_1 = arith.constant 0 : i32
    return %c0_i32, %c0_i32_0 : i32, i32
  }
  func.func @transform_8(%arg0: i32) -> (i32, i32) {
    %c0_i32 = arith.constant 0 : i32
    %c0_i32_0 = arith.constant 0 : i32
    %c0_i32_1 = arith.constant 0 : i32
    return %c0_i32, %c0_i32_0 : i32, i32
  }
  func.func @transform_9(%arg0: i32) -> (i32, i32) {
    %c0_i32 = arith.constant 0 : i32
    %c0_i32_0 = arith.constant 0 : i32
    %c0_i32_1 = arith.constant 0 : i32
    return %c0_i32, %c0_i32_0 : i32, i32
  }
  func.func @transform_10(%arg0: i32) -> (i32, i32) {
    %c0_i32 = arith.constant 0 : i32
    %c0_i32_0 = arith.constant 0 : i32
    %c0_i32_1 = arith.constant 0 : i32
    return %c0_i32, %c0_i32_0 : i32, i32
  }
  func.func @transform_11(%arg0: i32) -> (i32, i32) {
    %c0_i32 = arith.constant 0 : i32
    %c0_i32_0 = arith.constant 0 : i32
    return %arg0, %c0_i32 : i32, i32
  }
}

</mosaic_0001>

<llo_original>
// kernel: simple_cnn_forward.1
$region0: #{simple_cnn_forward.1}
  #allocation0 [shape = 'u32[]', space=smem, size = 0x4, offset = 0x4, fixed_abs, tag = 'smem constant byte address 0x4 - core index']
  #allocation1 [shape = 'u32[72,128]{1,0:T(1,128)}', space=vmem, size = 0x9000, scoped, tag = 'internal scratch']
  %s0 = inlined_call_operand.vmem [shape: f32[2,576,128], index: 0, kind: input, shape index: {}]
  %s1 = inlined_call_operand.vmem [shape: f32[128,128], index: 1, kind: input, shape index: {}]
  %s2 = inlined_call_operand.vmem [shape: f32[1,128], index: 2, kind: input, shape index: {}]
  %s3 = inlined_call_operand.vmem [shape: f32[25,128,128], index: 3, kind: input, shape index: {}]
  %s4 = inlined_call_operand.vmem [shape: f32[1,128], index: 4, kind: input, shape index: {}]
  %s5 = inlined_call_operand.vmem [shape: f32[16,128,128], index: 5, kind: input, shape index: {}]
  %s6 = inlined_call_operand.vmem [shape: f32[1,128], index: 6, kind: input, shape index: {}]
  %s7 = inlined_call_operand.vmem [shape: f32[128,128], index: 7, kind: input, shape index: {}]
  %s8 = inlined_call_operand.vmem [shape: f32[1,128], index: 8, kind: input, shape index: {}]
  %s9 = inlined_call_operand.vmem [shape: f32[128,128], index: 9, kind: input, shape index: {}]
  %s10 = inlined_call_operand.vmem [shape: f32[1,128], index: 10, kind: input, shape index: {}]
  %s11 = inlined_call_operand.hbm [shape: f32[2,128], index: 11, kind: output, shape index: {}]
  %s12 = sld [smem:[#allocation0]]
  $region54: #{simple_cnn_forward.1} parent=0
    _
  %s14 = ssub.s32 1, %s12
  %s15 = scalar_select 0, %s14, %s12
  $region1: #{simple_cnn_forward.1} parent=0
    #allocation2 [shape = 'u8[1024]{0}', space=vmem, size = 0x400, scoped, tag = 'output window, operand 0, single buffered']
    #allocation3 [shape = 's32[1]{0}', space=sflag, size = 0x4, scoped, tag = 'scoped memory for simple_cnn_forward.1']
    %16 = vsyncpa [#allocation3], 0
    // Predicated region
    $region2: #{simple_cnn_forward.1} parent=1 // pred_check
      _
    $region3: #{simple_cnn_forward.1} parent=1 // pred_check_branch
      %18 = sbr.rel (0) target = $region5
    $region4: #{simple_cnn_forward.1} parent=1 // pred_region
      _
    $region5: #{simple_cnn_forward.1} parent=1 // pred_fallthru
      _
    // Predicated region
    $region6: #{simple_cnn_forward.1} parent=1 // pred_check
      _
    $region7: #{simple_cnn_forward.1} parent=1 // pred_check_branch
      %20 = sbr.rel (0) target = $region9
    $region8: #{simple_cnn_forward.1} parent=1 // pred_region
      _
    $region9: #{simple_cnn_forward.1} parent=1 // pred_fallthru
      _
    // Predicated region
    $region10: #{simple_cnn_forward.1} parent=1 // pred_check
      _
    $region11: #{simple_cnn_forward.1} parent=1 // pred_check_branch
      %22 = sbr.rel (0) target = $region13
    $region12: #{simple_cnn_forward.1} parent=1 // pred_region
      _
    $region13: #{simple_cnn_forward.1} parent=1 // pred_fallthru
      _
    // Predicated region
    $region14: #{simple_cnn_forward.1} parent=1 // pred_check
      _
    $region15: #{simple_cnn_forward.1} parent=1 // pred_check_branch
      %24 = sbr.rel (0) target = $region17
    $region16: #{simple_cnn_forward.1} parent=1 // pred_region
      _
    $region17: #{simple_cnn_forward.1} parent=1 // pred_fallthru
      _
    // Predicated region
    $region18: #{simple_cnn_forward.1} parent=1 // pred_check
      _
    $region19: #{simple_cnn_forward.1} parent=1 // pred_check_branch
      %26 = sbr.rel (0) target = $region21
    $region20: #{simple_cnn_forward.1} parent=1 // pred_region
      _
    $region21: #{simple_cnn_forward.1} parent=1 // pred_fallthru
      _
    // Predicated region
    $region22: #{simple_cnn_forward.1} parent=1 // pred_check
      _
    $region23: #{simple_cnn_forward.1} parent=1 // pred_check_branch
      %28 = sbr.rel (0) target = $region25
    $region24: #{simple_cnn_forward.1} parent=1 // pred_region
      _
    $region25: #{simple_cnn_forward.1} parent=1 // pred_fallthru
      _
    // Predicated region
    $region26: #{simple_cnn_forward.1} parent=1 // pred_check
      _
    $region27: #{simple_cnn_forward.1} parent=1 // pred_check_branch
      %30 = sbr.rel (0) target = $region29
    $region28: #{simple_cnn_forward.1} parent=1 // pred_region
      _
    $region29: #{simple_cnn_forward.1} parent=1 // pred_fallthru
      _
    // Predicated region
    $region30: #{simple_cnn_forward.1} parent=1 // pred_check
      _
    $region31: #{simple_cnn_forward.1} parent=1 // pred_check_branch
      %32 = sbr.rel (0) target = $region33
    $region32: #{simple_cnn_forward.1} parent=1 // pred_region
      _
    $region33: #{simple_cnn_forward.1} parent=1 // pred_fallthru
      _
    // Predicated region
    $region34: #{simple_cnn_forward.1} parent=1 // pred_check
      _
    $region35: #{simple_cnn_forward.1} parent=1 // pred_check_branch
      %34 = sbr.rel (0) target = $region37
    $region36: #{simple_cnn_forward.1} parent=1 // pred_region
      _
    $region37: #{simple_cnn_forward.1} parent=1 // pred_fallthru
      _
    // Predicated region
    $region38: #{simple_cnn_forward.1} parent=1 // pred_check
      _
    $region39: #{simple_cnn_forward.1} parent=1 // pred_check_branch
      %36 = sbr.rel (0) target = $region41
    $region40: #{simple_cnn_forward.1} parent=1 // pred_region
      _
    $region41: #{simple_cnn_forward.1} parent=1 // pred_fallthru
      _
    // Predicated region
    $region42: #{simple_cnn_forward.1} parent=1 // pred_check
      _
    $region43: #{simple_cnn_forward.1} parent=1 // pred_check_branch
      %38 = sbr.rel (0) target = $region45
    $region44: #{simple_cnn_forward.1} parent=1 // pred_region
      _
    $region45: #{simple_cnn_forward.1} parent=1 // pred_fallthru
      _
    %v39 = vld [vmem:[%s0] sm:$0xff]
    %v40 = vld [vmem:[%s0 + $0x8] sm:$0xff]
    %v41 = vld [vmem:[%s0 + $0x10] sm:$0xff]
    %v42 = vld [vmem:[%s0 + $0x18] sm:$0xff]
    %v43 = vld [vmem:[%s0 + $0x20] sm:$0xff]
    %v44 = vld [vmem:[%s0 + $0x28] sm:$0xff]
    %v45 = vld [vmem:[%s0 + $0x30] sm:$0xff]
    %v46 = vld [vmem:[%s0 + $0x38] sm:$0xff]
    %v47 = vld [vmem:[%s0 + $0x40] sm:$0xff]
    %v48 = vld [vmem:[%s0 + $0x48] sm:$0xff]
    %v49 = vld [vmem:[%s0 + $0x50] sm:$0xff]
    %v50 = vld [vmem:[%s0 + $0x58] sm:$0xff]
    %v51 = vld [vmem:[%s0 + $0x60] sm:$0xff]
    %v52 = vld [vmem:[%s0 + $0x68] sm:$0xff]
    %v53 = vld [vmem:[%s0 + $0x70] sm:$0xff]
    %v54 = vld [vmem:[%s0 + $0x78] sm:$0xff]
    %v55 = vld [vmem:[%s0 + $0x80] sm:$0xff]
    %v56 = vld [vmem:[%s0 + $0x88] sm:$0xff]
    %v57 = vld [vmem:[%s0 + $0x90] sm:$0xff]
    %v58 = vld [vmem:[%s0 + $0x98] sm:$0xff]
    %v59 = vld [vmem:[%s0 + $0xa0] sm:$0xff]
    %v60 = vld [vmem:[%s0 + $0xa8] sm:$0xff]
    %v61 = vld [vmem:[%s0 + $0xb0] sm:$0xff]
    %v62 = vld [vmem:[%s0 + $0xb8] sm:$0xff]
    %v63 = vld [vmem:[%s0 + $0xc0] sm:$0xff]
    %v64 = vld [vmem:[%s0 + $0xc8] sm:$0xff]
    %v65 = vld [vmem:[%s0 + $0xd0] sm:$0xff]
    %v66 = vld [vmem:[%s0 + $0xd8] sm:$0xff]
    %v67 = vld [vmem:[%s0 + $0xe0] sm:$0xff]
    %v68 = vld [vmem:[%s0 + $0xe8] sm:$0xff]
    %v69 = vld [vmem:[%s0 + $0xf0] sm:$0xff]
    %v70 = vld [vmem:[%s0 + $0xf8] sm:$0xff]
    %v71 = vld [vmem:[%s0 + $0x100] sm:$0xff]
    %v72 = vld [vmem:[%s0 + $0x108] sm:$0xff]
    %v73 = vld [vmem:[%s0 + $0x110] sm:$0xff]
    %v74 = vld [vmem:[%s0 + $0x118] sm:$0xff]
    %v75 = vld [vmem:[%s0 + $0x120] sm:$0xff]
    %v76 = vld [vmem:[%s0 + $0x128] sm:$0xff]
    %v77 = vld [vmem:[%s0 + $0x130] sm:$0xff]
    %v78 = vld [vmem:[%s0 + $0x138] sm:$0xff]
    %v79 = vld [vmem:[%s0 + $0x140] sm:$0xff]
    %v80 = vld [vmem:[%s0 + $0x148] sm:$0xff]
    %v81 = vld [vmem:[%s0 + $0x150] sm:$0xff]
    %v82 = vld [vmem:[%s0 + $0x158] sm:$0xff]
    %v83 = vld [vmem:[%s0 + $0x160] sm:$0xff]
    %v84 = vld [vmem:[%s0 + $0x168] sm:$0xff]
    %v85 = vld [vmem:[%s0 + $0x170] sm:$0xff]
    %v86 = vld [vmem:[%s0 + $0x178] sm:$0xff]
    %v87 = vld [vmem:[%s0 + $0x180] sm:$0xff]
    %v88 = vld [vmem:[%s0 + $0x188] sm:$0xff]
    %v89 = vld [vmem:[%s0 + $0x190] sm:$0xff]
    %v90 = vld [vmem:[%s0 + $0x198] sm:$0xff]
    %v91 = vld [vmem:[%s0 + $0x1a0] sm:$0xff]
    %v92 = vld [vmem:[%s0 + $0x1a8] sm:$0xff]
    %v93 = vld [vmem:[%s0 + $0x1b0] sm:$0xff]
    %v94 = vld [vmem:[%s0 + $0x1b8] sm:$0xff]
    %v95 = vld [vmem:[%s0 + $0x1c0] sm:$0xff]
    %v96 = vld [vmem:[%s0 + $0x1c8] sm:$0xff]
    %v97 = vld [vmem:[%s0 + $0x1d0] sm:$0xff]
    %v98 = vld [vmem:[%s0 + $0x1d8] sm:$0xff]
    %v99 = vld [vmem:[%s0 + $0x1e0] sm:$0xff]
    %v100 = vld [vmem:[%s0 + $0x1e8] sm:$0xff]
    %v101 = vld [vmem:[%s0 + $0x1f0] sm:$0xff]
    %v102 = vld [vmem:[%s0 + $0x1f8] sm:$0xff]
    %v103 = vld [vmem:[%s0 + $0x200] sm:$0xff]
    %v104 = vld [vmem:[%s0 + $0x208] sm:$0xff]
    %v105 = vld [vmem:[%s0 + $0x210] sm:$0xff]
    %v106 = vld [vmem:[%s0 + $0x218] sm:$0xff]
    %v107 = vld [vmem:[%s0 + $0x220] sm:$0xff]
    %v108 = vld [vmem:[%s0 + $0x228] sm:$0xff]
    %v109 = vld [vmem:[%s0 + $0x230] sm:$0xff]
    %v110 = vld [vmem:[%s0 + $0x238] sm:$0xff]
    %v111 = vld [vmem:[%s0 + $0x240] sm:$0xff]
    %v112 = vld [vmem:[%s0 + $0x248] sm:$0xff]
    %v113 = vld [vmem:[%s0 + $0x250] sm:$0xff]
    %v114 = vld [vmem:[%s0 + $0x258] sm:$0xff]
    %v115 = vld [vmem:[%s0 + $0x260] sm:$0xff]
    %v116 = vld [vmem:[%s0 + $0x268] sm:$0xff]
    %v117 = vld [vmem:[%s0 + $0x270] sm:$0xff]
    %v118 = vld [vmem:[%s0 + $0x278] sm:$0xff]
    %v119 = vld [vmem:[%s0 + $0x280] sm:$0xff]
    %v120 = vld [vmem:[%s0 + $0x288] sm:$0xff]
    %v121 = vld [vmem:[%s0 + $0x290] sm:$0xff]
    %v122 = vld [vmem:[%s0 + $0x298] sm:$0xff]
    %v123 = vld [vmem:[%s0 + $0x2a0] sm:$0xff]
    %v124 = vld [vmem:[%s0 + $0x2a8] sm:$0xff]
    %v125 = vld [vmem:[%s0 + $0x2b0] sm:$0xff]
    %v126 = vld [vmem:[%s0 + $0x2b8] sm:$0xff]
    %v127 = vld [vmem:[%s0 + $0x2c0] sm:$0xff]
    %v128 = vld [vmem:[%s0 + $0x2c8] sm:$0xff]
    %v129 = vld [vmem:[%s0 + $0x2d0] sm:$0xff]
    %v130 = vld [vmem:[%s0 + $0x2d8] sm:$0xff]
    %v131 = vld [vmem:[%s0 + $0x2e0] sm:$0xff]
    %v132 = vld [vmem:[%s0 + $0x2e8] sm:$0xff]
    %v133 = vld [vmem:[%s0 + $0x2f0] sm:$0xff]
    %v134 = vld [vmem:[%s0 + $0x2f8] sm:$0xff]
    %v135 = vld [vmem:[%s0 + $0x300] sm:$0xff]
    %v136 = vld [vmem:[%s0 + $0x308] sm:$0xff]
    %v137 = vld [vmem:[%s0 + $0x310] sm:$0xff]
    %v138 = vld [vmem:[%s0 + $0x318] sm:$0xff]
    %v139 = vld [vmem:[%s0 + $0x320] sm:$0xff]
    %v140 = vld [vmem:[%s0 + $0x328] sm:$0xff]
    %v141 = vld [vmem:[%s0 + $0x330] sm:$0xff]
    %v142 = vld [vmem:[%s0 + $0x338] sm:$0xff]
    %v143 = vld [vmem:[%s0 + $0x340] sm:$0xff]
    %v144 = vld [vmem:[%s0 + $0x348] sm:$0xff]
    %v145 = vld [vmem:[%s0 + $0x350] sm:$0xff]
    %v146 = vld [vmem:[%s0 + $0x358] sm:$0xff]
    %v147 = vld [vmem:[%s0 + $0x360] sm:$0xff]
    %v148 = vld [vmem:[%s0 + $0x368] sm:$0xff]
    %v149 = vld [vmem:[%s0 + $0x370] sm:$0xff]
    %v150 = vld [vmem:[%s0 + $0x378] sm:$0xff]
    %v151 = vld [vmem:[%s0 + $0x380] sm:$0xff]
    %v152 = vld [vmem:[%s0 + $0x388] sm:$0xff]
    %v153 = vld [vmem:[%s0 + $0x390] sm:$0xff]
    %v154 = vld [vmem:[%s0 + $0x398] sm:$0xff]
    %v155 = vld [vmem:[%s0 + $0x3a0] sm:$0xff]
    %v156 = vld [vmem:[%s0 + $0x3a8] sm:$0xff]
    %v157 = vld [vmem:[%s0 + $0x3b0] sm:$0xff]
    %v158 = vld [vmem:[%s0 + $0x3b8] sm:$0xff]
    %v159 = vld [vmem:[%s0 + $0x3c0] sm:$0xff]
    %v160 = vld [vmem:[%s0 + $0x3c8] sm:$0xff]
    %v161 = vld [vmem:[%s0 + $0x3d0] sm:$0xff]
    %v162 = vld [vmem:[%s0 + $0x3d8] sm:$0xff]
    %v163 = vld [vmem:[%s0 + $0x3e0] sm:$0xff]
    %v164 = vld [vmem:[%s0 + $0x3e8] sm:$0xff]
    %v165 = vld [vmem:[%s0 + $0x3f0] sm:$0xff]
    %v166 = vld [vmem:[%s0 + $0x3f8] sm:$0xff]
    %v167 = vld [vmem:[%s0 + $0x400] sm:$0xff]
    %v168 = vld [vmem:[%s0 + $0x408] sm:$0xff]
    %v169 = vld [vmem:[%s0 + $0x410] sm:$0xff]
    %v170 = vld [vmem:[%s0 + $0x418] sm:$0xff]
    %v171 = vld [vmem:[%s0 + $0x420] sm:$0xff]
    %v172 = vld [vmem:[%s0 + $0x428] sm:$0xff]
    %v173 = vld [vmem:[%s0 + $0x430] sm:$0xff]
    %v174 = vld [vmem:[%s0 + $0x438] sm:$0xff]
    %v175 = vld [vmem:[%s0 + $0x440] sm:$0xff]
    %v176 = vld [vmem:[%s0 + $0x448] sm:$0xff]
    %v177 = vld [vmem:[%s0 + $0x450] sm:$0xff]
    %v178 = vld [vmem:[%s0 + $0x458] sm:$0xff]
    %v179 = vld [vmem:[%s0 + $0x460] sm:$0xff]
    %v180 = vld [vmem:[%s0 + $0x468] sm:$0xff]
    %v181 = vld [vmem:[%s0 + $0x470] sm:$0xff]
    %v182 = vld [vmem:[%s0 + $0x478] sm:$0xff]
    %v183 = vld [vmem:[%s1] sm:$0xff]
    %v184 = vld [vmem:[%s1 + $0x8] sm:$0xff]
    %v185 = vld [vmem:[%s1 + $0x10] sm:$0xff]
    %v186 = vld [vmem:[%s1 + $0x18] sm:$0xff]
    %v187 = vld [vmem:[%s1 + $0x20] sm:$0xff]
    %v188 = vld [vmem:[%s1 + $0x28] sm:$0xff]
    %v189 = vld [vmem:[%s1 + $0x30] sm:$0xff]
    %v190 = vld [vmem:[%s1 + $0x38] sm:$0xff]
    %v191 = vld [vmem:[%s1 + $0x40] sm:$0xff]
    %v192 = vld [vmem:[%s1 + $0x48] sm:$0xff]
    %v193 = vld [vmem:[%s1 + $0x50] sm:$0xff]
    %v194 = vld [vmem:[%s1 + $0x58] sm:$0xff]
    %v195 = vld [vmem:[%s1 + $0x60] sm:$0xff]
    %v196 = vld [vmem:[%s1 + $0x68] sm:$0xff]
    %v197 = vld [vmem:[%s1 + $0x70] sm:$0xff]
    %v198 = vld [vmem:[%s1 + $0x78] sm:$0xff]
    %v199 = vld [vmem:[%s2] sm:$0x1]
    %v201 = vperm.slane %v199, 0
    %203 = vmatpush.msra.mxu0 %v198
    %204 = vmatpush.msra.mxu0 %v197
    %205 = vmatpush.msra.mxu0 %v196
    %206 = vmatpush.msra.mxu0 %v195
    %207 = vmatpush.msra.mxu0 %v194
    %208 = vmatpush.msra.mxu0 %v193
    %209 = vmatpush.msra.mxu0 %v192
    %210 = vmatpush.msra.mxu0 %v191
    %211 = vmatpush.msra.mxu0 %v190
    %212 = vmatpush.msra.mxu0 %v189
    %213 = vmatpush.msra.mxu0 %v188
    %214 = vmatpush.msra.mxu0 %v187
    %215 = vmatpush.msra.mxu0 %v186
    %216 = vmatpush.msra.mxu0 %v185
    %217 = vmatpush.msra.mxu0 %v184
    %218 = vmatpush.msra.mxu0 %v183
    %219 = vmatmul.f32.gmra.mxu0 %v39
    %v220 = vpop.f32.mrf.mxu0
    %v221 = vadd.f32 %v201, %v220
    %222 = vmatmul.f32.gmra.mxu0 %v40
    %v223 = vpop.f32.mrf.mxu0
    %v224 = vadd.f32 %v201, %v223
    %225 = vmatmul.f32.gmra.mxu0 %v41
    %v226 = vpop.f32.mrf.mxu0
    %v227 = vadd.f32 %v201, %v226
    %228 = vmatmul.f32.gmra.mxu0 %v42
    %v229 = vpop.f32.mrf.mxu0
    %v230 = vadd.f32 %v201, %v229
    %231 = vmatmul.f32.gmra.mxu0 %v43
    %v232 = vpop.f32.mrf.mxu0
    %v233 = vadd.f32 %v201, %v232
    %234 = vmatmul.f32.gmra.mxu0 %v44
    %v235 = vpop.f32.mrf.mxu0
    %v236 = vadd.f32 %v201, %v235
    %237 = vmatmul.f32.gmra.mxu0 %v45
    %v238 = vpop.f32.mrf.mxu0
    %v239 = vadd.f32 %v201, %v238
    %240 = vmatmul.f32.gmra.mxu0 %v46
    %v241 = vpop.f32.mrf.mxu0
    %v242 = vadd.f32 %v201, %v241
    %243 = vmatmul.f32.gmra.mxu0 %v47
    %v244 = vpop.f32.mrf.mxu0
    %v245 = vadd.f32 %v201, %v244
    %246 = vmatmul.f32.gmra.mxu0 %v48
    %v247 = vpop.f32.mrf.mxu0
    %v248 = vadd.f32 %v201, %v247
    %249 = vmatmul.f32.gmra.mxu0 %v49
    %v250 = vpop.f32.mrf.mxu0
    %v251 = vadd.f32 %v201, %v250
    %252 = vmatmul.f32.gmra.mxu0 %v50
    %v253 = vpop.f32.mrf.mxu0
    %v254 = vadd.f32 %v201, %v253
    %255 = vmatmul.f32.gmra.mxu0 %v51
    %v256 = vpop.f32.mrf.mxu0
    %v257 = vadd.f32 %v201, %v256
    %258 = vmatmul.f32.gmra.mxu0 %v52
    %v259 = vpop.f32.mrf.mxu0
    %v260 = vadd.f32 %v201, %v259
    %261 = vmatmul.f32.gmra.mxu0 %v53
    %v262 = vpop.f32.mrf.mxu0
    %v263 = vadd.f32 %v201, %v262
    %264 = vmatmul.f32.gmra.mxu0 %v54
    %v265 = vpop.f32.mrf.mxu0
    %v266 = vadd.f32 %v201, %v265
    %267 = vmatmul.f32.gmra.mxu0 %v55
    %v268 = vpop.f32.mrf.mxu0
    %v269 = vadd.f32 %v201, %v268
    %270 = vmatmul.f32.gmra.mxu0 %v56
    %v271 = vpop.f32.mrf.mxu0
    %v272 = vadd.f32 %v201, %v271
    %273 = vmatmul.f32.gmra.mxu0 %v57
    %v274 = vpop.f32.mrf.mxu0
    %v275 = vadd.f32 %v201, %v274
    %276 = vmatmul.f32.gmra.mxu0 %v58
    %v277 = vpop.f32.mrf.mxu0
    %v278 = vadd.f32 %v201, %v277
    %279 = vmatmul.f32.gmra.mxu0 %v59
    %v280 = vpop.f32.mrf.mxu0
    %v281 = vadd.f32 %v201, %v280
    %282 = vmatmul.f32.gmra.mxu0 %v60
    %v283 = vpop.f32.mrf.mxu0
    %v284 = vadd.f32 %v201, %v283
    %285 = vmatmul.f32.gmra.mxu0 %v61
    %v286 = vpop.f32.mrf.mxu0
    %v287 = vadd.f32 %v201, %v286
    %288 = vmatmul.f32.gmra.mxu0 %v62
    %v289 = vpop.f32.mrf.mxu0
    %v290 = vadd.f32 %v201, %v289
    %291 = vmatmul.f32.gmra.mxu0 %v63
    %v292 = vpop.f32.mrf.mxu0
    %v293 = vadd.f32 %v201, %v292
    %294 = vmatmul.f32.gmra.mxu0 %v64
    %v295 = vpop.f32.mrf.mxu0
    %v296 = vadd.f32 %v201, %v295
    %297 = vmatmul.f32.gmra.mxu0 %v65
    %v298 = vpop.f32.mrf.mxu0
    %v299 = vadd.f32 %v201, %v298
    %300 = vmatmul.f32.gmra.mxu0 %v66
    %v301 = vpop.f32.mrf.mxu0
    %v302 = vadd.f32 %v201, %v301
    %303 = vmatmul.f32.gmra.mxu0 %v67
    %v304 = vpop.f32.mrf.mxu0
    %v305 = vadd.f32 %v201, %v304
    %306 = vmatmul.f32.gmra.mxu0 %v68
    %v307 = vpop.f32.mrf.mxu0
    %v308 = vadd.f32 %v201, %v307
    %309 = vmatmul.f32.gmra.mxu0 %v69
    %v310 = vpop.f32.mrf.mxu0
    %v311 = vadd.f32 %v201, %v310
    %312 = vmatmul.f32.gmra.mxu0 %v70
    %v313 = vpop.f32.mrf.mxu0
    %v314 = vadd.f32 %v201, %v313
    %315 = vmatmul.f32.gmra.mxu0 %v71
    %v316 = vpop.f32.mrf.mxu0
    %v317 = vadd.f32 %v201, %v316
    %318 = vmatmul.f32.gmra.mxu0 %v72
    %v319 = vpop.f32.mrf.mxu0
    %v320 = vadd.f32 %v201, %v319
    %321 = vmatmul.f32.gmra.mxu0 %v73
    %v322 = vpop.f32.mrf.mxu0
    %v323 = vadd.f32 %v201, %v322
    %324 = vmatmul.f32.gmra.mxu0 %v74
    %v325 = vpop.f32.mrf.mxu0
    %v326 = vadd.f32 %v201, %v325
    %327 = vmatmul.f32.gmra.mxu0 %v75
    %v328 = vpop.f32.mrf.mxu0
    %v329 = vadd.f32 %v201, %v328
    %330 = vmatmul.f32.gmra.mxu0 %v76
    %v331 = vpop.f32.mrf.mxu0
    %v332 = vadd.f32 %v201, %v331
    %333 = vmatmul.f32.gmra.mxu0 %v77
    %v334 = vpop.f32.mrf.mxu0
    %v335 = vadd.f32 %v201, %v334
    %336 = vmatmul.f32.gmra.mxu0 %v78
    %v337 = vpop.f32.mrf.mxu0
    %v338 = vadd.f32 %v201, %v337
    %339 = vmatmul.f32.gmra.mxu0 %v79
    %v340 = vpop.f32.mrf.mxu0
    %v341 = vadd.f32 %v201, %v340
    %342 = vmatmul.f32.gmra.mxu0 %v80
    %v343 = vpop.f32.mrf.mxu0
    %v344 = vadd.f32 %v201, %v343
    %345 = vmatmul.f32.gmra.mxu0 %v81
    %v346 = vpop.f32.mrf.mxu0
    %v347 = vadd.f32 %v201, %v346
    %348 = vmatmul.f32.gmra.mxu0 %v82
    %v349 = vpop.f32.mrf.mxu0
    %v350 = vadd.f32 %v201, %v349
    %351 = vmatmul.f32.gmra.mxu0 %v83
    %v352 = vpop.f32.mrf.mxu0
    %v353 = vadd.f32 %v201, %v352
    %354 = vmatmul.f32.gmra.mxu0 %v84
    %v355 = vpop.f32.mrf.mxu0
    %v356 = vadd.f32 %v201, %v355
    %357 = vmatmul.f32.gmra.mxu0 %v85
    %v358 = vpop.f32.mrf.mxu0
    %v359 = vadd.f32 %v201, %v358
    %360 = vmatmul.f32.gmra.mxu0 %v86
    %v361 = vpop.f32.mrf.mxu0
    %v362 = vadd.f32 %v201, %v361
    %363 = vmatmul.f32.gmra.mxu0 %v87
    %v364 = vpop.f32.mrf.mxu0
    %v365 = vadd.f32 %v201, %v364
    %366 = vmatmul.f32.gmra.mxu0 %v88
    %v367 = vpop.f32.mrf.mxu0
    %v368 = vadd.f32 %v201, %v367
    %369 = vmatmul.f32.gmra.mxu0 %v89
    %v370 = vpop.f32.mrf.mxu0
    %v371 = vadd.f32 %v201, %v370
    %372 = vmatmul.f32.gmra.mxu0 %v90
    %v373 = vpop.f32.mrf.mxu0
    %v374 = vadd.f32 %v201, %v373
    %375 = vmatmul.f32.gmra.mxu0 %v91
    %v376 = vpop.f32.mrf.mxu0
    %v377 = vadd.f32 %v201, %v376
    %378 = vmatmul.f32.gmra.mxu0 %v92
    %v379 = vpop.f32.mrf.mxu0
    %v380 = vadd.f32 %v201, %v379
    %381 = vmatmul.f32.gmra.mxu0 %v93
    %v382 = vpop.f32.mrf.mxu0
    %v383 = vadd.f32 %v201, %v382
    %384 = vmatmul.f32.gmra.mxu0 %v94
    %v385 = vpop.f32.mrf.mxu0
    %v386 = vadd.f32 %v201, %v385
    %387 = vmatmul.f32.gmra.mxu0 %v95
    %v388 = vpop.f32.mrf.mxu0
    %v389 = vadd.f32 %v201, %v388
    %390 = vmatmul.f32.gmra.mxu0 %v96
    %v391 = vpop.f32.mrf.mxu0
    %v392 = vadd.f32 %v201, %v391
    %393 = vmatmul.f32.gmra.mxu0 %v97
    %v394 = vpop.f32.mrf.mxu0
    %v395 = vadd.f32 %v201, %v394
    %396 = vmatmul.f32.gmra.mxu0 %v98
    %v397 = vpop.f32.mrf.mxu0
    %v398 = vadd.f32 %v201, %v397
    %399 = vmatmul.f32.gmra.mxu0 %v99
    %v400 = vpop.f32.mrf.mxu0
    %v401 = vadd.f32 %v201, %v400
    %402 = vmatmul.f32.gmra.mxu0 %v100
    %v403 = vpop.f32.mrf.mxu0
    %v404 = vadd.f32 %v201, %v403
    %405 = vmatmul.f32.gmra.mxu0 %v101
    %v406 = vpop.f32.mrf.mxu0
    %v407 = vadd.f32 %v201, %v406
    %408 = vmatmul.f32.gmra.mxu0 %v102
    %v409 = vpop.f32.mrf.mxu0
    %v410 = vadd.f32 %v201, %v409
    %411 = vmatmul.f32.gmra.mxu0 %v103
    %v412 = vpop.f32.mrf.mxu0
    %v413 = vadd.f32 %v201, %v412
    %414 = vmatmul.f32.gmra.mxu0 %v104
    %v415 = vpop.f32.mrf.mxu0
    %v416 = vadd.f32 %v201, %v415
    %417 = vmatmul.f32.gmra.mxu0 %v105
    %v418 = vpop.f32.mrf.mxu0
    %v419 = vadd.f32 %v201, %v418
    %420 = vmatmul.f32.gmra.mxu0 %v106
    %v421 = vpop.f32.mrf.mxu0
    %v422 = vadd.f32 %v201, %v421
    %423 = vmatmul.f32.gmra.mxu0 %v107
    %v424 = vpop.f32.mrf.mxu0
    %v425 = vadd.f32 %v201, %v424
    %426 = vmatmul.f32.gmra.mxu0 %v108
    %v427 = vpop.f32.mrf.mxu0
    %v428 = vadd.f32 %v201, %v427
    %429 = vmatmul.f32.gmra.mxu0 %v109
    %v430 = vpop.f32.mrf.mxu0
    %v431 = vadd.f32 %v201, %v430
    %432 = vmatmul.f32.gmra.mxu0 %v110
    %v433 = vpop.f32.mrf.mxu0
    %v434 = vadd.f32 %v201, %v433
    %435 = vmatmul.f32.gmra.mxu0 %v111
    %v436 = vpop.f32.mrf.mxu0
    %v437 = vadd.f32 %v201, %v436
    %438 = vmatmul.f32.gmra.mxu0 %v112
    %v439 = vpop.f32.mrf.mxu0
    %v440 = vadd.f32 %v201, %v439
    %441 = vmatmul.f32.gmra.mxu0 %v113
    %v442 = vpop.f32.mrf.mxu0
    %v443 = vadd.f32 %v201, %v442
    %444 = vmatmul.f32.gmra.mxu0 %v114
    %v445 = vpop.f32.mrf.mxu0
    %v446 = vadd.f32 %v201, %v445
    %447 = vmatmul.f32.gmra.mxu0 %v115
    %v448 = vpop.f32.mrf.mxu0
    %v449 = vadd.f32 %v201, %v448
    %450 = vmatmul.f32.gmra.mxu0 %v116
    %v451 = vpop.f32.mrf.mxu0
    %v452 = vadd.f32 %v201, %v451
    %453 = vmatmul.f32.gmra.mxu0 %v117
    %v454 = vpop.f32.mrf.mxu0
    %v455 = vadd.f32 %v201, %v454
    %456 = vmatmul.f32.gmra.mxu0 %v118
    %v457 = vpop.f32.mrf.mxu0
    %v458 = vadd.f32 %v201, %v457
    %459 = vmatmul.f32.gmra.mxu0 %v119
    %v460 = vpop.f32.mrf.mxu0
    %v461 = vadd.f32 %v201, %v460
    %462 = vmatmul.f32.gmra.mxu0 %v120
    %v463 = vpop.f32.mrf.mxu0
    %v464 = vadd.f32 %v201, %v463
    %465 = vmatmul.f32.gmra.mxu0 %v121
    %v466 = vpop.f32.mrf.mxu0
    %v467 = vadd.f32 %v201, %v466
    %468 = vmatmul.f32.gmra.mxu0 %v122
    %v469 = vpop.f32.mrf.mxu0
    %v470 = vadd.f32 %v201, %v469
    %471 = vmatmul.f32.gmra.mxu0 %v123
    %v472 = vpop.f32.mrf.mxu0
    %v473 = vadd.f32 %v201, %v472
    %474 = vmatmul.f32.gmra.mxu0 %v124
    %v475 = vpop.f32.mrf.mxu0
    %v476 = vadd.f32 %v201, %v475
    %477 = vmatmul.f32.gmra.mxu0 %v125
    %v478 = vpop.f32.mrf.mxu0
    %v479 = vadd.f32 %v201, %v478
    %480 = vmatmul.f32.gmra.mxu0 %v126
    %v481 = vpop.f32.mrf.mxu0
    %v482 = vadd.f32 %v201, %v481
    %483 = vmatmul.f32.gmra.mxu0 %v127
    %v484 = vpop.f32.mrf.mxu0
    %v485 = vadd.f32 %v201, %v484
    %486 = vmatmul.f32.gmra.mxu0 %v128
    %v487 = vpop.f32.mrf.mxu0
    %v488 = vadd.f32 %v201, %v487
    %489 = vmatmul.f32.gmra.mxu0 %v129
    %v490 = vpop.f32.mrf.mxu0
    %v491 = vadd.f32 %v201, %v490
    %492 = vmatmul.f32.gmra.mxu0 %v130
    %v493 = vpop.f32.mrf.mxu0
    %v494 = vadd.f32 %v201, %v493
    %495 = vmatmul.f32.gmra.mxu0 %v131
    %v496 = vpop.f32.mrf.mxu0
    %v497 = vadd.f32 %v201, %v496
    %498 = vmatmul.f32.gmra.mxu0 %v132
    %v499 = vpop.f32.mrf.mxu0
    %v500 = vadd.f32 %v201, %v499
    %501 = vmatmul.f32.gmra.mxu0 %v133
    %v502 = vpop.f32.mrf.mxu0
    %v503 = vadd.f32 %v201, %v502
    %504 = vmatmul.f32.gmra.mxu0 %v134
    %v505 = vpop.f32.mrf.mxu0
    %v506 = vadd.f32 %v201, %v505
    %507 = vmatmul.f32.gmra.mxu0 %v135
    %v508 = vpop.f32.mrf.mxu0
    %v509 = vadd.f32 %v201, %v508
    %510 = vmatmul.f32.gmra.mxu0 %v136
    %v511 = vpop.f32.mrf.mxu0
    %v512 = vadd.f32 %v201, %v511
    %513 = vmatmul.f32.gmra.mxu0 %v137
    %v514 = vpop.f32.mrf.mxu0
    %v515 = vadd.f32 %v201, %v514
    %516 = vmatmul.f32.gmra.mxu0 %v138
    %v517 = vpop.f32.mrf.mxu0
    %v518 = vadd.f32 %v201, %v517
    %519 = vmatmul.f32.gmra.mxu0 %v139
    %v520 = vpop.f32.mrf.mxu0
    %v521 = vadd.f32 %v201, %v520
    %522 = vmatmul.f32.gmra.mxu0 %v140
    %v523 = vpop.f32.mrf.mxu0
    %v524 = vadd.f32 %v201, %v523
    %525 = vmatmul.f32.gmra.mxu0 %v141
    %v526 = vpop.f32.mrf.mxu0
    %v527 = vadd.f32 %v201, %v526
    %528 = vmatmul.f32.gmra.mxu0 %v142
    %v529 = vpop.f32.mrf.mxu0
    %v530 = vadd.f32 %v201, %v529
    %531 = vmatmul.f32.gmra.mxu0 %v143
    %v532 = vpop.f32.mrf.mxu0
    %v533 = vadd.f32 %v201, %v532
    %534 = vmatmul.f32.gmra.mxu0 %v144
    %v535 = vpop.f32.mrf.mxu0
    %v536 = vadd.f32 %v201, %v535
    %537 = vmatmul.f32.gmra.mxu0 %v145
    %v538 = vpop.f32.mrf.mxu0
    %v539 = vadd.f32 %v201, %v538
    %540 = vmatmul.f32.gmra.mxu0 %v146
    %v541 = vpop.f32.mrf.mxu0
    %v542 = vadd.f32 %v201, %v541
    %543 = vmatmul.f32.gmra.mxu0 %v147
    %v544 = vpop.f32.mrf.mxu0
    %v545 = vadd.f32 %v201, %v544
    %546 = vmatmul.f32.gmra.mxu0 %v148
    %v547 = vpop.f32.mrf.mxu0
    %v548 = vadd.f32 %v201, %v547
    %549 = vmatmul.f32.gmra.mxu0 %v149
    %v550 = vpop.f32.mrf.mxu0
    %v551 = vadd.f32 %v201, %v550
    %552 = vmatmul.f32.gmra.mxu0 %v150
    %v553 = vpop.f32.mrf.mxu0
    %v554 = vadd.f32 %v201, %v553
    %555 = vmatmul.f32.gmra.mxu0 %v151
    %v556 = vpop.f32.mrf.mxu0
    %v557 = vadd.f32 %v201, %v556
    %558 = vmatmul.f32.gmra.mxu0 %v152
    %v559 = vpop.f32.mrf.mxu0
    %v560 = vadd.f32 %v201, %v559
    %561 = vmatmul.f32.gmra.mxu0 %v153
    %v562 = vpop.f32.mrf.mxu0
    %v563 = vadd.f32 %v201, %v562
    %564 = vmatmul.f32.gmra.mxu0 %v154
    %v565 = vpop.f32.mrf.mxu0
    %v566 = vadd.f32 %v201, %v565
    %567 = vmatmul.f32.gmra.mxu0 %v155
    %v568 = vpop.f32.mrf.mxu0
    %v569 = vadd.f32 %v201, %v568
    %570 = vmatmul.f32.gmra.mxu0 %v156
    %v571 = vpop.f32.mrf.mxu0
    %v572 = vadd.f32 %v201, %v571
    %573 = vmatmul.f32.gmra.mxu0 %v157
    %v574 = vpop.f32.mrf.mxu0
    %v575 = vadd.f32 %v201, %v574
    %576 = vmatmul.f32.gmra.mxu0 %v158
    %v577 = vpop.f32.mrf.mxu0
    %v578 = vadd.f32 %v201, %v577
    %579 = vmatmul.f32.gmra.mxu0 %v159
    %v580 = vpop.f32.mrf.mxu0
    %v581 = vadd.f32 %v201, %v580
    %582 = vmatmul.f32.gmra.mxu0 %v160
    %v583 = vpop.f32.mrf.mxu0
    %v584 = vadd.f32 %v201, %v583
    %585 = vmatmul.f32.gmra.mxu0 %v161
    %v586 = vpop.f32.mrf.mxu0
    %v587 = vadd.f32 %v201, %v586
    %588 = vmatmul.f32.gmra.mxu0 %v162
    %v589 = vpop.f32.mrf.mxu0
    %v590 = vadd.f32 %v201, %v589
    %591 = vmatmul.f32.gmra.mxu0 %v163
    %v592 = vpop.f32.mrf.mxu0
    %v593 = vadd.f32 %v201, %v592
    %594 = vmatmul.f32.gmra.mxu0 %v164
    %v595 = vpop.f32.mrf.mxu0
    %v596 = vadd.f32 %v201, %v595
    %597 = vmatmul.f32.gmra.mxu0 %v165
    %v598 = vpop.f32.mrf.mxu0
    %v599 = vadd.f32 %v201, %v598
    %600 = vmatmul.f32.gmra.mxu0 %v166
    %v601 = vpop.f32.mrf.mxu0
    %v602 = vadd.f32 %v201, %v601
    %603 = vmatmul.f32.gmra.mxu0 %v167
    %v604 = vpop.f32.mrf.mxu0
    %v605 = vadd.f32 %v201, %v604
    %606 = vmatmul.f32.gmra.mxu0 %v168
    %v607 = vpop.f32.mrf.mxu0
    %v608 = vadd.f32 %v201, %v607
    %609 = vmatmul.f32.gmra.mxu0 %v169
    %v610 = vpop.f32.mrf.mxu0
    %v611 = vadd.f32 %v201, %v610
    %612 = vmatmul.f32.gmra.mxu0 %v170
    %v613 = vpop.f32.mrf.mxu0
    %v614 = vadd.f32 %v201, %v613
    %615 = vmatmul.f32.gmra.mxu0 %v171
    %v616 = vpop.f32.mrf.mxu0
    %v617 = vadd.f32 %v201, %v616
    %618 = vmatmul.f32.gmra.mxu0 %v172
    %v619 = vpop.f32.mrf.mxu0
    %v620 = vadd.f32 %v201, %v619
    %621 = vmatmul.f32.gmra.mxu0 %v173
    %v622 = vpop.f32.mrf.mxu0
    %v623 = vadd.f32 %v201, %v622
    %624 = vmatmul.f32.gmra.mxu0 %v174
    %v625 = vpop.f32.mrf.mxu0
    %v626 = vadd.f32 %v201, %v625
    %627 = vmatmul.f32.gmra.mxu0 %v175
    %v628 = vpop.f32.mrf.mxu0
    %v629 = vadd.f32 %v201, %v628
    %630 = vmatmul.f32.gmra.mxu0 %v176
    %v631 = vpop.f32.mrf.mxu0
    %v632 = vadd.f32 %v201, %v631
    %633 = vmatmul.f32.gmra.mxu0 %v177
    %v634 = vpop.f32.mrf.mxu0
    %v635 = vadd.f32 %v201, %v634
    %636 = vmatmul.f32.gmra.mxu0 %v178
    %v637 = vpop.f32.mrf.mxu0
    %v638 = vadd.f32 %v201, %v637
    %639 = vmatmul.f32.gmra.mxu0 %v179
    %v640 = vpop.f32.mrf.mxu0
    %v641 = vadd.f32 %v201, %v640
    %642 = vmatmul.f32.gmra.mxu0 %v180
    %v643 = vpop.f32.mrf.mxu0
    %v644 = vadd.f32 %v201, %v643
    %645 = vmatmul.f32.gmra.mxu0 %v181
    %v646 = vpop.f32.mrf.mxu0
    %v647 = vadd.f32 %v201, %v646
    %648 = vmatmul.f32.gmra.mxu0 %v182
    %v649 = vpop.f32.mrf.mxu0
    %v650 = vadd.f32 %v201, %v649
    %651 = vdwg.mxu0
    %v652 = vmax.f32 %v221, 0.0
    %v653 = vmax.f32 %v224, 0.0
    %v654 = vmax.f32 %v227, 0.0
    %v655 = vmax.f32 %v230, 0.0
    %v656 = vmax.f32 %v233, 0.0
    %v657 = vmax.f32 %v236, 0.0
    %v658 = vmax.f32 %v239, 0.0
    %v659 = vmax.f32 %v242, 0.0
    %v660 = vmax.f32 %v245, 0.0
    %v661 = vmax.f32 %v248, 0.0
    %v662 = vmax.f32 %v251, 0.0
    %v663 = vmax.f32 %v254, 0.0
    %v664 = vmax.f32 %v257, 0.0
    %v665 = vmax.f32 %v260, 0.0
    %v666 = vmax.f32 %v263, 0.0
    %v667 = vmax.f32 %v266, 0.0
    %v668 = vmax.f32 %v269, 0.0
    %v669 = vmax.f32 %v272, 0.0
    %v670 = vmax.f32 %v275, 0.0
    %v671 = vmax.f32 %v278, 0.0
    %v672 = vmax.f32 %v281, 0.0
    %v673 = vmax.f32 %v284, 0.0
    %v674 = vmax.f32 %v287, 0.0
    %v675 = vmax.f32 %v290, 0.0
    %v676 = vmax.f32 %v293, 0.0
    %v677 = vmax.f32 %v296, 0.0
    %v678 = vmax.f32 %v299, 0.0
    %v679 = vmax.f32 %v302, 0.0
    %v680 = vmax.f32 %v305, 0.0
    %v681 = vmax.f32 %v308, 0.0
    %v682 = vmax.f32 %v311, 0.0
    %v683 = vmax.f32 %v314, 0.0
    %v684 = vmax.f32 %v317, 0.0
    %v685 = vmax.f32 %v320, 0.0
    %v686 = vmax.f32 %v323, 0.0
    %v687 = vmax.f32 %v326, 0.0
    %v688 = vmax.f32 %v329, 0.0
    %v689 = vmax.f32 %v332, 0.0
    %v690 = vmax.f32 %v335, 0.0
    %v691 = vmax.f32 %v338, 0.0
    %v692 = vmax.f32 %v341, 0.0
    %v693 = vmax.f32 %v344, 0.0
    %v694 = vmax.f32 %v347, 0.0
    %v695 = vmax.f32 %v350, 0.0
    %v696 = vmax.f32 %v353, 0.0
    %v697 = vmax.f32 %v356, 0.0
    %v698 = vmax.f32 %v359, 0.0
    %v699 = vmax.f32 %v362, 0.0
    %v700 = vmax.f32 %v365, 0.0
    %v701 = vmax.f32 %v368, 0.0
    %v702 = vmax.f32 %v371, 0.0
    %v703 = vmax.f32 %v374, 0.0
    %v704 = vmax.f32 %v377, 0.0
    %v705 = vmax.f32 %v380, 0.0
    %v706 = vmax.f32 %v383, 0.0
    %v707 = vmax.f32 %v386, 0.0
    %v708 = vmax.f32 %v389, 0.0
    %v709 = vmax.f32 %v392, 0.0
    %v710 = vmax.f32 %v395, 0.0
    %v711 = vmax.f32 %v398, 0.0
    %v712 = vmax.f32 %v401, 0.0
    %v713 = vmax.f32 %v404, 0.0
    %v714 = vmax.f32 %v407, 0.0
    %v715 = vmax.f32 %v410, 0.0
    %v716 = vmax.f32 %v413, 0.0
    %v717 = vmax.f32 %v416, 0.0
    %v718 = vmax.f32 %v419, 0.0
    %v719 = vmax.f32 %v422, 0.0
    %v720 = vmax.f32 %v425, 0.0
    %v721 = vmax.f32 %v428, 0.0
    %v722 = vmax.f32 %v431, 0.0
    %v723 = vmax.f32 %v434, 0.0
    %v724 = vmax.f32 %v437, 0.0
    %v725 = vmax.f32 %v440, 0.0
    %v726 = vmax.f32 %v443, 0.0
    %v727 = vmax.f32 %v446, 0.0
    %v728 = vmax.f32 %v449, 0.0
    %v729 = vmax.f32 %v452, 0.0
    %v730 = vmax.f32 %v455, 0.0
    %v731 = vmax.f32 %v458, 0.0
    %v732 = vmax.f32 %v461, 0.0
    %v733 = vmax.f32 %v464, 0.0
    %v734 = vmax.f32 %v467, 0.0
    %v735 = vmax.f32 %v470, 0.0
    %v736 = vmax.f32 %v473, 0.0
    %v737 = vmax.f32 %v476, 0.0
    %v738 = vmax.f32 %v479, 0.0
    %v739 = vmax.f32 %v482, 0.0
    %v740 = vmax.f32 %v485, 0.0
    %v741 = vmax.f32 %v488, 0.0
    %v742 = vmax.f32 %v491, 0.0
    %v743 = vmax.f32 %v494, 0.0
    %v744 = vmax.f32 %v497, 0.0
    %v745 = vmax.f32 %v500, 0.0
    %v746 = vmax.f32 %v503, 0.0
    %v747 = vmax.f32 %v506, 0.0
    %v748 = vmax.f32 %v509, 0.0
    %v749 = vmax.f32 %v512, 0.0
    %v750 = vmax.f32 %v515, 0.0
    %v751 = vmax.f32 %v518, 0.0
    %v752 = vmax.f32 %v521, 0.0
    %v753 = vmax.f32 %v524, 0.0
    %v754 = vmax.f32 %v527, 0.0
    %v755 = vmax.f32 %v530, 0.0
    %v756 = vmax.f32 %v533, 0.0
    %v757 = vmax.f32 %v536, 0.0
    %v758 = vmax.f32 %v539, 0.0
    %v759 = vmax.f32 %v542, 0.0
    %v760 = vmax.f32 %v545, 0.0
    %v761 = vmax.f32 %v548, 0.0
    %v762 = vmax.f32 %v551, 0.0
    %v763 = vmax.f32 %v554, 0.0
    %v764 = vmax.f32 %v557, 0.0
    %v765 = vmax.f32 %v560, 0.0
    %v766 = vmax.f32 %v563, 0.0
    %v767 = vmax.f32 %v566, 0.0
    %v768 = vmax.f32 %v569, 0.0
    %v769 = vmax.f32 %v572, 0.0
    %v770 = vmax.f32 %v575, 0.0
    %v771 = vmax.f32 %v578, 0.0
    %v772 = vmax.f32 %v581, 0.0
    %v773 = vmax.f32 %v584, 0.0
    %v774 = vmax.f32 %v587, 0.0
    %v775 = vmax.f32 %v590, 0.0
    %v776 = vmax.f32 %v593, 0.0
    %v777 = vmax.f32 %v596, 0.0
    %v778 = vmax.f32 %v599, 0.0
    %v779 = vmax.f32 %v602, 0.0
    %v780 = vmax.f32 %v605, 0.0
    %v781 = vmax.f32 %v608, 0.0
    %v782 = vmax.f32 %v611, 0.0
    %v783 = vmax.f32 %v614, 0.0
    %v784 = vmax.f32 %v617, 0.0
    %v785 = vmax.f32 %v620, 0.0
    %v786 = vmax.f32 %v623, 0.0
    %v787 = vmax.f32 %v626, 0.0
    %v788 = vmax.f32 %v629, 0.0
    %v789 = vmax.f32 %v632, 0.0
    %v790 = vmax.f32 %v635, 0.0
    %v791 = vmax.f32 %v638, 0.0
    %v792 = vmax.f32 %v641, 0.0
    %v793 = vmax.f32 %v644, 0.0
    %v794 = vmax.f32 %v647, 0.0
    %v795 = vmax.f32 %v650, 0.0
    %v940 = vrot.slane %v652, 2
    %v941 = vrot.slane %v652, 4
    %v942 = vrot.slane %v652, 6
    %v943 = vrot.slane %v653, 2
    %v944 = vrot.slane %v653, 4
    %v945 = vrot.slane %v653, 6
    %v946 = vrot.slane %v654, 2
    %v947 = vrot.slane %v654, 4
    %v948 = vrot.slane %v654, 6
    %v949 = vrot.slane %v655, 2
    %v950 = vrot.slane %v655, 4
    %v951 = vrot.slane %v655, 6
    %v952 = vrot.slane %v656, 2
    %v953 = vrot.slane %v656, 4
    %v954 = vrot.slane %v656, 6
    %v955 = vrot.slane %v657, 2
    %v956 = vrot.slane %v657, 4
    %v957 = vrot.slane %v657, 6
    %v958 = vrot.slane %v658, 2
    %v959 = vrot.slane %v658, 4
    %v960 = vrot.slane %v658, 6
    %v961 = vrot.slane %v659, 2
    %v962 = vrot.slane %v659, 4
    %v963 = vrot.slane %v659, 6
    %v964 = vrot.slane %v660, 2
    %v965 = vrot.slane %v660, 4
    %v966 = vrot.slane %v660, 6
    %v967 = vrot.slane %v661, 2
    %v968 = vrot.slane %v661, 4
    %v969 = vrot.slane %v661, 6
    %v970 = vrot.slane %v662, 2
    %v971 = vrot.slane %v662, 4
    %v972 = vrot.slane %v662, 6
    %v973 = vrot.slane %v663, 2
    %v974 = vrot.slane %v663, 4
    %v975 = vrot.slane %v663, 6
    %v976 = vrot.slane %v664, 2
    %v977 = vrot.slane %v664, 4
    %v978 = vrot.slane %v664, 6
    %v979 = vrot.slane %v665, 2
    %v980 = vrot.slane %v665, 4
    %v981 = vrot.slane %v665, 6
    %v982 = vrot.slane %v666, 2
    %v983 = vrot.slane %v666, 4
    %v984 = vrot.slane %v666, 6
    %v985 = vrot.slane %v667, 2
    %v986 = vrot.slane %v667, 4
    %v987 = vrot.slane %v667, 6
    %v988 = vrot.slane %v668, 2
    %v989 = vrot.slane %v668, 4
    %v990 = vrot.slane %v668, 6
    %v991 = vrot.slane %v669, 2
    %v992 = vrot.slane %v669, 4
    %v993 = vrot.slane %v669, 6
    %v994 = vrot.slane %v670, 2
    %v995 = vrot.slane %v670, 4
    %v996 = vrot.slane %v670, 6
    %v997 = vrot.slane %v671, 2
    %v998 = vrot.slane %v671, 4
    %v999 = vrot.slane %v671, 6
    %v1000 = vrot.slane %v672, 2
    %v1001 = vrot.slane %v672, 4
    %v1002 = vrot.slane %v672, 6
    %v1003 = vrot.slane %v673, 2
    %v1004 = vrot.slane %v673, 4
    %v1005 = vrot.slane %v673, 6
    %v1006 = vrot.slane %v674, 2
    %v1007 = vrot.slane %v674, 4
    %v1008 = vrot.slane %v674, 6
    %v1009 = vrot.slane %v675, 2
    %v1010 = vrot.slane %v675, 4
    %v1011 = vrot.slane %v675, 6
    %v1012 = vrot.slane %v676, 2
    %v1013 = vrot.slane %v676, 4
    %v1014 = vrot.slane %v676, 6
    %v1015 = vrot.slane %v677, 2
    %v1016 = vrot.slane %v677, 4
    %v1017 = vrot.slane %v677, 6
    %v1018 = vrot.slane %v678, 2
    %v1019 = vrot.slane %v678, 4
    %v1020 = vrot.slane %v678, 6
    %v1021 = vrot.slane %v679, 2
    %v1022 = vrot.slane %v679, 4
    %v1023 = vrot.slane %v679, 6
    %v1024 = vrot.slane %v680, 2
    %v1025 = vrot.slane %v680, 4
    %v1026 = vrot.slane %v680, 6
    %v1027 = vrot.slane %v681, 2
    %v1028 = vrot.slane %v681, 4
    %v1029 = vrot.slane %v681, 6
    %v1030 = vrot.slane %v682, 2
    %v1031 = vrot.slane %v682, 4
    %v1032 = vrot.slane %v682, 6
    %v1033 = vrot.slane %v683, 2
    %v1034 = vrot.slane %v683, 4
    %v1035 = vrot.slane %v683, 6
    %v1036 = vrot.slane %v684, 2
    %v1037 = vrot.slane %v684, 4
    %v1038 = vrot.slane %v684, 6
    %v1039 = vrot.slane %v685, 2
    %v1040 = vrot.slane %v685, 4
    %v1041 = vrot.slane %v685, 6
    %v1042 = vrot.slane %v686, 2
    %v1043 = vrot.slane %v686, 4
    %v1044 = vrot.slane %v686, 6
    %v1045 = vrot.slane %v687, 2
    %v1046 = vrot.slane %v687, 4
    %v1047 = vrot.slane %v687, 6
    %v1048 = vrot.slane %v688, 2
    %v1049 = vrot.slane %v688, 4
    %v1050 = vrot.slane %v688, 6
    %v1051 = vrot.slane %v689, 2
    %v1052 = vrot.slane %v689, 4
    %v1053 = vrot.slane %v689, 6
    %v1054 = vrot.slane %v690, 2
    %v1055 = vrot.slane %v690, 4
    %v1056 = vrot.slane %v690, 6
    %v1057 = vrot.slane %v691, 2
    %v1058 = vrot.slane %v691, 4
    %v1059 = vrot.slane %v691, 6
    %v1060 = vrot.slane %v692, 2
    %v1061 = vrot.slane %v692, 4
    %v1062 = vrot.slane %v692, 6
    %v1063 = vrot.slane %v693, 2
    %v1064 = vrot.slane %v693, 4
    %v1065 = vrot.slane %v693, 6
    %v1066 = vrot.slane %v694, 2
    %v1067 = vrot.slane %v694, 4
    %v1068 = vrot.slane %v694, 6
    %v1069 = vrot.slane %v695, 2
    %v1070 = vrot.slane %v695, 4
    %v1071 = vrot.slane %v695, 6
    %v1072 = vrot.slane %v696, 2
    %v1073 = vrot.slane %v696, 4
    %v1074 = vrot.slane %v696, 6
    %v1075 = vrot.slane %v697, 2
    %v1076 = vrot.slane %v697, 4
    %v1077 = vrot.slane %v697, 6
    %v1078 = vrot.slane %v698, 2
    %v1079 = vrot.slane %v698, 4
    %v1080 = vrot.slane %v698, 6
    %v1081 = vrot.slane %v699, 2
    %v1082 = vrot.slane %v699, 4
    %v1083 = vrot.slane %v699, 6
    %v1084 = vrot.slane %v700, 2
    %v1085 = vrot.slane %v700, 4
    %v1086 = vrot.slane %v700, 6
    %v1087 = vrot.slane %v701, 2
    %v1088 = vrot.slane %v701, 4
    %v1089 = vrot.slane %v701, 6
    %v1090 = vrot.slane %v702, 2
    %v1091 = vrot.slane %v702, 4
    %v1092 = vrot.slane %v702, 6
    %v1093 = vrot.slane %v703, 2
    %v1094 = vrot.slane %v703, 4
    %v1095 = vrot.slane %v703, 6
    %v1096 = vrot.slane %v704, 2
    %v1097 = vrot.slane %v704, 4
    %v1098 = vrot.slane %v704, 6
    %v1099 = vrot.slane %v705, 2
    %v1100 = vrot.slane %v705, 4
    %v1101 = vrot.slane %v705, 6
    %v1102 = vrot.slane %v706, 2
    %v1103 = vrot.slane %v706, 4
    %v1104 = vrot.slane %v706, 6
    %v1105 = vrot.slane %v707, 2
    %v1106 = vrot.slane %v707, 4
    %v1107 = vrot.slane %v707, 6
    %v1108 = vrot.slane %v708, 2
    %v1109 = vrot.slane %v708, 4
    %v1110 = vrot.slane %v708, 6
    %v1111 = vrot.slane %v709, 2
    %v1112 = vrot.slane %v709, 4
    %v1113 = vrot.slane %v709, 6
    %v1114 = vrot.slane %v710, 2
    %v1115 = vrot.slane %v710, 4
    %v1116 = vrot.slane %v710, 6
    %v1117 = vrot.slane %v711, 2
    %v1118 = vrot.slane %v711, 4
    %v1119 = vrot.slane %v711, 6
    %v1120 = vrot.slane %v712, 2
    %v1121 = vrot.slane %v712, 4
    %v1122 = vrot.slane %v712, 6
    %v1123 = vrot.slane %v713, 2
    %v1124 = vrot.slane %v713, 4
    %v1125 = vrot.slane %v713, 6
    %v1126 = vrot.slane %v714, 2
    %v1127 = vrot.slane %v714, 4
    %v1128 = vrot.slane %v714, 6
    %v1129 = vrot.slane %v715, 2
    %v1130 = vrot.slane %v715, 4
    %v1131 = vrot.slane %v715, 6
    %v1132 = vrot.slane %v716, 2
    %v1133 = vrot.slane %v716, 4
    %v1134 = vrot.slane %v716, 6
    %v1135 = vrot.slane %v717, 2
    %v1136 = vrot.slane %v717, 4
    %v1137 = vrot.slane %v717, 6
    %v1138 = vrot.slane %v718, 2
    %v1139 = vrot.slane %v718, 4
    %v1140 = vrot.slane %v718, 6
    %v1141 = vrot.slane %v719, 2
    %v1142 = vrot.slane %v719, 4
    %v1143 = vrot.slane %v719, 6
    %v1144 = vrot.slane %v720, 2
    %v1145 = vrot.slane %v720, 4
    %v1146 = vrot.slane %v720, 6
    %v1147 = vrot.slane %v721, 2
    %v1148 = vrot.slane %v721, 4
    %v1149 = vrot.slane %v721, 6
    %v1150 = vrot.slane %v722, 2
    %v1151 = vrot.slane %v722, 4
    %v1152 = vrot.slane %v722, 6
    %v1153 = vrot.slane %v723, 2
    %v1154 = vrot.slane %v723, 4
    %v1155 = vrot.slane %v723, 6
    %v1156 = vrot.slane %v724, 2
    %v1157 = vrot.slane %v724, 4
    %v1158 = vrot.slane %v724, 6
    %v1159 = vrot.slane %v725, 2
    %v1160 = vrot.slane %v725, 4
    %v1161 = vrot.slane %v725, 6
    %v1162 = vrot.slane %v726, 2
    %v1163 = vrot.slane %v726, 4
    %v1164 = vrot.slane %v726, 6
    %v1165 = vrot.slane %v727, 2
    %v1166 = vrot.slane %v727, 4
    %v1167 = vrot.slane %v727, 6
    %v1168 = vrot.slane %v728, 2
    %v1169 = vrot.slane %v728, 4
    %v1170 = vrot.slane %v728, 6
    %v1171 = vrot.slane %v729, 2
    %v1172 = vrot.slane %v729, 4
    %v1173 = vrot.slane %v729, 6
    %v1174 = vrot.slane %v730, 2
    %v1175 = vrot.slane %v730, 4
    %v1176 = vrot.slane %v730, 6
    %v1177 = vrot.slane %v731, 2
    %v1178 = vrot.slane %v731, 4
    %v1179 = vrot.slane %v731, 6
    %v1180 = vrot.slane %v732, 2
    %v1181 = vrot.slane %v732, 4
    %v1182 = vrot.slane %v732, 6
    %v1183 = vrot.slane %v733, 2
    %v1184 = vrot.slane %v733, 4
    %v1185 = vrot.slane %v733, 6
    %v1186 = vrot.slane %v734, 2
    %v1187 = vrot.slane %v734, 4
    %v1188 = vrot.slane %v734, 6
    %v1189 = vrot.slane %v735, 2
    %v1190 = vrot.slane %v735, 4
    %v1191 = vrot.slane %v735, 6
    %v1192 = vrot.slane %v736, 2
    %v1193 = vrot.slane %v736, 4
    %v1194 = vrot.slane %v736, 6
    %v1195 = vrot.slane %v737, 2
    %v1196 = vrot.slane %v737, 4
    %v1197 = vrot.slane %v737, 6
    %v1198 = vrot.slane %v738, 2
    %v1199 = vrot.slane %v738, 4
    %v1200 = vrot.slane %v738, 6
    %v1201 = vrot.slane %v739, 2
    %v1202 = vrot.slane %v739, 4
    %v1203 = vrot.slane %v739, 6
    %v1204 = vrot.slane %v740, 2
    %v1205 = vrot.slane %v740, 4
    %v1206 = vrot.slane %v740, 6
    %v1207 = vrot.slane %v741, 2
    %v1208 = vrot.slane %v741, 4
    %v1209 = vrot.slane %v741, 6
    %v1210 = vrot.slane %v742, 2
    %v1211 = vrot.slane %v742, 4
    %v1212 = vrot.slane %v742, 6
    %v1213 = vrot.slane %v743, 2
    %v1214 = vrot.slane %v743, 4
    %v1215 = vrot.slane %v743, 6
    %v1216 = vrot.slane %v744, 2
    %v1217 = vrot.slane %v744, 4
    %v1218 = vrot.slane %v744, 6
    %v1219 = vrot.slane %v745, 2
    %v1220 = vrot.slane %v745, 4
    %v1221 = vrot.slane %v745, 6
    %v1222 = vrot.slane %v746, 2
    %v1223 = vrot.slane %v746, 4
    %v1224 = vrot.slane %v746, 6
    %v1225 = vrot.slane %v747, 2
    %v1226 = vrot.slane %v747, 4
    %v1227 = vrot.slane %v747, 6
    %v1228 = vrot.slane %v748, 2
    %v1229 = vrot.slane %v748, 4
    %v1230 = vrot.slane %v748, 6
    %v1231 = vrot.slane %v749, 2
    %v1232 = vrot.slane %v749, 4
    %v1233 = vrot.slane %v749, 6
    %v1234 = vrot.slane %v750, 2
    %v1235 = vrot.slane %v750, 4
    %v1236 = vrot.slane %v750, 6
    %v1237 = vrot.slane %v751, 2
    %v1238 = vrot.slane %v751, 4
    %v1239 = vrot.slane %v751, 6
    %v1240 = vrot.slane %v752, 2
    %v1241 = vrot.slane %v752, 4
    %v1242 = vrot.slane %v752, 6
    %v1243 = vrot.slane %v753, 2
    %v1244 = vrot.slane %v753, 4
    %v1245 = vrot.slane %v753, 6
    %v1246 = vrot.slane %v754, 2
    %v1247 = vrot.slane %v754, 4
    %v1248 = vrot.slane %v754, 6
    %v1249 = vrot.slane %v755, 2
    %v1250 = vrot.slane %v755, 4
    %v1251 = vrot.slane %v755, 6
    %v1252 = vrot.slane %v756, 2
    %v1253 = vrot.slane %v756, 4
    %v1254 = vrot.slane %v756, 6
    %v1255 = vrot.slane %v757, 2
    %v1256 = vrot.slane %v757, 4
    %v1257 = vrot.slane %v757, 6
    %v1258 = vrot.slane %v758, 2
    %v1259 = vrot.slane %v758, 4
    %v1260 = vrot.slane %v758, 6
    %v1261 = vrot.slane %v759, 2
    %v1262 = vrot.slane %v759, 4
    %v1263 = vrot.slane %v759, 6
    %v1264 = vrot.slane %v760, 2
    %v1265 = vrot.slane %v760, 4
    %v1266 = vrot.slane %v760, 6
    %v1267 = vrot.slane %v761, 2
    %v1268 = vrot.slane %v761, 4
    %v1269 = vrot.slane %v761, 6
    %v1270 = vrot.slane %v762, 2
    %v1271 = vrot.slane %v762, 4
    %v1272 = vrot.slane %v762, 6
    %v1273 = vrot.slane %v763, 2
    %v1274 = vrot.slane %v763, 4
    %v1275 = vrot.slane %v763, 6
    %v1276 = vrot.slane %v764, 2
    %v1277 = vrot.slane %v764, 4
    %v1278 = vrot.slane %v764, 6
    %v1279 = vrot.slane %v765, 2
    %v1280 = vrot.slane %v765, 4
    %v1281 = vrot.slane %v765, 6
    %v1282 = vrot.slane %v766, 2
    %v1283 = vrot.slane %v766, 4
    %v1284 = vrot.slane %v766, 6
    %v1285 = vrot.slane %v767, 2
    %v1286 = vrot.slane %v767, 4
    %v1287 = vrot.slane %v767, 6
    %v1288 = vrot.slane %v768, 2
    %v1289 = vrot.slane %v768, 4
    %v1290 = vrot.slane %v768, 6
    %v1291 = vrot.slane %v769, 2
    %v1292 = vrot.slane %v769, 4
    %v1293 = vrot.slane %v769, 6
    %v1294 = vrot.slane %v770, 2
    %v1295 = vrot.slane %v770, 4
    %v1296 = vrot.slane %v770, 6
    %v1297 = vrot.slane %v771, 2
    %v1298 = vrot.slane %v771, 4
    %v1299 = vrot.slane %v771, 6
    %v1300 = vrot.slane %v772, 2
    %v1301 = vrot.slane %v772, 4
    %v1302 = vrot.slane %v772, 6
    %v1303 = vrot.slane %v773, 2
    %v1304 = vrot.slane %v773, 4
    %v1305 = vrot.slane %v773, 6
    %v1306 = vrot.slane %v774, 2
    %v1307 = vrot.slane %v774, 4
    %v1308 = vrot.slane %v774, 6
    %v1309 = vrot.slane %v775, 2
    %v1310 = vrot.slane %v775, 4
    %v1311 = vrot.slane %v775, 6
    %v1312 = vrot.slane %v776, 2
    %v1313 = vrot.slane %v776, 4
    %v1314 = vrot.slane %v776, 6
    %v1315 = vrot.slane %v777, 2
    %v1316 = vrot.slane %v777, 4
    %v1317 = vrot.slane %v777, 6
    %v1318 = vrot.slane %v778, 2
    %v1319 = vrot.slane %v778, 4
    %v1320 = vrot.slane %v778, 6
    %v1321 = vrot.slane %v779, 2
    %v1322 = vrot.slane %v779, 4
    %v1323 = vrot.slane %v779, 6
    %v1324 = vrot.slane %v780, 2
    %v1325 = vrot.slane %v780, 4
    %v1326 = vrot.slane %v780, 6
    %v1327 = vrot.slane %v781, 2
    %v1328 = vrot.slane %v781, 4
    %v1329 = vrot.slane %v781, 6
    %v1330 = vrot.slane %v782, 2
    %v1331 = vrot.slane %v782, 4
    %v1332 = vrot.slane %v782, 6
    %v1333 = vrot.slane %v783, 2
    %v1334 = vrot.slane %v783, 4
    %v1335 = vrot.slane %v783, 6
    %v1336 = vrot.slane %v784, 2
    %v1337 = vrot.slane %v784, 4
    %v1338 = vrot.slane %v784, 6
    %v1339 = vrot.slane %v785, 2
    %v1340 = vrot.slane %v785, 4
    %v1341 = vrot.slane %v785, 6
    %v1342 = vrot.slane %v786, 2
    %v1343 = vrot.slane %v786, 4
    %v1344 = vrot.slane %v786, 6
    %v1345 = vrot.slane %v787, 2
    %v1346 = vrot.slane %v787, 4
    %v1347 = vrot.slane %v787, 6
    %v1348 = vrot.slane %v788, 2
    %v1349 = vrot.slane %v788, 4
    %v1350 = vrot.slane %v788, 6
    %v1351 = vrot.slane %v789, 2
    %v1352 = vrot.slane %v789, 4
    %v1353 = vrot.slane %v789, 6
    %v1354 = vrot.slane %v790, 2
    %v1355 = vrot.slane %v790, 4
    %v1356 = vrot.slane %v790, 6
    %v1357 = vrot.slane %v791, 2
    %v1358 = vrot.slane %v791, 4
    %v1359 = vrot.slane %v791, 6
    %v1360 = vrot.slane %v792, 2
    %v1361 = vrot.slane %v792, 4
    %v1362 = vrot.slane %v792, 6
    %v1363 = vrot.slane %v793, 2
    %v1364 = vrot.slane %v793, 4
    %v1365 = vrot.slane %v793, 6
    %v1366 = vrot.slane %v794, 2
    %v1367 = vrot.slane %v794, 4
    %v1368 = vrot.slane %v794, 6
    %v1369 = vrot.slane %v795, 2
    %v1370 = vrot.slane %v795, 4
    %v1371 = vrot.slane %v795, 6
    %vm1804 = vcmask 1041408
    %v1805 = vsel %vm1804, %v652, -inf
    %v1806 = vrot.slane %v1805, 4
    %v1807 = vmax.f32 %v1805, %v1806
    %v1808 = vrot.slane %v1807, 2
    %v1809 = vmax.f32 %v1807, %v1808
    %v1810 = vrot.slane %v1809, 1
    %v1811 = vmax.f32 %v1809, %v1810
    %v1812 = vsel %vm1804, %v940, -inf
    %v1813 = vrot.slane %v1812, 4
    %v1814 = vmax.f32 %v1812, %v1813
    %v1815 = vrot.slane %v1814, 2
    %v1816 = vmax.f32 %v1814, %v1815
    %v1817 = vrot.slane %v1816, 1
    %v1818 = vmax.f32 %v1816, %v1817
    %v1819 = vsel %vm1804, %v941, -inf
    %v1820 = vrot.slane %v1819, 4
    %v1821 = vmax.f32 %v1819, %v1820
    %v1822 = vrot.slane %v1821, 2
    %v1823 = vmax.f32 %v1821, %v1822
    %v1824 = vrot.slane %v1823, 1
    %v1825 = vmax.f32 %v1823, %v1824
    %v1826 = vsel %vm1804, %v942, -inf
    %v1827 = vrot.slane %v1826, 4
    %v1828 = vmax.f32 %v1826, %v1827
    %v1829 = vrot.slane %v1828, 2
    %v1830 = vmax.f32 %v1828, %v1829
    %v1831 = vrot.slane %v1830, 1
    %v1832 = vmax.f32 %v1830, %v1831
    %v1833 = vsel %vm1804, %v653, -inf
    %v1834 = vrot.slane %v1833, 4
    %v1835 = vmax.f32 %v1833, %v1834
    %v1836 = vrot.slane %v1835, 2
    %v1837 = vmax.f32 %v1835, %v1836
    %v1838 = vrot.slane %v1837, 1
    %v1839 = vmax.f32 %v1837, %v1838
    %v1840 = vsel %vm1804, %v943, -inf
    %v1841 = vrot.slane %v1840, 4
    %v1842 = vmax.f32 %v1840, %v1841
    %v1843 = vrot.slane %v1842, 2
    %v1844 = vmax.f32 %v1842, %v1843
    %v1845 = vrot.slane %v1844, 1
    %v1846 = vmax.f32 %v1844, %v1845
    %v1847 = vsel %vm1804, %v944, -inf
    %v1848 = vrot.slane %v1847, 4
    %v1849 = vmax.f32 %v1847, %v1848
    %v1850 = vrot.slane %v1849, 2
    %v1851 = vmax.f32 %v1849, %v1850
    %v1852 = vrot.slane %v1851, 1
    %v1853 = vmax.f32 %v1851, %v1852
    %v1854 = vsel %vm1804, %v945, -inf
    %v1855 = vrot.slane %v1854, 4
    %v1856 = vmax.f32 %v1854, %v1855
    %v1857 = vrot.slane %v1856, 2
    %v1858 = vmax.f32 %v1856, %v1857
    %v1859 = vrot.slane %v1858, 1
    %v1860 = vmax.f32 %v1858, %v1859
    %v1861 = vsel %vm1804, %v654, -inf
    %v1862 = vrot.slane %v1861, 4
    %v1863 = vmax.f32 %v1861, %v1862
    %v1864 = vrot.slane %v1863, 2
    %v1865 = vmax.f32 %v1863, %v1864
    %v1866 = vrot.slane %v1865, 1
    %v1867 = vmax.f32 %v1865, %v1866
    %v1868 = vsel %vm1804, %v946, -inf
    %v1869 = vrot.slane %v1868, 4
    %v1870 = vmax.f32 %v1868, %v1869
    %v1871 = vrot.slane %v1870, 2
    %v1872 = vmax.f32 %v1870, %v1871
    %v1873 = vrot.slane %v1872, 1
    %v1874 = vmax.f32 %v1872, %v1873
    %v1875 = vsel %vm1804, %v947, -inf
    %v1876 = vrot.slane %v1875, 4
    %v1877 = vmax.f32 %v1875, %v1876
    %v1878 = vrot.slane %v1877, 2
    %v1879 = vmax.f32 %v1877, %v1878
    %v1880 = vrot.slane %v1879, 1
    %v1881 = vmax.f32 %v1879, %v1880
    %v1882 = vsel %vm1804, %v948, -inf
    %v1883 = vrot.slane %v1882, 4
    %v1884 = vmax.f32 %v1882, %v1883
    %v1885 = vrot.slane %v1884, 2
    %v1886 = vmax.f32 %v1884, %v1885
    %v1887 = vrot.slane %v1886, 1
    %v1888 = vmax.f32 %v1886, %v1887
    %v1889 = vsel %vm1804, %v655, -inf
    %v1890 = vrot.slane %v1889, 4
    %v1891 = vmax.f32 %v1889, %v1890
    %v1892 = vrot.slane %v1891, 2
    %v1893 = vmax.f32 %v1891, %v1892
    %v1894 = vrot.slane %v1893, 1
    %v1895 = vmax.f32 %v1893, %v1894
    %v1896 = vsel %vm1804, %v949, -inf
    %v1897 = vrot.slane %v1896, 4
    %v1898 = vmax.f32 %v1896, %v1897
    %v1899 = vrot.slane %v1898, 2
    %v1900 = vmax.f32 %v1898, %v1899
    %v1901 = vrot.slane %v1900, 1
    %v1902 = vmax.f32 %v1900, %v1901
    %v1903 = vsel %vm1804, %v950, -inf
    %v1904 = vrot.slane %v1903, 4
    %v1905 = vmax.f32 %v1903, %v1904
    %v1906 = vrot.slane %v1905, 2
    %v1907 = vmax.f32 %v1905, %v1906
    %v1908 = vrot.slane %v1907, 1
    %v1909 = vmax.f32 %v1907, %v1908
    %v1910 = vsel %vm1804, %v951, -inf
    %v1911 = vrot.slane %v1910, 4
    %v1912 = vmax.f32 %v1910, %v1911
    %v1913 = vrot.slane %v1912, 2
    %v1914 = vmax.f32 %v1912, %v1913
    %v1915 = vrot.slane %v1914, 1
    %v1916 = vmax.f32 %v1914, %v1915
    %v1917 = vsel %vm1804, %v656, -inf
    %v1918 = vrot.slane %v1917, 4
    %v1919 = vmax.f32 %v1917, %v1918
    %v1920 = vrot.slane %v1919, 2
    %v1921 = vmax.f32 %v1919, %v1920
    %v1922 = vrot.slane %v1921, 1
    %v1923 = vmax.f32 %v1921, %v1922
    %v1924 = vsel %vm1804, %v952, -inf
    %v1925 = vrot.slane %v1924, 4
    %v1926 = vmax.f32 %v1924, %v1925
    %v1927 = vrot.slane %v1926, 2
    %v1928 = vmax.f32 %v1926, %v1927
    %v1929 = vrot.slane %v1928, 1
    %v1930 = vmax.f32 %v1928, %v1929
    %v1931 = vsel %vm1804, %v953, -inf
    %v1932 = vrot.slane %v1931, 4
    %v1933 = vmax.f32 %v1931, %v1932
    %v1934 = vrot.slane %v1933, 2
    %v1935 = vmax.f32 %v1933, %v1934
    %v1936 = vrot.slane %v1935, 1
    %v1937 = vmax.f32 %v1935, %v1936
    %v1938 = vsel %vm1804, %v954, -inf
    %v1939 = vrot.slane %v1938, 4
    %v1940 = vmax.f32 %v1938, %v1939
    %v1941 = vrot.slane %v1940, 2
    %v1942 = vmax.f32 %v1940, %v1941
    %v1943 = vrot.slane %v1942, 1
    %v1944 = vmax.f32 %v1942, %v1943
    %v1945 = vsel %vm1804, %v657, -inf
    %v1946 = vrot.slane %v1945, 4
    %v1947 = vmax.f32 %v1945, %v1946
    %v1948 = vrot.slane %v1947, 2
    %v1949 = vmax.f32 %v1947, %v1948
    %v1950 = vrot.slane %v1949, 1
    %v1951 = vmax.f32 %v1949, %v1950
    %v1952 = vsel %vm1804, %v955, -inf
    %v1953 = vrot.slane %v1952, 4
    %v1954 = vmax.f32 %v1952, %v1953
    %v1955 = vrot.slane %v1954, 2
    %v1956 = vmax.f32 %v1954, %v1955
    %v1957 = vrot.slane %v1956, 1
    %v1958 = vmax.f32 %v1956, %v1957
    %v1959 = vsel %vm1804, %v956, -inf
    %v1960 = vrot.slane %v1959, 4
    %v1961 = vmax.f32 %v1959, %v1960
    %v1962 = vrot.slane %v1961, 2
    %v1963 = vmax.f32 %v1961, %v1962
    %v1964 = vrot.slane %v1963, 1
    %v1965 = vmax.f32 %v1963, %v1964
    %v1966 = vsel %vm1804, %v957, -inf
    %v1967 = vrot.slane %v1966, 4
    %v1968 = vmax.f32 %v1966, %v1967
    %v1969 = vrot.slane %v1968, 2
    %v1970 = vmax.f32 %v1968, %v1969
    %v1971 = vrot.slane %v1970, 1
    %v1972 = vmax.f32 %v1970, %v1971
    %v1973 = vsel %vm1804, %v658, -inf
    %v1974 = vrot.slane %v1973, 4
    %v1975 = vmax.f32 %v1973, %v1974
    %v1976 = vrot.slane %v1975, 2
    %v1977 = vmax.f32 %v1975, %v1976
    %v1978 = vrot.slane %v1977, 1
    %v1979 = vmax.f32 %v1977, %v1978
    %v1980 = vsel %vm1804, %v958, -inf
    %v1981 = vrot.slane %v1980, 4
    %v1982 = vmax.f32 %v1980, %v1981
    %v1983 = vrot.slane %v1982, 2
    %v1984 = vmax.f32 %v1982, %v1983
    %v1985 = vrot.slane %v1984, 1
    %v1986 = vmax.f32 %v1984, %v1985
    %v1987 = vsel %vm1804, %v959, -inf
    %v1988 = vrot.slane %v1987, 4
    %v1989 = vmax.f32 %v1987, %v1988
    %v1990 = vrot.slane %v1989, 2
    %v1991 = vmax.f32 %v1989, %v1990
    %v1992 = vrot.slane %v1991, 1
    %v1993 = vmax.f32 %v1991, %v1992
    %v1994 = vsel %vm1804, %v960, -inf
    %v1995 = vrot.slane %v1994, 4
    %v1996 = vmax.f32 %v1994, %v1995
    %v1997 = vrot.slane %v1996, 2
    %v1998 = vmax.f32 %v1996, %v1997
    %v1999 = vrot.slane %v1998, 1
    %v2000 = vmax.f32 %v1998, %v1999
    %v2001 = vsel %vm1804, %v659, -inf
    %v2002 = vrot.slane %v2001, 4
    %v2003 = vmax.f32 %v2001, %v2002
    %v2004 = vrot.slane %v2003, 2
    %v2005 = vmax.f32 %v2003, %v2004
    %v2006 = vrot.slane %v2005, 1
    %v2007 = vmax.f32 %v2005, %v2006
    %v2008 = vsel %vm1804, %v961, -inf
    %v2009 = vrot.slane %v2008, 4
    %v2010 = vmax.f32 %v2008, %v2009
    %v2011 = vrot.slane %v2010, 2
    %v2012 = vmax.f32 %v2010, %v2011
    %v2013 = vrot.slane %v2012, 1
    %v2014 = vmax.f32 %v2012, %v2013
    %v2015 = vsel %vm1804, %v962, -inf
    %v2016 = vrot.slane %v2015, 4
    %v2017 = vmax.f32 %v2015, %v2016
    %v2018 = vrot.slane %v2017, 2
    %v2019 = vmax.f32 %v2017, %v2018
    %v2020 = vrot.slane %v2019, 1
    %v2021 = vmax.f32 %v2019, %v2020
    %v2022 = vsel %vm1804, %v963, -inf
    %v2023 = vrot.slane %v2022, 4
    %v2024 = vmax.f32 %v2022, %v2023
    %v2025 = vrot.slane %v2024, 2
    %v2026 = vmax.f32 %v2024, %v2025
    %v2027 = vrot.slane %v2026, 1
    %v2028 = vmax.f32 %v2026, %v2027
    %v2029 = vsel %vm1804, %v660, -inf
    %v2030 = vrot.slane %v2029, 4
    %v2031 = vmax.f32 %v2029, %v2030
    %v2032 = vrot.slane %v2031, 2
    %v2033 = vmax.f32 %v2031, %v2032
    %v2034 = vrot.slane %v2033, 1
    %v2035 = vmax.f32 %v2033, %v2034
    %v2036 = vsel %vm1804, %v964, -inf
    %v2037 = vrot.slane %v2036, 4
    %v2038 = vmax.f32 %v2036, %v2037
    %v2039 = vrot.slane %v2038, 2
    %v2040 = vmax.f32 %v2038, %v2039
    %v2041 = vrot.slane %v2040, 1
    %v2042 = vmax.f32 %v2040, %v2041
    %v2043 = vsel %vm1804, %v965, -inf
    %v2044 = vrot.slane %v2043, 4
    %v2045 = vmax.f32 %v2043, %v2044
    %v2046 = vrot.slane %v2045, 2
    %v2047 = vmax.f32 %v2045, %v2046
    %v2048 = vrot.slane %v2047, 1
    %v2049 = vmax.f32 %v2047, %v2048
    %v2050 = vsel %vm1804, %v966, -inf
    %v2051 = vrot.slane %v2050, 4
    %v2052 = vmax.f32 %v2050, %v2051
    %v2053 = vrot.slane %v2052, 2
    %v2054 = vmax.f32 %v2052, %v2053
    %v2055 = vrot.slane %v2054, 1
    %v2056 = vmax.f32 %v2054, %v2055
    %v2057 = vsel %vm1804, %v661, -inf
    %v2058 = vrot.slane %v2057, 4
    %v2059 = vmax.f32 %v2057, %v2058
    %v2060 = vrot.slane %v2059, 2
    %v2061 = vmax.f32 %v2059, %v2060
    %v2062 = vrot.slane %v2061, 1
    %v2063 = vmax.f32 %v2061, %v2062
    %v2064 = vsel %vm1804, %v967, -inf
    %v2065 = vrot.slane %v2064, 4
    %v2066 = vmax.f32 %v2064, %v2065
    %v2067 = vrot.slane %v2066, 2
    %v2068 = vmax.f32 %v2066, %v2067
    %v2069 = vrot.slane %v2068, 1
    %v2070 = vmax.f32 %v2068, %v2069
    %v2071 = vsel %vm1804, %v968, -inf
    %v2072 = vrot.slane %v2071, 4
    %v2073 = vmax.f32 %v2071, %v2072
    %v2074 = vrot.slane %v2073, 2
    %v2075 = vmax.f32 %v2073, %v2074
    %v2076 = vrot.slane %v2075, 1
    %v2077 = vmax.f32 %v2075, %v2076
    %v2078 = vsel %vm1804, %v969, -inf
    %v2079 = vrot.slane %v2078, 4
    %v2080 = vmax.f32 %v2078, %v2079
    %v2081 = vrot.slane %v2080, 2
    %v2082 = vmax.f32 %v2080, %v2081
    %v2083 = vrot.slane %v2082, 1
    %v2084 = vmax.f32 %v2082, %v2083
    %v2085 = vsel %vm1804, %v662, -inf
    %v2086 = vrot.slane %v2085, 4
    %v2087 = vmax.f32 %v2085, %v2086
    %v2088 = vrot.slane %v2087, 2
    %v2089 = vmax.f32 %v2087, %v2088
    %v2090 = vrot.slane %v2089, 1
    %v2091 = vmax.f32 %v2089, %v2090
    %v2092 = vsel %vm1804, %v970, -inf
    %v2093 = vrot.slane %v2092, 4
    %v2094 = vmax.f32 %v2092, %v2093
    %v2095 = vrot.slane %v2094, 2
    %v2096 = vmax.f32 %v2094, %v2095
    %v2097 = vrot.slane %v2096, 1
    %v2098 = vmax.f32 %v2096, %v2097
    %v2099 = vsel %vm1804, %v971, -inf
    %v2100 = vrot.slane %v2099, 4
    %v2101 = vmax.f32 %v2099, %v2100
    %v2102 = vrot.slane %v2101, 2
    %v2103 = vmax.f32 %v2101, %v2102
    %v2104 = vrot.slane %v2103, 1
    %v2105 = vmax.f32 %v2103, %v2104
    %v2106 = vsel %vm1804, %v972, -inf
    %v2107 = vrot.slane %v2106, 4
    %v2108 = vmax.f32 %v2106, %v2107
    %v2109 = vrot.slane %v2108, 2
    %v2110 = vmax.f32 %v2108, %v2109
    %v2111 = vrot.slane %v2110, 1
    %v2112 = vmax.f32 %v2110, %v2111
    %v2113 = vsel %vm1804, %v663, -inf
    %v2114 = vrot.slane %v2113, 4
    %v2115 = vmax.f32 %v2113, %v2114
    %v2116 = vrot.slane %v2115, 2
    %v2117 = vmax.f32 %v2115, %v2116
    %v2118 = vrot.slane %v2117, 1
    %v2119 = vmax.f32 %v2117, %v2118
    %v2120 = vsel %vm1804, %v973, -inf
    %v2121 = vrot.slane %v2120, 4
    %v2122 = vmax.f32 %v2120, %v2121
    %v2123 = vrot.slane %v2122, 2
    %v2124 = vmax.f32 %v2122, %v2123
    %v2125 = vrot.slane %v2124, 1
    %v2126 = vmax.f32 %v2124, %v2125
    %v2127 = vsel %vm1804, %v974, -inf
    %v2128 = vrot.slane %v2127, 4
    %v2129 = vmax.f32 %v2127, %v2128
    %v2130 = vrot.slane %v2129, 2
    %v2131 = vmax.f32 %v2129, %v2130
    %v2132 = vrot.slane %v2131, 1
    %v2133 = vmax.f32 %v2131, %v2132
    %v2134 = vsel %vm1804, %v975, -inf
    %v2135 = vrot.slane %v2134, 4
    %v2136 = vmax.f32 %v2134, %v2135
    %v2137 = vrot.slane %v2136, 2
    %v2138 = vmax.f32 %v2136, %v2137
    %v2139 = vrot.slane %v2138, 1
    %v2140 = vmax.f32 %v2138, %v2139
    %v2141 = vsel %vm1804, %v664, -inf
    %v2142 = vrot.slane %v2141, 4
    %v2143 = vmax.f32 %v2141, %v2142
    %v2144 = vrot.slane %v2143, 2
    %v2145 = vmax.f32 %v2143, %v2144
    %v2146 = vrot.slane %v2145, 1
    %v2147 = vmax.f32 %v2145, %v2146
    %v2148 = vsel %vm1804, %v976, -inf
    %v2149 = vrot.slane %v2148, 4
    %v2150 = vmax.f32 %v2148, %v2149
    %v2151 = vrot.slane %v2150, 2
    %v2152 = vmax.f32 %v2150, %v2151
    %v2153 = vrot.slane %v2152, 1
    %v2154 = vmax.f32 %v2152, %v2153
    %v2155 = vsel %vm1804, %v977, -inf
    %v2156 = vrot.slane %v2155, 4
    %v2157 = vmax.f32 %v2155, %v2156
    %v2158 = vrot.slane %v2157, 2
    %v2159 = vmax.f32 %v2157, %v2158
    %v2160 = vrot.slane %v2159, 1
    %v2161 = vmax.f32 %v2159, %v2160
    %v2162 = vsel %vm1804, %v978, -inf
    %v2163 = vrot.slane %v2162, 4
    %v2164 = vmax.f32 %v2162, %v2163
    %v2165 = vrot.slane %v2164, 2
    %v2166 = vmax.f32 %v2164, %v2165
    %v2167 = vrot.slane %v2166, 1
    %v2168 = vmax.f32 %v2166, %v2167
    %v2169 = vsel %vm1804, %v665, -inf
    %v2170 = vrot.slane %v2169, 4
    %v2171 = vmax.f32 %v2169, %v2170
    %v2172 = vrot.slane %v2171, 2
    %v2173 = vmax.f32 %v2171, %v2172
    %v2174 = vrot.slane %v2173, 1
    %v2175 = vmax.f32 %v2173, %v2174
    %v2176 = vsel %vm1804, %v979, -inf
    %v2177 = vrot.slane %v2176, 4
    %v2178 = vmax.f32 %v2176, %v2177
    %v2179 = vrot.slane %v2178, 2
    %v2180 = vmax.f32 %v2178, %v2179
    %v2181 = vrot.slane %v2180, 1
    %v2182 = vmax.f32 %v2180, %v2181
    %v2183 = vsel %vm1804, %v980, -inf
    %v2184 = vrot.slane %v2183, 4
    %v2185 = vmax.f32 %v2183, %v2184
    %v2186 = vrot.slane %v2185, 2
    %v2187 = vmax.f32 %v2185, %v2186
    %v2188 = vrot.slane %v2187, 1
    %v2189 = vmax.f32 %v2187, %v2188
    %v2190 = vsel %vm1804, %v981, -inf
    %v2191 = vrot.slane %v2190, 4
    %v2192 = vmax.f32 %v2190, %v2191
    %v2193 = vrot.slane %v2192, 2
    %v2194 = vmax.f32 %v2192, %v2193
    %v2195 = vrot.slane %v2194, 1
    %v2196 = vmax.f32 %v2194, %v2195
    %v2197 = vsel %vm1804, %v666, -inf
    %v2198 = vrot.slane %v2197, 4
    %v2199 = vmax.f32 %v2197, %v2198
    %v2200 = vrot.slane %v2199, 2
    %v2201 = vmax.f32 %v2199, %v2200
    %v2202 = vrot.slane %v2201, 1
    %v2203 = vmax.f32 %v2201, %v2202
    %v2204 = vsel %vm1804, %v982, -inf
    %v2205 = vrot.slane %v2204, 4
    %v2206 = vmax.f32 %v2204, %v2205
    %v2207 = vrot.slane %v2206, 2
    %v2208 = vmax.f32 %v2206, %v2207
    %v2209 = vrot.slane %v2208, 1
    %v2210 = vmax.f32 %v2208, %v2209
    %v2211 = vsel %vm1804, %v983, -inf
    %v2212 = vrot.slane %v2211, 4
    %v2213 = vmax.f32 %v2211, %v2212
    %v2214 = vrot.slane %v2213, 2
    %v2215 = vmax.f32 %v2213, %v2214
    %v2216 = vrot.slane %v2215, 1
    %v2217 = vmax.f32 %v2215, %v2216
    %v2218 = vsel %vm1804, %v984, -inf
    %v2219 = vrot.slane %v2218, 4
    %v2220 = vmax.f32 %v2218, %v2219
    %v2221 = vrot.slane %v2220, 2
    %v2222 = vmax.f32 %v2220, %v2221
    %v2223 = vrot.slane %v2222, 1
    %v2224 = vmax.f32 %v2222, %v2223
    %v2225 = vsel %vm1804, %v667, -inf
    %v2226 = vrot.slane %v2225, 4
    %v2227 = vmax.f32 %v2225, %v2226
    %v2228 = vrot.slane %v2227, 2
    %v2229 = vmax.f32 %v2227, %v2228
    %v2230 = vrot.slane %v2229, 1
    %v2231 = vmax.f32 %v2229, %v2230
    %v2232 = vsel %vm1804, %v985, -inf
    %v2233 = vrot.slane %v2232, 4
    %v2234 = vmax.f32 %v2232, %v2233
    %v2235 = vrot.slane %v2234, 2
    %v2236 = vmax.f32 %v2234, %v2235
    %v2237 = vrot.slane %v2236, 1
    %v2238 = vmax.f32 %v2236, %v2237
    %v2239 = vsel %vm1804, %v986, -inf
    %v2240 = vrot.slane %v2239, 4
    %v2241 = vmax.f32 %v2239, %v2240
    %v2242 = vrot.slane %v2241, 2
    %v2243 = vmax.f32 %v2241, %v2242
    %v2244 = vrot.slane %v2243, 1
    %v2245 = vmax.f32 %v2243, %v2244
    %v2246 = vsel %vm1804, %v987, -inf
    %v2247 = vrot.slane %v2246, 4
    %v2248 = vmax.f32 %v2246, %v2247
    %v2249 = vrot.slane %v2248, 2
    %v2250 = vmax.f32 %v2248, %v2249
    %v2251 = vrot.slane %v2250, 1
    %v2252 = vmax.f32 %v2250, %v2251
    %v2253 = vsel %vm1804, %v668, -inf
    %v2254 = vrot.slane %v2253, 4
    %v2255 = vmax.f32 %v2253, %v2254
    %v2256 = vrot.slane %v2255, 2
    %v2257 = vmax.f32 %v2255, %v2256
    %v2258 = vrot.slane %v2257, 1
    %v2259 = vmax.f32 %v2257, %v2258
    %v2260 = vsel %vm1804, %v988, -inf
    %v2261 = vrot.slane %v2260, 4
    %v2262 = vmax.f32 %v2260, %v2261
    %v2263 = vrot.slane %v2262, 2
    %v2264 = vmax.f32 %v2262, %v2263
    %v2265 = vrot.slane %v2264, 1
    %v2266 = vmax.f32 %v2264, %v2265
    %v2267 = vsel %vm1804, %v989, -inf
    %v2268 = vrot.slane %v2267, 4
    %v2269 = vmax.f32 %v2267, %v2268
    %v2270 = vrot.slane %v2269, 2
    %v2271 = vmax.f32 %v2269, %v2270
    %v2272 = vrot.slane %v2271, 1
    %v2273 = vmax.f32 %v2271, %v2272
    %v2274 = vsel %vm1804, %v990, -inf
    %v2275 = vrot.slane %v2274, 4
    %v2276 = vmax.f32 %v2274, %v2275
    %v2277 = vrot.slane %v2276, 2
    %v2278 = vmax.f32 %v2276, %v2277
    %v2279 = vrot.slane %v2278, 1
    %v2280 = vmax.f32 %v2278, %v2279
    %v2281 = vsel %vm1804, %v669, -inf
    %v2282 = vrot.slane %v2281, 4
    %v2283 = vmax.f32 %v2281, %v2282
    %v2284 = vrot.slane %v2283, 2
    %v2285 = vmax.f32 %v2283, %v2284
    %v2286 = vrot.slane %v2285, 1
    %v2287 = vmax.f32 %v2285, %v2286
    %v2288 = vsel %vm1804, %v991, -inf
    %v2289 = vrot.slane %v2288, 4
    %v2290 = vmax.f32 %v2288, %v2289
    %v2291 = vrot.slane %v2290, 2
    %v2292 = vmax.f32 %v2290, %v2291
    %v2293 = vrot.slane %v2292, 1
    %v2294 = vmax.f32 %v2292, %v2293
    %v2295 = vsel %vm1804, %v992, -inf
    %v2296 = vrot.slane %v2295, 4
    %v2297 = vmax.f32 %v2295, %v2296
    %v2298 = vrot.slane %v2297, 2
    %v2299 = vmax.f32 %v2297, %v2298
    %v2300 = vrot.slane %v2299, 1
    %v2301 = vmax.f32 %v2299, %v2300
    %v2302 = vsel %vm1804, %v993, -inf
    %v2303 = vrot.slane %v2302, 4
    %v2304 = vmax.f32 %v2302, %v2303
    %v2305 = vrot.slane %v2304, 2
    %v2306 = vmax.f32 %v2304, %v2305
    %v2307 = vrot.slane %v2306, 1
    %v2308 = vmax.f32 %v2306, %v2307
    %v2309 = vsel %vm1804, %v670, -inf
    %v2310 = vrot.slane %v2309, 4
    %v2311 = vmax.f32 %v2309, %v2310
    %v2312 = vrot.slane %v2311, 2
    %v2313 = vmax.f32 %v2311, %v2312
    %v2314 = vrot.slane %v2313, 1
    %v2315 = vmax.f32 %v2313, %v2314
    %v2316 = vsel %vm1804, %v994, -inf
    %v2317 = vrot.slane %v2316, 4
    %v2318 = vmax.f32 %v2316, %v2317
    %v2319 = vrot.slane %v2318, 2
    %v2320 = vmax.f32 %v2318, %v2319
    %v2321 = vrot.slane %v2320, 1
    %v2322 = vmax.f32 %v2320, %v2321
    %v2323 = vsel %vm1804, %v995, -inf
    %v2324 = vrot.slane %v2323, 4
    %v2325 = vmax.f32 %v2323, %v2324
    %v2326 = vrot.slane %v2325, 2
    %v2327 = vmax.f32 %v2325, %v2326
    %v2328 = vrot.slane %v2327, 1
    %v2329 = vmax.f32 %v2327, %v2328
    %v2330 = vsel %vm1804, %v996, -inf
    %v2331 = vrot.slane %v2330, 4
    %v2332 = vmax.f32 %v2330, %v2331
    %v2333 = vrot.slane %v2332, 2
    %v2334 = vmax.f32 %v2332, %v2333
    %v2335 = vrot.slane %v2334, 1
    %v2336 = vmax.f32 %v2334, %v2335
    %v2337 = vsel %vm1804, %v671, -inf
    %v2338 = vrot.slane %v2337, 4
    %v2339 = vmax.f32 %v2337, %v2338
    %v2340 = vrot.slane %v2339, 2
    %v2341 = vmax.f32 %v2339, %v2340
    %v2342 = vrot.slane %v2341, 1
    %v2343 = vmax.f32 %v2341, %v2342
    %v2344 = vsel %vm1804, %v997, -inf
    %v2345 = vrot.slane %v2344, 4
    %v2346 = vmax.f32 %v2344, %v2345
    %v2347 = vrot.slane %v2346, 2
    %v2348 = vmax.f32 %v2346, %v2347
    %v2349 = vrot.slane %v2348, 1
    %v2350 = vmax.f32 %v2348, %v2349
    %v2351 = vsel %vm1804, %v998, -inf
    %v2352 = vrot.slane %v2351, 4
    %v2353 = vmax.f32 %v2351, %v2352
    %v2354 = vrot.slane %v2353, 2
    %v2355 = vmax.f32 %v2353, %v2354
    %v2356 = vrot.slane %v2355, 1
    %v2357 = vmax.f32 %v2355, %v2356
    %v2358 = vsel %vm1804, %v999, -inf
    %v2359 = vrot.slane %v2358, 4
    %v2360 = vmax.f32 %v2358, %v2359
    %v2361 = vrot.slane %v2360, 2
    %v2362 = vmax.f32 %v2360, %v2361
    %v2363 = vrot.slane %v2362, 1
    %v2364 = vmax.f32 %v2362, %v2363
    %v2365 = vsel %vm1804, %v672, -inf
    %v2366 = vrot.slane %v2365, 4
    %v2367 = vmax.f32 %v2365, %v2366
    %v2368 = vrot.slane %v2367, 2
    %v2369 = vmax.f32 %v2367, %v2368
    %v2370 = vrot.slane %v2369, 1
    %v2371 = vmax.f32 %v2369, %v2370
    %v2372 = vsel %vm1804, %v1000, -inf
    %v2373 = vrot.slane %v2372, 4
    %v2374 = vmax.f32 %v2372, %v2373
    %v2375 = vrot.slane %v2374, 2
    %v2376 = vmax.f32 %v2374, %v2375
    %v2377 = vrot.slane %v2376, 1
    %v2378 = vmax.f32 %v2376, %v2377
    %v2379 = vsel %vm1804, %v1001, -inf
    %v2380 = vrot.slane %v2379, 4
    %v2381 = vmax.f32 %v2379, %v2380
    %v2382 = vrot.slane %v2381, 2
    %v2383 = vmax.f32 %v2381, %v2382
    %v2384 = vrot.slane %v2383, 1
    %v2385 = vmax.f32 %v2383, %v2384
    %v2386 = vsel %vm1804, %v1002, -inf
    %v2387 = vrot.slane %v2386, 4
    %v2388 = vmax.f32 %v2386, %v2387
    %v2389 = vrot.slane %v2388, 2
    %v2390 = vmax.f32 %v2388, %v2389
    %v2391 = vrot.slane %v2390, 1
    %v2392 = vmax.f32 %v2390, %v2391
    %v2393 = vsel %vm1804, %v673, -inf
    %v2394 = vrot.slane %v2393, 4
    %v2395 = vmax.f32 %v2393, %v2394
    %v2396 = vrot.slane %v2395, 2
    %v2397 = vmax.f32 %v2395, %v2396
    %v2398 = vrot.slane %v2397, 1
    %v2399 = vmax.f32 %v2397, %v2398
    %v2400 = vsel %vm1804, %v1003, -inf
    %v2401 = vrot.slane %v2400, 4
    %v2402 = vmax.f32 %v2400, %v2401
    %v2403 = vrot.slane %v2402, 2
    %v2404 = vmax.f32 %v2402, %v2403
    %v2405 = vrot.slane %v2404, 1
    %v2406 = vmax.f32 %v2404, %v2405
    %v2407 = vsel %vm1804, %v1004, -inf
    %v2408 = vrot.slane %v2407, 4
    %v2409 = vmax.f32 %v2407, %v2408
    %v2410 = vrot.slane %v2409, 2
    %v2411 = vmax.f32 %v2409, %v2410
    %v2412 = vrot.slane %v2411, 1
    %v2413 = vmax.f32 %v2411, %v2412
    %v2414 = vsel %vm1804, %v1005, -inf
    %v2415 = vrot.slane %v2414, 4
    %v2416 = vmax.f32 %v2414, %v2415
    %v2417 = vrot.slane %v2416, 2
    %v2418 = vmax.f32 %v2416, %v2417
    %v2419 = vrot.slane %v2418, 1
    %v2420 = vmax.f32 %v2418, %v2419
    %v2421 = vsel %vm1804, %v674, -inf
    %v2422 = vrot.slane %v2421, 4
    %v2423 = vmax.f32 %v2421, %v2422
    %v2424 = vrot.slane %v2423, 2
    %v2425 = vmax.f32 %v2423, %v2424
    %v2426 = vrot.slane %v2425, 1
    %v2427 = vmax.f32 %v2425, %v2426
    %v2428 = vsel %vm1804, %v1006, -inf
    %v2429 = vrot.slane %v2428, 4
    %v2430 = vmax.f32 %v2428, %v2429
    %v2431 = vrot.slane %v2430, 2
    %v2432 = vmax.f32 %v2430, %v2431
    %v2433 = vrot.slane %v2432, 1
    %v2434 = vmax.f32 %v2432, %v2433
    %v2435 = vsel %vm1804, %v1007, -inf
    %v2436 = vrot.slane %v2435, 4
    %v2437 = vmax.f32 %v2435, %v2436
    %v2438 = vrot.slane %v2437, 2
    %v2439 = vmax.f32 %v2437, %v2438
    %v2440 = vrot.slane %v2439, 1
    %v2441 = vmax.f32 %v2439, %v2440
    %v2442 = vsel %vm1804, %v1008, -inf
    %v2443 = vrot.slane %v2442, 4
    %v2444 = vmax.f32 %v2442, %v2443
    %v2445 = vrot.slane %v2444, 2
    %v2446 = vmax.f32 %v2444, %v2445
    %v2447 = vrot.slane %v2446, 1
    %v2448 = vmax.f32 %v2446, %v2447
    %v2449 = vsel %vm1804, %v675, -inf
    %v2450 = vrot.slane %v2449, 4
    %v2451 = vmax.f32 %v2449, %v2450
    %v2452 = vrot.slane %v2451, 2
    %v2453 = vmax.f32 %v2451, %v2452
    %v2454 = vrot.slane %v2453, 1
    %v2455 = vmax.f32 %v2453, %v2454
    %v2456 = vsel %vm1804, %v1009, -inf
    %v2457 = vrot.slane %v2456, 4
    %v2458 = vmax.f32 %v2456, %v2457
    %v2459 = vrot.slane %v2458, 2
    %v2460 = vmax.f32 %v2458, %v2459
    %v2461 = vrot.slane %v2460, 1
    %v2462 = vmax.f32 %v2460, %v2461
    %v2463 = vsel %vm1804, %v1010, -inf
    %v2464 = vrot.slane %v2463, 4
    %v2465 = vmax.f32 %v2463, %v2464
    %v2466 = vrot.slane %v2465, 2
    %v2467 = vmax.f32 %v2465, %v2466
    %v2468 = vrot.slane %v2467, 1
    %v2469 = vmax.f32 %v2467, %v2468
    %v2470 = vsel %vm1804, %v1011, -inf
    %v2471 = vrot.slane %v2470, 4
    %v2472 = vmax.f32 %v2470, %v2471
    %v2473 = vrot.slane %v2472, 2
    %v2474 = vmax.f32 %v2472, %v2473
    %v2475 = vrot.slane %v2474, 1
    %v2476 = vmax.f32 %v2474, %v2475
    %v2477 = vsel %vm1804, %v676, -inf
    %v2478 = vrot.slane %v2477, 4
    %v2479 = vmax.f32 %v2477, %v2478
    %v2480 = vrot.slane %v2479, 2
    %v2481 = vmax.f32 %v2479, %v2480
    %v2482 = vrot.slane %v2481, 1
    %v2483 = vmax.f32 %v2481, %v2482
    %v2484 = vsel %vm1804, %v1012, -inf
    %v2485 = vrot.slane %v2484, 4
    %v2486 = vmax.f32 %v2484, %v2485
    %v2487 = vrot.slane %v2486, 2
    %v2488 = vmax.f32 %v2486, %v2487
    %v2489 = vrot.slane %v2488, 1
    %v2490 = vmax.f32 %v2488, %v2489
    %v2491 = vsel %vm1804, %v1013, -inf
    %v2492 = vrot.slane %v2491, 4
    %v2493 = vmax.f32 %v2491, %v2492
    %v2494 = vrot.slane %v2493, 2
    %v2495 = vmax.f32 %v2493, %v2494
    %v2496 = vrot.slane %v2495, 1
    %v2497 = vmax.f32 %v2495, %v2496
    %v2498 = vsel %vm1804, %v1014, -inf
    %v2499 = vrot.slane %v2498, 4
    %v2500 = vmax.f32 %v2498, %v2499
    %v2501 = vrot.slane %v2500, 2
    %v2502 = vmax.f32 %v2500, %v2501
    %v2503 = vrot.slane %v2502, 1
    %v2504 = vmax.f32 %v2502, %v2503
    %v2505 = vsel %vm1804, %v677, -inf
    %v2506 = vrot.slane %v2505, 4
    %v2507 = vmax.f32 %v2505, %v2506
    %v2508 = vrot.slane %v2507, 2
    %v2509 = vmax.f32 %v2507, %v2508
    %v2510 = vrot.slane %v2509, 1
    %v2511 = vmax.f32 %v2509, %v2510
    %v2512 = vsel %vm1804, %v1015, -inf
    %v2513 = vrot.slane %v2512, 4
    %v2514 = vmax.f32 %v2512, %v2513
    %v2515 = vrot.slane %v2514, 2
    %v2516 = vmax.f32 %v2514, %v2515
    %v2517 = vrot.slane %v2516, 1
    %v2518 = vmax.f32 %v2516, %v2517
    %v2519 = vsel %vm1804, %v1016, -inf
    %v2520 = vrot.slane %v2519, 4
    %v2521 = vmax.f32 %v2519, %v2520
    %v2522 = vrot.slane %v2521, 2
    %v2523 = vmax.f32 %v2521, %v2522
    %v2524 = vrot.slane %v2523, 1
    %v2525 = vmax.f32 %v2523, %v2524
    %v2526 = vsel %vm1804, %v1017, -inf
    %v2527 = vrot.slane %v2526, 4
    %v2528 = vmax.f32 %v2526, %v2527
    %v2529 = vrot.slane %v2528, 2
    %v2530 = vmax.f32 %v2528, %v2529
    %v2531 = vrot.slane %v2530, 1
    %v2532 = vmax.f32 %v2530, %v2531
    %v2533 = vsel %vm1804, %v678, -inf
    %v2534 = vrot.slane %v2533, 4
    %v2535 = vmax.f32 %v2533, %v2534
    %v2536 = vrot.slane %v2535, 2
    %v2537 = vmax.f32 %v2535, %v2536
    %v2538 = vrot.slane %v2537, 1
    %v2539 = vmax.f32 %v2537, %v2538
    %v2540 = vsel %vm1804, %v1018, -inf
    %v2541 = vrot.slane %v2540, 4
    %v2542 = vmax.f32 %v2540, %v2541
    %v2543 = vrot.slane %v2542, 2
    %v2544 = vmax.f32 %v2542, %v2543
    %v2545 = vrot.slane %v2544, 1
    %v2546 = vmax.f32 %v2544, %v2545
    %v2547 = vsel %vm1804, %v1019, -inf
    %v2548 = vrot.slane %v2547, 4
    %v2549 = vmax.f32 %v2547, %v2548
    %v2550 = vrot.slane %v2549, 2
    %v2551 = vmax.f32 %v2549, %v2550
    %v2552 = vrot.slane %v2551, 1
    %v2553 = vmax.f32 %v2551, %v2552
    %v2554 = vsel %vm1804, %v1020, -inf
    %v2555 = vrot.slane %v2554, 4
    %v2556 = vmax.f32 %v2554, %v2555
    %v2557 = vrot.slane %v2556, 2
    %v2558 = vmax.f32 %v2556, %v2557
    %v2559 = vrot.slane %v2558, 1
    %v2560 = vmax.f32 %v2558, %v2559
    %v2561 = vsel %vm1804, %v679, -inf
    %v2562 = vrot.slane %v2561, 4
    %v2563 = vmax.f32 %v2561, %v2562
    %v2564 = vrot.slane %v2563, 2
    %v2565 = vmax.f32 %v2563, %v2564
    %v2566 = vrot.slane %v2565, 1
    %v2567 = vmax.f32 %v2565, %v2566
    %v2568 = vsel %vm1804, %v1021, -inf
    %v2569 = vrot.slane %v2568, 4
    %v2570 = vmax.f32 %v2568, %v2569
    %v2571 = vrot.slane %v2570, 2
    %v2572 = vmax.f32 %v2570, %v2571
    %v2573 = vrot.slane %v2572, 1
    %v2574 = vmax.f32 %v2572, %v2573
    %v2575 = vsel %vm1804, %v1022, -inf
    %v2576 = vrot.slane %v2575, 4
    %v2577 = vmax.f32 %v2575, %v2576
    %v2578 = vrot.slane %v2577, 2
    %v2579 = vmax.f32 %v2577, %v2578
    %v2580 = vrot.slane %v2579, 1
    %v2581 = vmax.f32 %v2579, %v2580
    %v2582 = vsel %vm1804, %v1023, -inf
    %v2583 = vrot.slane %v2582, 4
    %v2584 = vmax.f32 %v2582, %v2583
    %v2585 = vrot.slane %v2584, 2
    %v2586 = vmax.f32 %v2584, %v2585
    %v2587 = vrot.slane %v2586, 1
    %v2588 = vmax.f32 %v2586, %v2587
    %v2589 = vsel %vm1804, %v680, -inf
    %v2590 = vrot.slane %v2589, 4
    %v2591 = vmax.f32 %v2589, %v2590
    %v2592 = vrot.slane %v2591, 2
    %v2593 = vmax.f32 %v2591, %v2592
    %v2594 = vrot.slane %v2593, 1
    %v2595 = vmax.f32 %v2593, %v2594
    %v2596 = vsel %vm1804, %v1024, -inf
    %v2597 = vrot.slane %v2596, 4
    %v2598 = vmax.f32 %v2596, %v2597
    %v2599 = vrot.slane %v2598, 2
    %v2600 = vmax.f32 %v2598, %v2599
    %v2601 = vrot.slane %v2600, 1
    %v2602 = vmax.f32 %v2600, %v2601
    %v2603 = vsel %vm1804, %v1025, -inf
    %v2604 = vrot.slane %v2603, 4
    %v2605 = vmax.f32 %v2603, %v2604
    %v2606 = vrot.slane %v2605, 2
    %v2607 = vmax.f32 %v2605, %v2606
    %v2608 = vrot.slane %v2607, 1
    %v2609 = vmax.f32 %v2607, %v2608
    %v2610 = vsel %vm1804, %v1026, -inf
    %v2611 = vrot.slane %v2610, 4
    %v2612 = vmax.f32 %v2610, %v2611
    %v2613 = vrot.slane %v2612, 2
    %v2614 = vmax.f32 %v2612, %v2613
    %v2615 = vrot.slane %v2614, 1
    %v2616 = vmax.f32 %v2614, %v2615
    %v2617 = vsel %vm1804, %v681, -inf
    %v2618 = vrot.slane %v2617, 4
    %v2619 = vmax.f32 %v2617, %v2618
    %v2620 = vrot.slane %v2619, 2
    %v2621 = vmax.f32 %v2619, %v2620
    %v2622 = vrot.slane %v2621, 1
    %v2623 = vmax.f32 %v2621, %v2622
    %v2624 = vsel %vm1804, %v1027, -inf
    %v2625 = vrot.slane %v2624, 4
    %v2626 = vmax.f32 %v2624, %v2625
    %v2627 = vrot.slane %v2626, 2
    %v2628 = vmax.f32 %v2626, %v2627
    %v2629 = vrot.slane %v2628, 1
    %v2630 = vmax.f32 %v2628, %v2629
    %v2631 = vsel %vm1804, %v1028, -inf
    %v2632 = vrot.slane %v2631, 4
    %v2633 = vmax.f32 %v2631, %v2632
    %v2634 = vrot.slane %v2633, 2
    %v2635 = vmax.f32 %v2633, %v2634
    %v2636 = vrot.slane %v2635, 1
    %v2637 = vmax.f32 %v2635, %v2636
    %v2638 = vsel %vm1804, %v1029, -inf
    %v2639 = vrot.slane %v2638, 4
    %v2640 = vmax.f32 %v2638, %v2639
    %v2641 = vrot.slane %v2640, 2
    %v2642 = vmax.f32 %v2640, %v2641
    %v2643 = vrot.slane %v2642, 1
    %v2644 = vmax.f32 %v2642, %v2643
    %v2645 = vsel %vm1804, %v682, -inf
    %v2646 = vrot.slane %v2645, 4
    %v2647 = vmax.f32 %v2645, %v2646
    %v2648 = vrot.slane %v2647, 2
    %v2649 = vmax.f32 %v2647, %v2648
    %v2650 = vrot.slane %v2649, 1
    %v2651 = vmax.f32 %v2649, %v2650
    %v2652 = vsel %vm1804, %v1030, -inf
    %v2653 = vrot.slane %v2652, 4
    %v2654 = vmax.f32 %v2652, %v2653
    %v2655 = vrot.slane %v2654, 2
    %v2656 = vmax.f32 %v2654, %v2655
    %v2657 = vrot.slane %v2656, 1
    %v2658 = vmax.f32 %v2656, %v2657
    %v2659 = vsel %vm1804, %v1031, -inf
    %v2660 = vrot.slane %v2659, 4
    %v2661 = vmax.f32 %v2659, %v2660
    %v2662 = vrot.slane %v2661, 2
    %v2663 = vmax.f32 %v2661, %v2662
    %v2664 = vrot.slane %v2663, 1
    %v2665 = vmax.f32 %v2663, %v2664
    %v2666 = vsel %vm1804, %v1032, -inf
    %v2667 = vrot.slane %v2666, 4
    %v2668 = vmax.f32 %v2666, %v2667
    %v2669 = vrot.slane %v2668, 2
    %v2670 = vmax.f32 %v2668, %v2669
    %v2671 = vrot.slane %v2670, 1
    %v2672 = vmax.f32 %v2670, %v2671
    %v2673 = vsel %vm1804, %v683, -inf
    %v2674 = vrot.slane %v2673, 4
    %v2675 = vmax.f32 %v2673, %v2674
    %v2676 = vrot.slane %v2675, 2
    %v2677 = vmax.f32 %v2675, %v2676
    %v2678 = vrot.slane %v2677, 1
    %v2679 = vmax.f32 %v2677, %v2678
    %v2680 = vsel %vm1804, %v1033, -inf
    %v2681 = vrot.slane %v2680, 4
    %v2682 = vmax.f32 %v2680, %v2681
    %v2683 = vrot.slane %v2682, 2
    %v2684 = vmax.f32 %v2682, %v2683
    %v2685 = vrot.slane %v2684, 1
    %v2686 = vmax.f32 %v2684, %v2685
    %v2687 = vsel %vm1804, %v1034, -inf
    %v2688 = vrot.slane %v2687, 4
    %v2689 = vmax.f32 %v2687, %v2688
    %v2690 = vrot.slane %v2689, 2
    %v2691 = vmax.f32 %v2689, %v2690
    %v2692 = vrot.slane %v2691, 1
    %v2693 = vmax.f32 %v2691, %v2692
    %v2694 = vsel %vm1804, %v1035, -inf
    %v2695 = vrot.slane %v2694, 4
    %v2696 = vmax.f32 %v2694, %v2695
    %v2697 = vrot.slane %v2696, 2
    %v2698 = vmax.f32 %v2696, %v2697
    %v2699 = vrot.slane %v2698, 1
    %v2700 = vmax.f32 %v2698, %v2699
    %v2701 = vsel %vm1804, %v684, -inf
    %v2702 = vrot.slane %v2701, 4
    %v2703 = vmax.f32 %v2701, %v2702
    %v2704 = vrot.slane %v2703, 2
    %v2705 = vmax.f32 %v2703, %v2704
    %v2706 = vrot.slane %v2705, 1
    %v2707 = vmax.f32 %v2705, %v2706
    %v2708 = vsel %vm1804, %v1036, -inf
    %v2709 = vrot.slane %v2708, 4
    %v2710 = vmax.f32 %v2708, %v2709
    %v2711 = vrot.slane %v2710, 2
    %v2712 = vmax.f32 %v2710, %v2711
    %v2713 = vrot.slane %v2712, 1
    %v2714 = vmax.f32 %v2712, %v2713
    %v2715 = vsel %vm1804, %v1037, -inf
    %v2716 = vrot.slane %v2715, 4
    %v2717 = vmax.f32 %v2715, %v2716
    %v2718 = vrot.slane %v2717, 2
    %v2719 = vmax.f32 %v2717, %v2718
    %v2720 = vrot.slane %v2719, 1
    %v2721 = vmax.f32 %v2719, %v2720
    %v2722 = vsel %vm1804, %v1038, -inf
    %v2723 = vrot.slane %v2722, 4
    %v2724 = vmax.f32 %v2722, %v2723
    %v2725 = vrot.slane %v2724, 2
    %v2726 = vmax.f32 %v2724, %v2725
    %v2727 = vrot.slane %v2726, 1
    %v2728 = vmax.f32 %v2726, %v2727
    %v2729 = vsel %vm1804, %v685, -inf
    %v2730 = vrot.slane %v2729, 4
    %v2731 = vmax.f32 %v2729, %v2730
    %v2732 = vrot.slane %v2731, 2
    %v2733 = vmax.f32 %v2731, %v2732
    %v2734 = vrot.slane %v2733, 1
    %v2735 = vmax.f32 %v2733, %v2734
    %v2736 = vsel %vm1804, %v1039, -inf
    %v2737 = vrot.slane %v2736, 4
    %v2738 = vmax.f32 %v2736, %v2737
    %v2739 = vrot.slane %v2738, 2
    %v2740 = vmax.f32 %v2738, %v2739
    %v2741 = vrot.slane %v2740, 1
    %v2742 = vmax.f32 %v2740, %v2741
    %v2743 = vsel %vm1804, %v1040, -inf
    %v2744 = vrot.slane %v2743, 4
    %v2745 = vmax.f32 %v2743, %v2744
    %v2746 = vrot.slane %v2745, 2
    %v2747 = vmax.f32 %v2745, %v2746
    %v2748 = vrot.slane %v2747, 1
    %v2749 = vmax.f32 %v2747, %v2748
    %v2750 = vsel %vm1804, %v1041, -inf
    %v2751 = vrot.slane %v2750, 4
    %v2752 = vmax.f32 %v2750, %v2751
    %v2753 = vrot.slane %v2752, 2
    %v2754 = vmax.f32 %v2752, %v2753
    %v2755 = vrot.slane %v2754, 1
    %v2756 = vmax.f32 %v2754, %v2755
    %v2757 = vsel %vm1804, %v686, -inf
    %v2758 = vrot.slane %v2757, 4
    %v2759 = vmax.f32 %v2757, %v2758
    %v2760 = vrot.slane %v2759, 2
    %v2761 = vmax.f32 %v2759, %v2760
    %v2762 = vrot.slane %v2761, 1
    %v2763 = vmax.f32 %v2761, %v2762
    %v2764 = vsel %vm1804, %v1042, -inf
    %v2765 = vrot.slane %v2764, 4
    %v2766 = vmax.f32 %v2764, %v2765
    %v2767 = vrot.slane %v2766, 2
    %v2768 = vmax.f32 %v2766, %v2767
    %v2769 = vrot.slane %v2768, 1
    %v2770 = vmax.f32 %v2768, %v2769
    %v2771 = vsel %vm1804, %v1043, -inf
    %v2772 = vrot.slane %v2771, 4
    %v2773 = vmax.f32 %v2771, %v2772
    %v2774 = vrot.slane %v2773, 2
    %v2775 = vmax.f32 %v2773, %v2774
    %v2776 = vrot.slane %v2775, 1
    %v2777 = vmax.f32 %v2775, %v2776
    %v2778 = vsel %vm1804, %v1044, -inf
    %v2779 = vrot.slane %v2778, 4
    %v2780 = vmax.f32 %v2778, %v2779
    %v2781 = vrot.slane %v2780, 2
    %v2782 = vmax.f32 %v2780, %v2781
    %v2783 = vrot.slane %v2782, 1
    %v2784 = vmax.f32 %v2782, %v2783
    %v2785 = vsel %vm1804, %v687, -inf
    %v2786 = vrot.slane %v2785, 4
    %v2787 = vmax.f32 %v2785, %v2786
    %v2788 = vrot.slane %v2787, 2
    %v2789 = vmax.f32 %v2787, %v2788
    %v2790 = vrot.slane %v2789, 1
    %v2791 = vmax.f32 %v2789, %v2790
    %v2792 = vsel %vm1804, %v1045, -inf
    %v2793 = vrot.slane %v2792, 4
    %v2794 = vmax.f32 %v2792, %v2793
    %v2795 = vrot.slane %v2794, 2
    %v2796 = vmax.f32 %v2794, %v2795
    %v2797 = vrot.slane %v2796, 1
    %v2798 = vmax.f32 %v2796, %v2797
    %v2799 = vsel %vm1804, %v1046, -inf
    %v2800 = vrot.slane %v2799, 4
    %v2801 = vmax.f32 %v2799, %v2800
    %v2802 = vrot.slane %v2801, 2
    %v2803 = vmax.f32 %v2801, %v2802
    %v2804 = vrot.slane %v2803, 1
    %v2805 = vmax.f32 %v2803, %v2804
    %v2806 = vsel %vm1804, %v1047, -inf
    %v2807 = vrot.slane %v2806, 4
    %v2808 = vmax.f32 %v2806, %v2807
    %v2809 = vrot.slane %v2808, 2
    %v2810 = vmax.f32 %v2808, %v2809
    %v2811 = vrot.slane %v2810, 1
    %v2812 = vmax.f32 %v2810, %v2811
    %v2813 = vsel %vm1804, %v688, -inf
    %v2814 = vrot.slane %v2813, 4
    %v2815 = vmax.f32 %v2813, %v2814
    %v2816 = vrot.slane %v2815, 2
    %v2817 = vmax.f32 %v2815, %v2816
    %v2818 = vrot.slane %v2817, 1
    %v2819 = vmax.f32 %v2817, %v2818
    %v2820 = vsel %vm1804, %v1048, -inf
    %v2821 = vrot.slane %v2820, 4
    %v2822 = vmax.f32 %v2820, %v2821
    %v2823 = vrot.slane %v2822, 2
    %v2824 = vmax.f32 %v2822, %v2823
    %v2825 = vrot.slane %v2824, 1
    %v2826 = vmax.f32 %v2824, %v2825
    %v2827 = vsel %vm1804, %v1049, -inf
    %v2828 = vrot.slane %v2827, 4
    %v2829 = vmax.f32 %v2827, %v2828
    %v2830 = vrot.slane %v2829, 2
    %v2831 = vmax.f32 %v2829, %v2830
    %v2832 = vrot.slane %v2831, 1
    %v2833 = vmax.f32 %v2831, %v2832
    %v2834 = vsel %vm1804, %v1050, -inf
    %v2835 = vrot.slane %v2834, 4
    %v2836 = vmax.f32 %v2834, %v2835
    %v2837 = vrot.slane %v2836, 2
    %v2838 = vmax.f32 %v2836, %v2837
    %v2839 = vrot.slane %v2838, 1
    %v2840 = vmax.f32 %v2838, %v2839
    %v2841 = vsel %vm1804, %v689, -inf
    %v2842 = vrot.slane %v2841, 4
    %v2843 = vmax.f32 %v2841, %v2842
    %v2844 = vrot.slane %v2843, 2
    %v2845 = vmax.f32 %v2843, %v2844
    %v2846 = vrot.slane %v2845, 1
    %v2847 = vmax.f32 %v2845, %v2846
    %v2848 = vsel %vm1804, %v1051, -inf
    %v2849 = vrot.slane %v2848, 4
    %v2850 = vmax.f32 %v2848, %v2849
    %v2851 = vrot.slane %v2850, 2
    %v2852 = vmax.f32 %v2850, %v2851
    %v2853 = vrot.slane %v2852, 1
    %v2854 = vmax.f32 %v2852, %v2853
    %v2855 = vsel %vm1804, %v1052, -inf
    %v2856 = vrot.slane %v2855, 4
    %v2857 = vmax.f32 %v2855, %v2856
    %v2858 = vrot.slane %v2857, 2
    %v2859 = vmax.f32 %v2857, %v2858
    %v2860 = vrot.slane %v2859, 1
    %v2861 = vmax.f32 %v2859, %v2860
    %v2862 = vsel %vm1804, %v1053, -inf
    %v2863 = vrot.slane %v2862, 4
    %v2864 = vmax.f32 %v2862, %v2863
    %v2865 = vrot.slane %v2864, 2
    %v2866 = vmax.f32 %v2864, %v2865
    %v2867 = vrot.slane %v2866, 1
    %v2868 = vmax.f32 %v2866, %v2867
    %v2869 = vsel %vm1804, %v690, -inf
    %v2870 = vrot.slane %v2869, 4
    %v2871 = vmax.f32 %v2869, %v2870
    %v2872 = vrot.slane %v2871, 2
    %v2873 = vmax.f32 %v2871, %v2872
    %v2874 = vrot.slane %v2873, 1
    %v2875 = vmax.f32 %v2873, %v2874
    %v2876 = vsel %vm1804, %v1054, -inf
    %v2877 = vrot.slane %v2876, 4
    %v2878 = vmax.f32 %v2876, %v2877
    %v2879 = vrot.slane %v2878, 2
    %v2880 = vmax.f32 %v2878, %v2879
    %v2881 = vrot.slane %v2880, 1
    %v2882 = vmax.f32 %v2880, %v2881
    %v2883 = vsel %vm1804, %v1055, -inf
    %v2884 = vrot.slane %v2883, 4
    %v2885 = vmax.f32 %v2883, %v2884
    %v2886 = vrot.slane %v2885, 2
    %v2887 = vmax.f32 %v2885, %v2886
    %v2888 = vrot.slane %v2887, 1
    %v2889 = vmax.f32 %v2887, %v2888
    %v2890 = vsel %vm1804, %v1056, -inf
    %v2891 = vrot.slane %v2890, 4
    %v2892 = vmax.f32 %v2890, %v2891
    %v2893 = vrot.slane %v2892, 2
    %v2894 = vmax.f32 %v2892, %v2893
    %v2895 = vrot.slane %v2894, 1
    %v2896 = vmax.f32 %v2894, %v2895
    %v2897 = vsel %vm1804, %v691, -inf
    %v2898 = vrot.slane %v2897, 4
    %v2899 = vmax.f32 %v2897, %v2898
    %v2900 = vrot.slane %v2899, 2
    %v2901 = vmax.f32 %v2899, %v2900
    %v2902 = vrot.slane %v2901, 1
    %v2903 = vmax.f32 %v2901, %v2902
    %v2904 = vsel %vm1804, %v1057, -inf
    %v2905 = vrot.slane %v2904, 4
    %v2906 = vmax.f32 %v2904, %v2905
    %v2907 = vrot.slane %v2906, 2
    %v2908 = vmax.f32 %v2906, %v2907
    %v2909 = vrot.slane %v2908, 1
    %v2910 = vmax.f32 %v2908, %v2909
    %v2911 = vsel %vm1804, %v1058, -inf
    %v2912 = vrot.slane %v2911, 4
    %v2913 = vmax.f32 %v2911, %v2912
    %v2914 = vrot.slane %v2913, 2
    %v2915 = vmax.f32 %v2913, %v2914
    %v2916 = vrot.slane %v2915, 1
    %v2917 = vmax.f32 %v2915, %v2916
    %v2918 = vsel %vm1804, %v1059, -inf
    %v2919 = vrot.slane %v2918, 4
    %v2920 = vmax.f32 %v2918, %v2919
    %v2921 = vrot.slane %v2920, 2
    %v2922 = vmax.f32 %v2920, %v2921
    %v2923 = vrot.slane %v2922, 1
    %v2924 = vmax.f32 %v2922, %v2923
    %v2925 = vsel %vm1804, %v692, -inf
    %v2926 = vrot.slane %v2925, 4
    %v2927 = vmax.f32 %v2925, %v2926
    %v2928 = vrot.slane %v2927, 2
    %v2929 = vmax.f32 %v2927, %v2928
    %v2930 = vrot.slane %v2929, 1
    %v2931 = vmax.f32 %v2929, %v2930
    %v2932 = vsel %vm1804, %v1060, -inf
    %v2933 = vrot.slane %v2932, 4
    %v2934 = vmax.f32 %v2932, %v2933
    %v2935 = vrot.slane %v2934, 2
    %v2936 = vmax.f32 %v2934, %v2935
    %v2937 = vrot.slane %v2936, 1
    %v2938 = vmax.f32 %v2936, %v2937
    %v2939 = vsel %vm1804, %v1061, -inf
    %v2940 = vrot.slane %v2939, 4
    %v2941 = vmax.f32 %v2939, %v2940
    %v2942 = vrot.slane %v2941, 2
    %v2943 = vmax.f32 %v2941, %v2942
    %v2944 = vrot.slane %v2943, 1
    %v2945 = vmax.f32 %v2943, %v2944
    %v2946 = vsel %vm1804, %v1062, -inf
    %v2947 = vrot.slane %v2946, 4
    %v2948 = vmax.f32 %v2946, %v2947
    %v2949 = vrot.slane %v2948, 2
    %v2950 = vmax.f32 %v2948, %v2949
    %v2951 = vrot.slane %v2950, 1
    %v2952 = vmax.f32 %v2950, %v2951
    %v2953 = vsel %vm1804, %v693, -inf
    %v2954 = vrot.slane %v2953, 4
    %v2955 = vmax.f32 %v2953, %v2954
    %v2956 = vrot.slane %v2955, 2
    %v2957 = vmax.f32 %v2955, %v2956
    %v2958 = vrot.slane %v2957, 1
    %v2959 = vmax.f32 %v2957, %v2958
    %v2960 = vsel %vm1804, %v1063, -inf
    %v2961 = vrot.slane %v2960, 4
    %v2962 = vmax.f32 %v2960, %v2961
    %v2963 = vrot.slane %v2962, 2
    %v2964 = vmax.f32 %v2962, %v2963
    %v2965 = vrot.slane %v2964, 1
    %v2966 = vmax.f32 %v2964, %v2965
    %v2967 = vsel %vm1804, %v1064, -inf
    %v2968 = vrot.slane %v2967, 4
    %v2969 = vmax.f32 %v2967, %v2968
    %v2970 = vrot.slane %v2969, 2
    %v2971 = vmax.f32 %v2969, %v2970
    %v2972 = vrot.slane %v2971, 1
    %v2973 = vmax.f32 %v2971, %v2972
    %v2974 = vsel %vm1804, %v1065, -inf
    %v2975 = vrot.slane %v2974, 4
    %v2976 = vmax.f32 %v2974, %v2975
    %v2977 = vrot.slane %v2976, 2
    %v2978 = vmax.f32 %v2976, %v2977
    %v2979 = vrot.slane %v2978, 1
    %v2980 = vmax.f32 %v2978, %v2979
    %v2981 = vsel %vm1804, %v694, -inf
    %v2982 = vrot.slane %v2981, 4
    %v2983 = vmax.f32 %v2981, %v2982
    %v2984 = vrot.slane %v2983, 2
    %v2985 = vmax.f32 %v2983, %v2984
    %v2986 = vrot.slane %v2985, 1
    %v2987 = vmax.f32 %v2985, %v2986
    %v2988 = vsel %vm1804, %v1066, -inf
    %v2989 = vrot.slane %v2988, 4
    %v2990 = vmax.f32 %v2988, %v2989
    %v2991 = vrot.slane %v2990, 2
    %v2992 = vmax.f32 %v2990, %v2991
    %v2993 = vrot.slane %v2992, 1
    %v2994 = vmax.f32 %v2992, %v2993
    %v2995 = vsel %vm1804, %v1067, -inf
    %v2996 = vrot.slane %v2995, 4
    %v2997 = vmax.f32 %v2995, %v2996
    %v2998 = vrot.slane %v2997, 2
    %v2999 = vmax.f32 %v2997, %v2998
    %v3000 = vrot.slane %v2999, 1
    %v3001 = vmax.f32 %v2999, %v3000
    %v3002 = vsel %vm1804, %v1068, -inf
    %v3003 = vrot.slane %v3002, 4
    %v3004 = vmax.f32 %v3002, %v3003
    %v3005 = vrot.slane %v3004, 2
    %v3006 = vmax.f32 %v3004, %v3005
    %v3007 = vrot.slane %v3006, 1
    %v3008 = vmax.f32 %v3006, %v3007
    %v3009 = vsel %vm1804, %v695, -inf
    %v3010 = vrot.slane %v3009, 4
    %v3011 = vmax.f32 %v3009, %v3010
    %v3012 = vrot.slane %v3011, 2
    %v3013 = vmax.f32 %v3011, %v3012
    %v3014 = vrot.slane %v3013, 1
    %v3015 = vmax.f32 %v3013, %v3014
    %v3016 = vsel %vm1804, %v1069, -inf
    %v3017 = vrot.slane %v3016, 4
    %v3018 = vmax.f32 %v3016, %v3017
    %v3019 = vrot.slane %v3018, 2
    %v3020 = vmax.f32 %v3018, %v3019
    %v3021 = vrot.slane %v3020, 1
    %v3022 = vmax.f32 %v3020, %v3021
    %v3023 = vsel %vm1804, %v1070, -inf
    %v3024 = vrot.slane %v3023, 4
    %v3025 = vmax.f32 %v3023, %v3024
    %v3026 = vrot.slane %v3025, 2
    %v3027 = vmax.f32 %v3025, %v3026
    %v3028 = vrot.slane %v3027, 1
    %v3029 = vmax.f32 %v3027, %v3028
    %v3030 = vsel %vm1804, %v1071, -inf
    %v3031 = vrot.slane %v3030, 4
    %v3032 = vmax.f32 %v3030, %v3031
    %v3033 = vrot.slane %v3032, 2
    %v3034 = vmax.f32 %v3032, %v3033
    %v3035 = vrot.slane %v3034, 1
    %v3036 = vmax.f32 %v3034, %v3035
    %v3037 = vsel %vm1804, %v696, -inf
    %v3038 = vrot.slane %v3037, 4
    %v3039 = vmax.f32 %v3037, %v3038
    %v3040 = vrot.slane %v3039, 2
    %v3041 = vmax.f32 %v3039, %v3040
    %v3042 = vrot.slane %v3041, 1
    %v3043 = vmax.f32 %v3041, %v3042
    %v3044 = vsel %vm1804, %v1072, -inf
    %v3045 = vrot.slane %v3044, 4
    %v3046 = vmax.f32 %v3044, %v3045
    %v3047 = vrot.slane %v3046, 2
    %v3048 = vmax.f32 %v3046, %v3047
    %v3049 = vrot.slane %v3048, 1
    %v3050 = vmax.f32 %v3048, %v3049
    %v3051 = vsel %vm1804, %v1073, -inf
    %v3052 = vrot.slane %v3051, 4
    %v3053 = vmax.f32 %v3051, %v3052
    %v3054 = vrot.slane %v3053, 2
    %v3055 = vmax.f32 %v3053, %v3054
    %v3056 = vrot.slane %v3055, 1
    %v3057 = vmax.f32 %v3055, %v3056
    %v3058 = vsel %vm1804, %v1074, -inf
    %v3059 = vrot.slane %v3058, 4
    %v3060 = vmax.f32 %v3058, %v3059
    %v3061 = vrot.slane %v3060, 2
    %v3062 = vmax.f32 %v3060, %v3061
    %v3063 = vrot.slane %v3062, 1
    %v3064 = vmax.f32 %v3062, %v3063
    %v3065 = vsel %vm1804, %v697, -inf
    %v3066 = vrot.slane %v3065, 4
    %v3067 = vmax.f32 %v3065, %v3066
    %v3068 = vrot.slane %v3067, 2
    %v3069 = vmax.f32 %v3067, %v3068
    %v3070 = vrot.slane %v3069, 1
    %v3071 = vmax.f32 %v3069, %v3070
    %v3072 = vsel %vm1804, %v1075, -inf
    %v3073 = vrot.slane %v3072, 4
    %v3074 = vmax.f32 %v3072, %v3073
    %v3075 = vrot.slane %v3074, 2
    %v3076 = vmax.f32 %v3074, %v3075
    %v3077 = vrot.slane %v3076, 1
    %v3078 = vmax.f32 %v3076, %v3077
    %v3079 = vsel %vm1804, %v1076, -inf
    %v3080 = vrot.slane %v3079, 4
    %v3081 = vmax.f32 %v3079, %v3080
    %v3082 = vrot.slane %v3081, 2
    %v3083 = vmax.f32 %v3081, %v3082
    %v3084 = vrot.slane %v3083, 1
    %v3085 = vmax.f32 %v3083, %v3084
    %v3086 = vsel %vm1804, %v1077, -inf
    %v3087 = vrot.slane %v3086, 4
    %v3088 = vmax.f32 %v3086, %v3087
    %v3089 = vrot.slane %v3088, 2
    %v3090 = vmax.f32 %v3088, %v3089
    %v3091 = vrot.slane %v3090, 1
    %v3092 = vmax.f32 %v3090, %v3091
    %v3093 = vsel %vm1804, %v698, -inf
    %v3094 = vrot.slane %v3093, 4
    %v3095 = vmax.f32 %v3093, %v3094
    %v3096 = vrot.slane %v3095, 2
    %v3097 = vmax.f32 %v3095, %v3096
    %v3098 = vrot.slane %v3097, 1
    %v3099 = vmax.f32 %v3097, %v3098
    %v3100 = vsel %vm1804, %v1078, -inf
    %v3101 = vrot.slane %v3100, 4
    %v3102 = vmax.f32 %v3100, %v3101
    %v3103 = vrot.slane %v3102, 2
    %v3104 = vmax.f32 %v3102, %v3103
    %v3105 = vrot.slane %v3104, 1
    %v3106 = vmax.f32 %v3104, %v3105
    %v3107 = vsel %vm1804, %v1079, -inf
    %v3108 = vrot.slane %v3107, 4
    %v3109 = vmax.f32 %v3107, %v3108
    %v3110 = vrot.slane %v3109, 2
    %v3111 = vmax.f32 %v3109, %v3110
    %v3112 = vrot.slane %v3111, 1
    %v3113 = vmax.f32 %v3111, %v3112
    %v3114 = vsel %vm1804, %v1080, -inf
    %v3115 = vrot.slane %v3114, 4
    %v3116 = vmax.f32 %v3114, %v3115
    %v3117 = vrot.slane %v3116, 2
    %v3118 = vmax.f32 %v3116, %v3117
    %v3119 = vrot.slane %v3118, 1
    %v3120 = vmax.f32 %v3118, %v3119
    %v3121 = vsel %vm1804, %v699, -inf
    %v3122 = vrot.slane %v3121, 4
    %v3123 = vmax.f32 %v3121, %v3122
    %v3124 = vrot.slane %v3123, 2
    %v3125 = vmax.f32 %v3123, %v3124
    %v3126 = vrot.slane %v3125, 1
    %v3127 = vmax.f32 %v3125, %v3126
    %v3128 = vsel %vm1804, %v1081, -inf
    %v3129 = vrot.slane %v3128, 4
    %v3130 = vmax.f32 %v3128, %v3129
    %v3131 = vrot.slane %v3130, 2
    %v3132 = vmax.f32 %v3130, %v3131
    %v3133 = vrot.slane %v3132, 1
    %v3134 = vmax.f32 %v3132, %v3133
    %v3135 = vsel %vm1804, %v1082, -inf
    %v3136 = vrot.slane %v3135, 4
    %v3137 = vmax.f32 %v3135, %v3136
    %v3138 = vrot.slane %v3137, 2
    %v3139 = vmax.f32 %v3137, %v3138
    %v3140 = vrot.slane %v3139, 1
    %v3141 = vmax.f32 %v3139, %v3140
    %v3142 = vsel %vm1804, %v1083, -inf
    %v3143 = vrot.slane %v3142, 4
    %v3144 = vmax.f32 %v3142, %v3143
    %v3145 = vrot.slane %v3144, 2
    %v3146 = vmax.f32 %v3144, %v3145
    %v3147 = vrot.slane %v3146, 1
    %v3148 = vmax.f32 %v3146, %v3147
    %v3149 = vsel %vm1804, %v700, -inf
    %v3150 = vrot.slane %v3149, 4
    %v3151 = vmax.f32 %v3149, %v3150
    %v3152 = vrot.slane %v3151, 2
    %v3153 = vmax.f32 %v3151, %v3152
    %v3154 = vrot.slane %v3153, 1
    %v3155 = vmax.f32 %v3153, %v3154
    %v3156 = vsel %vm1804, %v1084, -inf
    %v3157 = vrot.slane %v3156, 4
    %v3158 = vmax.f32 %v3156, %v3157
    %v3159 = vrot.slane %v3158, 2
    %v3160 = vmax.f32 %v3158, %v3159
    %v3161 = vrot.slane %v3160, 1
    %v3162 = vmax.f32 %v3160, %v3161
    %v3163 = vsel %vm1804, %v1085, -inf
    %v3164 = vrot.slane %v3163, 4
    %v3165 = vmax.f32 %v3163, %v3164
    %v3166 = vrot.slane %v3165, 2
    %v3167 = vmax.f32 %v3165, %v3166
    %v3168 = vrot.slane %v3167, 1
    %v3169 = vmax.f32 %v3167, %v3168
    %v3170 = vsel %vm1804, %v1086, -inf
    %v3171 = vrot.slane %v3170, 4
    %v3172 = vmax.f32 %v3170, %v3171
    %v3173 = vrot.slane %v3172, 2
    %v3174 = vmax.f32 %v3172, %v3173
    %v3175 = vrot.slane %v3174, 1
    %v3176 = vmax.f32 %v3174, %v3175
    %v3177 = vsel %vm1804, %v701, -inf
    %v3178 = vrot.slane %v3177, 4
    %v3179 = vmax.f32 %v3177, %v3178
    %v3180 = vrot.slane %v3179, 2
    %v3181 = vmax.f32 %v3179, %v3180
    %v3182 = vrot.slane %v3181, 1
    %v3183 = vmax.f32 %v3181, %v3182
    %v3184 = vsel %vm1804, %v1087, -inf
    %v3185 = vrot.slane %v3184, 4
    %v3186 = vmax.f32 %v3184, %v3185
    %v3187 = vrot.slane %v3186, 2
    %v3188 = vmax.f32 %v3186, %v3187
    %v3189 = vrot.slane %v3188, 1
    %v3190 = vmax.f32 %v3188, %v3189
    %v3191 = vsel %vm1804, %v1088, -inf
    %v3192 = vrot.slane %v3191, 4
    %v3193 = vmax.f32 %v3191, %v3192
    %v3194 = vrot.slane %v3193, 2
    %v3195 = vmax.f32 %v3193, %v3194
    %v3196 = vrot.slane %v3195, 1
    %v3197 = vmax.f32 %v3195, %v3196
    %v3198 = vsel %vm1804, %v1089, -inf
    %v3199 = vrot.slane %v3198, 4
    %v3200 = vmax.f32 %v3198, %v3199
    %v3201 = vrot.slane %v3200, 2
    %v3202 = vmax.f32 %v3200, %v3201
    %v3203 = vrot.slane %v3202, 1
    %v3204 = vmax.f32 %v3202, %v3203
    %v3205 = vsel %vm1804, %v702, -inf
    %v3206 = vrot.slane %v3205, 4
    %v3207 = vmax.f32 %v3205, %v3206
    %v3208 = vrot.slane %v3207, 2
    %v3209 = vmax.f32 %v3207, %v3208
    %v3210 = vrot.slane %v3209, 1
    %v3211 = vmax.f32 %v3209, %v3210
    %v3212 = vsel %vm1804, %v1090, -inf
    %v3213 = vrot.slane %v3212, 4
    %v3214 = vmax.f32 %v3212, %v3213
    %v3215 = vrot.slane %v3214, 2
    %v3216 = vmax.f32 %v3214, %v3215
    %v3217 = vrot.slane %v3216, 1
    %v3218 = vmax.f32 %v3216, %v3217
    %v3219 = vsel %vm1804, %v1091, -inf
    %v3220 = vrot.slane %v3219, 4
    %v3221 = vmax.f32 %v3219, %v3220
    %v3222 = vrot.slane %v3221, 2
    %v3223 = vmax.f32 %v3221, %v3222
    %v3224 = vrot.slane %v3223, 1
    %v3225 = vmax.f32 %v3223, %v3224
    %v3226 = vsel %vm1804, %v1092, -inf
    %v3227 = vrot.slane %v3226, 4
    %v3228 = vmax.f32 %v3226, %v3227
    %v3229 = vrot.slane %v3228, 2
    %v3230 = vmax.f32 %v3228, %v3229
    %v3231 = vrot.slane %v3230, 1
    %v3232 = vmax.f32 %v3230, %v3231
    %v3233 = vsel %vm1804, %v703, -inf
    %v3234 = vrot.slane %v3233, 4
    %v3235 = vmax.f32 %v3233, %v3234
    %v3236 = vrot.slane %v3235, 2
    %v3237 = vmax.f32 %v3235, %v3236
    %v3238 = vrot.slane %v3237, 1
    %v3239 = vmax.f32 %v3237, %v3238
    %v3240 = vsel %vm1804, %v1093, -inf
    %v3241 = vrot.slane %v3240, 4
    %v3242 = vmax.f32 %v3240, %v3241
    %v3243 = vrot.slane %v3242, 2
    %v3244 = vmax.f32 %v3242, %v3243
    %v3245 = vrot.slane %v3244, 1
    %v3246 = vmax.f32 %v3244, %v3245
    %v3247 = vsel %vm1804, %v1094, -inf
    %v3248 = vrot.slane %v3247, 4
    %v3249 = vmax.f32 %v3247, %v3248
    %v3250 = vrot.slane %v3249, 2
    %v3251 = vmax.f32 %v3249, %v3250
    %v3252 = vrot.slane %v3251, 1
    %v3253 = vmax.f32 %v3251, %v3252
    %v3254 = vsel %vm1804, %v1095, -inf
    %v3255 = vrot.slane %v3254, 4
    %v3256 = vmax.f32 %v3254, %v3255
    %v3257 = vrot.slane %v3256, 2
    %v3258 = vmax.f32 %v3256, %v3257
    %v3259 = vrot.slane %v3258, 1
    %v3260 = vmax.f32 %v3258, %v3259
    %v3261 = vsel %vm1804, %v704, -inf
    %v3262 = vrot.slane %v3261, 4
    %v3263 = vmax.f32 %v3261, %v3262
    %v3264 = vrot.slane %v3263, 2
    %v3265 = vmax.f32 %v3263, %v3264
    %v3266 = vrot.slane %v3265, 1
    %v3267 = vmax.f32 %v3265, %v3266
    %v3268 = vsel %vm1804, %v1096, -inf
    %v3269 = vrot.slane %v3268, 4
    %v3270 = vmax.f32 %v3268, %v3269
    %v3271 = vrot.slane %v3270, 2
    %v3272 = vmax.f32 %v3270, %v3271
    %v3273 = vrot.slane %v3272, 1
    %v3274 = vmax.f32 %v3272, %v3273
    %v3275 = vsel %vm1804, %v1097, -inf
    %v3276 = vrot.slane %v3275, 4
    %v3277 = vmax.f32 %v3275, %v3276
    %v3278 = vrot.slane %v3277, 2
    %v3279 = vmax.f32 %v3277, %v3278
    %v3280 = vrot.slane %v3279, 1
    %v3281 = vmax.f32 %v3279, %v3280
    %v3282 = vsel %vm1804, %v1098, -inf
    %v3283 = vrot.slane %v3282, 4
    %v3284 = vmax.f32 %v3282, %v3283
    %v3285 = vrot.slane %v3284, 2
    %v3286 = vmax.f32 %v3284, %v3285
    %v3287 = vrot.slane %v3286, 1
    %v3288 = vmax.f32 %v3286, %v3287
    %v3289 = vsel %vm1804, %v705, -inf
    %v3290 = vrot.slane %v3289, 4
    %v3291 = vmax.f32 %v3289, %v3290
    %v3292 = vrot.slane %v3291, 2
    %v3293 = vmax.f32 %v3291, %v3292
    %v3294 = vrot.slane %v3293, 1
    %v3295 = vmax.f32 %v3293, %v3294
    %v3296 = vsel %vm1804, %v1099, -inf
    %v3297 = vrot.slane %v3296, 4
    %v3298 = vmax.f32 %v3296, %v3297
    %v3299 = vrot.slane %v3298, 2
    %v3300 = vmax.f32 %v3298, %v3299
    %v3301 = vrot.slane %v3300, 1
    %v3302 = vmax.f32 %v3300, %v3301
    %v3303 = vsel %vm1804, %v1100, -inf
    %v3304 = vrot.slane %v3303, 4
    %v3305 = vmax.f32 %v3303, %v3304
    %v3306 = vrot.slane %v3305, 2
    %v3307 = vmax.f32 %v3305, %v3306
    %v3308 = vrot.slane %v3307, 1
    %v3309 = vmax.f32 %v3307, %v3308
    %v3310 = vsel %vm1804, %v1101, -inf
    %v3311 = vrot.slane %v3310, 4
    %v3312 = vmax.f32 %v3310, %v3311
    %v3313 = vrot.slane %v3312, 2
    %v3314 = vmax.f32 %v3312, %v3313
    %v3315 = vrot.slane %v3314, 1
    %v3316 = vmax.f32 %v3314, %v3315
    %v3317 = vsel %vm1804, %v706, -inf
    %v3318 = vrot.slane %v3317, 4
    %v3319 = vmax.f32 %v3317, %v3318
    %v3320 = vrot.slane %v3319, 2
    %v3321 = vmax.f32 %v3319, %v3320
    %v3322 = vrot.slane %v3321, 1
    %v3323 = vmax.f32 %v3321, %v3322
    %v3324 = vsel %vm1804, %v1102, -inf
    %v3325 = vrot.slane %v3324, 4
    %v3326 = vmax.f32 %v3324, %v3325
    %v3327 = vrot.slane %v3326, 2
    %v3328 = vmax.f32 %v3326, %v3327
    %v3329 = vrot.slane %v3328, 1
    %v3330 = vmax.f32 %v3328, %v3329
    %v3331 = vsel %vm1804, %v1103, -inf
    %v3332 = vrot.slane %v3331, 4
    %v3333 = vmax.f32 %v3331, %v3332
    %v3334 = vrot.slane %v3333, 2
    %v3335 = vmax.f32 %v3333, %v3334
    %v3336 = vrot.slane %v3335, 1
    %v3337 = vmax.f32 %v3335, %v3336
    %v3338 = vsel %vm1804, %v1104, -inf
    %v3339 = vrot.slane %v3338, 4
    %v3340 = vmax.f32 %v3338, %v3339
    %v3341 = vrot.slane %v3340, 2
    %v3342 = vmax.f32 %v3340, %v3341
    %v3343 = vrot.slane %v3342, 1
    %v3344 = vmax.f32 %v3342, %v3343
    %v3345 = vsel %vm1804, %v707, -inf
    %v3346 = vrot.slane %v3345, 4
    %v3347 = vmax.f32 %v3345, %v3346
    %v3348 = vrot.slane %v3347, 2
    %v3349 = vmax.f32 %v3347, %v3348
    %v3350 = vrot.slane %v3349, 1
    %v3351 = vmax.f32 %v3349, %v3350
    %v3352 = vsel %vm1804, %v1105, -inf
    %v3353 = vrot.slane %v3352, 4
    %v3354 = vmax.f32 %v3352, %v3353
    %v3355 = vrot.slane %v3354, 2
    %v3356 = vmax.f32 %v3354, %v3355
    %v3357 = vrot.slane %v3356, 1
    %v3358 = vmax.f32 %v3356, %v3357
    %v3359 = vsel %vm1804, %v1106, -inf
    %v3360 = vrot.slane %v3359, 4
    %v3361 = vmax.f32 %v3359, %v3360
    %v3362 = vrot.slane %v3361, 2
    %v3363 = vmax.f32 %v3361, %v3362
    %v3364 = vrot.slane %v3363, 1
    %v3365 = vmax.f32 %v3363, %v3364
    %v3366 = vsel %vm1804, %v1107, -inf
    %v3367 = vrot.slane %v3366, 4
    %v3368 = vmax.f32 %v3366, %v3367
    %v3369 = vrot.slane %v3368, 2
    %v3370 = vmax.f32 %v3368, %v3369
    %v3371 = vrot.slane %v3370, 1
    %v3372 = vmax.f32 %v3370, %v3371
    %v3373 = vsel %vm1804, %v708, -inf
    %v3374 = vrot.slane %v3373, 4
    %v3375 = vmax.f32 %v3373, %v3374
    %v3376 = vrot.slane %v3375, 2
    %v3377 = vmax.f32 %v3375, %v3376
    %v3378 = vrot.slane %v3377, 1
    %v3379 = vmax.f32 %v3377, %v3378
    %v3380 = vsel %vm1804, %v1108, -inf
    %v3381 = vrot.slane %v3380, 4
    %v3382 = vmax.f32 %v3380, %v3381
    %v3383 = vrot.slane %v3382, 2
    %v3384 = vmax.f32 %v3382, %v3383
    %v3385 = vrot.slane %v3384, 1
    %v3386 = vmax.f32 %v3384, %v3385
    %v3387 = vsel %vm1804, %v1109, -inf
    %v3388 = vrot.slane %v3387, 4
    %v3389 = vmax.f32 %v3387, %v3388
    %v3390 = vrot.slane %v3389, 2
    %v3391 = vmax.f32 %v3389, %v3390
    %v3392 = vrot.slane %v3391, 1
    %v3393 = vmax.f32 %v3391, %v3392
    %v3394 = vsel %vm1804, %v1110, -inf
    %v3395 = vrot.slane %v3394, 4
    %v3396 = vmax.f32 %v3394, %v3395
    %v3397 = vrot.slane %v3396, 2
    %v3398 = vmax.f32 %v3396, %v3397
    %v3399 = vrot.slane %v3398, 1
    %v3400 = vmax.f32 %v3398, %v3399
    %v3401 = vsel %vm1804, %v709, -inf
    %v3402 = vrot.slane %v3401, 4
    %v3403 = vmax.f32 %v3401, %v3402
    %v3404 = vrot.slane %v3403, 2
    %v3405 = vmax.f32 %v3403, %v3404
    %v3406 = vrot.slane %v3405, 1
    %v3407 = vmax.f32 %v3405, %v3406
    %v3408 = vsel %vm1804, %v1111, -inf
    %v3409 = vrot.slane %v3408, 4
    %v3410 = vmax.f32 %v3408, %v3409
    %v3411 = vrot.slane %v3410, 2
    %v3412 = vmax.f32 %v3410, %v3411
    %v3413 = vrot.slane %v3412, 1
    %v3414 = vmax.f32 %v3412, %v3413
    %v3415 = vsel %vm1804, %v1112, -inf
    %v3416 = vrot.slane %v3415, 4
    %v3417 = vmax.f32 %v3415, %v3416
    %v3418 = vrot.slane %v3417, 2
    %v3419 = vmax.f32 %v3417, %v3418
    %v3420 = vrot.slane %v3419, 1
    %v3421 = vmax.f32 %v3419, %v3420
    %v3422 = vsel %vm1804, %v1113, -inf
    %v3423 = vrot.slane %v3422, 4
    %v3424 = vmax.f32 %v3422, %v3423
    %v3425 = vrot.slane %v3424, 2
    %v3426 = vmax.f32 %v3424, %v3425
    %v3427 = vrot.slane %v3426, 1
    %v3428 = vmax.f32 %v3426, %v3427
    %v3429 = vsel %vm1804, %v710, -inf
    %v3430 = vrot.slane %v3429, 4
    %v3431 = vmax.f32 %v3429, %v3430
    %v3432 = vrot.slane %v3431, 2
    %v3433 = vmax.f32 %v3431, %v3432
    %v3434 = vrot.slane %v3433, 1
    %v3435 = vmax.f32 %v3433, %v3434
    %v3436 = vsel %vm1804, %v1114, -inf
    %v3437 = vrot.slane %v3436, 4
    %v3438 = vmax.f32 %v3436, %v3437
    %v3439 = vrot.slane %v3438, 2
    %v3440 = vmax.f32 %v3438, %v3439
    %v3441 = vrot.slane %v3440, 1
    %v3442 = vmax.f32 %v3440, %v3441
    %v3443 = vsel %vm1804, %v1115, -inf
    %v3444 = vrot.slane %v3443, 4
    %v3445 = vmax.f32 %v3443, %v3444
    %v3446 = vrot.slane %v3445, 2
    %v3447 = vmax.f32 %v3445, %v3446
    %v3448 = vrot.slane %v3447, 1
    %v3449 = vmax.f32 %v3447, %v3448
    %v3450 = vsel %vm1804, %v1116, -inf
    %v3451 = vrot.slane %v3450, 4
    %v3452 = vmax.f32 %v3450, %v3451
    %v3453 = vrot.slane %v3452, 2
    %v3454 = vmax.f32 %v3452, %v3453
    %v3455 = vrot.slane %v3454, 1
    %v3456 = vmax.f32 %v3454, %v3455
    %v3457 = vsel %vm1804, %v711, -inf
    %v3458 = vrot.slane %v3457, 4
    %v3459 = vmax.f32 %v3457, %v3458
    %v3460 = vrot.slane %v3459, 2
    %v3461 = vmax.f32 %v3459, %v3460
    %v3462 = vrot.slane %v3461, 1
    %v3463 = vmax.f32 %v3461, %v3462
    %v3464 = vsel %vm1804, %v1117, -inf
    %v3465 = vrot.slane %v3464, 4
    %v3466 = vmax.f32 %v3464, %v3465
    %v3467 = vrot.slane %v3466, 2
    %v3468 = vmax.f32 %v3466, %v3467
    %v3469 = vrot.slane %v3468, 1
    %v3470 = vmax.f32 %v3468, %v3469
    %v3471 = vsel %vm1804, %v1118, -inf
    %v3472 = vrot.slane %v3471, 4
    %v3473 = vmax.f32 %v3471, %v3472
    %v3474 = vrot.slane %v3473, 2
    %v3475 = vmax.f32 %v3473, %v3474
    %v3476 = vrot.slane %v3475, 1
    %v3477 = vmax.f32 %v3475, %v3476
    %v3478 = vsel %vm1804, %v1119, -inf
    %v3479 = vrot.slane %v3478, 4
    %v3480 = vmax.f32 %v3478, %v3479
    %v3481 = vrot.slane %v3480, 2
    %v3482 = vmax.f32 %v3480, %v3481
    %v3483 = vrot.slane %v3482, 1
    %v3484 = vmax.f32 %v3482, %v3483
    %v3485 = vsel %vm1804, %v712, -inf
    %v3486 = vrot.slane %v3485, 4
    %v3487 = vmax.f32 %v3485, %v3486
    %v3488 = vrot.slane %v3487, 2
    %v3489 = vmax.f32 %v3487, %v3488
    %v3490 = vrot.slane %v3489, 1
    %v3491 = vmax.f32 %v3489, %v3490
    %v3492 = vsel %vm1804, %v1120, -inf
    %v3493 = vrot.slane %v3492, 4
    %v3494 = vmax.f32 %v3492, %v3493
    %v3495 = vrot.slane %v3494, 2
    %v3496 = vmax.f32 %v3494, %v3495
    %v3497 = vrot.slane %v3496, 1
    %v3498 = vmax.f32 %v3496, %v3497
    %v3499 = vsel %vm1804, %v1121, -inf
    %v3500 = vrot.slane %v3499, 4
    %v3501 = vmax.f32 %v3499, %v3500
    %v3502 = vrot.slane %v3501, 2
    %v3503 = vmax.f32 %v3501, %v3502
    %v3504 = vrot.slane %v3503, 1
    %v3505 = vmax.f32 %v3503, %v3504
    %v3506 = vsel %vm1804, %v1122, -inf
    %v3507 = vrot.slane %v3506, 4
    %v3508 = vmax.f32 %v3506, %v3507
    %v3509 = vrot.slane %v3508, 2
    %v3510 = vmax.f32 %v3508, %v3509
    %v3511 = vrot.slane %v3510, 1
    %v3512 = vmax.f32 %v3510, %v3511
    %v3513 = vsel %vm1804, %v713, -inf
    %v3514 = vrot.slane %v3513, 4
    %v3515 = vmax.f32 %v3513, %v3514
    %v3516 = vrot.slane %v3515, 2
    %v3517 = vmax.f32 %v3515, %v3516
    %v3518 = vrot.slane %v3517, 1
    %v3519 = vmax.f32 %v3517, %v3518
    %v3520 = vsel %vm1804, %v1123, -inf
    %v3521 = vrot.slane %v3520, 4
    %v3522 = vmax.f32 %v3520, %v3521
    %v3523 = vrot.slane %v3522, 2
    %v3524 = vmax.f32 %v3522, %v3523
    %v3525 = vrot.slane %v3524, 1
    %v3526 = vmax.f32 %v3524, %v3525
    %v3527 = vsel %vm1804, %v1124, -inf
    %v3528 = vrot.slane %v3527, 4
    %v3529 = vmax.f32 %v3527, %v3528
    %v3530 = vrot.slane %v3529, 2
    %v3531 = vmax.f32 %v3529, %v3530
    %v3532 = vrot.slane %v3531, 1
    %v3533 = vmax.f32 %v3531, %v3532
    %v3534 = vsel %vm1804, %v1125, -inf
    %v3535 = vrot.slane %v3534, 4
    %v3536 = vmax.f32 %v3534, %v3535
    %v3537 = vrot.slane %v3536, 2
    %v3538 = vmax.f32 %v3536, %v3537
    %v3539 = vrot.slane %v3538, 1
    %v3540 = vmax.f32 %v3538, %v3539
    %v3541 = vsel %vm1804, %v714, -inf
    %v3542 = vrot.slane %v3541, 4
    %v3543 = vmax.f32 %v3541, %v3542
    %v3544 = vrot.slane %v3543, 2
    %v3545 = vmax.f32 %v3543, %v3544
    %v3546 = vrot.slane %v3545, 1
    %v3547 = vmax.f32 %v3545, %v3546
    %v3548 = vsel %vm1804, %v1126, -inf
    %v3549 = vrot.slane %v3548, 4
    %v3550 = vmax.f32 %v3548, %v3549
    %v3551 = vrot.slane %v3550, 2
    %v3552 = vmax.f32 %v3550, %v3551
    %v3553 = vrot.slane %v3552, 1
    %v3554 = vmax.f32 %v3552, %v3553
    %v3555 = vsel %vm1804, %v1127, -inf
    %v3556 = vrot.slane %v3555, 4
    %v3557 = vmax.f32 %v3555, %v3556
    %v3558 = vrot.slane %v3557, 2
    %v3559 = vmax.f32 %v3557, %v3558
    %v3560 = vrot.slane %v3559, 1
    %v3561 = vmax.f32 %v3559, %v3560
    %v3562 = vsel %vm1804, %v1128, -inf
    %v3563 = vrot.slane %v3562, 4
    %v3564 = vmax.f32 %v3562, %v3563
    %v3565 = vrot.slane %v3564, 2
    %v3566 = vmax.f32 %v3564, %v3565
    %v3567 = vrot.slane %v3566, 1
    %v3568 = vmax.f32 %v3566, %v3567
    %v3569 = vsel %vm1804, %v715, -inf
    %v3570 = vrot.slane %v3569, 4
    %v3571 = vmax.f32 %v3569, %v3570
    %v3572 = vrot.slane %v3571, 2
    %v3573 = vmax.f32 %v3571, %v3572
    %v3574 = vrot.slane %v3573, 1
    %v3575 = vmax.f32 %v3573, %v3574
    %v3576 = vsel %vm1804, %v1129, -inf
    %v3577 = vrot.slane %v3576, 4
    %v3578 = vmax.f32 %v3576, %v3577
    %v3579 = vrot.slane %v3578, 2
    %v3580 = vmax.f32 %v3578, %v3579
    %v3581 = vrot.slane %v3580, 1
    %v3582 = vmax.f32 %v3580, %v3581
    %v3583 = vsel %vm1804, %v1130, -inf
    %v3584 = vrot.slane %v3583, 4
    %v3585 = vmax.f32 %v3583, %v3584
    %v3586 = vrot.slane %v3585, 2
    %v3587 = vmax.f32 %v3585, %v3586
    %v3588 = vrot.slane %v3587, 1
    %v3589 = vmax.f32 %v3587, %v3588
    %v3590 = vsel %vm1804, %v1131, -inf
    %v3591 = vrot.slane %v3590, 4
    %v3592 = vmax.f32 %v3590, %v3591
    %v3593 = vrot.slane %v3592, 2
    %v3594 = vmax.f32 %v3592, %v3593
    %v3595 = vrot.slane %v3594, 1
    %v3596 = vmax.f32 %v3594, %v3595
    %v3597 = vsel %vm1804, %v716, -inf
    %v3598 = vrot.slane %v3597, 4
    %v3599 = vmax.f32 %v3597, %v3598
    %v3600 = vrot.slane %v3599, 2
    %v3601 = vmax.f32 %v3599, %v3600
    %v3602 = vrot.slane %v3601, 1
    %v3603 = vmax.f32 %v3601, %v3602
    %v3604 = vsel %vm1804, %v1132, -inf
    %v3605 = vrot.slane %v3604, 4
    %v3606 = vmax.f32 %v3604, %v3605
    %v3607 = vrot.slane %v3606, 2
    %v3608 = vmax.f32 %v3606, %v3607
    %v3609 = vrot.slane %v3608, 1
    %v3610 = vmax.f32 %v3608, %v3609
    %v3611 = vsel %vm1804, %v1133, -inf
    %v3612 = vrot.slane %v3611, 4
    %v3613 = vmax.f32 %v3611, %v3612
    %v3614 = vrot.slane %v3613, 2
    %v3615 = vmax.f32 %v3613, %v3614
    %v3616 = vrot.slane %v3615, 1
    %v3617 = vmax.f32 %v3615, %v3616
    %v3618 = vsel %vm1804, %v1134, -inf
    %v3619 = vrot.slane %v3618, 4
    %v3620 = vmax.f32 %v3618, %v3619
    %v3621 = vrot.slane %v3620, 2
    %v3622 = vmax.f32 %v3620, %v3621
    %v3623 = vrot.slane %v3622, 1
    %v3624 = vmax.f32 %v3622, %v3623
    %v3625 = vsel %vm1804, %v717, -inf
    %v3626 = vrot.slane %v3625, 4
    %v3627 = vmax.f32 %v3625, %v3626
    %v3628 = vrot.slane %v3627, 2
    %v3629 = vmax.f32 %v3627, %v3628
    %v3630 = vrot.slane %v3629, 1
    %v3631 = vmax.f32 %v3629, %v3630
    %v3632 = vsel %vm1804, %v1135, -inf
    %v3633 = vrot.slane %v3632, 4
    %v3634 = vmax.f32 %v3632, %v3633
    %v3635 = vrot.slane %v3634, 2
    %v3636 = vmax.f32 %v3634, %v3635
    %v3637 = vrot.slane %v3636, 1
    %v3638 = vmax.f32 %v3636, %v3637
    %v3639 = vsel %vm1804, %v1136, -inf
    %v3640 = vrot.slane %v3639, 4
    %v3641 = vmax.f32 %v3639, %v3640
    %v3642 = vrot.slane %v3641, 2
    %v3643 = vmax.f32 %v3641, %v3642
    %v3644 = vrot.slane %v3643, 1
    %v3645 = vmax.f32 %v3643, %v3644
    %v3646 = vsel %vm1804, %v1137, -inf
    %v3647 = vrot.slane %v3646, 4
    %v3648 = vmax.f32 %v3646, %v3647
    %v3649 = vrot.slane %v3648, 2
    %v3650 = vmax.f32 %v3648, %v3649
    %v3651 = vrot.slane %v3650, 1
    %v3652 = vmax.f32 %v3650, %v3651
    %v3653 = vsel %vm1804, %v718, -inf
    %v3654 = vrot.slane %v3653, 4
    %v3655 = vmax.f32 %v3653, %v3654
    %v3656 = vrot.slane %v3655, 2
    %v3657 = vmax.f32 %v3655, %v3656
    %v3658 = vrot.slane %v3657, 1
    %v3659 = vmax.f32 %v3657, %v3658
    %v3660 = vsel %vm1804, %v1138, -inf
    %v3661 = vrot.slane %v3660, 4
    %v3662 = vmax.f32 %v3660, %v3661
    %v3663 = vrot.slane %v3662, 2
    %v3664 = vmax.f32 %v3662, %v3663
    %v3665 = vrot.slane %v3664, 1
    %v3666 = vmax.f32 %v3664, %v3665
    %v3667 = vsel %vm1804, %v1139, -inf
    %v3668 = vrot.slane %v3667, 4
    %v3669 = vmax.f32 %v3667, %v3668
    %v3670 = vrot.slane %v3669, 2
    %v3671 = vmax.f32 %v3669, %v3670
    %v3672 = vrot.slane %v3671, 1
    %v3673 = vmax.f32 %v3671, %v3672
    %v3674 = vsel %vm1804, %v1140, -inf
    %v3675 = vrot.slane %v3674, 4
    %v3676 = vmax.f32 %v3674, %v3675
    %v3677 = vrot.slane %v3676, 2
    %v3678 = vmax.f32 %v3676, %v3677
    %v3679 = vrot.slane %v3678, 1
    %v3680 = vmax.f32 %v3678, %v3679
    %v3681 = vsel %vm1804, %v719, -inf
    %v3682 = vrot.slane %v3681, 4
    %v3683 = vmax.f32 %v3681, %v3682
    %v3684 = vrot.slane %v3683, 2
    %v3685 = vmax.f32 %v3683, %v3684
    %v3686 = vrot.slane %v3685, 1
    %v3687 = vmax.f32 %v3685, %v3686
    %v3688 = vsel %vm1804, %v1141, -inf
    %v3689 = vrot.slane %v3688, 4
    %v3690 = vmax.f32 %v3688, %v3689
    %v3691 = vrot.slane %v3690, 2
    %v3692 = vmax.f32 %v3690, %v3691
    %v3693 = vrot.slane %v3692, 1
    %v3694 = vmax.f32 %v3692, %v3693
    %v3695 = vsel %vm1804, %v1142, -inf
    %v3696 = vrot.slane %v3695, 4
    %v3697 = vmax.f32 %v3695, %v3696
    %v3698 = vrot.slane %v3697, 2
    %v3699 = vmax.f32 %v3697, %v3698
    %v3700 = vrot.slane %v3699, 1
    %v3701 = vmax.f32 %v3699, %v3700
    %v3702 = vsel %vm1804, %v1143, -inf
    %v3703 = vrot.slane %v3702, 4
    %v3704 = vmax.f32 %v3702, %v3703
    %v3705 = vrot.slane %v3704, 2
    %v3706 = vmax.f32 %v3704, %v3705
    %v3707 = vrot.slane %v3706, 1
    %v3708 = vmax.f32 %v3706, %v3707
    %v3709 = vsel %vm1804, %v720, -inf
    %v3710 = vrot.slane %v3709, 4
    %v3711 = vmax.f32 %v3709, %v3710
    %v3712 = vrot.slane %v3711, 2
    %v3713 = vmax.f32 %v3711, %v3712
    %v3714 = vrot.slane %v3713, 1
    %v3715 = vmax.f32 %v3713, %v3714
    %v3716 = vsel %vm1804, %v1144, -inf
    %v3717 = vrot.slane %v3716, 4
    %v3718 = vmax.f32 %v3716, %v3717
    %v3719 = vrot.slane %v3718, 2
    %v3720 = vmax.f32 %v3718, %v3719
    %v3721 = vrot.slane %v3720, 1
    %v3722 = vmax.f32 %v3720, %v3721
    %v3723 = vsel %vm1804, %v1145, -inf
    %v3724 = vrot.slane %v3723, 4
    %v3725 = vmax.f32 %v3723, %v3724
    %v3726 = vrot.slane %v3725, 2
    %v3727 = vmax.f32 %v3725, %v3726
    %v3728 = vrot.slane %v3727, 1
    %v3729 = vmax.f32 %v3727, %v3728
    %v3730 = vsel %vm1804, %v1146, -inf
    %v3731 = vrot.slane %v3730, 4
    %v3732 = vmax.f32 %v3730, %v3731
    %v3733 = vrot.slane %v3732, 2
    %v3734 = vmax.f32 %v3732, %v3733
    %v3735 = vrot.slane %v3734, 1
    %v3736 = vmax.f32 %v3734, %v3735
    %v3737 = vsel %vm1804, %v721, -inf
    %v3738 = vrot.slane %v3737, 4
    %v3739 = vmax.f32 %v3737, %v3738
    %v3740 = vrot.slane %v3739, 2
    %v3741 = vmax.f32 %v3739, %v3740
    %v3742 = vrot.slane %v3741, 1
    %v3743 = vmax.f32 %v3741, %v3742
    %v3744 = vsel %vm1804, %v1147, -inf
    %v3745 = vrot.slane %v3744, 4
    %v3746 = vmax.f32 %v3744, %v3745
    %v3747 = vrot.slane %v3746, 2
    %v3748 = vmax.f32 %v3746, %v3747
    %v3749 = vrot.slane %v3748, 1
    %v3750 = vmax.f32 %v3748, %v3749
    %v3751 = vsel %vm1804, %v1148, -inf
    %v3752 = vrot.slane %v3751, 4
    %v3753 = vmax.f32 %v3751, %v3752
    %v3754 = vrot.slane %v3753, 2
    %v3755 = vmax.f32 %v3753, %v3754
    %v3756 = vrot.slane %v3755, 1
    %v3757 = vmax.f32 %v3755, %v3756
    %v3758 = vsel %vm1804, %v1149, -inf
    %v3759 = vrot.slane %v3758, 4
    %v3760 = vmax.f32 %v3758, %v3759
    %v3761 = vrot.slane %v3760, 2
    %v3762 = vmax.f32 %v3760, %v3761
    %v3763 = vrot.slane %v3762, 1
    %v3764 = vmax.f32 %v3762, %v3763
    %v3765 = vsel %vm1804, %v722, -inf
    %v3766 = vrot.slane %v3765, 4
    %v3767 = vmax.f32 %v3765, %v3766
    %v3768 = vrot.slane %v3767, 2
    %v3769 = vmax.f32 %v3767, %v3768
    %v3770 = vrot.slane %v3769, 1
    %v3771 = vmax.f32 %v3769, %v3770
    %v3772 = vsel %vm1804, %v1150, -inf
    %v3773 = vrot.slane %v3772, 4
    %v3774 = vmax.f32 %v3772, %v3773
    %v3775 = vrot.slane %v3774, 2
    %v3776 = vmax.f32 %v3774, %v3775
    %v3777 = vrot.slane %v3776, 1
    %v3778 = vmax.f32 %v3776, %v3777
    %v3779 = vsel %vm1804, %v1151, -inf
    %v3780 = vrot.slane %v3779, 4
    %v3781 = vmax.f32 %v3779, %v3780
    %v3782 = vrot.slane %v3781, 2
    %v3783 = vmax.f32 %v3781, %v3782
    %v3784 = vrot.slane %v3783, 1
    %v3785 = vmax.f32 %v3783, %v3784
    %v3786 = vsel %vm1804, %v1152, -inf
    %v3787 = vrot.slane %v3786, 4
    %v3788 = vmax.f32 %v3786, %v3787
    %v3789 = vrot.slane %v3788, 2
    %v3790 = vmax.f32 %v3788, %v3789
    %v3791 = vrot.slane %v3790, 1
    %v3792 = vmax.f32 %v3790, %v3791
    %v3793 = vsel %vm1804, %v723, -inf
    %v3794 = vrot.slane %v3793, 4
    %v3795 = vmax.f32 %v3793, %v3794
    %v3796 = vrot.slane %v3795, 2
    %v3797 = vmax.f32 %v3795, %v3796
    %v3798 = vrot.slane %v3797, 1
    %v3799 = vmax.f32 %v3797, %v3798
    %v3800 = vsel %vm1804, %v1153, -inf
    %v3801 = vrot.slane %v3800, 4
    %v3802 = vmax.f32 %v3800, %v3801
    %v3803 = vrot.slane %v3802, 2
    %v3804 = vmax.f32 %v3802, %v3803
    %v3805 = vrot.slane %v3804, 1
    %v3806 = vmax.f32 %v3804, %v3805
    %v3807 = vsel %vm1804, %v1154, -inf
    %v3808 = vrot.slane %v3807, 4
    %v3809 = vmax.f32 %v3807, %v3808
    %v3810 = vrot.slane %v3809, 2
    %v3811 = vmax.f32 %v3809, %v3810
    %v3812 = vrot.slane %v3811, 1
    %v3813 = vmax.f32 %v3811, %v3812
    %v3814 = vsel %vm1804, %v1155, -inf
    %v3815 = vrot.slane %v3814, 4
    %v3816 = vmax.f32 %v3814, %v3815
    %v3817 = vrot.slane %v3816, 2
    %v3818 = vmax.f32 %v3816, %v3817
    %v3819 = vrot.slane %v3818, 1
    %v3820 = vmax.f32 %v3818, %v3819
    %v3821 = vsel %vm1804, %v724, -inf
    %v3822 = vrot.slane %v3821, 4
    %v3823 = vmax.f32 %v3821, %v3822
    %v3824 = vrot.slane %v3823, 2
    %v3825 = vmax.f32 %v3823, %v3824
    %v3826 = vrot.slane %v3825, 1
    %v3827 = vmax.f32 %v3825, %v3826
    %v3828 = vsel %vm1804, %v1156, -inf
    %v3829 = vrot.slane %v3828, 4
    %v3830 = vmax.f32 %v3828, %v3829
    %v3831 = vrot.slane %v3830, 2
    %v3832 = vmax.f32 %v3830, %v3831
    %v3833 = vrot.slane %v3832, 1
    %v3834 = vmax.f32 %v3832, %v3833
    %v3835 = vsel %vm1804, %v1157, -inf
    %v3836 = vrot.slane %v3835, 4
    %v3837 = vmax.f32 %v3835, %v3836
    %v3838 = vrot.slane %v3837, 2
    %v3839 = vmax.f32 %v3837, %v3838
    %v3840 = vrot.slane %v3839, 1
    %v3841 = vmax.f32 %v3839, %v3840
    %v3842 = vsel %vm1804, %v1158, -inf
    %v3843 = vrot.slane %v3842, 4
    %v3844 = vmax.f32 %v3842, %v3843
    %v3845 = vrot.slane %v3844, 2
    %v3846 = vmax.f32 %v3844, %v3845
    %v3847 = vrot.slane %v3846, 1
    %v3848 = vmax.f32 %v3846, %v3847
    %v3849 = vsel %vm1804, %v725, -inf
    %v3850 = vrot.slane %v3849, 4
    %v3851 = vmax.f32 %v3849, %v3850
    %v3852 = vrot.slane %v3851, 2
    %v3853 = vmax.f32 %v3851, %v3852
    %v3854 = vrot.slane %v3853, 1
    %v3855 = vmax.f32 %v3853, %v3854
    %v3856 = vsel %vm1804, %v1159, -inf
    %v3857 = vrot.slane %v3856, 4
    %v3858 = vmax.f32 %v3856, %v3857
    %v3859 = vrot.slane %v3858, 2
    %v3860 = vmax.f32 %v3858, %v3859
    %v3861 = vrot.slane %v3860, 1
    %v3862 = vmax.f32 %v3860, %v3861
    %v3863 = vsel %vm1804, %v1160, -inf
    %v3864 = vrot.slane %v3863, 4
    %v3865 = vmax.f32 %v3863, %v3864
    %v3866 = vrot.slane %v3865, 2
    %v3867 = vmax.f32 %v3865, %v3866
    %v3868 = vrot.slane %v3867, 1
    %v3869 = vmax.f32 %v3867, %v3868
    %v3870 = vsel %vm1804, %v1161, -inf
    %v3871 = vrot.slane %v3870, 4
    %v3872 = vmax.f32 %v3870, %v3871
    %v3873 = vrot.slane %v3872, 2
    %v3874 = vmax.f32 %v3872, %v3873
    %v3875 = vrot.slane %v3874, 1
    %v3876 = vmax.f32 %v3874, %v3875
    %v3877 = vsel %vm1804, %v726, -inf
    %v3878 = vrot.slane %v3877, 4
    %v3879 = vmax.f32 %v3877, %v3878
    %v3880 = vrot.slane %v3879, 2
    %v3881 = vmax.f32 %v3879, %v3880
    %v3882 = vrot.slane %v3881, 1
    %v3883 = vmax.f32 %v3881, %v3882
    %v3884 = vsel %vm1804, %v1162, -inf
    %v3885 = vrot.slane %v3884, 4
    %v3886 = vmax.f32 %v3884, %v3885
    %v3887 = vrot.slane %v3886, 2
    %v3888 = vmax.f32 %v3886, %v3887
    %v3889 = vrot.slane %v3888, 1
    %v3890 = vmax.f32 %v3888, %v3889
    %v3891 = vsel %vm1804, %v1163, -inf
    %v3892 = vrot.slane %v3891, 4
    %v3893 = vmax.f32 %v3891, %v3892
    %v3894 = vrot.slane %v3893, 2
    %v3895 = vmax.f32 %v3893, %v3894
    %v3896 = vrot.slane %v3895, 1
    %v3897 = vmax.f32 %v3895, %v3896
    %v3898 = vsel %vm1804, %v1164, -inf
    %v3899 = vrot.slane %v3898, 4
    %v3900 = vmax.f32 %v3898, %v3899
    %v3901 = vrot.slane %v3900, 2
    %v3902 = vmax.f32 %v3900, %v3901
    %v3903 = vrot.slane %v3902, 1
    %v3904 = vmax.f32 %v3902, %v3903
    %v3905 = vsel %vm1804, %v727, -inf
    %v3906 = vrot.slane %v3905, 4
    %v3907 = vmax.f32 %v3905, %v3906
    %v3908 = vrot.slane %v3907, 2
    %v3909 = vmax.f32 %v3907, %v3908
    %v3910 = vrot.slane %v3909, 1
    %v3911 = vmax.f32 %v3909, %v3910
    %v3912 = vsel %vm1804, %v1165, -inf
    %v3913 = vrot.slane %v3912, 4
    %v3914 = vmax.f32 %v3912, %v3913
    %v3915 = vrot.slane %v3914, 2
    %v3916 = vmax.f32 %v3914, %v3915
    %v3917 = vrot.slane %v3916, 1
    %v3918 = vmax.f32 %v3916, %v3917
    %v3919 = vsel %vm1804, %v1166, -inf
    %v3920 = vrot.slane %v3919, 4
    %v3921 = vmax.f32 %v3919, %v3920
    %v3922 = vrot.slane %v3921, 2
    %v3923 = vmax.f32 %v3921, %v3922
    %v3924 = vrot.slane %v3923, 1
    %v3925 = vmax.f32 %v3923, %v3924
    %v3926 = vsel %vm1804, %v1167, -inf
    %v3927 = vrot.slane %v3926, 4
    %v3928 = vmax.f32 %v3926, %v3927
    %v3929 = vrot.slane %v3928, 2
    %v3930 = vmax.f32 %v3928, %v3929
    %v3931 = vrot.slane %v3930, 1
    %v3932 = vmax.f32 %v3930, %v3931
    %v3933 = vsel %vm1804, %v728, -inf
    %v3934 = vrot.slane %v3933, 4
    %v3935 = vmax.f32 %v3933, %v3934
    %v3936 = vrot.slane %v3935, 2
    %v3937 = vmax.f32 %v3935, %v3936
    %v3938 = vrot.slane %v3937, 1
    %v3939 = vmax.f32 %v3937, %v3938
    %v3940 = vsel %vm1804, %v1168, -inf
    %v3941 = vrot.slane %v3940, 4
    %v3942 = vmax.f32 %v3940, %v3941
    %v3943 = vrot.slane %v3942, 2
    %v3944 = vmax.f32 %v3942, %v3943
    %v3945 = vrot.slane %v3944, 1
    %v3946 = vmax.f32 %v3944, %v3945
    %v3947 = vsel %vm1804, %v1169, -inf
    %v3948 = vrot.slane %v3947, 4
    %v3949 = vmax.f32 %v3947, %v3948
    %v3950 = vrot.slane %v3949, 2
    %v3951 = vmax.f32 %v3949, %v3950
    %v3952 = vrot.slane %v3951, 1
    %v3953 = vmax.f32 %v3951, %v3952
    %v3954 = vsel %vm1804, %v1170, -inf
    %v3955 = vrot.slane %v3954, 4
    %v3956 = vmax.f32 %v3954, %v3955
    %v3957 = vrot.slane %v3956, 2
    %v3958 = vmax.f32 %v3956, %v3957
    %v3959 = vrot.slane %v3958, 1
    %v3960 = vmax.f32 %v3958, %v3959
    %v3961 = vsel %vm1804, %v729, -inf
    %v3962 = vrot.slane %v3961, 4
    %v3963 = vmax.f32 %v3961, %v3962
    %v3964 = vrot.slane %v3963, 2
    %v3965 = vmax.f32 %v3963, %v3964
    %v3966 = vrot.slane %v3965, 1
    %v3967 = vmax.f32 %v3965, %v3966
    %v3968 = vsel %vm1804, %v1171, -inf
    %v3969 = vrot.slane %v3968, 4
    %v3970 = vmax.f32 %v3968, %v3969
    %v3971 = vrot.slane %v3970, 2
    %v3972 = vmax.f32 %v3970, %v3971
    %v3973 = vrot.slane %v3972, 1
    %v3974 = vmax.f32 %v3972, %v3973
    %v3975 = vsel %vm1804, %v1172, -inf
    %v3976 = vrot.slane %v3975, 4
    %v3977 = vmax.f32 %v3975, %v3976
    %v3978 = vrot.slane %v3977, 2
    %v3979 = vmax.f32 %v3977, %v3978
    %v3980 = vrot.slane %v3979, 1
    %v3981 = vmax.f32 %v3979, %v3980
    %v3982 = vsel %vm1804, %v1173, -inf
    %v3983 = vrot.slane %v3982, 4
    %v3984 = vmax.f32 %v3982, %v3983
    %v3985 = vrot.slane %v3984, 2
    %v3986 = vmax.f32 %v3984, %v3985
    %v3987 = vrot.slane %v3986, 1
    %v3988 = vmax.f32 %v3986, %v3987
    %v3989 = vsel %vm1804, %v730, -inf
    %v3990 = vrot.slane %v3989, 4
    %v3991 = vmax.f32 %v3989, %v3990
    %v3992 = vrot.slane %v3991, 2
    %v3993 = vmax.f32 %v3991, %v3992
    %v3994 = vrot.slane %v3993, 1
    %v3995 = vmax.f32 %v3993, %v3994
    %v3996 = vsel %vm1804, %v1174, -inf
    %v3997 = vrot.slane %v3996, 4
    %v3998 = vmax.f32 %v3996, %v3997
    %v3999 = vrot.slane %v3998, 2
    %v4000 = vmax.f32 %v3998, %v3999
    %v4001 = vrot.slane %v4000, 1
    %v4002 = vmax.f32 %v4000, %v4001
    %v4003 = vsel %vm1804, %v1175, -inf
    %v4004 = vrot.slane %v4003, 4
    %v4005 = vmax.f32 %v4003, %v4004
    %v4006 = vrot.slane %v4005, 2
    %v4007 = vmax.f32 %v4005, %v4006
    %v4008 = vrot.slane %v4007, 1
    %v4009 = vmax.f32 %v4007, %v4008
    %v4010 = vsel %vm1804, %v1176, -inf
    %v4011 = vrot.slane %v4010, 4
    %v4012 = vmax.f32 %v4010, %v4011
    %v4013 = vrot.slane %v4012, 2
    %v4014 = vmax.f32 %v4012, %v4013
    %v4015 = vrot.slane %v4014, 1
    %v4016 = vmax.f32 %v4014, %v4015
    %v4017 = vsel %vm1804, %v731, -inf
    %v4018 = vrot.slane %v4017, 4
    %v4019 = vmax.f32 %v4017, %v4018
    %v4020 = vrot.slane %v4019, 2
    %v4021 = vmax.f32 %v4019, %v4020
    %v4022 = vrot.slane %v4021, 1
    %v4023 = vmax.f32 %v4021, %v4022
    %v4024 = vsel %vm1804, %v1177, -inf
    %v4025 = vrot.slane %v4024, 4
    %v4026 = vmax.f32 %v4024, %v4025
    %v4027 = vrot.slane %v4026, 2
    %v4028 = vmax.f32 %v4026, %v4027
    %v4029 = vrot.slane %v4028, 1
    %v4030 = vmax.f32 %v4028, %v4029
    %v4031 = vsel %vm1804, %v1178, -inf
    %v4032 = vrot.slane %v4031, 4
    %v4033 = vmax.f32 %v4031, %v4032
    %v4034 = vrot.slane %v4033, 2
    %v4035 = vmax.f32 %v4033, %v4034
    %v4036 = vrot.slane %v4035, 1
    %v4037 = vmax.f32 %v4035, %v4036
    %v4038 = vsel %vm1804, %v1179, -inf
    %v4039 = vrot.slane %v4038, 4
    %v4040 = vmax.f32 %v4038, %v4039
    %v4041 = vrot.slane %v4040, 2
    %v4042 = vmax.f32 %v4040, %v4041
    %v4043 = vrot.slane %v4042, 1
    %v4044 = vmax.f32 %v4042, %v4043
    %v4045 = vsel %vm1804, %v732, -inf
    %v4046 = vrot.slane %v4045, 4
    %v4047 = vmax.f32 %v4045, %v4046
    %v4048 = vrot.slane %v4047, 2
    %v4049 = vmax.f32 %v4047, %v4048
    %v4050 = vrot.slane %v4049, 1
    %v4051 = vmax.f32 %v4049, %v4050
    %v4052 = vsel %vm1804, %v1180, -inf
    %v4053 = vrot.slane %v4052, 4
    %v4054 = vmax.f32 %v4052, %v4053
    %v4055 = vrot.slane %v4054, 2
    %v4056 = vmax.f32 %v4054, %v4055
    %v4057 = vrot.slane %v4056, 1
    %v4058 = vmax.f32 %v4056, %v4057
    %v4059 = vsel %vm1804, %v1181, -inf
    %v4060 = vrot.slane %v4059, 4
    %v4061 = vmax.f32 %v4059, %v4060
    %v4062 = vrot.slane %v4061, 2
    %v4063 = vmax.f32 %v4061, %v4062
    %v4064 = vrot.slane %v4063, 1
    %v4065 = vmax.f32 %v4063, %v4064
    %v4066 = vsel %vm1804, %v1182, -inf
    %v4067 = vrot.slane %v4066, 4
    %v4068 = vmax.f32 %v4066, %v4067
    %v4069 = vrot.slane %v4068, 2
    %v4070 = vmax.f32 %v4068, %v4069
    %v4071 = vrot.slane %v4070, 1
    %v4072 = vmax.f32 %v4070, %v4071
    %v4073 = vsel %vm1804, %v733, -inf
    %v4074 = vrot.slane %v4073, 4
    %v4075 = vmax.f32 %v4073, %v4074
    %v4076 = vrot.slane %v4075, 2
    %v4077 = vmax.f32 %v4075, %v4076
    %v4078 = vrot.slane %v4077, 1
    %v4079 = vmax.f32 %v4077, %v4078
    %v4080 = vsel %vm1804, %v1183, -inf
    %v4081 = vrot.slane %v4080, 4
    %v4082 = vmax.f32 %v4080, %v4081
    %v4083 = vrot.slane %v4082, 2
    %v4084 = vmax.f32 %v4082, %v4083
    %v4085 = vrot.slane %v4084, 1
    %v4086 = vmax.f32 %v4084, %v4085
    %v4087 = vsel %vm1804, %v1184, -inf
    %v4088 = vrot.slane %v4087, 4
    %v4089 = vmax.f32 %v4087, %v4088
    %v4090 = vrot.slane %v4089, 2
    %v4091 = vmax.f32 %v4089, %v4090
    %v4092 = vrot.slane %v4091, 1
    %v4093 = vmax.f32 %v4091, %v4092
    %v4094 = vsel %vm1804, %v1185, -inf
    %v4095 = vrot.slane %v4094, 4
    %v4096 = vmax.f32 %v4094, %v4095
    %v4097 = vrot.slane %v4096, 2
    %v4098 = vmax.f32 %v4096, %v4097
    %v4099 = vrot.slane %v4098, 1
    %v4100 = vmax.f32 %v4098, %v4099
    %v4101 = vsel %vm1804, %v734, -inf
    %v4102 = vrot.slane %v4101, 4
    %v4103 = vmax.f32 %v4101, %v4102
    %v4104 = vrot.slane %v4103, 2
    %v4105 = vmax.f32 %v4103, %v4104
    %v4106 = vrot.slane %v4105, 1
    %v4107 = vmax.f32 %v4105, %v4106
    %v4108 = vsel %vm1804, %v1186, -inf
    %v4109 = vrot.slane %v4108, 4
    %v4110 = vmax.f32 %v4108, %v4109
    %v4111 = vrot.slane %v4110, 2
    %v4112 = vmax.f32 %v4110, %v4111
    %v4113 = vrot.slane %v4112, 1
    %v4114 = vmax.f32 %v4112, %v4113
    %v4115 = vsel %vm1804, %v1187, -inf
    %v4116 = vrot.slane %v4115, 4
    %v4117 = vmax.f32 %v4115, %v4116
    %v4118 = vrot.slane %v4117, 2
    %v4119 = vmax.f32 %v4117, %v4118
    %v4120 = vrot.slane %v4119, 1
    %v4121 = vmax.f32 %v4119, %v4120
    %v4122 = vsel %vm1804, %v1188, -inf
    %v4123 = vrot.slane %v4122, 4
    %v4124 = vmax.f32 %v4122, %v4123
    %v4125 = vrot.slane %v4124, 2
    %v4126 = vmax.f32 %v4124, %v4125
    %v4127 = vrot.slane %v4126, 1
    %v4128 = vmax.f32 %v4126, %v4127
    %v4129 = vsel %vm1804, %v735, -inf
    %v4130 = vrot.slane %v4129, 4
    %v4131 = vmax.f32 %v4129, %v4130
    %v4132 = vrot.slane %v4131, 2
    %v4133 = vmax.f32 %v4131, %v4132
    %v4134 = vrot.slane %v4133, 1
    %v4135 = vmax.f32 %v4133, %v4134
    %v4136 = vsel %vm1804, %v1189, -inf
    %v4137 = vrot.slane %v4136, 4
    %v4138 = vmax.f32 %v4136, %v4137
    %v4139 = vrot.slane %v4138, 2
    %v4140 = vmax.f32 %v4138, %v4139
    %v4141 = vrot.slane %v4140, 1
    %v4142 = vmax.f32 %v4140, %v4141
    %v4143 = vsel %vm1804, %v1190, -inf
    %v4144 = vrot.slane %v4143, 4
    %v4145 = vmax.f32 %v4143, %v4144
    %v4146 = vrot.slane %v4145, 2
    %v4147 = vmax.f32 %v4145, %v4146
    %v4148 = vrot.slane %v4147, 1
    %v4149 = vmax.f32 %v4147, %v4148
    %v4150 = vsel %vm1804, %v1191, -inf
    %v4151 = vrot.slane %v4150, 4
    %v4152 = vmax.f32 %v4150, %v4151
    %v4153 = vrot.slane %v4152, 2
    %v4154 = vmax.f32 %v4152, %v4153
    %v4155 = vrot.slane %v4154, 1
    %v4156 = vmax.f32 %v4154, %v4155
    %v4157 = vsel %vm1804, %v736, -inf
    %v4158 = vrot.slane %v4157, 4
    %v4159 = vmax.f32 %v4157, %v4158
    %v4160 = vrot.slane %v4159, 2
    %v4161 = vmax.f32 %v4159, %v4160
    %v4162 = vrot.slane %v4161, 1
    %v4163 = vmax.f32 %v4161, %v4162
    %v4164 = vsel %vm1804, %v1192, -inf
    %v4165 = vrot.slane %v4164, 4
    %v4166 = vmax.f32 %v4164, %v4165
    %v4167 = vrot.slane %v4166, 2
    %v4168 = vmax.f32 %v4166, %v4167
    %v4169 = vrot.slane %v4168, 1
    %v4170 = vmax.f32 %v4168, %v4169
    %v4171 = vsel %vm1804, %v1193, -inf
    %v4172 = vrot.slane %v4171, 4
    %v4173 = vmax.f32 %v4171, %v4172
    %v4174 = vrot.slane %v4173, 2
    %v4175 = vmax.f32 %v4173, %v4174
    %v4176 = vrot.slane %v4175, 1
    %v4177 = vmax.f32 %v4175, %v4176
    %v4178 = vsel %vm1804, %v1194, -inf
    %v4179 = vrot.slane %v4178, 4
    %v4180 = vmax.f32 %v4178, %v4179
    %v4181 = vrot.slane %v4180, 2
    %v4182 = vmax.f32 %v4180, %v4181
    %v4183 = vrot.slane %v4182, 1
    %v4184 = vmax.f32 %v4182, %v4183
    %v4185 = vsel %vm1804, %v737, -inf
    %v4186 = vrot.slane %v4185, 4
    %v4187 = vmax.f32 %v4185, %v4186
    %v4188 = vrot.slane %v4187, 2
    %v4189 = vmax.f32 %v4187, %v4188
    %v4190 = vrot.slane %v4189, 1
    %v4191 = vmax.f32 %v4189, %v4190
    %v4192 = vsel %vm1804, %v1195, -inf
    %v4193 = vrot.slane %v4192, 4
    %v4194 = vmax.f32 %v4192, %v4193
    %v4195 = vrot.slane %v4194, 2
    %v4196 = vmax.f32 %v4194, %v4195
    %v4197 = vrot.slane %v4196, 1
    %v4198 = vmax.f32 %v4196, %v4197
    %v4199 = vsel %vm1804, %v1196, -inf
    %v4200 = vrot.slane %v4199, 4
    %v4201 = vmax.f32 %v4199, %v4200
    %v4202 = vrot.slane %v4201, 2
    %v4203 = vmax.f32 %v4201, %v4202
    %v4204 = vrot.slane %v4203, 1
    %v4205 = vmax.f32 %v4203, %v4204
    %v4206 = vsel %vm1804, %v1197, -inf
    %v4207 = vrot.slane %v4206, 4
    %v4208 = vmax.f32 %v4206, %v4207
    %v4209 = vrot.slane %v4208, 2
    %v4210 = vmax.f32 %v4208, %v4209
    %v4211 = vrot.slane %v4210, 1
    %v4212 = vmax.f32 %v4210, %v4211
    %v4213 = vsel %vm1804, %v738, -inf
    %v4214 = vrot.slane %v4213, 4
    %v4215 = vmax.f32 %v4213, %v4214
    %v4216 = vrot.slane %v4215, 2
    %v4217 = vmax.f32 %v4215, %v4216
    %v4218 = vrot.slane %v4217, 1
    %v4219 = vmax.f32 %v4217, %v4218
    %v4220 = vsel %vm1804, %v1198, -inf
    %v4221 = vrot.slane %v4220, 4
    %v4222 = vmax.f32 %v4220, %v4221
    %v4223 = vrot.slane %v4222, 2
    %v4224 = vmax.f32 %v4222, %v4223
    %v4225 = vrot.slane %v4224, 1
    %v4226 = vmax.f32 %v4224, %v4225
    %v4227 = vsel %vm1804, %v1199, -inf
    %v4228 = vrot.slane %v4227, 4
    %v4229 = vmax.f32 %v4227, %v4228
    %v4230 = vrot.slane %v4229, 2
    %v4231 = vmax.f32 %v4229, %v4230
    %v4232 = vrot.slane %v4231, 1
    %v4233 = vmax.f32 %v4231, %v4232
    %v4234 = vsel %vm1804, %v1200, -inf
    %v4235 = vrot.slane %v4234, 4
    %v4236 = vmax.f32 %v4234, %v4235
    %v4237 = vrot.slane %v4236, 2
    %v4238 = vmax.f32 %v4236, %v4237
    %v4239 = vrot.slane %v4238, 1
    %v4240 = vmax.f32 %v4238, %v4239
    %v4241 = vsel %vm1804, %v739, -inf
    %v4242 = vrot.slane %v4241, 4
    %v4243 = vmax.f32 %v4241, %v4242
    %v4244 = vrot.slane %v4243, 2
    %v4245 = vmax.f32 %v4243, %v4244
    %v4246 = vrot.slane %v4245, 1
    %v4247 = vmax.f32 %v4245, %v4246
    %v4248 = vsel %vm1804, %v1201, -inf
    %v4249 = vrot.slane %v4248, 4
    %v4250 = vmax.f32 %v4248, %v4249
    %v4251 = vrot.slane %v4250, 2
    %v4252 = vmax.f32 %v4250, %v4251
    %v4253 = vrot.slane %v4252, 1
    %v4254 = vmax.f32 %v4252, %v4253
    %v4255 = vsel %vm1804, %v1202, -inf
    %v4256 = vrot.slane %v4255, 4
    %v4257 = vmax.f32 %v4255, %v4256
    %v4258 = vrot.slane %v4257, 2
    %v4259 = vmax.f32 %v4257, %v4258
    %v4260 = vrot.slane %v4259, 1
    %v4261 = vmax.f32 %v4259, %v4260
    %v4262 = vsel %vm1804, %v1203, -inf
    %v4263 = vrot.slane %v4262, 4
    %v4264 = vmax.f32 %v4262, %v4263
    %v4265 = vrot.slane %v4264, 2
    %v4266 = vmax.f32 %v4264, %v4265
    %v4267 = vrot.slane %v4266, 1
    %v4268 = vmax.f32 %v4266, %v4267
    %v4269 = vsel %vm1804, %v740, -inf
    %v4270 = vrot.slane %v4269, 4
    %v4271 = vmax.f32 %v4269, %v4270
    %v4272 = vrot.slane %v4271, 2
    %v4273 = vmax.f32 %v4271, %v4272
    %v4274 = vrot.slane %v4273, 1
    %v4275 = vmax.f32 %v4273, %v4274
    %v4276 = vsel %vm1804, %v1204, -inf
    %v4277 = vrot.slane %v4276, 4
    %v4278 = vmax.f32 %v4276, %v4277
    %v4279 = vrot.slane %v4278, 2
    %v4280 = vmax.f32 %v4278, %v4279
    %v4281 = vrot.slane %v4280, 1
    %v4282 = vmax.f32 %v4280, %v4281
    %v4283 = vsel %vm1804, %v1205, -inf
    %v4284 = vrot.slane %v4283, 4
    %v4285 = vmax.f32 %v4283, %v4284
    %v4286 = vrot.slane %v4285, 2
    %v4287 = vmax.f32 %v4285, %v4286
    %v4288 = vrot.slane %v4287, 1
    %v4289 = vmax.f32 %v4287, %v4288
    %v4290 = vsel %vm1804, %v1206, -inf
    %v4291 = vrot.slane %v4290, 4
    %v4292 = vmax.f32 %v4290, %v4291
    %v4293 = vrot.slane %v4292, 2
    %v4294 = vmax.f32 %v4292, %v4293
    %v4295 = vrot.slane %v4294, 1
    %v4296 = vmax.f32 %v4294, %v4295
    %v4297 = vsel %vm1804, %v741, -inf
    %v4298 = vrot.slane %v4297, 4
    %v4299 = vmax.f32 %v4297, %v4298
    %v4300 = vrot.slane %v4299, 2
    %v4301 = vmax.f32 %v4299, %v4300
    %v4302 = vrot.slane %v4301, 1
    %v4303 = vmax.f32 %v4301, %v4302
    %v4304 = vsel %vm1804, %v1207, -inf
    %v4305 = vrot.slane %v4304, 4
    %v4306 = vmax.f32 %v4304, %v4305
    %v4307 = vrot.slane %v4306, 2
    %v4308 = vmax.f32 %v4306, %v4307
    %v4309 = vrot.slane %v4308, 1
    %v4310 = vmax.f32 %v4308, %v4309
    %v4311 = vsel %vm1804, %v1208, -inf
    %v4312 = vrot.slane %v4311, 4
    %v4313 = vmax.f32 %v4311, %v4312
    %v4314 = vrot.slane %v4313, 2
    %v4315 = vmax.f32 %v4313, %v4314
    %v4316 = vrot.slane %v4315, 1
    %v4317 = vmax.f32 %v4315, %v4316
    %v4318 = vsel %vm1804, %v1209, -inf
    %v4319 = vrot.slane %v4318, 4
    %v4320 = vmax.f32 %v4318, %v4319
    %v4321 = vrot.slane %v4320, 2
    %v4322 = vmax.f32 %v4320, %v4321
    %v4323 = vrot.slane %v4322, 1
    %v4324 = vmax.f32 %v4322, %v4323
    %v4325 = vsel %vm1804, %v742, -inf
    %v4326 = vrot.slane %v4325, 4
    %v4327 = vmax.f32 %v4325, %v4326
    %v4328 = vrot.slane %v4327, 2
    %v4329 = vmax.f32 %v4327, %v4328
    %v4330 = vrot.slane %v4329, 1
    %v4331 = vmax.f32 %v4329, %v4330
    %v4332 = vsel %vm1804, %v1210, -inf
    %v4333 = vrot.slane %v4332, 4
    %v4334 = vmax.f32 %v4332, %v4333
    %v4335 = vrot.slane %v4334, 2
    %v4336 = vmax.f32 %v4334, %v4335
    %v4337 = vrot.slane %v4336, 1
    %v4338 = vmax.f32 %v4336, %v4337
    %v4339 = vsel %vm1804, %v1211, -inf
    %v4340 = vrot.slane %v4339, 4
    %v4341 = vmax.f32 %v4339, %v4340
    %v4342 = vrot.slane %v4341, 2
    %v4343 = vmax.f32 %v4341, %v4342
    %v4344 = vrot.slane %v4343, 1
    %v4345 = vmax.f32 %v4343, %v4344
    %v4346 = vsel %vm1804, %v1212, -inf
    %v4347 = vrot.slane %v4346, 4
    %v4348 = vmax.f32 %v4346, %v4347
    %v4349 = vrot.slane %v4348, 2
    %v4350 = vmax.f32 %v4348, %v4349
    %v4351 = vrot.slane %v4350, 1
    %v4352 = vmax.f32 %v4350, %v4351
    %v4353 = vsel %vm1804, %v743, -inf
    %v4354 = vrot.slane %v4353, 4
    %v4355 = vmax.f32 %v4353, %v4354
    %v4356 = vrot.slane %v4355, 2
    %v4357 = vmax.f32 %v4355, %v4356
    %v4358 = vrot.slane %v4357, 1
    %v4359 = vmax.f32 %v4357, %v4358
    %v4360 = vsel %vm1804, %v1213, -inf
    %v4361 = vrot.slane %v4360, 4
    %v4362 = vmax.f32 %v4360, %v4361
    %v4363 = vrot.slane %v4362, 2
    %v4364 = vmax.f32 %v4362, %v4363
    %v4365 = vrot.slane %v4364, 1
    %v4366 = vmax.f32 %v4364, %v4365
    %v4367 = vsel %vm1804, %v1214, -inf
    %v4368 = vrot.slane %v4367, 4
    %v4369 = vmax.f32 %v4367, %v4368
    %v4370 = vrot.slane %v4369, 2
    %v4371 = vmax.f32 %v4369, %v4370
    %v4372 = vrot.slane %v4371, 1
    %v4373 = vmax.f32 %v4371, %v4372
    %v4374 = vsel %vm1804, %v1215, -inf
    %v4375 = vrot.slane %v4374, 4
    %v4376 = vmax.f32 %v4374, %v4375
    %v4377 = vrot.slane %v4376, 2
    %v4378 = vmax.f32 %v4376, %v4377
    %v4379 = vrot.slane %v4378, 1
    %v4380 = vmax.f32 %v4378, %v4379
    %v4381 = vsel %vm1804, %v744, -inf
    %v4382 = vrot.slane %v4381, 4
    %v4383 = vmax.f32 %v4381, %v4382
    %v4384 = vrot.slane %v4383, 2
    %v4385 = vmax.f32 %v4383, %v4384
    %v4386 = vrot.slane %v4385, 1
    %v4387 = vmax.f32 %v4385, %v4386
    %v4388 = vsel %vm1804, %v1216, -inf
    %v4389 = vrot.slane %v4388, 4
    %v4390 = vmax.f32 %v4388, %v4389
    %v4391 = vrot.slane %v4390, 2
    %v4392 = vmax.f32 %v4390, %v4391
    %v4393 = vrot.slane %v4392, 1
    %v4394 = vmax.f32 %v4392, %v4393
    %v4395 = vsel %vm1804, %v1217, -inf
    %v4396 = vrot.slane %v4395, 4
    %v4397 = vmax.f32 %v4395, %v4396
    %v4398 = vrot.slane %v4397, 2
    %v4399 = vmax.f32 %v4397, %v4398
    %v4400 = vrot.slane %v4399, 1
    %v4401 = vmax.f32 %v4399, %v4400
    %v4402 = vsel %vm1804, %v1218, -inf
    %v4403 = vrot.slane %v4402, 4
    %v4404 = vmax.f32 %v4402, %v4403
    %v4405 = vrot.slane %v4404, 2
    %v4406 = vmax.f32 %v4404, %v4405
    %v4407 = vrot.slane %v4406, 1
    %v4408 = vmax.f32 %v4406, %v4407
    %v4409 = vsel %vm1804, %v745, -inf
    %v4410 = vrot.slane %v4409, 4
    %v4411 = vmax.f32 %v4409, %v4410
    %v4412 = vrot.slane %v4411, 2
    %v4413 = vmax.f32 %v4411, %v4412
    %v4414 = vrot.slane %v4413, 1
    %v4415 = vmax.f32 %v4413, %v4414
    %v4416 = vsel %vm1804, %v1219, -inf
    %v4417 = vrot.slane %v4416, 4
    %v4418 = vmax.f32 %v4416, %v4417
    %v4419 = vrot.slane %v4418, 2
    %v4420 = vmax.f32 %v4418, %v4419
    %v4421 = vrot.slane %v4420, 1
    %v4422 = vmax.f32 %v4420, %v4421
    %v4423 = vsel %vm1804, %v1220, -inf
    %v4424 = vrot.slane %v4423, 4
    %v4425 = vmax.f32 %v4423, %v4424
    %v4426 = vrot.slane %v4425, 2
    %v4427 = vmax.f32 %v4425, %v4426
    %v4428 = vrot.slane %v4427, 1
    %v4429 = vmax.f32 %v4427, %v4428
    %v4430 = vsel %vm1804, %v1221, -inf
    %v4431 = vrot.slane %v4430, 4
    %v4432 = vmax.f32 %v4430, %v4431
    %v4433 = vrot.slane %v4432, 2
    %v4434 = vmax.f32 %v4432, %v4433
    %v4435 = vrot.slane %v4434, 1
    %v4436 = vmax.f32 %v4434, %v4435
    %v4437 = vsel %vm1804, %v746, -inf
    %v4438 = vrot.slane %v4437, 4
    %v4439 = vmax.f32 %v4437, %v4438
    %v4440 = vrot.slane %v4439, 2
    %v4441 = vmax.f32 %v4439, %v4440
    %v4442 = vrot.slane %v4441, 1
    %v4443 = vmax.f32 %v4441, %v4442
    %v4444 = vsel %vm1804, %v1222, -inf
    %v4445 = vrot.slane %v4444, 4
    %v4446 = vmax.f32 %v4444, %v4445
    %v4447 = vrot.slane %v4446, 2
    %v4448 = vmax.f32 %v4446, %v4447
    %v4449 = vrot.slane %v4448, 1
    %v4450 = vmax.f32 %v4448, %v4449
    %v4451 = vsel %vm1804, %v1223, -inf
    %v4452 = vrot.slane %v4451, 4
    %v4453 = vmax.f32 %v4451, %v4452
    %v4454 = vrot.slane %v4453, 2
    %v4455 = vmax.f32 %v4453, %v4454
    %v4456 = vrot.slane %v4455, 1
    %v4457 = vmax.f32 %v4455, %v4456
    %v4458 = vsel %vm1804, %v1224, -inf
    %v4459 = vrot.slane %v4458, 4
    %v4460 = vmax.f32 %v4458, %v4459
    %v4461 = vrot.slane %v4460, 2
    %v4462 = vmax.f32 %v4460, %v4461
    %v4463 = vrot.slane %v4462, 1
    %v4464 = vmax.f32 %v4462, %v4463
    %v4465 = vsel %vm1804, %v747, -inf
    %v4466 = vrot.slane %v4465, 4
    %v4467 = vmax.f32 %v4465, %v4466
    %v4468 = vrot.slane %v4467, 2
    %v4469 = vmax.f32 %v4467, %v4468
    %v4470 = vrot.slane %v4469, 1
    %v4471 = vmax.f32 %v4469, %v4470
    %v4472 = vsel %vm1804, %v1225, -inf
    %v4473 = vrot.slane %v4472, 4
    %v4474 = vmax.f32 %v4472, %v4473
    %v4475 = vrot.slane %v4474, 2
    %v4476 = vmax.f32 %v4474, %v4475
    %v4477 = vrot.slane %v4476, 1
    %v4478 = vmax.f32 %v4476, %v4477
    %v4479 = vsel %vm1804, %v1226, -inf
    %v4480 = vrot.slane %v4479, 4
    %v4481 = vmax.f32 %v4479, %v4480
    %v4482 = vrot.slane %v4481, 2
    %v4483 = vmax.f32 %v4481, %v4482
    %v4484 = vrot.slane %v4483, 1
    %v4485 = vmax.f32 %v4483, %v4484
    %v4486 = vsel %vm1804, %v1227, -inf
    %v4487 = vrot.slane %v4486, 4
    %v4488 = vmax.f32 %v4486, %v4487
    %v4489 = vrot.slane %v4488, 2
    %v4490 = vmax.f32 %v4488, %v4489
    %v4491 = vrot.slane %v4490, 1
    %v4492 = vmax.f32 %v4490, %v4491
    %v4493 = vsel %vm1804, %v748, -inf
    %v4494 = vrot.slane %v4493, 4
    %v4495 = vmax.f32 %v4493, %v4494
    %v4496 = vrot.slane %v4495, 2
    %v4497 = vmax.f32 %v4495, %v4496
    %v4498 = vrot.slane %v4497, 1
    %v4499 = vmax.f32 %v4497, %v4498
    %v4500 = vsel %vm1804, %v1228, -inf
    %v4501 = vrot.slane %v4500, 4
    %v4502 = vmax.f32 %v4500, %v4501
    %v4503 = vrot.slane %v4502, 2
    %v4504 = vmax.f32 %v4502, %v4503
    %v4505 = vrot.slane %v4504, 1
    %v4506 = vmax.f32 %v4504, %v4505
    %v4507 = vsel %vm1804, %v1229, -inf
    %v4508 = vrot.slane %v4507, 4
    %v4509 = vmax.f32 %v4507, %v4508
    %v4510 = vrot.slane %v4509, 2
    %v4511 = vmax.f32 %v4509, %v4510
    %v4512 = vrot.slane %v4511, 1
    %v4513 = vmax.f32 %v4511, %v4512
    %v4514 = vsel %vm1804, %v1230, -inf
    %v4515 = vrot.slane %v4514, 4
    %v4516 = vmax.f32 %v4514, %v4515
    %v4517 = vrot.slane %v4516, 2
    %v4518 = vmax.f32 %v4516, %v4517
    %v4519 = vrot.slane %v4518, 1
    %v4520 = vmax.f32 %v4518, %v4519
    %v4521 = vsel %vm1804, %v749, -inf
    %v4522 = vrot.slane %v4521, 4
    %v4523 = vmax.f32 %v4521, %v4522
    %v4524 = vrot.slane %v4523, 2
    %v4525 = vmax.f32 %v4523, %v4524
    %v4526 = vrot.slane %v4525, 1
    %v4527 = vmax.f32 %v4525, %v4526
    %v4528 = vsel %vm1804, %v1231, -inf
    %v4529 = vrot.slane %v4528, 4
    %v4530 = vmax.f32 %v4528, %v4529
    %v4531 = vrot.slane %v4530, 2
    %v4532 = vmax.f32 %v4530, %v4531
    %v4533 = vrot.slane %v4532, 1
    %v4534 = vmax.f32 %v4532, %v4533
    %v4535 = vsel %vm1804, %v1232, -inf
    %v4536 = vrot.slane %v4535, 4
    %v4537 = vmax.f32 %v4535, %v4536
    %v4538 = vrot.slane %v4537, 2
    %v4539 = vmax.f32 %v4537, %v4538
    %v4540 = vrot.slane %v4539, 1
    %v4541 = vmax.f32 %v4539, %v4540
    %v4542 = vsel %vm1804, %v1233, -inf
    %v4543 = vrot.slane %v4542, 4
    %v4544 = vmax.f32 %v4542, %v4543
    %v4545 = vrot.slane %v4544, 2
    %v4546 = vmax.f32 %v4544, %v4545
    %v4547 = vrot.slane %v4546, 1
    %v4548 = vmax.f32 %v4546, %v4547
    %v4549 = vsel %vm1804, %v750, -inf
    %v4550 = vrot.slane %v4549, 4
    %v4551 = vmax.f32 %v4549, %v4550
    %v4552 = vrot.slane %v4551, 2
    %v4553 = vmax.f32 %v4551, %v4552
    %v4554 = vrot.slane %v4553, 1
    %v4555 = vmax.f32 %v4553, %v4554
    %v4556 = vsel %vm1804, %v1234, -inf
    %v4557 = vrot.slane %v4556, 4
    %v4558 = vmax.f32 %v4556, %v4557
    %v4559 = vrot.slane %v4558, 2
    %v4560 = vmax.f32 %v4558, %v4559
    %v4561 = vrot.slane %v4560, 1
    %v4562 = vmax.f32 %v4560, %v4561
    %v4563 = vsel %vm1804, %v1235, -inf
    %v4564 = vrot.slane %v4563, 4
    %v4565 = vmax.f32 %v4563, %v4564
    %v4566 = vrot.slane %v4565, 2
    %v4567 = vmax.f32 %v4565, %v4566
    %v4568 = vrot.slane %v4567, 1
    %v4569 = vmax.f32 %v4567, %v4568
    %v4570 = vsel %vm1804, %v1236, -inf
    %v4571 = vrot.slane %v4570, 4
    %v4572 = vmax.f32 %v4570, %v4571
    %v4573 = vrot.slane %v4572, 2
    %v4574 = vmax.f32 %v4572, %v4573
    %v4575 = vrot.slane %v4574, 1
    %v4576 = vmax.f32 %v4574, %v4575
    %v4577 = vsel %vm1804, %v751, -inf
    %v4578 = vrot.slane %v4577, 4
    %v4579 = vmax.f32 %v4577, %v4578
    %v4580 = vrot.slane %v4579, 2
    %v4581 = vmax.f32 %v4579, %v4580
    %v4582 = vrot.slane %v4581, 1
    %v4583 = vmax.f32 %v4581, %v4582
    %v4584 = vsel %vm1804, %v1237, -inf
    %v4585 = vrot.slane %v4584, 4
    %v4586 = vmax.f32 %v4584, %v4585
    %v4587 = vrot.slane %v4586, 2
    %v4588 = vmax.f32 %v4586, %v4587
    %v4589 = vrot.slane %v4588, 1
    %v4590 = vmax.f32 %v4588, %v4589
    %v4591 = vsel %vm1804, %v1238, -inf
    %v4592 = vrot.slane %v4591, 4
    %v4593 = vmax.f32 %v4591, %v4592
    %v4594 = vrot.slane %v4593, 2
    %v4595 = vmax.f32 %v4593, %v4594
    %v4596 = vrot.slane %v4595, 1
    %v4597 = vmax.f32 %v4595, %v4596
    %v4598 = vsel %vm1804, %v1239, -inf
    %v4599 = vrot.slane %v4598, 4
    %v4600 = vmax.f32 %v4598, %v4599
    %v4601 = vrot.slane %v4600, 2
    %v4602 = vmax.f32 %v4600, %v4601
    %v4603 = vrot.slane %v4602, 1
    %v4604 = vmax.f32 %v4602, %v4603
    %v4605 = vsel %vm1804, %v752, -inf
    %v4606 = vrot.slane %v4605, 4
    %v4607 = vmax.f32 %v4605, %v4606
    %v4608 = vrot.slane %v4607, 2
    %v4609 = vmax.f32 %v4607, %v4608
    %v4610 = vrot.slane %v4609, 1
    %v4611 = vmax.f32 %v4609, %v4610
    %v4612 = vsel %vm1804, %v1240, -inf
    %v4613 = vrot.slane %v4612, 4
    %v4614 = vmax.f32 %v4612, %v4613
    %v4615 = vrot.slane %v4614, 2
    %v4616 = vmax.f32 %v4614, %v4615
    %v4617 = vrot.slane %v4616, 1
    %v4618 = vmax.f32 %v4616, %v4617
    %v4619 = vsel %vm1804, %v1241, -inf
    %v4620 = vrot.slane %v4619, 4
    %v4621 = vmax.f32 %v4619, %v4620
    %v4622 = vrot.slane %v4621, 2
    %v4623 = vmax.f32 %v4621, %v4622
    %v4624 = vrot.slane %v4623, 1
    %v4625 = vmax.f32 %v4623, %v4624
    %v4626 = vsel %vm1804, %v1242, -inf
    %v4627 = vrot.slane %v4626, 4
    %v4628 = vmax.f32 %v4626, %v4627
    %v4629 = vrot.slane %v4628, 2
    %v4630 = vmax.f32 %v4628, %v4629
    %v4631 = vrot.slane %v4630, 1
    %v4632 = vmax.f32 %v4630, %v4631
    %v4633 = vsel %vm1804, %v753, -inf
    %v4634 = vrot.slane %v4633, 4
    %v4635 = vmax.f32 %v4633, %v4634
    %v4636 = vrot.slane %v4635, 2
    %v4637 = vmax.f32 %v4635, %v4636
    %v4638 = vrot.slane %v4637, 1
    %v4639 = vmax.f32 %v4637, %v4638
    %v4640 = vsel %vm1804, %v1243, -inf
    %v4641 = vrot.slane %v4640, 4
    %v4642 = vmax.f32 %v4640, %v4641
    %v4643 = vrot.slane %v4642, 2
    %v4644 = vmax.f32 %v4642, %v4643
    %v4645 = vrot.slane %v4644, 1
    %v4646 = vmax.f32 %v4644, %v4645
    %v4647 = vsel %vm1804, %v1244, -inf
    %v4648 = vrot.slane %v4647, 4
    %v4649 = vmax.f32 %v4647, %v4648
    %v4650 = vrot.slane %v4649, 2
    %v4651 = vmax.f32 %v4649, %v4650
    %v4652 = vrot.slane %v4651, 1
    %v4653 = vmax.f32 %v4651, %v4652
    %v4654 = vsel %vm1804, %v1245, -inf
    %v4655 = vrot.slane %v4654, 4
    %v4656 = vmax.f32 %v4654, %v4655
    %v4657 = vrot.slane %v4656, 2
    %v4658 = vmax.f32 %v4656, %v4657
    %v4659 = vrot.slane %v4658, 1
    %v4660 = vmax.f32 %v4658, %v4659
    %v4661 = vsel %vm1804, %v754, -inf
    %v4662 = vrot.slane %v4661, 4
    %v4663 = vmax.f32 %v4661, %v4662
    %v4664 = vrot.slane %v4663, 2
    %v4665 = vmax.f32 %v4663, %v4664
    %v4666 = vrot.slane %v4665, 1
    %v4667 = vmax.f32 %v4665, %v4666
    %v4668 = vsel %vm1804, %v1246, -inf
    %v4669 = vrot.slane %v4668, 4
    %v4670 = vmax.f32 %v4668, %v4669
    %v4671 = vrot.slane %v4670, 2
    %v4672 = vmax.f32 %v4670, %v4671
    %v4673 = vrot.slane %v4672, 1
    %v4674 = vmax.f32 %v4672, %v4673
    %v4675 = vsel %vm1804, %v1247, -inf
    %v4676 = vrot.slane %v4675, 4
    %v4677 = vmax.f32 %v4675, %v4676
    %v4678 = vrot.slane %v4677, 2
    %v4679 = vmax.f32 %v4677, %v4678
    %v4680 = vrot.slane %v4679, 1
    %v4681 = vmax.f32 %v4679, %v4680
    %v4682 = vsel %vm1804, %v1248, -inf
    %v4683 = vrot.slane %v4682, 4
    %v4684 = vmax.f32 %v4682, %v4683
    %v4685 = vrot.slane %v4684, 2
    %v4686 = vmax.f32 %v4684, %v4685
    %v4687 = vrot.slane %v4686, 1
    %v4688 = vmax.f32 %v4686, %v4687
    %v4689 = vsel %vm1804, %v755, -inf
    %v4690 = vrot.slane %v4689, 4
    %v4691 = vmax.f32 %v4689, %v4690
    %v4692 = vrot.slane %v4691, 2
    %v4693 = vmax.f32 %v4691, %v4692
    %v4694 = vrot.slane %v4693, 1
    %v4695 = vmax.f32 %v4693, %v4694
    %v4696 = vsel %vm1804, %v1249, -inf
    %v4697 = vrot.slane %v4696, 4
    %v4698 = vmax.f32 %v4696, %v4697
    %v4699 = vrot.slane %v4698, 2
    %v4700 = vmax.f32 %v4698, %v4699
    %v4701 = vrot.slane %v4700, 1
    %v4702 = vmax.f32 %v4700, %v4701
    %v4703 = vsel %vm1804, %v1250, -inf
    %v4704 = vrot.slane %v4703, 4
    %v4705 = vmax.f32 %v4703, %v4704
    %v4706 = vrot.slane %v4705, 2
    %v4707 = vmax.f32 %v4705, %v4706
    %v4708 = vrot.slane %v4707, 1
    %v4709 = vmax.f32 %v4707, %v4708
    %v4710 = vsel %vm1804, %v1251, -inf
    %v4711 = vrot.slane %v4710, 4
    %v4712 = vmax.f32 %v4710, %v4711
    %v4713 = vrot.slane %v4712, 2
    %v4714 = vmax.f32 %v4712, %v4713
    %v4715 = vrot.slane %v4714, 1
    %v4716 = vmax.f32 %v4714, %v4715
    %v4717 = vsel %vm1804, %v756, -inf
    %v4718 = vrot.slane %v4717, 4
    %v4719 = vmax.f32 %v4717, %v4718
    %v4720 = vrot.slane %v4719, 2
    %v4721 = vmax.f32 %v4719, %v4720
    %v4722 = vrot.slane %v4721, 1
    %v4723 = vmax.f32 %v4721, %v4722
    %v4724 = vsel %vm1804, %v1252, -inf
    %v4725 = vrot.slane %v4724, 4
    %v4726 = vmax.f32 %v4724, %v4725
    %v4727 = vrot.slane %v4726, 2
    %v4728 = vmax.f32 %v4726, %v4727
    %v4729 = vrot.slane %v4728, 1
    %v4730 = vmax.f32 %v4728, %v4729
    %v4731 = vsel %vm1804, %v1253, -inf
    %v4732 = vrot.slane %v4731, 4
    %v4733 = vmax.f32 %v4731, %v4732
    %v4734 = vrot.slane %v4733, 2
    %v4735 = vmax.f32 %v4733, %v4734
    %v4736 = vrot.slane %v4735, 1
    %v4737 = vmax.f32 %v4735, %v4736
    %v4738 = vsel %vm1804, %v1254, -inf
    %v4739 = vrot.slane %v4738, 4
    %v4740 = vmax.f32 %v4738, %v4739
    %v4741 = vrot.slane %v4740, 2
    %v4742 = vmax.f32 %v4740, %v4741
    %v4743 = vrot.slane %v4742, 1
    %v4744 = vmax.f32 %v4742, %v4743
    %v4745 = vsel %vm1804, %v757, -inf
    %v4746 = vrot.slane %v4745, 4
    %v4747 = vmax.f32 %v4745, %v4746
    %v4748 = vrot.slane %v4747, 2
    %v4749 = vmax.f32 %v4747, %v4748
    %v4750 = vrot.slane %v4749, 1
    %v4751 = vmax.f32 %v4749, %v4750
    %v4752 = vsel %vm1804, %v1255, -inf
    %v4753 = vrot.slane %v4752, 4
    %v4754 = vmax.f32 %v4752, %v4753
    %v4755 = vrot.slane %v4754, 2
    %v4756 = vmax.f32 %v4754, %v4755
    %v4757 = vrot.slane %v4756, 1
    %v4758 = vmax.f32 %v4756, %v4757
    %v4759 = vsel %vm1804, %v1256, -inf
    %v4760 = vrot.slane %v4759, 4
    %v4761 = vmax.f32 %v4759, %v4760
    %v4762 = vrot.slane %v4761, 2
    %v4763 = vmax.f32 %v4761, %v4762
    %v4764 = vrot.slane %v4763, 1
    %v4765 = vmax.f32 %v4763, %v4764
    %v4766 = vsel %vm1804, %v1257, -inf
    %v4767 = vrot.slane %v4766, 4
    %v4768 = vmax.f32 %v4766, %v4767
    %v4769 = vrot.slane %v4768, 2
    %v4770 = vmax.f32 %v4768, %v4769
    %v4771 = vrot.slane %v4770, 1
    %v4772 = vmax.f32 %v4770, %v4771
    %v4773 = vsel %vm1804, %v758, -inf
    %v4774 = vrot.slane %v4773, 4
    %v4775 = vmax.f32 %v4773, %v4774
    %v4776 = vrot.slane %v4775, 2
    %v4777 = vmax.f32 %v4775, %v4776
    %v4778 = vrot.slane %v4777, 1
    %v4779 = vmax.f32 %v4777, %v4778
    %v4780 = vsel %vm1804, %v1258, -inf
    %v4781 = vrot.slane %v4780, 4
    %v4782 = vmax.f32 %v4780, %v4781
    %v4783 = vrot.slane %v4782, 2
    %v4784 = vmax.f32 %v4782, %v4783
    %v4785 = vrot.slane %v4784, 1
    %v4786 = vmax.f32 %v4784, %v4785
    %v4787 = vsel %vm1804, %v1259, -inf
    %v4788 = vrot.slane %v4787, 4
    %v4789 = vmax.f32 %v4787, %v4788
    %v4790 = vrot.slane %v4789, 2
    %v4791 = vmax.f32 %v4789, %v4790
    %v4792 = vrot.slane %v4791, 1
    %v4793 = vmax.f32 %v4791, %v4792
    %v4794 = vsel %vm1804, %v1260, -inf
    %v4795 = vrot.slane %v4794, 4
    %v4796 = vmax.f32 %v4794, %v4795
    %v4797 = vrot.slane %v4796, 2
    %v4798 = vmax.f32 %v4796, %v4797
    %v4799 = vrot.slane %v4798, 1
    %v4800 = vmax.f32 %v4798, %v4799
    %v4801 = vsel %vm1804, %v759, -inf
    %v4802 = vrot.slane %v4801, 4
    %v4803 = vmax.f32 %v4801, %v4802
    %v4804 = vrot.slane %v4803, 2
    %v4805 = vmax.f32 %v4803, %v4804
    %v4806 = vrot.slane %v4805, 1
    %v4807 = vmax.f32 %v4805, %v4806
    %v4808 = vsel %vm1804, %v1261, -inf
    %v4809 = vrot.slane %v4808, 4
    %v4810 = vmax.f32 %v4808, %v4809
    %v4811 = vrot.slane %v4810, 2
    %v4812 = vmax.f32 %v4810, %v4811
    %v4813 = vrot.slane %v4812, 1
    %v4814 = vmax.f32 %v4812, %v4813
    %v4815 = vsel %vm1804, %v1262, -inf
    %v4816 = vrot.slane %v4815, 4
    %v4817 = vmax.f32 %v4815, %v4816
    %v4818 = vrot.slane %v4817, 2
    %v4819 = vmax.f32 %v4817, %v4818
    %v4820 = vrot.slane %v4819, 1
    %v4821 = vmax.f32 %v4819, %v4820
    %v4822 = vsel %vm1804, %v1263, -inf
    %v4823 = vrot.slane %v4822, 4
    %v4824 = vmax.f32 %v4822, %v4823
    %v4825 = vrot.slane %v4824, 2
    %v4826 = vmax.f32 %v4824, %v4825
    %v4827 = vrot.slane %v4826, 1
    %v4828 = vmax.f32 %v4826, %v4827
    %v4829 = vsel %vm1804, %v760, -inf
    %v4830 = vrot.slane %v4829, 4
    %v4831 = vmax.f32 %v4829, %v4830
    %v4832 = vrot.slane %v4831, 2
    %v4833 = vmax.f32 %v4831, %v4832
    %v4834 = vrot.slane %v4833, 1
    %v4835 = vmax.f32 %v4833, %v4834
    %v4836 = vsel %vm1804, %v1264, -inf
    %v4837 = vrot.slane %v4836, 4
    %v4838 = vmax.f32 %v4836, %v4837
    %v4839 = vrot.slane %v4838, 2
    %v4840 = vmax.f32 %v4838, %v4839
    %v4841 = vrot.slane %v4840, 1
    %v4842 = vmax.f32 %v4840, %v4841
    %v4843 = vsel %vm1804, %v1265, -inf
    %v4844 = vrot.slane %v4843, 4
    %v4845 = vmax.f32 %v4843, %v4844
    %v4846 = vrot.slane %v4845, 2
    %v4847 = vmax.f32 %v4845, %v4846
    %v4848 = vrot.slane %v4847, 1
    %v4849 = vmax.f32 %v4847, %v4848
    %v4850 = vsel %vm1804, %v1266, -inf
    %v4851 = vrot.slane %v4850, 4
    %v4852 = vmax.f32 %v4850, %v4851
    %v4853 = vrot.slane %v4852, 2
    %v4854 = vmax.f32 %v4852, %v4853
    %v4855 = vrot.slane %v4854, 1
    %v4856 = vmax.f32 %v4854, %v4855
    %v4857 = vsel %vm1804, %v761, -inf
    %v4858 = vrot.slane %v4857, 4
    %v4859 = vmax.f32 %v4857, %v4858
    %v4860 = vrot.slane %v4859, 2
    %v4861 = vmax.f32 %v4859, %v4860
    %v4862 = vrot.slane %v4861, 1
    %v4863 = vmax.f32 %v4861, %v4862
    %v4864 = vsel %vm1804, %v1267, -inf
    %v4865 = vrot.slane %v4864, 4
    %v4866 = vmax.f32 %v4864, %v4865
    %v4867 = vrot.slane %v4866, 2
    %v4868 = vmax.f32 %v4866, %v4867
    %v4869 = vrot.slane %v4868, 1
    %v4870 = vmax.f32 %v4868, %v4869
    %v4871 = vsel %vm1804, %v1268, -inf
    %v4872 = vrot.slane %v4871, 4
    %v4873 = vmax.f32 %v4871, %v4872
    %v4874 = vrot.slane %v4873, 2
    %v4875 = vmax.f32 %v4873, %v4874
    %v4876 = vrot.slane %v4875, 1
    %v4877 = vmax.f32 %v4875, %v4876
    %v4878 = vsel %vm1804, %v1269, -inf
    %v4879 = vrot.slane %v4878, 4
    %v4880 = vmax.f32 %v4878, %v4879
    %v4881 = vrot.slane %v4880, 2
    %v4882 = vmax.f32 %v4880, %v4881
    %v4883 = vrot.slane %v4882, 1
    %v4884 = vmax.f32 %v4882, %v4883
    %v4885 = vsel %vm1804, %v762, -inf
    %v4886 = vrot.slane %v4885, 4
    %v4887 = vmax.f32 %v4885, %v4886
    %v4888 = vrot.slane %v4887, 2
    %v4889 = vmax.f32 %v4887, %v4888
    %v4890 = vrot.slane %v4889, 1
    %v4891 = vmax.f32 %v4889, %v4890
    %v4892 = vsel %vm1804, %v1270, -inf
    %v4893 = vrot.slane %v4892, 4
    %v4894 = vmax.f32 %v4892, %v4893
    %v4895 = vrot.slane %v4894, 2
    %v4896 = vmax.f32 %v4894, %v4895
    %v4897 = vrot.slane %v4896, 1
    %v4898 = vmax.f32 %v4896, %v4897
    %v4899 = vsel %vm1804, %v1271, -inf
    %v4900 = vrot.slane %v4899, 4
    %v4901 = vmax.f32 %v4899, %v4900
    %v4902 = vrot.slane %v4901, 2
    %v4903 = vmax.f32 %v4901, %v4902
    %v4904 = vrot.slane %v4903, 1
    %v4905 = vmax.f32 %v4903, %v4904
    %v4906 = vsel %vm1804, %v1272, -inf
    %v4907 = vrot.slane %v4906, 4
    %v4908 = vmax.f32 %v4906, %v4907
    %v4909 = vrot.slane %v4908, 2
    %v4910 = vmax.f32 %v4908, %v4909
    %v4911 = vrot.slane %v4910, 1
    %v4912 = vmax.f32 %v4910, %v4911
    %v4913 = vsel %vm1804, %v763, -inf
    %v4914 = vrot.slane %v4913, 4
    %v4915 = vmax.f32 %v4913, %v4914
    %v4916 = vrot.slane %v4915, 2
    %v4917 = vmax.f32 %v4915, %v4916
    %v4918 = vrot.slane %v4917, 1
    %v4919 = vmax.f32 %v4917, %v4918
    %v4920 = vsel %vm1804, %v1273, -inf
    %v4921 = vrot.slane %v4920, 4
    %v4922 = vmax.f32 %v4920, %v4921
    %v4923 = vrot.slane %v4922, 2
    %v4924 = vmax.f32 %v4922, %v4923
    %v4925 = vrot.slane %v4924, 1
    %v4926 = vmax.f32 %v4924, %v4925
    %v4927 = vsel %vm1804, %v1274, -inf
    %v4928 = vrot.slane %v4927, 4
    %v4929 = vmax.f32 %v4927, %v4928
    %v4930 = vrot.slane %v4929, 2
    %v4931 = vmax.f32 %v4929, %v4930
    %v4932 = vrot.slane %v4931, 1
    %v4933 = vmax.f32 %v4931, %v4932
    %v4934 = vsel %vm1804, %v1275, -inf
    %v4935 = vrot.slane %v4934, 4
    %v4936 = vmax.f32 %v4934, %v4935
    %v4937 = vrot.slane %v4936, 2
    %v4938 = vmax.f32 %v4936, %v4937
    %v4939 = vrot.slane %v4938, 1
    %v4940 = vmax.f32 %v4938, %v4939
    %v4941 = vsel %vm1804, %v764, -inf
    %v4942 = vrot.slane %v4941, 4
    %v4943 = vmax.f32 %v4941, %v4942
    %v4944 = vrot.slane %v4943, 2
    %v4945 = vmax.f32 %v4943, %v4944
    %v4946 = vrot.slane %v4945, 1
    %v4947 = vmax.f32 %v4945, %v4946
    %v4948 = vsel %vm1804, %v1276, -inf
    %v4949 = vrot.slane %v4948, 4
    %v4950 = vmax.f32 %v4948, %v4949
    %v4951 = vrot.slane %v4950, 2
    %v4952 = vmax.f32 %v4950, %v4951
    %v4953 = vrot.slane %v4952, 1
    %v4954 = vmax.f32 %v4952, %v4953
    %v4955 = vsel %vm1804, %v1277, -inf
    %v4956 = vrot.slane %v4955, 4
    %v4957 = vmax.f32 %v4955, %v4956
    %v4958 = vrot.slane %v4957, 2
    %v4959 = vmax.f32 %v4957, %v4958
    %v4960 = vrot.slane %v4959, 1
    %v4961 = vmax.f32 %v4959, %v4960
    %v4962 = vsel %vm1804, %v1278, -inf
    %v4963 = vrot.slane %v4962, 4
    %v4964 = vmax.f32 %v4962, %v4963
    %v4965 = vrot.slane %v4964, 2
    %v4966 = vmax.f32 %v4964, %v4965
    %v4967 = vrot.slane %v4966, 1
    %v4968 = vmax.f32 %v4966, %v4967
    %v4969 = vsel %vm1804, %v765, -inf
    %v4970 = vrot.slane %v4969, 4
    %v4971 = vmax.f32 %v4969, %v4970
    %v4972 = vrot.slane %v4971, 2
    %v4973 = vmax.f32 %v4971, %v4972
    %v4974 = vrot.slane %v4973, 1
    %v4975 = vmax.f32 %v4973, %v4974
    %v4976 = vsel %vm1804, %v1279, -inf
    %v4977 = vrot.slane %v4976, 4
    %v4978 = vmax.f32 %v4976, %v4977
    %v4979 = vrot.slane %v4978, 2
    %v4980 = vmax.f32 %v4978, %v4979
    %v4981 = vrot.slane %v4980, 1
    %v4982 = vmax.f32 %v4980, %v4981
    %v4983 = vsel %vm1804, %v1280, -inf
    %v4984 = vrot.slane %v4983, 4
    %v4985 = vmax.f32 %v4983, %v4984
    %v4986 = vrot.slane %v4985, 2
    %v4987 = vmax.f32 %v4985, %v4986
    %v4988 = vrot.slane %v4987, 1
    %v4989 = vmax.f32 %v4987, %v4988
    %v4990 = vsel %vm1804, %v1281, -inf
    %v4991 = vrot.slane %v4990, 4
    %v4992 = vmax.f32 %v4990, %v4991
    %v4993 = vrot.slane %v4992, 2
    %v4994 = vmax.f32 %v4992, %v4993
    %v4995 = vrot.slane %v4994, 1
    %v4996 = vmax.f32 %v4994, %v4995
    %v4997 = vsel %vm1804, %v766, -inf
    %v4998 = vrot.slane %v4997, 4
    %v4999 = vmax.f32 %v4997, %v4998
    %v5000 = vrot.slane %v4999, 2
    %v5001 = vmax.f32 %v4999, %v5000
    %v5002 = vrot.slane %v5001, 1
    %v5003 = vmax.f32 %v5001, %v5002
    %v5004 = vsel %vm1804, %v1282, -inf
    %v5005 = vrot.slane %v5004, 4
    %v5006 = vmax.f32 %v5004, %v5005
    %v5007 = vrot.slane %v5006, 2
    %v5008 = vmax.f32 %v5006, %v5007
    %v5009 = vrot.slane %v5008, 1
    %v5010 = vmax.f32 %v5008, %v5009
    %v5011 = vsel %vm1804, %v1283, -inf
    %v5012 = vrot.slane %v5011, 4
    %v5013 = vmax.f32 %v5011, %v5012
    %v5014 = vrot.slane %v5013, 2
    %v5015 = vmax.f32 %v5013, %v5014
    %v5016 = vrot.slane %v5015, 1
    %v5017 = vmax.f32 %v5015, %v5016
    %v5018 = vsel %vm1804, %v1284, -inf
    %v5019 = vrot.slane %v5018, 4
    %v5020 = vmax.f32 %v5018, %v5019
    %v5021 = vrot.slane %v5020, 2
    %v5022 = vmax.f32 %v5020, %v5021
    %v5023 = vrot.slane %v5022, 1
    %v5024 = vmax.f32 %v5022, %v5023
    %v5025 = vsel %vm1804, %v767, -inf
    %v5026 = vrot.slane %v5025, 4
    %v5027 = vmax.f32 %v5025, %v5026
    %v5028 = vrot.slane %v5027, 2
    %v5029 = vmax.f32 %v5027, %v5028
    %v5030 = vrot.slane %v5029, 1
    %v5031 = vmax.f32 %v5029, %v5030
    %v5032 = vsel %vm1804, %v1285, -inf
    %v5033 = vrot.slane %v5032, 4
    %v5034 = vmax.f32 %v5032, %v5033
    %v5035 = vrot.slane %v5034, 2
    %v5036 = vmax.f32 %v5034, %v5035
    %v5037 = vrot.slane %v5036, 1
    %v5038 = vmax.f32 %v5036, %v5037
    %v5039 = vsel %vm1804, %v1286, -inf
    %v5040 = vrot.slane %v5039, 4
    %v5041 = vmax.f32 %v5039, %v5040
    %v5042 = vrot.slane %v5041, 2
    %v5043 = vmax.f32 %v5041, %v5042
    %v5044 = vrot.slane %v5043, 1
    %v5045 = vmax.f32 %v5043, %v5044
    %v5046 = vsel %vm1804, %v1287, -inf
    %v5047 = vrot.slane %v5046, 4
    %v5048 = vmax.f32 %v5046, %v5047
    %v5049 = vrot.slane %v5048, 2
    %v5050 = vmax.f32 %v5048, %v5049
    %v5051 = vrot.slane %v5050, 1
    %v5052 = vmax.f32 %v5050, %v5051
    %v5053 = vsel %vm1804, %v768, -inf
    %v5054 = vrot.slane %v5053, 4
    %v5055 = vmax.f32 %v5053, %v5054
    %v5056 = vrot.slane %v5055, 2
    %v5057 = vmax.f32 %v5055, %v5056
    %v5058 = vrot.slane %v5057, 1
    %v5059 = vmax.f32 %v5057, %v5058
    %v5060 = vsel %vm1804, %v1288, -inf
    %v5061 = vrot.slane %v5060, 4
    %v5062 = vmax.f32 %v5060, %v5061
    %v5063 = vrot.slane %v5062, 2
    %v5064 = vmax.f32 %v5062, %v5063
    %v5065 = vrot.slane %v5064, 1
    %v5066 = vmax.f32 %v5064, %v5065
    %v5067 = vsel %vm1804, %v1289, -inf
    %v5068 = vrot.slane %v5067, 4
    %v5069 = vmax.f32 %v5067, %v5068
    %v5070 = vrot.slane %v5069, 2
    %v5071 = vmax.f32 %v5069, %v5070
    %v5072 = vrot.slane %v5071, 1
    %v5073 = vmax.f32 %v5071, %v5072
    %v5074 = vsel %vm1804, %v1290, -inf
    %v5075 = vrot.slane %v5074, 4
    %v5076 = vmax.f32 %v5074, %v5075
    %v5077 = vrot.slane %v5076, 2
    %v5078 = vmax.f32 %v5076, %v5077
    %v5079 = vrot.slane %v5078, 1
    %v5080 = vmax.f32 %v5078, %v5079
    %v5081 = vsel %vm1804, %v769, -inf
    %v5082 = vrot.slane %v5081, 4
    %v5083 = vmax.f32 %v5081, %v5082
    %v5084 = vrot.slane %v5083, 2
    %v5085 = vmax.f32 %v5083, %v5084
    %v5086 = vrot.slane %v5085, 1
    %v5087 = vmax.f32 %v5085, %v5086
    %v5088 = vsel %vm1804, %v1291, -inf
    %v5089 = vrot.slane %v5088, 4
    %v5090 = vmax.f32 %v5088, %v5089
    %v5091 = vrot.slane %v5090, 2
    %v5092 = vmax.f32 %v5090, %v5091
    %v5093 = vrot.slane %v5092, 1
    %v5094 = vmax.f32 %v5092, %v5093
    %v5095 = vsel %vm1804, %v1292, -inf
    %v5096 = vrot.slane %v5095, 4
    %v5097 = vmax.f32 %v5095, %v5096
    %v5098 = vrot.slane %v5097, 2
    %v5099 = vmax.f32 %v5097, %v5098
    %v5100 = vrot.slane %v5099, 1
    %v5101 = vmax.f32 %v5099, %v5100
    %v5102 = vsel %vm1804, %v1293, -inf
    %v5103 = vrot.slane %v5102, 4
    %v5104 = vmax.f32 %v5102, %v5103
    %v5105 = vrot.slane %v5104, 2
    %v5106 = vmax.f32 %v5104, %v5105
    %v5107 = vrot.slane %v5106, 1
    %v5108 = vmax.f32 %v5106, %v5107
    %v5109 = vsel %vm1804, %v770, -inf
    %v5110 = vrot.slane %v5109, 4
    %v5111 = vmax.f32 %v5109, %v5110
    %v5112 = vrot.slane %v5111, 2
    %v5113 = vmax.f32 %v5111, %v5112
    %v5114 = vrot.slane %v5113, 1
    %v5115 = vmax.f32 %v5113, %v5114
    %v5116 = vsel %vm1804, %v1294, -inf
    %v5117 = vrot.slane %v5116, 4
    %v5118 = vmax.f32 %v5116, %v5117
    %v5119 = vrot.slane %v5118, 2
    %v5120 = vmax.f32 %v5118, %v5119
    %v5121 = vrot.slane %v5120, 1
    %v5122 = vmax.f32 %v5120, %v5121
    %v5123 = vsel %vm1804, %v1295, -inf
    %v5124 = vrot.slane %v5123, 4
    %v5125 = vmax.f32 %v5123, %v5124
    %v5126 = vrot.slane %v5125, 2
    %v5127 = vmax.f32 %v5125, %v5126
    %v5128 = vrot.slane %v5127, 1
    %v5129 = vmax.f32 %v5127, %v5128
    %v5130 = vsel %vm1804, %v1296, -inf
    %v5131 = vrot.slane %v5130, 4
    %v5132 = vmax.f32 %v5130, %v5131
    %v5133 = vrot.slane %v5132, 2
    %v5134 = vmax.f32 %v5132, %v5133
    %v5135 = vrot.slane %v5134, 1
    %v5136 = vmax.f32 %v5134, %v5135
    %v5137 = vsel %vm1804, %v771, -inf
    %v5138 = vrot.slane %v5137, 4
    %v5139 = vmax.f32 %v5137, %v5138
    %v5140 = vrot.slane %v5139, 2
    %v5141 = vmax.f32 %v5139, %v5140
    %v5142 = vrot.slane %v5141, 1
    %v5143 = vmax.f32 %v5141, %v5142
    %v5144 = vsel %vm1804, %v1297, -inf
    %v5145 = vrot.slane %v5144, 4
    %v5146 = vmax.f32 %v5144, %v5145
    %v5147 = vrot.slane %v5146, 2
    %v5148 = vmax.f32 %v5146, %v5147
    %v5149 = vrot.slane %v5148, 1
    %v5150 = vmax.f32 %v5148, %v5149
    %v5151 = vsel %vm1804, %v1298, -inf
    %v5152 = vrot.slane %v5151, 4
    %v5153 = vmax.f32 %v5151, %v5152
    %v5154 = vrot.slane %v5153, 2
    %v5155 = vmax.f32 %v5153, %v5154
    %v5156 = vrot.slane %v5155, 1
    %v5157 = vmax.f32 %v5155, %v5156
    %v5158 = vsel %vm1804, %v1299, -inf
    %v5159 = vrot.slane %v5158, 4
    %v5160 = vmax.f32 %v5158, %v5159
    %v5161 = vrot.slane %v5160, 2
    %v5162 = vmax.f32 %v5160, %v5161
    %v5163 = vrot.slane %v5162, 1
    %v5164 = vmax.f32 %v5162, %v5163
    %v5165 = vsel %vm1804, %v772, -inf
    %v5166 = vrot.slane %v5165, 4
    %v5167 = vmax.f32 %v5165, %v5166
    %v5168 = vrot.slane %v5167, 2
    %v5169 = vmax.f32 %v5167, %v5168
    %v5170 = vrot.slane %v5169, 1
    %v5171 = vmax.f32 %v5169, %v5170
    %v5172 = vsel %vm1804, %v1300, -inf
    %v5173 = vrot.slane %v5172, 4
    %v5174 = vmax.f32 %v5172, %v5173
    %v5175 = vrot.slane %v5174, 2
    %v5176 = vmax.f32 %v5174, %v5175
    %v5177 = vrot.slane %v5176, 1
    %v5178 = vmax.f32 %v5176, %v5177
    %v5179 = vsel %vm1804, %v1301, -inf
    %v5180 = vrot.slane %v5179, 4
    %v5181 = vmax.f32 %v5179, %v5180
    %v5182 = vrot.slane %v5181, 2
    %v5183 = vmax.f32 %v5181, %v5182
    %v5184 = vrot.slane %v5183, 1
    %v5185 = vmax.f32 %v5183, %v5184
    %v5186 = vsel %vm1804, %v1302, -inf
    %v5187 = vrot.slane %v5186, 4
    %v5188 = vmax.f32 %v5186, %v5187
    %v5189 = vrot.slane %v5188, 2
    %v5190 = vmax.f32 %v5188, %v5189
    %v5191 = vrot.slane %v5190, 1
    %v5192 = vmax.f32 %v5190, %v5191
    %v5193 = vsel %vm1804, %v773, -inf
    %v5194 = vrot.slane %v5193, 4
    %v5195 = vmax.f32 %v5193, %v5194
    %v5196 = vrot.slane %v5195, 2
    %v5197 = vmax.f32 %v5195, %v5196
    %v5198 = vrot.slane %v5197, 1
    %v5199 = vmax.f32 %v5197, %v5198
    %v5200 = vsel %vm1804, %v1303, -inf
    %v5201 = vrot.slane %v5200, 4
    %v5202 = vmax.f32 %v5200, %v5201
    %v5203 = vrot.slane %v5202, 2
    %v5204 = vmax.f32 %v5202, %v5203
    %v5205 = vrot.slane %v5204, 1
    %v5206 = vmax.f32 %v5204, %v5205
    %v5207 = vsel %vm1804, %v1304, -inf
    %v5208 = vrot.slane %v5207, 4
    %v5209 = vmax.f32 %v5207, %v5208
    %v5210 = vrot.slane %v5209, 2
    %v5211 = vmax.f32 %v5209, %v5210
    %v5212 = vrot.slane %v5211, 1
    %v5213 = vmax.f32 %v5211, %v5212
    %v5214 = vsel %vm1804, %v1305, -inf
    %v5215 = vrot.slane %v5214, 4
    %v5216 = vmax.f32 %v5214, %v5215
    %v5217 = vrot.slane %v5216, 2
    %v5218 = vmax.f32 %v5216, %v5217
    %v5219 = vrot.slane %v5218, 1
    %v5220 = vmax.f32 %v5218, %v5219
    %v5221 = vsel %vm1804, %v774, -inf
    %v5222 = vrot.slane %v5221, 4
    %v5223 = vmax.f32 %v5221, %v5222
    %v5224 = vrot.slane %v5223, 2
    %v5225 = vmax.f32 %v5223, %v5224
    %v5226 = vrot.slane %v5225, 1
    %v5227 = vmax.f32 %v5225, %v5226
    %v5228 = vsel %vm1804, %v1306, -inf
    %v5229 = vrot.slane %v5228, 4
    %v5230 = vmax.f32 %v5228, %v5229
    %v5231 = vrot.slane %v5230, 2
    %v5232 = vmax.f32 %v5230, %v5231
    %v5233 = vrot.slane %v5232, 1
    %v5234 = vmax.f32 %v5232, %v5233
    %v5235 = vsel %vm1804, %v1307, -inf
    %v5236 = vrot.slane %v5235, 4
    %v5237 = vmax.f32 %v5235, %v5236
    %v5238 = vrot.slane %v5237, 2
    %v5239 = vmax.f32 %v5237, %v5238
    %v5240 = vrot.slane %v5239, 1
    %v5241 = vmax.f32 %v5239, %v5240
    %v5242 = vsel %vm1804, %v1308, -inf
    %v5243 = vrot.slane %v5242, 4
    %v5244 = vmax.f32 %v5242, %v5243
    %v5245 = vrot.slane %v5244, 2
    %v5246 = vmax.f32 %v5244, %v5245
    %v5247 = vrot.slane %v5246, 1
    %v5248 = vmax.f32 %v5246, %v5247
    %v5249 = vsel %vm1804, %v775, -inf
    %v5250 = vrot.slane %v5249, 4
    %v5251 = vmax.f32 %v5249, %v5250
    %v5252 = vrot.slane %v5251, 2
    %v5253 = vmax.f32 %v5251, %v5252
    %v5254 = vrot.slane %v5253, 1
    %v5255 = vmax.f32 %v5253, %v5254
    %v5256 = vsel %vm1804, %v1309, -inf
    %v5257 = vrot.slane %v5256, 4
    %v5258 = vmax.f32 %v5256, %v5257
    %v5259 = vrot.slane %v5258, 2
    %v5260 = vmax.f32 %v5258, %v5259
    %v5261 = vrot.slane %v5260, 1
    %v5262 = vmax.f32 %v5260, %v5261
    %v5263 = vsel %vm1804, %v1310, -inf
    %v5264 = vrot.slane %v5263, 4
    %v5265 = vmax.f32 %v5263, %v5264
    %v5266 = vrot.slane %v5265, 2
    %v5267 = vmax.f32 %v5265, %v5266
    %v5268 = vrot.slane %v5267, 1
    %v5269 = vmax.f32 %v5267, %v5268
    %v5270 = vsel %vm1804, %v1311, -inf
    %v5271 = vrot.slane %v5270, 4
    %v5272 = vmax.f32 %v5270, %v5271
    %v5273 = vrot.slane %v5272, 2
    %v5274 = vmax.f32 %v5272, %v5273
    %v5275 = vrot.slane %v5274, 1
    %v5276 = vmax.f32 %v5274, %v5275
    %v5277 = vsel %vm1804, %v776, -inf
    %v5278 = vrot.slane %v5277, 4
    %v5279 = vmax.f32 %v5277, %v5278
    %v5280 = vrot.slane %v5279, 2
    %v5281 = vmax.f32 %v5279, %v5280
    %v5282 = vrot.slane %v5281, 1
    %v5283 = vmax.f32 %v5281, %v5282
    %v5284 = vsel %vm1804, %v1312, -inf
    %v5285 = vrot.slane %v5284, 4
    %v5286 = vmax.f32 %v5284, %v5285
    %v5287 = vrot.slane %v5286, 2
    %v5288 = vmax.f32 %v5286, %v5287
    %v5289 = vrot.slane %v5288, 1
    %v5290 = vmax.f32 %v5288, %v5289
    %v5291 = vsel %vm1804, %v1313, -inf
    %v5292 = vrot.slane %v5291, 4
    %v5293 = vmax.f32 %v5291, %v5292
    %v5294 = vrot.slane %v5293, 2
    %v5295 = vmax.f32 %v5293, %v5294
    %v5296 = vrot.slane %v5295, 1
    %v5297 = vmax.f32 %v5295, %v5296
    %v5298 = vsel %vm1804, %v1314, -inf
    %v5299 = vrot.slane %v5298, 4
    %v5300 = vmax.f32 %v5298, %v5299
    %v5301 = vrot.slane %v5300, 2
    %v5302 = vmax.f32 %v5300, %v5301
    %v5303 = vrot.slane %v5302, 1
    %v5304 = vmax.f32 %v5302, %v5303
    %v5305 = vsel %vm1804, %v777, -inf
    %v5306 = vrot.slane %v5305, 4
    %v5307 = vmax.f32 %v5305, %v5306
    %v5308 = vrot.slane %v5307, 2
    %v5309 = vmax.f32 %v5307, %v5308
    %v5310 = vrot.slane %v5309, 1
    %v5311 = vmax.f32 %v5309, %v5310
    %v5312 = vsel %vm1804, %v1315, -inf
    %v5313 = vrot.slane %v5312, 4
    %v5314 = vmax.f32 %v5312, %v5313
    %v5315 = vrot.slane %v5314, 2
    %v5316 = vmax.f32 %v5314, %v5315
    %v5317 = vrot.slane %v5316, 1
    %v5318 = vmax.f32 %v5316, %v5317
    %v5319 = vsel %vm1804, %v1316, -inf
    %v5320 = vrot.slane %v5319, 4
    %v5321 = vmax.f32 %v5319, %v5320
    %v5322 = vrot.slane %v5321, 2
    %v5323 = vmax.f32 %v5321, %v5322
    %v5324 = vrot.slane %v5323, 1
    %v5325 = vmax.f32 %v5323, %v5324
    %v5326 = vsel %vm1804, %v1317, -inf
    %v5327 = vrot.slane %v5326, 4
    %v5328 = vmax.f32 %v5326, %v5327
    %v5329 = vrot.slane %v5328, 2
    %v5330 = vmax.f32 %v5328, %v5329
    %v5331 = vrot.slane %v5330, 1
    %v5332 = vmax.f32 %v5330, %v5331
    %v5333 = vsel %vm1804, %v778, -inf
    %v5334 = vrot.slane %v5333, 4
    %v5335 = vmax.f32 %v5333, %v5334
    %v5336 = vrot.slane %v5335, 2
    %v5337 = vmax.f32 %v5335, %v5336
    %v5338 = vrot.slane %v5337, 1
    %v5339 = vmax.f32 %v5337, %v5338
    %v5340 = vsel %vm1804, %v1318, -inf
    %v5341 = vrot.slane %v5340, 4
    %v5342 = vmax.f32 %v5340, %v5341
    %v5343 = vrot.slane %v5342, 2
    %v5344 = vmax.f32 %v5342, %v5343
    %v5345 = vrot.slane %v5344, 1
    %v5346 = vmax.f32 %v5344, %v5345
    %v5347 = vsel %vm1804, %v1319, -inf
    %v5348 = vrot.slane %v5347, 4
    %v5349 = vmax.f32 %v5347, %v5348
    %v5350 = vrot.slane %v5349, 2
    %v5351 = vmax.f32 %v5349, %v5350
    %v5352 = vrot.slane %v5351, 1
    %v5353 = vmax.f32 %v5351, %v5352
    %v5354 = vsel %vm1804, %v1320, -inf
    %v5355 = vrot.slane %v5354, 4
    %v5356 = vmax.f32 %v5354, %v5355
    %v5357 = vrot.slane %v5356, 2
    %v5358 = vmax.f32 %v5356, %v5357
    %v5359 = vrot.slane %v5358, 1
    %v5360 = vmax.f32 %v5358, %v5359
    %v5361 = vsel %vm1804, %v779, -inf
    %v5362 = vrot.slane %v5361, 4
    %v5363 = vmax.f32 %v5361, %v5362
    %v5364 = vrot.slane %v5363, 2
    %v5365 = vmax.f32 %v5363, %v5364
    %v5366 = vrot.slane %v5365, 1
    %v5367 = vmax.f32 %v5365, %v5366
    %v5368 = vsel %vm1804, %v1321, -inf
    %v5369 = vrot.slane %v5368, 4
    %v5370 = vmax.f32 %v5368, %v5369
    %v5371 = vrot.slane %v5370, 2
    %v5372 = vmax.f32 %v5370, %v5371
    %v5373 = vrot.slane %v5372, 1
    %v5374 = vmax.f32 %v5372, %v5373
    %v5375 = vsel %vm1804, %v1322, -inf
    %v5376 = vrot.slane %v5375, 4
    %v5377 = vmax.f32 %v5375, %v5376
    %v5378 = vrot.slane %v5377, 2
    %v5379 = vmax.f32 %v5377, %v5378
    %v5380 = vrot.slane %v5379, 1
    %v5381 = vmax.f32 %v5379, %v5380
    %v5382 = vsel %vm1804, %v1323, -inf
    %v5383 = vrot.slane %v5382, 4
    %v5384 = vmax.f32 %v5382, %v5383
    %v5385 = vrot.slane %v5384, 2
    %v5386 = vmax.f32 %v5384, %v5385
    %v5387 = vrot.slane %v5386, 1
    %v5388 = vmax.f32 %v5386, %v5387
    %v5389 = vsel %vm1804, %v780, -inf
    %v5390 = vrot.slane %v5389, 4
    %v5391 = vmax.f32 %v5389, %v5390
    %v5392 = vrot.slane %v5391, 2
    %v5393 = vmax.f32 %v5391, %v5392
    %v5394 = vrot.slane %v5393, 1
    %v5395 = vmax.f32 %v5393, %v5394
    %v5396 = vsel %vm1804, %v1324, -inf
    %v5397 = vrot.slane %v5396, 4
    %v5398 = vmax.f32 %v5396, %v5397
    %v5399 = vrot.slane %v5398, 2
    %v5400 = vmax.f32 %v5398, %v5399
    %v5401 = vrot.slane %v5400, 1
    %v5402 = vmax.f32 %v5400, %v5401
    %v5403 = vsel %vm1804, %v1325, -inf
    %v5404 = vrot.slane %v5403, 4
    %v5405 = vmax.f32 %v5403, %v5404
    %v5406 = vrot.slane %v5405, 2
    %v5407 = vmax.f32 %v5405, %v5406
    %v5408 = vrot.slane %v5407, 1
    %v5409 = vmax.f32 %v5407, %v5408
    %v5410 = vsel %vm1804, %v1326, -inf
    %v5411 = vrot.slane %v5410, 4
    %v5412 = vmax.f32 %v5410, %v5411
    %v5413 = vrot.slane %v5412, 2
    %v5414 = vmax.f32 %v5412, %v5413
    %v5415 = vrot.slane %v5414, 1
    %v5416 = vmax.f32 %v5414, %v5415
    %v5417 = vsel %vm1804, %v781, -inf
    %v5418 = vrot.slane %v5417, 4
    %v5419 = vmax.f32 %v5417, %v5418
    %v5420 = vrot.slane %v5419, 2
    %v5421 = vmax.f32 %v5419, %v5420
    %v5422 = vrot.slane %v5421, 1
    %v5423 = vmax.f32 %v5421, %v5422
    %v5424 = vsel %vm1804, %v1327, -inf
    %v5425 = vrot.slane %v5424, 4
    %v5426 = vmax.f32 %v5424, %v5425
    %v5427 = vrot.slane %v5426, 2
    %v5428 = vmax.f32 %v5426, %v5427
    %v5429 = vrot.slane %v5428, 1
    %v5430 = vmax.f32 %v5428, %v5429
    %v5431 = vsel %vm1804, %v1328, -inf
    %v5432 = vrot.slane %v5431, 4
    %v5433 = vmax.f32 %v5431, %v5432
    %v5434 = vrot.slane %v5433, 2
    %v5435 = vmax.f32 %v5433, %v5434
    %v5436 = vrot.slane %v5435, 1
    %v5437 = vmax.f32 %v5435, %v5436
    %v5438 = vsel %vm1804, %v1329, -inf
    %v5439 = vrot.slane %v5438, 4
    %v5440 = vmax.f32 %v5438, %v5439
    %v5441 = vrot.slane %v5440, 2
    %v5442 = vmax.f32 %v5440, %v5441
    %v5443 = vrot.slane %v5442, 1
    %v5444 = vmax.f32 %v5442, %v5443
    %v5445 = vsel %vm1804, %v782, -inf
    %v5446 = vrot.slane %v5445, 4
    %v5447 = vmax.f32 %v5445, %v5446
    %v5448 = vrot.slane %v5447, 2
    %v5449 = vmax.f32 %v5447, %v5448
    %v5450 = vrot.slane %v5449, 1
    %v5451 = vmax.f32 %v5449, %v5450
    %v5452 = vsel %vm1804, %v1330, -inf
    %v5453 = vrot.slane %v5452, 4
    %v5454 = vmax.f32 %v5452, %v5453
    %v5455 = vrot.slane %v5454, 2
    %v5456 = vmax.f32 %v5454, %v5455
    %v5457 = vrot.slane %v5456, 1
    %v5458 = vmax.f32 %v5456, %v5457
    %v5459 = vsel %vm1804, %v1331, -inf
    %v5460 = vrot.slane %v5459, 4
    %v5461 = vmax.f32 %v5459, %v5460
    %v5462 = vrot.slane %v5461, 2
    %v5463 = vmax.f32 %v5461, %v5462
    %v5464 = vrot.slane %v5463, 1
    %v5465 = vmax.f32 %v5463, %v5464
    %v5466 = vsel %vm1804, %v1332, -inf
    %v5467 = vrot.slane %v5466, 4
    %v5468 = vmax.f32 %v5466, %v5467
    %v5469 = vrot.slane %v5468, 2
    %v5470 = vmax.f32 %v5468, %v5469
    %v5471 = vrot.slane %v5470, 1
    %v5472 = vmax.f32 %v5470, %v5471
    %v5473 = vsel %vm1804, %v783, -inf
    %v5474 = vrot.slane %v5473, 4
    %v5475 = vmax.f32 %v5473, %v5474
    %v5476 = vrot.slane %v5475, 2
    %v5477 = vmax.f32 %v5475, %v5476
    %v5478 = vrot.slane %v5477, 1
    %v5479 = vmax.f32 %v5477, %v5478
    %v5480 = vsel %vm1804, %v1333, -inf
    %v5481 = vrot.slane %v5480, 4
    %v5482 = vmax.f32 %v5480, %v5481
    %v5483 = vrot.slane %v5482, 2
    %v5484 = vmax.f32 %v5482, %v5483
    %v5485 = vrot.slane %v5484, 1
    %v5486 = vmax.f32 %v5484, %v5485
    %v5487 = vsel %vm1804, %v1334, -inf
    %v5488 = vrot.slane %v5487, 4
    %v5489 = vmax.f32 %v5487, %v5488
    %v5490 = vrot.slane %v5489, 2
    %v5491 = vmax.f32 %v5489, %v5490
    %v5492 = vrot.slane %v5491, 1
    %v5493 = vmax.f32 %v5491, %v5492
    %v5494 = vsel %vm1804, %v1335, -inf
    %v5495 = vrot.slane %v5494, 4
    %v5496 = vmax.f32 %v5494, %v5495
    %v5497 = vrot.slane %v5496, 2
    %v5498 = vmax.f32 %v5496, %v5497
    %v5499 = vrot.slane %v5498, 1
    %v5500 = vmax.f32 %v5498, %v5499
    %v5501 = vsel %vm1804, %v784, -inf
    %v5502 = vrot.slane %v5501, 4
    %v5503 = vmax.f32 %v5501, %v5502
    %v5504 = vrot.slane %v5503, 2
    %v5505 = vmax.f32 %v5503, %v5504
    %v5506 = vrot.slane %v5505, 1
    %v5507 = vmax.f32 %v5505, %v5506
    %v5508 = vsel %vm1804, %v1336, -inf
    %v5509 = vrot.slane %v5508, 4
    %v5510 = vmax.f32 %v5508, %v5509
    %v5511 = vrot.slane %v5510, 2
    %v5512 = vmax.f32 %v5510, %v5511
    %v5513 = vrot.slane %v5512, 1
    %v5514 = vmax.f32 %v5512, %v5513
    %v5515 = vsel %vm1804, %v1337, -inf
    %v5516 = vrot.slane %v5515, 4
    %v5517 = vmax.f32 %v5515, %v5516
    %v5518 = vrot.slane %v5517, 2
    %v5519 = vmax.f32 %v5517, %v5518
    %v5520 = vrot.slane %v5519, 1
    %v5521 = vmax.f32 %v5519, %v5520
    %v5522 = vsel %vm1804, %v1338, -inf
    %v5523 = vrot.slane %v5522, 4
    %v5524 = vmax.f32 %v5522, %v5523
    %v5525 = vrot.slane %v5524, 2
    %v5526 = vmax.f32 %v5524, %v5525
    %v5527 = vrot.slane %v5526, 1
    %v5528 = vmax.f32 %v5526, %v5527
    %v5529 = vsel %vm1804, %v785, -inf
    %v5530 = vrot.slane %v5529, 4
    %v5531 = vmax.f32 %v5529, %v5530
    %v5532 = vrot.slane %v5531, 2
    %v5533 = vmax.f32 %v5531, %v5532
    %v5534 = vrot.slane %v5533, 1
    %v5535 = vmax.f32 %v5533, %v5534
    %v5536 = vsel %vm1804, %v1339, -inf
    %v5537 = vrot.slane %v5536, 4
    %v5538 = vmax.f32 %v5536, %v5537
    %v5539 = vrot.slane %v5538, 2
    %v5540 = vmax.f32 %v5538, %v5539
    %v5541 = vrot.slane %v5540, 1
    %v5542 = vmax.f32 %v5540, %v5541
    %v5543 = vsel %vm1804, %v1340, -inf
    %v5544 = vrot.slane %v5543, 4
    %v5545 = vmax.f32 %v5543, %v5544
    %v5546 = vrot.slane %v5545, 2
    %v5547 = vmax.f32 %v5545, %v5546
    %v5548 = vrot.slane %v5547, 1
    %v5549 = vmax.f32 %v5547, %v5548
    %v5550 = vsel %vm1804, %v1341, -inf
    %v5551 = vrot.slane %v5550, 4
    %v5552 = vmax.f32 %v5550, %v5551
    %v5553 = vrot.slane %v5552, 2
    %v5554 = vmax.f32 %v5552, %v5553
    %v5555 = vrot.slane %v5554, 1
    %v5556 = vmax.f32 %v5554, %v5555
    %v5557 = vsel %vm1804, %v786, -inf
    %v5558 = vrot.slane %v5557, 4
    %v5559 = vmax.f32 %v5557, %v5558
    %v5560 = vrot.slane %v5559, 2
    %v5561 = vmax.f32 %v5559, %v5560
    %v5562 = vrot.slane %v5561, 1
    %v5563 = vmax.f32 %v5561, %v5562
    %v5564 = vsel %vm1804, %v1342, -inf
    %v5565 = vrot.slane %v5564, 4
    %v5566 = vmax.f32 %v5564, %v5565
    %v5567 = vrot.slane %v5566, 2
    %v5568 = vmax.f32 %v5566, %v5567
    %v5569 = vrot.slane %v5568, 1
    %v5570 = vmax.f32 %v5568, %v5569
    %v5571 = vsel %vm1804, %v1343, -inf
    %v5572 = vrot.slane %v5571, 4
    %v5573 = vmax.f32 %v5571, %v5572
    %v5574 = vrot.slane %v5573, 2
    %v5575 = vmax.f32 %v5573, %v5574
    %v5576 = vrot.slane %v5575, 1
    %v5577 = vmax.f32 %v5575, %v5576
    %v5578 = vsel %vm1804, %v1344, -inf
    %v5579 = vrot.slane %v5578, 4
    %v5580 = vmax.f32 %v5578, %v5579
    %v5581 = vrot.slane %v5580, 2
    %v5582 = vmax.f32 %v5580, %v5581
    %v5583 = vrot.slane %v5582, 1
    %v5584 = vmax.f32 %v5582, %v5583
    %v5585 = vsel %vm1804, %v787, -inf
    %v5586 = vrot.slane %v5585, 4
    %v5587 = vmax.f32 %v5585, %v5586
    %v5588 = vrot.slane %v5587, 2
    %v5589 = vmax.f32 %v5587, %v5588
    %v5590 = vrot.slane %v5589, 1
    %v5591 = vmax.f32 %v5589, %v5590
    %v5592 = vsel %vm1804, %v1345, -inf
    %v5593 = vrot.slane %v5592, 4
    %v5594 = vmax.f32 %v5592, %v5593
    %v5595 = vrot.slane %v5594, 2
    %v5596 = vmax.f32 %v5594, %v5595
    %v5597 = vrot.slane %v5596, 1
    %v5598 = vmax.f32 %v5596, %v5597
    %v5599 = vsel %vm1804, %v1346, -inf
    %v5600 = vrot.slane %v5599, 4
    %v5601 = vmax.f32 %v5599, %v5600
    %v5602 = vrot.slane %v5601, 2
    %v5603 = vmax.f32 %v5601, %v5602
    %v5604 = vrot.slane %v5603, 1
    %v5605 = vmax.f32 %v5603, %v5604
    %v5606 = vsel %vm1804, %v1347, -inf
    %v5607 = vrot.slane %v5606, 4
    %v5608 = vmax.f32 %v5606, %v5607
    %v5609 = vrot.slane %v5608, 2
    %v5610 = vmax.f32 %v5608, %v5609
    %v5611 = vrot.slane %v5610, 1
    %v5612 = vmax.f32 %v5610, %v5611
    %v5613 = vsel %vm1804, %v788, -inf
    %v5614 = vrot.slane %v5613, 4
    %v5615 = vmax.f32 %v5613, %v5614
    %v5616 = vrot.slane %v5615, 2
    %v5617 = vmax.f32 %v5615, %v5616
    %v5618 = vrot.slane %v5617, 1
    %v5619 = vmax.f32 %v5617, %v5618
    %v5620 = vsel %vm1804, %v1348, -inf
    %v5621 = vrot.slane %v5620, 4
    %v5622 = vmax.f32 %v5620, %v5621
    %v5623 = vrot.slane %v5622, 2
    %v5624 = vmax.f32 %v5622, %v5623
    %v5625 = vrot.slane %v5624, 1
    %v5626 = vmax.f32 %v5624, %v5625
    %v5627 = vsel %vm1804, %v1349, -inf
    %v5628 = vrot.slane %v5627, 4
    %v5629 = vmax.f32 %v5627, %v5628
    %v5630 = vrot.slane %v5629, 2
    %v5631 = vmax.f32 %v5629, %v5630
    %v5632 = vrot.slane %v5631, 1
    %v5633 = vmax.f32 %v5631, %v5632
    %v5634 = vsel %vm1804, %v1350, -inf
    %v5635 = vrot.slane %v5634, 4
    %v5636 = vmax.f32 %v5634, %v5635
    %v5637 = vrot.slane %v5636, 2
    %v5638 = vmax.f32 %v5636, %v5637
    %v5639 = vrot.slane %v5638, 1
    %v5640 = vmax.f32 %v5638, %v5639
    %v5641 = vsel %vm1804, %v789, -inf
    %v5642 = vrot.slane %v5641, 4
    %v5643 = vmax.f32 %v5641, %v5642
    %v5644 = vrot.slane %v5643, 2
    %v5645 = vmax.f32 %v5643, %v5644
    %v5646 = vrot.slane %v5645, 1
    %v5647 = vmax.f32 %v5645, %v5646
    %v5648 = vsel %vm1804, %v1351, -inf
    %v5649 = vrot.slane %v5648, 4
    %v5650 = vmax.f32 %v5648, %v5649
    %v5651 = vrot.slane %v5650, 2
    %v5652 = vmax.f32 %v5650, %v5651
    %v5653 = vrot.slane %v5652, 1
    %v5654 = vmax.f32 %v5652, %v5653
    %v5655 = vsel %vm1804, %v1352, -inf
    %v5656 = vrot.slane %v5655, 4
    %v5657 = vmax.f32 %v5655, %v5656
    %v5658 = vrot.slane %v5657, 2
    %v5659 = vmax.f32 %v5657, %v5658
    %v5660 = vrot.slane %v5659, 1
    %v5661 = vmax.f32 %v5659, %v5660
    %v5662 = vsel %vm1804, %v1353, -inf
    %v5663 = vrot.slane %v5662, 4
    %v5664 = vmax.f32 %v5662, %v5663
    %v5665 = vrot.slane %v5664, 2
    %v5666 = vmax.f32 %v5664, %v5665
    %v5667 = vrot.slane %v5666, 1
    %v5668 = vmax.f32 %v5666, %v5667
    %v5669 = vsel %vm1804, %v790, -inf
    %v5670 = vrot.slane %v5669, 4
    %v5671 = vmax.f32 %v5669, %v5670
    %v5672 = vrot.slane %v5671, 2
    %v5673 = vmax.f32 %v5671, %v5672
    %v5674 = vrot.slane %v5673, 1
    %v5675 = vmax.f32 %v5673, %v5674
    %v5676 = vsel %vm1804, %v1354, -inf
    %v5677 = vrot.slane %v5676, 4
    %v5678 = vmax.f32 %v5676, %v5677
    %v5679 = vrot.slane %v5678, 2
    %v5680 = vmax.f32 %v5678, %v5679
    %v5681 = vrot.slane %v5680, 1
    %v5682 = vmax.f32 %v5680, %v5681
    %v5683 = vsel %vm1804, %v1355, -inf
    %v5684 = vrot.slane %v5683, 4
    %v5685 = vmax.f32 %v5683, %v5684
    %v5686 = vrot.slane %v5685, 2
    %v5687 = vmax.f32 %v5685, %v5686
    %v5688 = vrot.slane %v5687, 1
    %v5689 = vmax.f32 %v5687, %v5688
    %v5690 = vsel %vm1804, %v1356, -inf
    %v5691 = vrot.slane %v5690, 4
    %v5692 = vmax.f32 %v5690, %v5691
    %v5693 = vrot.slane %v5692, 2
    %v5694 = vmax.f32 %v5692, %v5693
    %v5695 = vrot.slane %v5694, 1
    %v5696 = vmax.f32 %v5694, %v5695
    %v5697 = vsel %vm1804, %v791, -inf
    %v5698 = vrot.slane %v5697, 4
    %v5699 = vmax.f32 %v5697, %v5698
    %v5700 = vrot.slane %v5699, 2
    %v5701 = vmax.f32 %v5699, %v5700
    %v5702 = vrot.slane %v5701, 1
    %v5703 = vmax.f32 %v5701, %v5702
    %v5704 = vsel %vm1804, %v1357, -inf
    %v5705 = vrot.slane %v5704, 4
    %v5706 = vmax.f32 %v5704, %v5705
    %v5707 = vrot.slane %v5706, 2
    %v5708 = vmax.f32 %v5706, %v5707
    %v5709 = vrot.slane %v5708, 1
    %v5710 = vmax.f32 %v5708, %v5709
    %v5711 = vsel %vm1804, %v1358, -inf
    %v5712 = vrot.slane %v5711, 4
    %v5713 = vmax.f32 %v5711, %v5712
    %v5714 = vrot.slane %v5713, 2
    %v5715 = vmax.f32 %v5713, %v5714
    %v5716 = vrot.slane %v5715, 1
    %v5717 = vmax.f32 %v5715, %v5716
    %v5718 = vsel %vm1804, %v1359, -inf
    %v5719 = vrot.slane %v5718, 4
    %v5720 = vmax.f32 %v5718, %v5719
    %v5721 = vrot.slane %v5720, 2
    %v5722 = vmax.f32 %v5720, %v5721
    %v5723 = vrot.slane %v5722, 1
    %v5724 = vmax.f32 %v5722, %v5723
    %v5725 = vsel %vm1804, %v792, -inf
    %v5726 = vrot.slane %v5725, 4
    %v5727 = vmax.f32 %v5725, %v5726
    %v5728 = vrot.slane %v5727, 2
    %v5729 = vmax.f32 %v5727, %v5728
    %v5730 = vrot.slane %v5729, 1
    %v5731 = vmax.f32 %v5729, %v5730
    %v5732 = vsel %vm1804, %v1360, -inf
    %v5733 = vrot.slane %v5732, 4
    %v5734 = vmax.f32 %v5732, %v5733
    %v5735 = vrot.slane %v5734, 2
    %v5736 = vmax.f32 %v5734, %v5735
    %v5737 = vrot.slane %v5736, 1
    %v5738 = vmax.f32 %v5736, %v5737
    %v5739 = vsel %vm1804, %v1361, -inf
    %v5740 = vrot.slane %v5739, 4
    %v5741 = vmax.f32 %v5739, %v5740
    %v5742 = vrot.slane %v5741, 2
    %v5743 = vmax.f32 %v5741, %v5742
    %v5744 = vrot.slane %v5743, 1
    %v5745 = vmax.f32 %v5743, %v5744
    %v5746 = vsel %vm1804, %v1362, -inf
    %v5747 = vrot.slane %v5746, 4
    %v5748 = vmax.f32 %v5746, %v5747
    %v5749 = vrot.slane %v5748, 2
    %v5750 = vmax.f32 %v5748, %v5749
    %v5751 = vrot.slane %v5750, 1
    %v5752 = vmax.f32 %v5750, %v5751
    %v5753 = vsel %vm1804, %v793, -inf
    %v5754 = vrot.slane %v5753, 4
    %v5755 = vmax.f32 %v5753, %v5754
    %v5756 = vrot.slane %v5755, 2
    %v5757 = vmax.f32 %v5755, %v5756
    %v5758 = vrot.slane %v5757, 1
    %v5759 = vmax.f32 %v5757, %v5758
    %v5760 = vsel %vm1804, %v1363, -inf
    %v5761 = vrot.slane %v5760, 4
    %v5762 = vmax.f32 %v5760, %v5761
    %v5763 = vrot.slane %v5762, 2
    %v5764 = vmax.f32 %v5762, %v5763
    %v5765 = vrot.slane %v5764, 1
    %v5766 = vmax.f32 %v5764, %v5765
    %v5767 = vsel %vm1804, %v1364, -inf
    %v5768 = vrot.slane %v5767, 4
    %v5769 = vmax.f32 %v5767, %v5768
    %v5770 = vrot.slane %v5769, 2
    %v5771 = vmax.f32 %v5769, %v5770
    %v5772 = vrot.slane %v5771, 1
    %v5773 = vmax.f32 %v5771, %v5772
    %v5774 = vsel %vm1804, %v1365, -inf
    %v5775 = vrot.slane %v5774, 4
    %v5776 = vmax.f32 %v5774, %v5775
    %v5777 = vrot.slane %v5776, 2
    %v5778 = vmax.f32 %v5776, %v5777
    %v5779 = vrot.slane %v5778, 1
    %v5780 = vmax.f32 %v5778, %v5779
    %v5781 = vsel %vm1804, %v794, -inf
    %v5782 = vrot.slane %v5781, 4
    %v5783 = vmax.f32 %v5781, %v5782
    %v5784 = vrot.slane %v5783, 2
    %v5785 = vmax.f32 %v5783, %v5784
    %v5786 = vrot.slane %v5785, 1
    %v5787 = vmax.f32 %v5785, %v5786
    %v5788 = vsel %vm1804, %v1366, -inf
    %v5789 = vrot.slane %v5788, 4
    %v5790 = vmax.f32 %v5788, %v5789
    %v5791 = vrot.slane %v5790, 2
    %v5792 = vmax.f32 %v5790, %v5791
    %v5793 = vrot.slane %v5792, 1
    %v5794 = vmax.f32 %v5792, %v5793
    %v5795 = vsel %vm1804, %v1367, -inf
    %v5796 = vrot.slane %v5795, 4
    %v5797 = vmax.f32 %v5795, %v5796
    %v5798 = vrot.slane %v5797, 2
    %v5799 = vmax.f32 %v5797, %v5798
    %v5800 = vrot.slane %v5799, 1
    %v5801 = vmax.f32 %v5799, %v5800
    %v5802 = vsel %vm1804, %v1368, -inf
    %v5803 = vrot.slane %v5802, 4
    %v5804 = vmax.f32 %v5802, %v5803
    %v5805 = vrot.slane %v5804, 2
    %v5806 = vmax.f32 %v5804, %v5805
    %v5807 = vrot.slane %v5806, 1
    %v5808 = vmax.f32 %v5806, %v5807
    %v5809 = vsel %vm1804, %v795, -inf
    %v5810 = vrot.slane %v5809, 4
    %v5811 = vmax.f32 %v5809, %v5810
    %v5812 = vrot.slane %v5811, 2
    %v5813 = vmax.f32 %v5811, %v5812
    %v5814 = vrot.slane %v5813, 1
    %v5815 = vmax.f32 %v5813, %v5814
    %v5816 = vsel %vm1804, %v1369, -inf
    %v5817 = vrot.slane %v5816, 4
    %v5818 = vmax.f32 %v5816, %v5817
    %v5819 = vrot.slane %v5818, 2
    %v5820 = vmax.f32 %v5818, %v5819
    %v5821 = vrot.slane %v5820, 1
    %v5822 = vmax.f32 %v5820, %v5821
    %v5823 = vsel %vm1804, %v1370, -inf
    %v5824 = vrot.slane %v5823, 4
    %v5825 = vmax.f32 %v5823, %v5824
    %v5826 = vrot.slane %v5825, 2
    %v5827 = vmax.f32 %v5825, %v5826
    %v5828 = vrot.slane %v5827, 1
    %v5829 = vmax.f32 %v5827, %v5828
    %v5830 = vsel %vm1804, %v1371, -inf
    %v5831 = vrot.slane %v5830, 4
    %v5832 = vmax.f32 %v5830, %v5831
    %v5833 = vrot.slane %v5832, 2
    %v5834 = vmax.f32 %v5832, %v5833
    %v5835 = vrot.slane %v5834, 1
    %v5836 = vmax.f32 %v5834, %v5835
    %v5837 = vmax.f32 %v1811, %v1895
    %v5838 = vmax.f32 %v1818, %v1902
    %v5839 = vmax.f32 %v1825, %v1909
    %v5840 = vmax.f32 %v1832, %v1916
    %v5841 = vmax.f32 %v1839, %v1923
    %v5842 = vmax.f32 %v1846, %v1930
    %v5843 = vmax.f32 %v1853, %v1937
    %v5844 = vmax.f32 %v1860, %v1944
    %v5845 = vmax.f32 %v1867, %v1951
    %v5846 = vmax.f32 %v1874, %v1958
    %v5847 = vmax.f32 %v1881, %v1965
    %v5848 = vmax.f32 %v1888, %v1972
    %v5849 = vmax.f32 %v1979, %v2063
    %v5850 = vmax.f32 %v1986, %v2070
    %v5851 = vmax.f32 %v1993, %v2077
    %v5852 = vmax.f32 %v2000, %v2084
    %v5853 = vmax.f32 %v2007, %v2091
    %v5854 = vmax.f32 %v2014, %v2098
    %v5855 = vmax.f32 %v2021, %v2105
    %v5856 = vmax.f32 %v2028, %v2112
    %v5857 = vmax.f32 %v2035, %v2119
    %v5858 = vmax.f32 %v2042, %v2126
    %v5859 = vmax.f32 %v2049, %v2133
    %v5860 = vmax.f32 %v2056, %v2140
    %v5861 = vmax.f32 %v2147, %v2231
    %v5862 = vmax.f32 %v2154, %v2238
    %v5863 = vmax.f32 %v2161, %v2245
    %v5864 = vmax.f32 %v2168, %v2252
    %v5865 = vmax.f32 %v2175, %v2259
    %v5866 = vmax.f32 %v2182, %v2266
    %v5867 = vmax.f32 %v2189, %v2273
    %v5868 = vmax.f32 %v2196, %v2280
    %v5869 = vmax.f32 %v2203, %v2287
    %v5870 = vmax.f32 %v2210, %v2294
    %v5871 = vmax.f32 %v2217, %v2301
    %v5872 = vmax.f32 %v2224, %v2308
    %v5873 = vmax.f32 %v2315, %v2399
    %v5874 = vmax.f32 %v2322, %v2406
    %v5875 = vmax.f32 %v2329, %v2413
    %v5876 = vmax.f32 %v2336, %v2420
    %v5877 = vmax.f32 %v2343, %v2427
    %v5878 = vmax.f32 %v2350, %v2434
    %v5879 = vmax.f32 %v2357, %v2441
    %v5880 = vmax.f32 %v2364, %v2448
    %v5881 = vmax.f32 %v2371, %v2455
    %v5882 = vmax.f32 %v2378, %v2462
    %v5883 = vmax.f32 %v2385, %v2469
    %v5884 = vmax.f32 %v2392, %v2476
    %v5885 = vmax.f32 %v2483, %v2567
    %v5886 = vmax.f32 %v2490, %v2574
    %v5887 = vmax.f32 %v2497, %v2581
    %v5888 = vmax.f32 %v2504, %v2588
    %v5889 = vmax.f32 %v2511, %v2595
    %v5890 = vmax.f32 %v2518, %v2602
    %v5891 = vmax.f32 %v2525, %v2609
    %v5892 = vmax.f32 %v2532, %v2616
    %v5893 = vmax.f32 %v2539, %v2623
    %v5894 = vmax.f32 %v2546, %v2630
    %v5895 = vmax.f32 %v2553, %v2637
    %v5896 = vmax.f32 %v2560, %v2644
    %v5897 = vmax.f32 %v2651, %v2735
    %v5898 = vmax.f32 %v2658, %v2742
    %v5899 = vmax.f32 %v2665, %v2749
    %v5900 = vmax.f32 %v2672, %v2756
    %v5901 = vmax.f32 %v2679, %v2763
    %v5902 = vmax.f32 %v2686, %v2770
    %v5903 = vmax.f32 %v2693, %v2777
    %v5904 = vmax.f32 %v2700, %v2784
    %v5905 = vmax.f32 %v2707, %v2791
    %v5906 = vmax.f32 %v2714, %v2798
    %v5907 = vmax.f32 %v2721, %v2805
    %v5908 = vmax.f32 %v2728, %v2812
    %v5909 = vmax.f32 %v2819, %v2903
    %v5910 = vmax.f32 %v2826, %v2910
    %v5911 = vmax.f32 %v2833, %v2917
    %v5912 = vmax.f32 %v2840, %v2924
    %v5913 = vmax.f32 %v2847, %v2931
    %v5914 = vmax.f32 %v2854, %v2938
    %v5915 = vmax.f32 %v2861, %v2945
    %v5916 = vmax.f32 %v2868, %v2952
    %v5917 = vmax.f32 %v2875, %v2959
    %v5918 = vmax.f32 %v2882, %v2966
    %v5919 = vmax.f32 %v2889, %v2973
    %v5920 = vmax.f32 %v2896, %v2980
    %v5921 = vmax.f32 %v2987, %v3071
    %v5922 = vmax.f32 %v2994, %v3078
    %v5923 = vmax.f32 %v3001, %v3085
    %v5924 = vmax.f32 %v3008, %v3092
    %v5925 = vmax.f32 %v3015, %v3099
    %v5926 = vmax.f32 %v3022, %v3106
    %v5927 = vmax.f32 %v3029, %v3113
    %v5928 = vmax.f32 %v3036, %v3120
    %v5929 = vmax.f32 %v3043, %v3127
    %v5930 = vmax.f32 %v3050, %v3134
    %v5931 = vmax.f32 %v3057, %v3141
    %v5932 = vmax.f32 %v3064, %v3148
    %v5933 = vmax.f32 %v3155, %v3239
    %v5934 = vmax.f32 %v3162, %v3246
    %v5935 = vmax.f32 %v3169, %v3253
    %v5936 = vmax.f32 %v3176, %v3260
    %v5937 = vmax.f32 %v3183, %v3267
    %v5938 = vmax.f32 %v3190, %v3274
    %v5939 = vmax.f32 %v3197, %v3281
    %v5940 = vmax.f32 %v3204, %v3288
    %v5941 = vmax.f32 %v3211, %v3295
    %v5942 = vmax.f32 %v3218, %v3302
    %v5943 = vmax.f32 %v3225, %v3309
    %v5944 = vmax.f32 %v3232, %v3316
    %v5945 = vmax.f32 %v3323, %v3407
    %v5946 = vmax.f32 %v3330, %v3414
    %v5947 = vmax.f32 %v3337, %v3421
    %v5948 = vmax.f32 %v3344, %v3428
    %v5949 = vmax.f32 %v3351, %v3435
    %v5950 = vmax.f32 %v3358, %v3442
    %v5951 = vmax.f32 %v3365, %v3449
    %v5952 = vmax.f32 %v3372, %v3456
    %v5953 = vmax.f32 %v3379, %v3463
    %v5954 = vmax.f32 %v3386, %v3470
    %v5955 = vmax.f32 %v3393, %v3477
    %v5956 = vmax.f32 %v3400, %v3484
    %v5957 = vmax.f32 %v3491, %v3575
    %v5958 = vmax.f32 %v3498, %v3582
    %v5959 = vmax.f32 %v3505, %v3589
    %v5960 = vmax.f32 %v3512, %v3596
    %v5961 = vmax.f32 %v3519, %v3603
    %v5962 = vmax.f32 %v3526, %v3610
    %v5963 = vmax.f32 %v3533, %v3617
    %v5964 = vmax.f32 %v3540, %v3624
    %v5965 = vmax.f32 %v3547, %v3631
    %v5966 = vmax.f32 %v3554, %v3638
    %v5967 = vmax.f32 %v3561, %v3645
    %v5968 = vmax.f32 %v3568, %v3652
    %v5969 = vmax.f32 %v3659, %v3743
    %v5970 = vmax.f32 %v3666, %v3750
    %v5971 = vmax.f32 %v3673, %v3757
    %v5972 = vmax.f32 %v3680, %v3764
    %v5973 = vmax.f32 %v3687, %v3771
    %v5974 = vmax.f32 %v3694, %v3778
    %v5975 = vmax.f32 %v3701, %v3785
    %v5976 = vmax.f32 %v3708, %v3792
    %v5977 = vmax.f32 %v3715, %v3799
    %v5978 = vmax.f32 %v3722, %v3806
    %v5979 = vmax.f32 %v3729, %v3813
    %v5980 = vmax.f32 %v3736, %v3820
    %v5981 = vmax.f32 %v3827, %v3911
    %v5982 = vmax.f32 %v3834, %v3918
    %v5983 = vmax.f32 %v3841, %v3925
    %v5984 = vmax.f32 %v3848, %v3932
    %v5985 = vmax.f32 %v3855, %v3939
    %v5986 = vmax.f32 %v3862, %v3946
    %v5987 = vmax.f32 %v3869, %v3953
    %v5988 = vmax.f32 %v3876, %v3960
    %v5989 = vmax.f32 %v3883, %v3967
    %v5990 = vmax.f32 %v3890, %v3974
    %v5991 = vmax.f32 %v3897, %v3981
    %v5992 = vmax.f32 %v3904, %v3988
    %v5993 = vmax.f32 %v3995, %v4079
    %v5994 = vmax.f32 %v4002, %v4086
    %v5995 = vmax.f32 %v4009, %v4093
    %v5996 = vmax.f32 %v4016, %v4100
    %v5997 = vmax.f32 %v4023, %v4107
    %v5998 = vmax.f32 %v4030, %v4114
    %v5999 = vmax.f32 %v4037, %v4121
    %v6000 = vmax.f32 %v4044, %v4128
    %v6001 = vmax.f32 %v4051, %v4135
    %v6002 = vmax.f32 %v4058, %v4142
    %v6003 = vmax.f32 %v4065, %v4149
    %v6004 = vmax.f32 %v4072, %v4156
    %v6005 = vmax.f32 %v4163, %v4247
    %v6006 = vmax.f32 %v4170, %v4254
    %v6007 = vmax.f32 %v4177, %v4261
    %v6008 = vmax.f32 %v4184, %v4268
    %v6009 = vmax.f32 %v4191, %v4275
    %v6010 = vmax.f32 %v4198, %v4282
    %v6011 = vmax.f32 %v4205, %v4289
    %v6012 = vmax.f32 %v4212, %v4296
    %v6013 = vmax.f32 %v4219, %v4303
    %v6014 = vmax.f32 %v4226, %v4310
    %v6015 = vmax.f32 %v4233, %v4317
    %v6016 = vmax.f32 %v4240, %v4324
    %v6017 = vmax.f32 %v4331, %v4415
    %v6018 = vmax.f32 %v4338, %v4422
    %v6019 = vmax.f32 %v4345, %v4429
    %v6020 = vmax.f32 %v4352, %v4436
    %v6021 = vmax.f32 %v4359, %v4443
    %v6022 = vmax.f32 %v4366, %v4450
    %v6023 = vmax.f32 %v4373, %v4457
    %v6024 = vmax.f32 %v4380, %v4464
    %v6025 = vmax.f32 %v4387, %v4471
    %v6026 = vmax.f32 %v4394, %v4478
    %v6027 = vmax.f32 %v4401, %v4485
    %v6028 = vmax.f32 %v4408, %v4492
    %v6029 = vmax.f32 %v4499, %v4583
    %v6030 = vmax.f32 %v4506, %v4590
    %v6031 = vmax.f32 %v4513, %v4597
    %v6032 = vmax.f32 %v4520, %v4604
    %v6033 = vmax.f32 %v4527, %v4611
    %v6034 = vmax.f32 %v4534, %v4618
    %v6035 = vmax.f32 %v4541, %v4625
    %v6036 = vmax.f32 %v4548, %v4632
    %v6037 = vmax.f32 %v4555, %v4639
    %v6038 = vmax.f32 %v4562, %v4646
    %v6039 = vmax.f32 %v4569, %v4653
    %v6040 = vmax.f32 %v4576, %v4660
    %v6041 = vmax.f32 %v4667, %v4751
    %v6042 = vmax.f32 %v4674, %v4758
    %v6043 = vmax.f32 %v4681, %v4765
    %v6044 = vmax.f32 %v4688, %v4772
    %v6045 = vmax.f32 %v4695, %v4779
    %v6046 = vmax.f32 %v4702, %v4786
    %v6047 = vmax.f32 %v4709, %v4793
    %v6048 = vmax.f32 %v4716, %v4800
    %v6049 = vmax.f32 %v4723, %v4807
    %v6050 = vmax.f32 %v4730, %v4814
    %v6051 = vmax.f32 %v4737, %v4821
    %v6052 = vmax.f32 %v4744, %v4828
    %v6053 = vmax.f32 %v4835, %v4919
    %v6054 = vmax.f32 %v4842, %v4926
    %v6055 = vmax.f32 %v4849, %v4933
    %v6056 = vmax.f32 %v4856, %v4940
    %v6057 = vmax.f32 %v4863, %v4947
    %v6058 = vmax.f32 %v4870, %v4954
    %v6059 = vmax.f32 %v4877, %v4961
    %v6060 = vmax.f32 %v4884, %v4968
    %v6061 = vmax.f32 %v4891, %v4975
    %v6062 = vmax.f32 %v4898, %v4982
    %v6063 = vmax.f32 %v4905, %v4989
    %v6064 = vmax.f32 %v4912, %v4996
    %v6065 = vmax.f32 %v5003, %v5087
    %v6066 = vmax.f32 %v5010, %v5094
    %v6067 = vmax.f32 %v5017, %v5101
    %v6068 = vmax.f32 %v5024, %v5108
    %v6069 = vmax.f32 %v5031, %v5115
    %v6070 = vmax.f32 %v5038, %v5122
    %v6071 = vmax.f32 %v5045, %v5129
    %v6072 = vmax.f32 %v5052, %v5136
    %v6073 = vmax.f32 %v5059, %v5143
    %v6074 = vmax.f32 %v5066, %v5150
    %v6075 = vmax.f32 %v5073, %v5157
    %v6076 = vmax.f32 %v5080, %v5164
    %v6077 = vmax.f32 %v5171, %v5255
    %v6078 = vmax.f32 %v5178, %v5262
    %v6079 = vmax.f32 %v5185, %v5269
    %v6080 = vmax.f32 %v5192, %v5276
    %v6081 = vmax.f32 %v5199, %v5283
    %v6082 = vmax.f32 %v5206, %v5290
    %v6083 = vmax.f32 %v5213, %v5297
    %v6084 = vmax.f32 %v5220, %v5304
    %v6085 = vmax.f32 %v5227, %v5311
    %v6086 = vmax.f32 %v5234, %v5318
    %v6087 = vmax.f32 %v5241, %v5325
    %v6088 = vmax.f32 %v5248, %v5332
    %v6089 = vmax.f32 %v5339, %v5423
    %v6090 = vmax.f32 %v5346, %v5430
    %v6091 = vmax.f32 %v5353, %v5437
    %v6092 = vmax.f32 %v5360, %v5444
    %v6093 = vmax.f32 %v5367, %v5451
    %v6094 = vmax.f32 %v5374, %v5458
    %v6095 = vmax.f32 %v5381, %v5465
    %v6096 = vmax.f32 %v5388, %v5472
    %v6097 = vmax.f32 %v5395, %v5479
    %v6098 = vmax.f32 %v5402, %v5486
    %v6099 = vmax.f32 %v5409, %v5493
    %v6100 = vmax.f32 %v5416, %v5500
    %v6101 = vmax.f32 %v5507, %v5591
    %v6102 = vmax.f32 %v5514, %v5598
    %v6103 = vmax.f32 %v5521, %v5605
    %v6104 = vmax.f32 %v5528, %v5612
    %v6105 = vmax.f32 %v5535, %v5619
    %v6106 = vmax.f32 %v5542, %v5626
    %v6107 = vmax.f32 %v5549, %v5633
    %v6108 = vmax.f32 %v5556, %v5640
    %v6109 = vmax.f32 %v5563, %v5647
    %v6110 = vmax.f32 %v5570, %v5654
    %v6111 = vmax.f32 %v5577, %v5661
    %v6112 = vmax.f32 %v5584, %v5668
    %v6113 = vmax.f32 %v5675, %v5759
    %v6114 = vmax.f32 %v5682, %v5766
    %v6115 = vmax.f32 %v5689, %v5773
    %v6116 = vmax.f32 %v5696, %v5780
    %v6117 = vmax.f32 %v5703, %v5787
    %v6118 = vmax.f32 %v5710, %v5794
    %v6119 = vmax.f32 %v5717, %v5801
    %v6120 = vmax.f32 %v5724, %v5808
    %v6121 = vmax.f32 %v5731, %v5815
    %v6122 = vmax.f32 %v5738, %v5822
    %v6123 = vmax.f32 %v5745, %v5829
    %v6124 = vmax.f32 %v5752, %v5836
    %v6125 = vld [vmem:[%s3] sm:$0xff]
    %v6126 = vld [vmem:[%s3 + $0x8] sm:$0xff]
    %v6127 = vld [vmem:[%s3 + $0x10] sm:$0xff]
    %v6128 = vld [vmem:[%s3 + $0x18] sm:$0xff]
    %v6129 = vld [vmem:[%s3 + $0x20] sm:$0xff]
    %v6130 = vld [vmem:[%s3 + $0x28] sm:$0xff]
    %v6131 = vld [vmem:[%s3 + $0x30] sm:$0xff]
    %v6132 = vld [vmem:[%s3 + $0x38] sm:$0xff]
    %v6133 = vld [vmem:[%s3 + $0x40] sm:$0xff]
    %v6134 = vld [vmem:[%s3 + $0x48] sm:$0xff]
    %v6135 = vld [vmem:[%s3 + $0x50] sm:$0xff]
    %v6136 = vld [vmem:[%s3 + $0x58] sm:$0xff]
    %v6137 = vld [vmem:[%s3 + $0x60] sm:$0xff]
    %v6138 = vld [vmem:[%s3 + $0x68] sm:$0xff]
    %v6139 = vld [vmem:[%s3 + $0x70] sm:$0xff]
    %v6140 = vld [vmem:[%s3 + $0x78] sm:$0xff]
    %s6141 = scalar_lea.vmem %s3, 128
    %v6142 = vld [vmem:[%s6141] sm:$0xff]
    %v6143 = vld [vmem:[%s6141 + $0x8] sm:$0xff]
    %v6144 = vld [vmem:[%s6141 + $0x10] sm:$0xff]
    %v6145 = vld [vmem:[%s6141 + $0x18] sm:$0xff]
    %v6146 = vld [vmem:[%s6141 + $0x20] sm:$0xff]
    %v6147 = vld [vmem:[%s6141 + $0x28] sm:$0xff]
    %v6148 = vld [vmem:[%s6141 + $0x30] sm:$0xff]
    %v6149 = vld [vmem:[%s6141 + $0x38] sm:$0xff]
    %v6150 = vld [vmem:[%s6141 + $0x40] sm:$0xff]
    %v6151 = vld [vmem:[%s6141 + $0x48] sm:$0xff]
    %v6152 = vld [vmem:[%s6141 + $0x50] sm:$0xff]
    %v6153 = vld [vmem:[%s6141 + $0x58] sm:$0xff]
    %v6154 = vld [vmem:[%s6141 + $0x60] sm:$0xff]
    %v6155 = vld [vmem:[%s6141 + $0x68] sm:$0xff]
    %v6156 = vld [vmem:[%s6141 + $0x70] sm:$0xff]
    %v6157 = vld [vmem:[%s6141 + $0x78] sm:$0xff]
    %vm6286 = vcmask 1041409
    %v6287 = vsel %vm6286, %v5839, %v5838
    %vm6288 = vcmask 1042434
    %v6289 = vsel %vm6288, %v5840, %v6287
    %vm6290 = vcmask 1043459
    %v6291 = vsel %vm6290, %v5841, %v6289
    %vm6292 = vcmask 1044484
    %v6293 = vsel %vm6292, %v5842, %v6291
    %vm6294 = vcmask 1045509
    %v6295 = vsel %vm6294, %v5843, %v6293
    %vm6296 = vcmask 1046534
    %v6297 = vsel %vm6296, %v5844, %v6295
    %vm6298 = vcmask 1047559
    %v6299 = vsel %vm6298, %v5845, %v6297
    %v6300 = vsel %vm6286, %v5851, %v5850
    %v6301 = vsel %vm6288, %v5852, %v6300
    %v6302 = vsel %vm6290, %v5853, %v6301
    %v6303 = vsel %vm6292, %v5854, %v6302
    %v6304 = vsel %vm6294, %v5855, %v6303
    %v6305 = vsel %vm6296, %v5856, %v6304
    %v6306 = vsel %vm6298, %v5857, %v6305
    %v6307 = vsel %vm6286, %v5863, %v5862
    %v6308 = vsel %vm6288, %v5864, %v6307
    %v6309 = vsel %vm6290, %v5865, %v6308
    %v6310 = vsel %vm6292, %v5866, %v6309
    %v6311 = vsel %vm6294, %v5867, %v6310
    %v6312 = vsel %vm6296, %v5868, %v6311
    %v6313 = vsel %vm6298, %v5869, %v6312
    %v6314 = vsel %vm6286, %v5875, %v5874
    %v6315 = vsel %vm6288, %v5876, %v6314
    %v6316 = vsel %vm6290, %v5877, %v6315
    %v6317 = vsel %vm6292, %v5878, %v6316
    %v6318 = vsel %vm6294, %v5879, %v6317
    %v6319 = vsel %vm6296, %v5880, %v6318
    %v6320 = vsel %vm6298, %v5881, %v6319
    %v6321 = vsel %vm6286, %v5887, %v5886
    %v6322 = vsel %vm6288, %v5888, %v6321
    %v6323 = vsel %vm6290, %v5889, %v6322
    %v6324 = vsel %vm6292, %v5890, %v6323
    %v6325 = vsel %vm6294, %v5891, %v6324
    %v6326 = vsel %vm6296, %v5892, %v6325
    %v6327 = vsel %vm6298, %v5893, %v6326
    %v6328 = vsel %vm6286, %v5899, %v5898
    %v6329 = vsel %vm6288, %v5900, %v6328
    %v6330 = vsel %vm6290, %v5901, %v6329
    %v6331 = vsel %vm6292, %v5902, %v6330
    %v6332 = vsel %vm6294, %v5903, %v6331
    %v6333 = vsel %vm6296, %v5904, %v6332
    %v6334 = vsel %vm6298, %v5905, %v6333
    %v6335 = vsel %vm6286, %v5911, %v5910
    %v6336 = vsel %vm6288, %v5912, %v6335
    %v6337 = vsel %vm6290, %v5913, %v6336
    %v6338 = vsel %vm6292, %v5914, %v6337
    %v6339 = vsel %vm6294, %v5915, %v6338
    %v6340 = vsel %vm6296, %v5916, %v6339
    %v6341 = vsel %vm6298, %v5917, %v6340
    %v6342 = vsel %vm6286, %v5923, %v5922
    %v6343 = vsel %vm6288, %v5924, %v6342
    %v6344 = vsel %vm6290, %v5925, %v6343
    %v6345 = vsel %vm6292, %v5926, %v6344
    %v6346 = vsel %vm6294, %v5927, %v6345
    %v6347 = vsel %vm6296, %v5928, %v6346
    %v6348 = vsel %vm6298, %v5929, %v6347
    %v6349 = vsel %vm6286, %v5983, %v5982
    %v6350 = vsel %vm6288, %v5984, %v6349
    %v6351 = vsel %vm6290, %v5985, %v6350
    %v6352 = vsel %vm6292, %v5986, %v6351
    %v6353 = vsel %vm6294, %v5987, %v6352
    %v6354 = vsel %vm6296, %v5988, %v6353
    %v6355 = vsel %vm6298, %v5989, %v6354
    %v6356 = vsel %vm6286, %v5995, %v5994
    %v6357 = vsel %vm6288, %v5996, %v6356
    %v6358 = vsel %vm6290, %v5997, %v6357
    %v6359 = vsel %vm6292, %v5998, %v6358
    %v6360 = vsel %vm6294, %v5999, %v6359
    %v6361 = vsel %vm6296, %v6000, %v6360
    %v6362 = vsel %vm6298, %v6001, %v6361
    %v6363 = vsel %vm6286, %v6007, %v6006
    %v6364 = vsel %vm6288, %v6008, %v6363
    %v6365 = vsel %vm6290, %v6009, %v6364
    %v6366 = vsel %vm6292, %v6010, %v6365
    %v6367 = vsel %vm6294, %v6011, %v6366
    %v6368 = vsel %vm6296, %v6012, %v6367
    %v6369 = vsel %vm6298, %v6013, %v6368
    %v6370 = vsel %vm6286, %v6019, %v6018
    %v6371 = vsel %vm6288, %v6020, %v6370
    %v6372 = vsel %vm6290, %v6021, %v6371
    %v6373 = vsel %vm6292, %v6022, %v6372
    %v6374 = vsel %vm6294, %v6023, %v6373
    %v6375 = vsel %vm6296, %v6024, %v6374
    %v6376 = vsel %vm6298, %v6025, %v6375
    %v6377 = vsel %vm6286, %v6031, %v6030
    %v6378 = vsel %vm6288, %v6032, %v6377
    %v6379 = vsel %vm6290, %v6033, %v6378
    %v6380 = vsel %vm6292, %v6034, %v6379
    %v6381 = vsel %vm6294, %v6035, %v6380
    %v6382 = vsel %vm6296, %v6036, %v6381
    %v6383 = vsel %vm6298, %v6037, %v6382
    %v6384 = vsel %vm6286, %v6043, %v6042
    %v6385 = vsel %vm6288, %v6044, %v6384
    %v6386 = vsel %vm6290, %v6045, %v6385
    %v6387 = vsel %vm6292, %v6046, %v6386
    %v6388 = vsel %vm6294, %v6047, %v6387
    %v6389 = vsel %vm6296, %v6048, %v6388
    %v6390 = vsel %vm6298, %v6049, %v6389
    %v6391 = vsel %vm6286, %v6055, %v6054
    %v6392 = vsel %vm6288, %v6056, %v6391
    %v6393 = vsel %vm6290, %v6057, %v6392
    %v6394 = vsel %vm6292, %v6058, %v6393
    %v6395 = vsel %vm6294, %v6059, %v6394
    %v6396 = vsel %vm6296, %v6060, %v6395
    %v6397 = vsel %vm6298, %v6061, %v6396
    %v6398 = vsel %vm6286, %v6067, %v6066
    %v6399 = vsel %vm6288, %v6068, %v6398
    %v6400 = vsel %vm6290, %v6069, %v6399
    %v6401 = vsel %vm6292, %v6070, %v6400
    %v6402 = vsel %vm6294, %v6071, %v6401
    %v6403 = vsel %vm6296, %v6072, %v6402
    %v6404 = vsel %vm6298, %v6073, %v6403
    %6421 = vmatpush.msra.mxu0 %v6157
    %6422 = vmatpush.msra.mxu0 %v6156
    %6423 = vmatpush.msra.mxu0 %v6155
    %6424 = vmatpush.msra.mxu0 %v6154
    %6425 = vmatpush.msra.mxu0 %v6153
    %6426 = vmatpush.msra.mxu0 %v6152
    %6427 = vmatpush.msra.mxu0 %v6151
    %6428 = vmatpush.msra.mxu0 %v6150
    %6429 = vmatpush.msra.mxu0 %v6149
    %6430 = vmatpush.msra.mxu0 %v6148
    %6431 = vmatpush.msra.mxu0 %v6147
    %6432 = vmatpush.msra.mxu0 %v6146
    %6433 = vmatpush.msra.mxu0 %v6145
    %6434 = vmatpush.msra.mxu0 %v6144
    %6435 = vmatpush.msra.mxu0 %v6143
    %6436 = vmatpush.msra.mxu0 %v6142
    %6437 = vmatmul.f32.gmra.mxu0 %v6299
    %v6438 = vpop.f32.mrf.mxu0
    %v6439 = vadd.f32 0.0, %v6438
    %6440 = vmatmul.f32.gmra.mxu0 %v6306
    %v6441 = vpop.f32.mrf.mxu0
    %v6442 = vadd.f32 0.0, %v6441
    %6443 = vmatmul.f32.gmra.mxu0 %v6313
    %v6444 = vpop.f32.mrf.mxu0
    %v6445 = vadd.f32 0.0, %v6444
    %6446 = vmatmul.f32.gmra.mxu0 %v6320
    %v6447 = vpop.f32.mrf.mxu0
    %v6448 = vadd.f32 0.0, %v6447
    %6449 = vmatmul.f32.gmra.mxu0 %v6327
    %v6450 = vpop.f32.mrf.mxu0
    %v6451 = vadd.f32 0.0, %v6450
    %6452 = vmatmul.f32.gmra.mxu0 %v6334
    %v6453 = vpop.f32.mrf.mxu0
    %v6454 = vadd.f32 0.0, %v6453
    %6455 = vmatmul.f32.gmra.mxu0 %v6341
    %v6456 = vpop.f32.mrf.mxu0
    %v6457 = vadd.f32 0.0, %v6456
    %6458 = vmatmul.f32.gmra.mxu0 %v6348
    %v6459 = vpop.f32.mrf.mxu0
    %v6460 = vadd.f32 0.0, %v6459
    %6461 = vmatmul.f32.gmra.mxu0 %v6355
    %v6462 = vpop.f32.mrf.mxu0
    %v6463 = vadd.f32 0.0, %v6462
    %6464 = vmatmul.f32.gmra.mxu0 %v6362
    %v6465 = vpop.f32.mrf.mxu0
    %v6466 = vadd.f32 0.0, %v6465
    %6467 = vmatmul.f32.gmra.mxu0 %v6369
    %v6468 = vpop.f32.mrf.mxu0
    %v6469 = vadd.f32 0.0, %v6468
    %6470 = vmatmul.f32.gmra.mxu0 %v6376
    %v6471 = vpop.f32.mrf.mxu0
    %v6472 = vadd.f32 0.0, %v6471
    %6473 = vmatmul.f32.gmra.mxu0 %v6383
    %v6474 = vpop.f32.mrf.mxu0
    %v6475 = vadd.f32 0.0, %v6474
    %6476 = vmatmul.f32.gmra.mxu0 %v6390
    %v6477 = vpop.f32.mrf.mxu0
    %v6478 = vadd.f32 0.0, %v6477
    %6479 = vmatmul.f32.gmra.mxu0 %v6397
    %v6480 = vpop.f32.mrf.mxu0
    %v6481 = vadd.f32 0.0, %v6480
    %6482 = vmatmul.f32.gmra.mxu0 %v6404
    %v6483 = vpop.f32.mrf.mxu0
    %v6484 = vadd.f32 0.0, %v6483
    %6485 = vdwg.mxu0
    %v6502 = vsel %vm6286, %v5838, %v5837
    %v6503 = vsel %vm6288, %v5839, %v6502
    %v6504 = vsel %vm6290, %v5840, %v6503
    %v6505 = vsel %vm6292, %v5841, %v6504
    %v6506 = vsel %vm6294, %v5842, %v6505
    %v6507 = vsel %vm6296, %v5843, %v6506
    %v6508 = vsel %vm6298, %v5844, %v6507
    %v6509 = vsel %vm6286, %v5850, %v5849
    %v6510 = vsel %vm6288, %v5851, %v6509
    %v6511 = vsel %vm6290, %v5852, %v6510
    %v6512 = vsel %vm6292, %v5853, %v6511
    %v6513 = vsel %vm6294, %v5854, %v6512
    %v6514 = vsel %vm6296, %v5855, %v6513
    %v6515 = vsel %vm6298, %v5856, %v6514
    %v6516 = vsel %vm6286, %v5862, %v5861
    %v6517 = vsel %vm6288, %v5863, %v6516
    %v6518 = vsel %vm6290, %v5864, %v6517
    %v6519 = vsel %vm6292, %v5865, %v6518
    %v6520 = vsel %vm6294, %v5866, %v6519
    %v6521 = vsel %vm6296, %v5867, %v6520
    %v6522 = vsel %vm6298, %v5868, %v6521
    %v6523 = vsel %vm6286, %v5874, %v5873
    %v6524 = vsel %vm6288, %v5875, %v6523
    %v6525 = vsel %vm6290, %v5876, %v6524
    %v6526 = vsel %vm6292, %v5877, %v6525
    %v6527 = vsel %vm6294, %v5878, %v6526
    %v6528 = vsel %vm6296, %v5879, %v6527
    %v6529 = vsel %vm6298, %v5880, %v6528
    %v6530 = vsel %vm6286, %v5886, %v5885
    %v6531 = vsel %vm6288, %v5887, %v6530
    %v6532 = vsel %vm6290, %v5888, %v6531
    %v6533 = vsel %vm6292, %v5889, %v6532
    %v6534 = vsel %vm6294, %v5890, %v6533
    %v6535 = vsel %vm6296, %v5891, %v6534
    %v6536 = vsel %vm6298, %v5892, %v6535
    %v6537 = vsel %vm6286, %v5898, %v5897
    %v6538 = vsel %vm6288, %v5899, %v6537
    %v6539 = vsel %vm6290, %v5900, %v6538
    %v6540 = vsel %vm6292, %v5901, %v6539
    %v6541 = vsel %vm6294, %v5902, %v6540
    %v6542 = vsel %vm6296, %v5903, %v6541
    %v6543 = vsel %vm6298, %v5904, %v6542
    %v6544 = vsel %vm6286, %v5910, %v5909
    %v6545 = vsel %vm6288, %v5911, %v6544
    %v6546 = vsel %vm6290, %v5912, %v6545
    %v6547 = vsel %vm6292, %v5913, %v6546
    %v6548 = vsel %vm6294, %v5914, %v6547
    %v6549 = vsel %vm6296, %v5915, %v6548
    %v6550 = vsel %vm6298, %v5916, %v6549
    %v6551 = vsel %vm6286, %v5922, %v5921
    %v6552 = vsel %vm6288, %v5923, %v6551
    %v6553 = vsel %vm6290, %v5924, %v6552
    %v6554 = vsel %vm6292, %v5925, %v6553
    %v6555 = vsel %vm6294, %v5926, %v6554
    %v6556 = vsel %vm6296, %v5927, %v6555
    %v6557 = vsel %vm6298, %v5928, %v6556
    %v6558 = vsel %vm6286, %v5982, %v5981
    %v6559 = vsel %vm6288, %v5983, %v6558
    %v6560 = vsel %vm6290, %v5984, %v6559
    %v6561 = vsel %vm6292, %v5985, %v6560
    %v6562 = vsel %vm6294, %v5986, %v6561
    %v6563 = vsel %vm6296, %v5987, %v6562
    %v6564 = vsel %vm6298, %v5988, %v6563
    %v6565 = vsel %vm6286, %v5994, %v5993
    %v6566 = vsel %vm6288, %v5995, %v6565
    %v6567 = vsel %vm6290, %v5996, %v6566
    %v6568 = vsel %vm6292, %v5997, %v6567
    %v6569 = vsel %vm6294, %v5998, %v6568
    %v6570 = vsel %vm6296, %v5999, %v6569
    %v6571 = vsel %vm6298, %v6000, %v6570
    %v6572 = vsel %vm6286, %v6006, %v6005
    %v6573 = vsel %vm6288, %v6007, %v6572
    %v6574 = vsel %vm6290, %v6008, %v6573
    %v6575 = vsel %vm6292, %v6009, %v6574
    %v6576 = vsel %vm6294, %v6010, %v6575
    %v6577 = vsel %vm6296, %v6011, %v6576
    %v6578 = vsel %vm6298, %v6012, %v6577
    %v6579 = vsel %vm6286, %v6018, %v6017
    %v6580 = vsel %vm6288, %v6019, %v6579
    %v6581 = vsel %vm6290, %v6020, %v6580
    %v6582 = vsel %vm6292, %v6021, %v6581
    %v6583 = vsel %vm6294, %v6022, %v6582
    %v6584 = vsel %vm6296, %v6023, %v6583
    %v6585 = vsel %vm6298, %v6024, %v6584
    %v6586 = vsel %vm6286, %v6030, %v6029
    %v6587 = vsel %vm6288, %v6031, %v6586
    %v6588 = vsel %vm6290, %v6032, %v6587
    %v6589 = vsel %vm6292, %v6033, %v6588
    %v6590 = vsel %vm6294, %v6034, %v6589
    %v6591 = vsel %vm6296, %v6035, %v6590
    %v6592 = vsel %vm6298, %v6036, %v6591
    %v6593 = vsel %vm6286, %v6042, %v6041
    %v6594 = vsel %vm6288, %v6043, %v6593
    %v6595 = vsel %vm6290, %v6044, %v6594
    %v6596 = vsel %vm6292, %v6045, %v6595
    %v6597 = vsel %vm6294, %v6046, %v6596
    %v6598 = vsel %vm6296, %v6047, %v6597
    %v6599 = vsel %vm6298, %v6048, %v6598
    %v6600 = vsel %vm6286, %v6054, %v6053
    %v6601 = vsel %vm6288, %v6055, %v6600
    %v6602 = vsel %vm6290, %v6056, %v6601
    %v6603 = vsel %vm6292, %v6057, %v6602
    %v6604 = vsel %vm6294, %v6058, %v6603
    %v6605 = vsel %vm6296, %v6059, %v6604
    %v6606 = vsel %vm6298, %v6060, %v6605
    %v6607 = vsel %vm6286, %v6066, %v6065
    %v6608 = vsel %vm6288, %v6067, %v6607
    %v6609 = vsel %vm6290, %v6068, %v6608
    %v6610 = vsel %vm6292, %v6069, %v6609
    %v6611 = vsel %vm6294, %v6070, %v6610
    %v6612 = vsel %vm6296, %v6071, %v6611
    %v6613 = vsel %vm6298, %v6072, %v6612
    %6630 = vmatpush.msra.mxu0 %v6140
    %6631 = vmatpush.msra.mxu0 %v6139
    %6632 = vmatpush.msra.mxu0 %v6138
    %6633 = vmatpush.msra.mxu0 %v6137
    %6634 = vmatpush.msra.mxu0 %v6136
    %6635 = vmatpush.msra.mxu0 %v6135
    %6636 = vmatpush.msra.mxu0 %v6134
    %6637 = vmatpush.msra.mxu0 %v6133
    %6638 = vmatpush.msra.mxu0 %v6132
    %6639 = vmatpush.msra.mxu0 %v6131
    %6640 = vmatpush.msra.mxu0 %v6130
    %6641 = vmatpush.msra.mxu0 %v6129
    %6642 = vmatpush.msra.mxu0 %v6128
    %6643 = vmatpush.msra.mxu0 %v6127
    %6644 = vmatpush.msra.mxu0 %v6126
    %6645 = vmatpush.msra.mxu0 %v6125
    %6646 = vmatmul.f32.gmra.mxu0 %v6508
    %v6647 = vpop.f32.mrf.mxu0
    %v6648 = vadd.f32 %v6439, %v6647
    %6649 = vmatmul.f32.gmra.mxu0 %v6515
    %v6650 = vpop.f32.mrf.mxu0
    %v6651 = vadd.f32 %v6442, %v6650
    %6652 = vmatmul.f32.gmra.mxu0 %v6522
    %v6653 = vpop.f32.mrf.mxu0
    %v6654 = vadd.f32 %v6445, %v6653
    %6655 = vmatmul.f32.gmra.mxu0 %v6529
    %v6656 = vpop.f32.mrf.mxu0
    %v6657 = vadd.f32 %v6448, %v6656
    %6658 = vmatmul.f32.gmra.mxu0 %v6536
    %v6659 = vpop.f32.mrf.mxu0
    %v6660 = vadd.f32 %v6451, %v6659
    %6661 = vmatmul.f32.gmra.mxu0 %v6543
    %v6662 = vpop.f32.mrf.mxu0
    %v6663 = vadd.f32 %v6454, %v6662
    %6664 = vmatmul.f32.gmra.mxu0 %v6550
    %v6665 = vpop.f32.mrf.mxu0
    %v6666 = vadd.f32 %v6457, %v6665
    %6667 = vmatmul.f32.gmra.mxu0 %v6557
    %v6668 = vpop.f32.mrf.mxu0
    %v6669 = vadd.f32 %v6460, %v6668
    %6670 = vmatmul.f32.gmra.mxu0 %v6564
    %v6671 = vpop.f32.mrf.mxu0
    %v6672 = vadd.f32 %v6463, %v6671
    %6673 = vmatmul.f32.gmra.mxu0 %v6571
    %v6674 = vpop.f32.mrf.mxu0
    %v6675 = vadd.f32 %v6466, %v6674
    %6676 = vmatmul.f32.gmra.mxu0 %v6578
    %v6677 = vpop.f32.mrf.mxu0
    %v6678 = vadd.f32 %v6469, %v6677
    %6679 = vmatmul.f32.gmra.mxu0 %v6585
    %v6680 = vpop.f32.mrf.mxu0
    %v6681 = vadd.f32 %v6472, %v6680
    %6682 = vmatmul.f32.gmra.mxu0 %v6592
    %v6683 = vpop.f32.mrf.mxu0
    %v6684 = vadd.f32 %v6475, %v6683
    %6685 = vmatmul.f32.gmra.mxu0 %v6599
    %v6686 = vpop.f32.mrf.mxu0
    %v6687 = vadd.f32 %v6478, %v6686
    %6688 = vmatmul.f32.gmra.mxu0 %v6606
    %v6689 = vpop.f32.mrf.mxu0
    %v6690 = vadd.f32 %v6481, %v6689
    %6691 = vmatmul.f32.gmra.mxu0 %v6613
    %v6692 = vpop.f32.mrf.mxu0
    %v6693 = vadd.f32 %v6484, %v6692
    %6694 = vdwg.mxu0
    %s6695 = scalar_lea.vmem %s3, 256
    %v6696 = vld [vmem:[%s6695] sm:$0xff]
    %v6697 = vld [vmem:[%s6695 + $0x8] sm:$0xff]
    %v6698 = vld [vmem:[%s6695 + $0x10] sm:$0xff]
    %v6699 = vld [vmem:[%s6695 + $0x18] sm:$0xff]
    %v6700 = vld [vmem:[%s6695 + $0x20] sm:$0xff]
    %v6701 = vld [vmem:[%s6695 + $0x28] sm:$0xff]
    %v6702 = vld [vmem:[%s6695 + $0x30] sm:$0xff]
    %v6703 = vld [vmem:[%s6695 + $0x38] sm:$0xff]
    %v6704 = vld [vmem:[%s6695 + $0x40] sm:$0xff]
    %v6705 = vld [vmem:[%s6695 + $0x48] sm:$0xff]
    %v6706 = vld [vmem:[%s6695 + $0x50] sm:$0xff]
    %v6707 = vld [vmem:[%s6695 + $0x58] sm:$0xff]
    %v6708 = vld [vmem:[%s6695 + $0x60] sm:$0xff]
    %v6709 = vld [vmem:[%s6695 + $0x68] sm:$0xff]
    %v6710 = vld [vmem:[%s6695 + $0x70] sm:$0xff]
    %v6711 = vld [vmem:[%s6695 + $0x78] sm:$0xff]
    %v6728 = vsel %vm6286, %v5840, %v5839
    %v6729 = vsel %vm6288, %v5841, %v6728
    %v6730 = vsel %vm6290, %v5842, %v6729
    %v6731 = vsel %vm6292, %v5843, %v6730
    %v6732 = vsel %vm6294, %v5844, %v6731
    %v6733 = vsel %vm6296, %v5845, %v6732
    %v6734 = vsel %vm6298, %v5846, %v6733
    %v6735 = vsel %vm6286, %v5852, %v5851
    %v6736 = vsel %vm6288, %v5853, %v6735
    %v6737 = vsel %vm6290, %v5854, %v6736
    %v6738 = vsel %vm6292, %v5855, %v6737
    %v6739 = vsel %vm6294, %v5856, %v6738
    %v6740 = vsel %vm6296, %v5857, %v6739
    %v6741 = vsel %vm6298, %v5858, %v6740
    %v6742 = vsel %vm6286, %v5864, %v5863
    %v6743 = vsel %vm6288, %v5865, %v6742
    %v6744 = vsel %vm6290, %v5866, %v6743
    %v6745 = vsel %vm6292, %v5867, %v6744
    %v6746 = vsel %vm6294, %v5868, %v6745
    %v6747 = vsel %vm6296, %v5869, %v6746
    %v6748 = vsel %vm6298, %v5870, %v6747
    %v6749 = vsel %vm6286, %v5876, %v5875
    %v6750 = vsel %vm6288, %v5877, %v6749
    %v6751 = vsel %vm6290, %v5878, %v6750
    %v6752 = vsel %vm6292, %v5879, %v6751
    %v6753 = vsel %vm6294, %v5880, %v6752
    %v6754 = vsel %vm6296, %v5881, %v6753
    %v6755 = vsel %vm6298, %v5882, %v6754
    %v6756 = vsel %vm6286, %v5888, %v5887
    %v6757 = vsel %vm6288, %v5889, %v6756
    %v6758 = vsel %vm6290, %v5890, %v6757
    %v6759 = vsel %vm6292, %v5891, %v6758
    %v6760 = vsel %vm6294, %v5892, %v6759
    %v6761 = vsel %vm6296, %v5893, %v6760
    %v6762 = vsel %vm6298, %v5894, %v6761
    %v6763 = vsel %vm6286, %v5900, %v5899
    %v6764 = vsel %vm6288, %v5901, %v6763
    %v6765 = vsel %vm6290, %v5902, %v6764
    %v6766 = vsel %vm6292, %v5903, %v6765
    %v6767 = vsel %vm6294, %v5904, %v6766
    %v6768 = vsel %vm6296, %v5905, %v6767
    %v6769 = vsel %vm6298, %v5906, %v6768
    %v6770 = vsel %vm6286, %v5912, %v5911
    %v6771 = vsel %vm6288, %v5913, %v6770
    %v6772 = vsel %vm6290, %v5914, %v6771
    %v6773 = vsel %vm6292, %v5915, %v6772
    %v6774 = vsel %vm6294, %v5916, %v6773
    %v6775 = vsel %vm6296, %v5917, %v6774
    %v6776 = vsel %vm6298, %v5918, %v6775
    %v6777 = vsel %vm6286, %v5924, %v5923
    %v6778 = vsel %vm6288, %v5925, %v6777
    %v6779 = vsel %vm6290, %v5926, %v6778
    %v6780 = vsel %vm6292, %v5927, %v6779
    %v6781 = vsel %vm6294, %v5928, %v6780
    %v6782 = vsel %vm6296, %v5929, %v6781
    %v6783 = vsel %vm6298, %v5930, %v6782
    %v6784 = vsel %vm6286, %v5984, %v5983
    %v6785 = vsel %vm6288, %v5985, %v6784
    %v6786 = vsel %vm6290, %v5986, %v6785
    %v6787 = vsel %vm6292, %v5987, %v6786
    %v6788 = vsel %vm6294, %v5988, %v6787
    %v6789 = vsel %vm6296, %v5989, %v6788
    %v6790 = vsel %vm6298, %v5990, %v6789
    %v6791 = vsel %vm6286, %v5996, %v5995
    %v6792 = vsel %vm6288, %v5997, %v6791
    %v6793 = vsel %vm6290, %v5998, %v6792
    %v6794 = vsel %vm6292, %v5999, %v6793
    %v6795 = vsel %vm6294, %v6000, %v6794
    %v6796 = vsel %vm6296, %v6001, %v6795
    %v6797 = vsel %vm6298, %v6002, %v6796
    %v6798 = vsel %vm6286, %v6008, %v6007
    %v6799 = vsel %vm6288, %v6009, %v6798
    %v6800 = vsel %vm6290, %v6010, %v6799
    %v6801 = vsel %vm6292, %v6011, %v6800
    %v6802 = vsel %vm6294, %v6012, %v6801
    %v6803 = vsel %vm6296, %v6013, %v6802
    %v6804 = vsel %vm6298, %v6014, %v6803
    %v6805 = vsel %vm6286, %v6020, %v6019
    %v6806 = vsel %vm6288, %v6021, %v6805
    %v6807 = vsel %vm6290, %v6022, %v6806
    %v6808 = vsel %vm6292, %v6023, %v6807
    %v6809 = vsel %vm6294, %v6024, %v6808
    %v6810 = vsel %vm6296, %v6025, %v6809
    %v6811 = vsel %vm6298, %v6026, %v6810
    %v6812 = vsel %vm6286, %v6032, %v6031
    %v6813 = vsel %vm6288, %v6033, %v6812
    %v6814 = vsel %vm6290, %v6034, %v6813
    %v6815 = vsel %vm6292, %v6035, %v6814
    %v6816 = vsel %vm6294, %v6036, %v6815
    %v6817 = vsel %vm6296, %v6037, %v6816
    %v6818 = vsel %vm6298, %v6038, %v6817
    %v6819 = vsel %vm6286, %v6044, %v6043
    %v6820 = vsel %vm6288, %v6045, %v6819
    %v6821 = vsel %vm6290, %v6046, %v6820
    %v6822 = vsel %vm6292, %v6047, %v6821
    %v6823 = vsel %vm6294, %v6048, %v6822
    %v6824 = vsel %vm6296, %v6049, %v6823
    %v6825 = vsel %vm6298, %v6050, %v6824
    %v6826 = vsel %vm6286, %v6056, %v6055
    %v6827 = vsel %vm6288, %v6057, %v6826
    %v6828 = vsel %vm6290, %v6058, %v6827
    %v6829 = vsel %vm6292, %v6059, %v6828
    %v6830 = vsel %vm6294, %v6060, %v6829
    %v6831 = vsel %vm6296, %v6061, %v6830
    %v6832 = vsel %vm6298, %v6062, %v6831
    %v6833 = vsel %vm6286, %v6068, %v6067
    %v6834 = vsel %vm6288, %v6069, %v6833
    %v6835 = vsel %vm6290, %v6070, %v6834
    %v6836 = vsel %vm6292, %v6071, %v6835
    %v6837 = vsel %vm6294, %v6072, %v6836
    %v6838 = vsel %vm6296, %v6073, %v6837
    %v6839 = vsel %vm6298, %v6074, %v6838
    %6856 = vmatpush.msra.mxu0 %v6711
    %6857 = vmatpush.msra.mxu0 %v6710
    %6858 = vmatpush.msra.mxu0 %v6709
    %6859 = vmatpush.msra.mxu0 %v6708
    %6860 = vmatpush.msra.mxu0 %v6707
    %6861 = vmatpush.msra.mxu0 %v6706
    %6862 = vmatpush.msra.mxu0 %v6705
    %6863 = vmatpush.msra.mxu0 %v6704
    %6864 = vmatpush.msra.mxu0 %v6703
    %6865 = vmatpush.msra.mxu0 %v6702
    %6866 = vmatpush.msra.mxu0 %v6701
    %6867 = vmatpush.msra.mxu0 %v6700
    %6868 = vmatpush.msra.mxu0 %v6699
    %6869 = vmatpush.msra.mxu0 %v6698
    %6870 = vmatpush.msra.mxu0 %v6697
    %6871 = vmatpush.msra.mxu0 %v6696
    %6872 = vmatmul.f32.gmra.mxu0 %v6734
    %v6873 = vpop.f32.mrf.mxu0
    %v6874 = vadd.f32 0.0, %v6873
    %6875 = vmatmul.f32.gmra.mxu0 %v6741
    %v6876 = vpop.f32.mrf.mxu0
    %v6877 = vadd.f32 0.0, %v6876
    %6878 = vmatmul.f32.gmra.mxu0 %v6748
    %v6879 = vpop.f32.mrf.mxu0
    %v6880 = vadd.f32 0.0, %v6879
    %6881 = vmatmul.f32.gmra.mxu0 %v6755
    %v6882 = vpop.f32.mrf.mxu0
    %v6883 = vadd.f32 0.0, %v6882
    %6884 = vmatmul.f32.gmra.mxu0 %v6762
    %v6885 = vpop.f32.mrf.mxu0
    %v6886 = vadd.f32 0.0, %v6885
    %6887 = vmatmul.f32.gmra.mxu0 %v6769
    %v6888 = vpop.f32.mrf.mxu0
    %v6889 = vadd.f32 0.0, %v6888
    %6890 = vmatmul.f32.gmra.mxu0 %v6776
    %v6891 = vpop.f32.mrf.mxu0
    %v6892 = vadd.f32 0.0, %v6891
    %6893 = vmatmul.f32.gmra.mxu0 %v6783
    %v6894 = vpop.f32.mrf.mxu0
    %v6895 = vadd.f32 0.0, %v6894
    %6896 = vmatmul.f32.gmra.mxu0 %v6790
    %v6897 = vpop.f32.mrf.mxu0
    %v6898 = vadd.f32 0.0, %v6897
    %6899 = vmatmul.f32.gmra.mxu0 %v6797
    %v6900 = vpop.f32.mrf.mxu0
    %v6901 = vadd.f32 0.0, %v6900
    %6902 = vmatmul.f32.gmra.mxu0 %v6804
    %v6903 = vpop.f32.mrf.mxu0
    %v6904 = vadd.f32 0.0, %v6903
    %6905 = vmatmul.f32.gmra.mxu0 %v6811
    %v6906 = vpop.f32.mrf.mxu0
    %v6907 = vadd.f32 0.0, %v6906
    %6908 = vmatmul.f32.gmra.mxu0 %v6818
    %v6909 = vpop.f32.mrf.mxu0
    %v6910 = vadd.f32 0.0, %v6909
    %6911 = vmatmul.f32.gmra.mxu0 %v6825
    %v6912 = vpop.f32.mrf.mxu0
    %v6913 = vadd.f32 0.0, %v6912
    %6914 = vmatmul.f32.gmra.mxu0 %v6832
    %v6915 = vpop.f32.mrf.mxu0
    %v6916 = vadd.f32 0.0, %v6915
    %6917 = vmatmul.f32.gmra.mxu0 %v6839
    %v6918 = vpop.f32.mrf.mxu0
    %v6919 = vadd.f32 0.0, %v6918
    %6920 = vdwg.mxu0
    %v6921 = vadd.f32 %v6648, %v6874
    %v6922 = vadd.f32 %v6651, %v6877
    %v6923 = vadd.f32 %v6654, %v6880
    %v6924 = vadd.f32 %v6657, %v6883
    %v6925 = vadd.f32 %v6660, %v6886
    %v6926 = vadd.f32 %v6663, %v6889
    %v6927 = vadd.f32 %v6666, %v6892
    %v6928 = vadd.f32 %v6669, %v6895
    %v6929 = vadd.f32 %v6672, %v6898
    %v6930 = vadd.f32 %v6675, %v6901
    %v6931 = vadd.f32 %v6678, %v6904
    %v6932 = vadd.f32 %v6681, %v6907
    %v6933 = vadd.f32 %v6684, %v6910
    %v6934 = vadd.f32 %v6687, %v6913
    %v6935 = vadd.f32 %v6690, %v6916
    %v6936 = vadd.f32 %v6693, %v6919
    %s6937 = scalar_lea.vmem %s3, 384
    %v6938 = vld [vmem:[%s6937] sm:$0xff]
    %v6939 = vld [vmem:[%s6937 + $0x8] sm:$0xff]
    %v6940 = vld [vmem:[%s6937 + $0x10] sm:$0xff]
    %v6941 = vld [vmem:[%s6937 + $0x18] sm:$0xff]
    %v6942 = vld [vmem:[%s6937 + $0x20] sm:$0xff]
    %v6943 = vld [vmem:[%s6937 + $0x28] sm:$0xff]
    %v6944 = vld [vmem:[%s6937 + $0x30] sm:$0xff]
    %v6945 = vld [vmem:[%s6937 + $0x38] sm:$0xff]
    %v6946 = vld [vmem:[%s6937 + $0x40] sm:$0xff]
    %v6947 = vld [vmem:[%s6937 + $0x48] sm:$0xff]
    %v6948 = vld [vmem:[%s6937 + $0x50] sm:$0xff]
    %v6949 = vld [vmem:[%s6937 + $0x58] sm:$0xff]
    %v6950 = vld [vmem:[%s6937 + $0x60] sm:$0xff]
    %v6951 = vld [vmem:[%s6937 + $0x68] sm:$0xff]
    %v6952 = vld [vmem:[%s6937 + $0x70] sm:$0xff]
    %v6953 = vld [vmem:[%s6937 + $0x78] sm:$0xff]
    %v6970 = vsel %vm6286, %v5841, %v5840
    %v6971 = vsel %vm6288, %v5842, %v6970
    %v6972 = vsel %vm6290, %v5843, %v6971
    %v6973 = vsel %vm6292, %v5844, %v6972
    %v6974 = vsel %vm6294, %v5845, %v6973
    %v6975 = vsel %vm6296, %v5846, %v6974
    %v6976 = vsel %vm6298, %v5847, %v6975
    %v6977 = vsel %vm6286, %v5853, %v5852
    %v6978 = vsel %vm6288, %v5854, %v6977
    %v6979 = vsel %vm6290, %v5855, %v6978
    %v6980 = vsel %vm6292, %v5856, %v6979
    %v6981 = vsel %vm6294, %v5857, %v6980
    %v6982 = vsel %vm6296, %v5858, %v6981
    %v6983 = vsel %vm6298, %v5859, %v6982
    %v6984 = vsel %vm6286, %v5865, %v5864
    %v6985 = vsel %vm6288, %v5866, %v6984
    %v6986 = vsel %vm6290, %v5867, %v6985
    %v6987 = vsel %vm6292, %v5868, %v6986
    %v6988 = vsel %vm6294, %v5869, %v6987
    %v6989 = vsel %vm6296, %v5870, %v6988
    %v6990 = vsel %vm6298, %v5871, %v6989
    %v6991 = vsel %vm6286, %v5877, %v5876
    %v6992 = vsel %vm6288, %v5878, %v6991
    %v6993 = vsel %vm6290, %v5879, %v6992
    %v6994 = vsel %vm6292, %v5880, %v6993
    %v6995 = vsel %vm6294, %v5881, %v6994
    %v6996 = vsel %vm6296, %v5882, %v6995
    %v6997 = vsel %vm6298, %v5883, %v6996
    %v6998 = vsel %vm6286, %v5889, %v5888
    %v6999 = vsel %vm6288, %v5890, %v6998
    %v7000 = vsel %vm6290, %v5891, %v6999
    %v7001 = vsel %vm6292, %v5892, %v7000
    %v7002 = vsel %vm6294, %v5893, %v7001
    %v7003 = vsel %vm6296, %v5894, %v7002
    %v7004 = vsel %vm6298, %v5895, %v7003
    %v7005 = vsel %vm6286, %v5901, %v5900
    %v7006 = vsel %vm6288, %v5902, %v7005
    %v7007 = vsel %vm6290, %v5903, %v7006
    %v7008 = vsel %vm6292, %v5904, %v7007
    %v7009 = vsel %vm6294, %v5905, %v7008
    %v7010 = vsel %vm6296, %v5906, %v7009
    %v7011 = vsel %vm6298, %v5907, %v7010
    %v7012 = vsel %vm6286, %v5913, %v5912
    %v7013 = vsel %vm6288, %v5914, %v7012
    %v7014 = vsel %vm6290, %v5915, %v7013
    %v7015 = vsel %vm6292, %v5916, %v7014
    %v7016 = vsel %vm6294, %v5917, %v7015
    %v7017 = vsel %vm6296, %v5918, %v7016
    %v7018 = vsel %vm6298, %v5919, %v7017
    %v7019 = vsel %vm6286, %v5925, %v5924
    %v7020 = vsel %vm6288, %v5926, %v7019
    %v7021 = vsel %vm6290, %v5927, %v7020
    %v7022 = vsel %vm6292, %v5928, %v7021
    %v7023 = vsel %vm6294, %v5929, %v7022
    %v7024 = vsel %vm6296, %v5930, %v7023
    %v7025 = vsel %vm6298, %v5931, %v7024
    %v7026 = vsel %vm6286, %v5985, %v5984
    %v7027 = vsel %vm6288, %v5986, %v7026
    %v7028 = vsel %vm6290, %v5987, %v7027
    %v7029 = vsel %vm6292, %v5988, %v7028
    %v7030 = vsel %vm6294, %v5989, %v7029
    %v7031 = vsel %vm6296, %v5990, %v7030
    %v7032 = vsel %vm6298, %v5991, %v7031
    %v7033 = vsel %vm6286, %v5997, %v5996
    %v7034 = vsel %vm6288, %v5998, %v7033
    %v7035 = vsel %vm6290, %v5999, %v7034
    %v7036 = vsel %vm6292, %v6000, %v7035
    %v7037 = vsel %vm6294, %v6001, %v7036
    %v7038 = vsel %vm6296, %v6002, %v7037
    %v7039 = vsel %vm6298, %v6003, %v7038
    %v7040 = vsel %vm6286, %v6009, %v6008
    %v7041 = vsel %vm6288, %v6010, %v7040
    %v7042 = vsel %vm6290, %v6011, %v7041
    %v7043 = vsel %vm6292, %v6012, %v7042
    %v7044 = vsel %vm6294, %v6013, %v7043
    %v7045 = vsel %vm6296, %v6014, %v7044
    %v7046 = vsel %vm6298, %v6015, %v7045
    %v7047 = vsel %vm6286, %v6021, %v6020
    %v7048 = vsel %vm6288, %v6022, %v7047
    %v7049 = vsel %vm6290, %v6023, %v7048
    %v7050 = vsel %vm6292, %v6024, %v7049
    %v7051 = vsel %vm6294, %v6025, %v7050
    %v7052 = vsel %vm6296, %v6026, %v7051
    %v7053 = vsel %vm6298, %v6027, %v7052
    %v7054 = vsel %vm6286, %v6033, %v6032
    %v7055 = vsel %vm6288, %v6034, %v7054
    %v7056 = vsel %vm6290, %v6035, %v7055
    %v7057 = vsel %vm6292, %v6036, %v7056
    %v7058 = vsel %vm6294, %v6037, %v7057
    %v7059 = vsel %vm6296, %v6038, %v7058
    %v7060 = vsel %vm6298, %v6039, %v7059
    %v7061 = vsel %vm6286, %v6045, %v6044
    %v7062 = vsel %vm6288, %v6046, %v7061
    %v7063 = vsel %vm6290, %v6047, %v7062
    %v7064 = vsel %vm6292, %v6048, %v7063
    %v7065 = vsel %vm6294, %v6049, %v7064
    %v7066 = vsel %vm6296, %v6050, %v7065
    %v7067 = vsel %vm6298, %v6051, %v7066
    %v7068 = vsel %vm6286, %v6057, %v6056
    %v7069 = vsel %vm6288, %v6058, %v7068
    %v7070 = vsel %vm6290, %v6059, %v7069
    %v7071 = vsel %vm6292, %v6060, %v7070
    %v7072 = vsel %vm6294, %v6061, %v7071
    %v7073 = vsel %vm6296, %v6062, %v7072
    %v7074 = vsel %vm6298, %v6063, %v7073
    %v7075 = vsel %vm6286, %v6069, %v6068
    %v7076 = vsel %vm6288, %v6070, %v7075
    %v7077 = vsel %vm6290, %v6071, %v7076
    %v7078 = vsel %vm6292, %v6072, %v7077
    %v7079 = vsel %vm6294, %v6073, %v7078
    %v7080 = vsel %vm6296, %v6074, %v7079
    %v7081 = vsel %vm6298, %v6075, %v7080
    %7098 = vmatpush.msra.mxu0 %v6953
    %7099 = vmatpush.msra.mxu0 %v6952
    %7100 = vmatpush.msra.mxu0 %v6951
    %7101 = vmatpush.msra.mxu0 %v6950
    %7102 = vmatpush.msra.mxu0 %v6949
    %7103 = vmatpush.msra.mxu0 %v6948
    %7104 = vmatpush.msra.mxu0 %v6947
    %7105 = vmatpush.msra.mxu0 %v6946
    %7106 = vmatpush.msra.mxu0 %v6945
    %7107 = vmatpush.msra.mxu0 %v6944
    %7108 = vmatpush.msra.mxu0 %v6943
    %7109 = vmatpush.msra.mxu0 %v6942
    %7110 = vmatpush.msra.mxu0 %v6941
    %7111 = vmatpush.msra.mxu0 %v6940
    %7112 = vmatpush.msra.mxu0 %v6939
    %7113 = vmatpush.msra.mxu0 %v6938
    %7114 = vmatmul.f32.gmra.mxu0 %v6976
    %v7115 = vpop.f32.mrf.mxu0
    %v7116 = vadd.f32 0.0, %v7115
    %7117 = vmatmul.f32.gmra.mxu0 %v6983
    %v7118 = vpop.f32.mrf.mxu0
    %v7119 = vadd.f32 0.0, %v7118
    %7120 = vmatmul.f32.gmra.mxu0 %v6990
    %v7121 = vpop.f32.mrf.mxu0
    %v7122 = vadd.f32 0.0, %v7121
    %7123 = vmatmul.f32.gmra.mxu0 %v6997
    %v7124 = vpop.f32.mrf.mxu0
    %v7125 = vadd.f32 0.0, %v7124
    %7126 = vmatmul.f32.gmra.mxu0 %v7004
    %v7127 = vpop.f32.mrf.mxu0
    %v7128 = vadd.f32 0.0, %v7127
    %7129 = vmatmul.f32.gmra.mxu0 %v7011
    %v7130 = vpop.f32.mrf.mxu0
    %v7131 = vadd.f32 0.0, %v7130
    %7132 = vmatmul.f32.gmra.mxu0 %v7018
    %v7133 = vpop.f32.mrf.mxu0
    %v7134 = vadd.f32 0.0, %v7133
    %7135 = vmatmul.f32.gmra.mxu0 %v7025
    %v7136 = vpop.f32.mrf.mxu0
    %v7137 = vadd.f32 0.0, %v7136
    %7138 = vmatmul.f32.gmra.mxu0 %v7032
    %v7139 = vpop.f32.mrf.mxu0
    %v7140 = vadd.f32 0.0, %v7139
    %7141 = vmatmul.f32.gmra.mxu0 %v7039
    %v7142 = vpop.f32.mrf.mxu0
    %v7143 = vadd.f32 0.0, %v7142
    %7144 = vmatmul.f32.gmra.mxu0 %v7046
    %v7145 = vpop.f32.mrf.mxu0
    %v7146 = vadd.f32 0.0, %v7145
    %7147 = vmatmul.f32.gmra.mxu0 %v7053
    %v7148 = vpop.f32.mrf.mxu0
    %v7149 = vadd.f32 0.0, %v7148
    %7150 = vmatmul.f32.gmra.mxu0 %v7060
    %v7151 = vpop.f32.mrf.mxu0
    %v7152 = vadd.f32 0.0, %v7151
    %7153 = vmatmul.f32.gmra.mxu0 %v7067
    %v7154 = vpop.f32.mrf.mxu0
    %v7155 = vadd.f32 0.0, %v7154
    %7156 = vmatmul.f32.gmra.mxu0 %v7074
    %v7157 = vpop.f32.mrf.mxu0
    %v7158 = vadd.f32 0.0, %v7157
    %7159 = vmatmul.f32.gmra.mxu0 %v7081
    %v7160 = vpop.f32.mrf.mxu0
    %v7161 = vadd.f32 0.0, %v7160
    %7162 = vdwg.mxu0
    %v7163 = vadd.f32 %v6921, %v7116
    %v7164 = vadd.f32 %v6922, %v7119
    %v7165 = vadd.f32 %v6923, %v7122
    %v7166 = vadd.f32 %v6924, %v7125
    %v7167 = vadd.f32 %v6925, %v7128
    %v7168 = vadd.f32 %v6926, %v7131
    %v7169 = vadd.f32 %v6927, %v7134
    %v7170 = vadd.f32 %v6928, %v7137
    %v7171 = vadd.f32 %v6929, %v7140
    %v7172 = vadd.f32 %v6930, %v7143
    %v7173 = vadd.f32 %v6931, %v7146
    %v7174 = vadd.f32 %v6932, %v7149
    %v7175 = vadd.f32 %v6933, %v7152
    %v7176 = vadd.f32 %v6934, %v7155
    %v7177 = vadd.f32 %v6935, %v7158
    %v7178 = vadd.f32 %v6936, %v7161
    %s7179 = scalar_lea.vmem %s3, 512
    %v7180 = vld [vmem:[%s7179] sm:$0xff]
    %v7181 = vld [vmem:[%s7179 + $0x8] sm:$0xff]
    %v7182 = vld [vmem:[%s7179 + $0x10] sm:$0xff]
    %v7183 = vld [vmem:[%s7179 + $0x18] sm:$0xff]
    %v7184 = vld [vmem:[%s7179 + $0x20] sm:$0xff]
    %v7185 = vld [vmem:[%s7179 + $0x28] sm:$0xff]
    %v7186 = vld [vmem:[%s7179 + $0x30] sm:$0xff]
    %v7187 = vld [vmem:[%s7179 + $0x38] sm:$0xff]
    %v7188 = vld [vmem:[%s7179 + $0x40] sm:$0xff]
    %v7189 = vld [vmem:[%s7179 + $0x48] sm:$0xff]
    %v7190 = vld [vmem:[%s7179 + $0x50] sm:$0xff]
    %v7191 = vld [vmem:[%s7179 + $0x58] sm:$0xff]
    %v7192 = vld [vmem:[%s7179 + $0x60] sm:$0xff]
    %v7193 = vld [vmem:[%s7179 + $0x68] sm:$0xff]
    %v7194 = vld [vmem:[%s7179 + $0x70] sm:$0xff]
    %v7195 = vld [vmem:[%s7179 + $0x78] sm:$0xff]
    %v7212 = vsel %vm6286, %v5842, %v5841
    %v7213 = vsel %vm6288, %v5843, %v7212
    %v7214 = vsel %vm6290, %v5844, %v7213
    %v7215 = vsel %vm6292, %v5845, %v7214
    %v7216 = vsel %vm6294, %v5846, %v7215
    %v7217 = vsel %vm6296, %v5847, %v7216
    %v7218 = vsel %vm6298, %v5848, %v7217
    %v7219 = vsel %vm6286, %v5854, %v5853
    %v7220 = vsel %vm6288, %v5855, %v7219
    %v7221 = vsel %vm6290, %v5856, %v7220
    %v7222 = vsel %vm6292, %v5857, %v7221
    %v7223 = vsel %vm6294, %v5858, %v7222
    %v7224 = vsel %vm6296, %v5859, %v7223
    %v7225 = vsel %vm6298, %v5860, %v7224
    %v7226 = vsel %vm6286, %v5866, %v5865
    %v7227 = vsel %vm6288, %v5867, %v7226
    %v7228 = vsel %vm6290, %v5868, %v7227
    %v7229 = vsel %vm6292, %v5869, %v7228
    %v7230 = vsel %vm6294, %v5870, %v7229
    %v7231 = vsel %vm6296, %v5871, %v7230
    %v7232 = vsel %vm6298, %v5872, %v7231
    %v7233 = vsel %vm6286, %v5878, %v5877
    %v7234 = vsel %vm6288, %v5879, %v7233
    %v7235 = vsel %vm6290, %v5880, %v7234
    %v7236 = vsel %vm6292, %v5881, %v7235
    %v7237 = vsel %vm6294, %v5882, %v7236
    %v7238 = vsel %vm6296, %v5883, %v7237
    %v7239 = vsel %vm6298, %v5884, %v7238
    %v7240 = vsel %vm6286, %v5890, %v5889
    %v7241 = vsel %vm6288, %v5891, %v7240
    %v7242 = vsel %vm6290, %v5892, %v7241
    %v7243 = vsel %vm6292, %v5893, %v7242
    %v7244 = vsel %vm6294, %v5894, %v7243
    %v7245 = vsel %vm6296, %v5895, %v7244
    %v7246 = vsel %vm6298, %v5896, %v7245
    %v7247 = vsel %vm6286, %v5902, %v5901
    %v7248 = vsel %vm6288, %v5903, %v7247
    %v7249 = vsel %vm6290, %v5904, %v7248
    %v7250 = vsel %vm6292, %v5905, %v7249
    %v7251 = vsel %vm6294, %v5906, %v7250
    %v7252 = vsel %vm6296, %v5907, %v7251
    %v7253 = vsel %vm6298, %v5908, %v7252
    %v7254 = vsel %vm6286, %v5914, %v5913
    %v7255 = vsel %vm6288, %v5915, %v7254
    %v7256 = vsel %vm6290, %v5916, %v7255
    %v7257 = vsel %vm6292, %v5917, %v7256
    %v7258 = vsel %vm6294, %v5918, %v7257
    %v7259 = vsel %vm6296, %v5919, %v7258
    %v7260 = vsel %vm6298, %v5920, %v7259
    %v7261 = vsel %vm6286, %v5926, %v5925
    %v7262 = vsel %vm6288, %v5927, %v7261
    %v7263 = vsel %vm6290, %v5928, %v7262
    %v7264 = vsel %vm6292, %v5929, %v7263
    %v7265 = vsel %vm6294, %v5930, %v7264
    %v7266 = vsel %vm6296, %v5931, %v7265
    %v7267 = vsel %vm6298, %v5932, %v7266
    %v7268 = vsel %vm6286, %v5986, %v5985
    %v7269 = vsel %vm6288, %v5987, %v7268
    %v7270 = vsel %vm6290, %v5988, %v7269
    %v7271 = vsel %vm6292, %v5989, %v7270
    %v7272 = vsel %vm6294, %v5990, %v7271
    %v7273 = vsel %vm6296, %v5991, %v7272
    %v7274 = vsel %vm6298, %v5992, %v7273
    %v7275 = vsel %vm6286, %v5998, %v5997
    %v7276 = vsel %vm6288, %v5999, %v7275
    %v7277 = vsel %vm6290, %v6000, %v7276
    %v7278 = vsel %vm6292, %v6001, %v7277
    %v7279 = vsel %vm6294, %v6002, %v7278
    %v7280 = vsel %vm6296, %v6003, %v7279
    %v7281 = vsel %vm6298, %v6004, %v7280
    %v7282 = vsel %vm6286, %v6010, %v6009
    %v7283 = vsel %vm6288, %v6011, %v7282
    %v7284 = vsel %vm6290, %v6012, %v7283
    %v7285 = vsel %vm6292, %v6013, %v7284
    %v7286 = vsel %vm6294, %v6014, %v7285
    %v7287 = vsel %vm6296, %v6015, %v7286
    %v7288 = vsel %vm6298, %v6016, %v7287
    %v7289 = vsel %vm6286, %v6022, %v6021
    %v7290 = vsel %vm6288, %v6023, %v7289
    %v7291 = vsel %vm6290, %v6024, %v7290
    %v7292 = vsel %vm6292, %v6025, %v7291
    %v7293 = vsel %vm6294, %v6026, %v7292
    %v7294 = vsel %vm6296, %v6027, %v7293
    %v7295 = vsel %vm6298, %v6028, %v7294
    %v7296 = vsel %vm6286, %v6034, %v6033
    %v7297 = vsel %vm6288, %v6035, %v7296
    %v7298 = vsel %vm6290, %v6036, %v7297
    %v7299 = vsel %vm6292, %v6037, %v7298
    %v7300 = vsel %vm6294, %v6038, %v7299
    %v7301 = vsel %vm6296, %v6039, %v7300
    %v7302 = vsel %vm6298, %v6040, %v7301
    %v7303 = vsel %vm6286, %v6046, %v6045
    %v7304 = vsel %vm6288, %v6047, %v7303
    %v7305 = vsel %vm6290, %v6048, %v7304
    %v7306 = vsel %vm6292, %v6049, %v7305
    %v7307 = vsel %vm6294, %v6050, %v7306
    %v7308 = vsel %vm6296, %v6051, %v7307
    %v7309 = vsel %vm6298, %v6052, %v7308
    %v7310 = vsel %vm6286, %v6058, %v6057
    %v7311 = vsel %vm6288, %v6059, %v7310
    %v7312 = vsel %vm6290, %v6060, %v7311
    %v7313 = vsel %vm6292, %v6061, %v7312
    %v7314 = vsel %vm6294, %v6062, %v7313
    %v7315 = vsel %vm6296, %v6063, %v7314
    %v7316 = vsel %vm6298, %v6064, %v7315
    %v7317 = vsel %vm6286, %v6070, %v6069
    %v7318 = vsel %vm6288, %v6071, %v7317
    %v7319 = vsel %vm6290, %v6072, %v7318
    %v7320 = vsel %vm6292, %v6073, %v7319
    %v7321 = vsel %vm6294, %v6074, %v7320
    %v7322 = vsel %vm6296, %v6075, %v7321
    %v7323 = vsel %vm6298, %v6076, %v7322
    %7340 = vmatpush.msra.mxu0 %v7195
    %7341 = vmatpush.msra.mxu0 %v7194
    %7342 = vmatpush.msra.mxu0 %v7193
    %7343 = vmatpush.msra.mxu0 %v7192
    %7344 = vmatpush.msra.mxu0 %v7191
    %7345 = vmatpush.msra.mxu0 %v7190
    %7346 = vmatpush.msra.mxu0 %v7189
    %7347 = vmatpush.msra.mxu0 %v7188
    %7348 = vmatpush.msra.mxu0 %v7187
    %7349 = vmatpush.msra.mxu0 %v7186
    %7350 = vmatpush.msra.mxu0 %v7185
    %7351 = vmatpush.msra.mxu0 %v7184
    %7352 = vmatpush.msra.mxu0 %v7183
    %7353 = vmatpush.msra.mxu0 %v7182
    %7354 = vmatpush.msra.mxu0 %v7181
    %7355 = vmatpush.msra.mxu0 %v7180
    %7356 = vmatmul.f32.gmra.mxu0 %v7218
    %v7357 = vpop.f32.mrf.mxu0
    %v7358 = vadd.f32 0.0, %v7357
    %7359 = vmatmul.f32.gmra.mxu0 %v7225
    %v7360 = vpop.f32.mrf.mxu0
    %v7361 = vadd.f32 0.0, %v7360
    %7362 = vmatmul.f32.gmra.mxu0 %v7232
    %v7363 = vpop.f32.mrf.mxu0
    %v7364 = vadd.f32 0.0, %v7363
    %7365 = vmatmul.f32.gmra.mxu0 %v7239
    %v7366 = vpop.f32.mrf.mxu0
    %v7367 = vadd.f32 0.0, %v7366
    %7368 = vmatmul.f32.gmra.mxu0 %v7246
    %v7369 = vpop.f32.mrf.mxu0
    %v7370 = vadd.f32 0.0, %v7369
    %7371 = vmatmul.f32.gmra.mxu0 %v7253
    %v7372 = vpop.f32.mrf.mxu0
    %v7373 = vadd.f32 0.0, %v7372
    %7374 = vmatmul.f32.gmra.mxu0 %v7260
    %v7375 = vpop.f32.mrf.mxu0
    %v7376 = vadd.f32 0.0, %v7375
    %7377 = vmatmul.f32.gmra.mxu0 %v7267
    %v7378 = vpop.f32.mrf.mxu0
    %v7379 = vadd.f32 0.0, %v7378
    %7380 = vmatmul.f32.gmra.mxu0 %v7274
    %v7381 = vpop.f32.mrf.mxu0
    %v7382 = vadd.f32 0.0, %v7381
    %7383 = vmatmul.f32.gmra.mxu0 %v7281
    %v7384 = vpop.f32.mrf.mxu0
    %v7385 = vadd.f32 0.0, %v7384
    %7386 = vmatmul.f32.gmra.mxu0 %v7288
    %v7387 = vpop.f32.mrf.mxu0
    %v7388 = vadd.f32 0.0, %v7387
    %7389 = vmatmul.f32.gmra.mxu0 %v7295
    %v7390 = vpop.f32.mrf.mxu0
    %v7391 = vadd.f32 0.0, %v7390
    %7392 = vmatmul.f32.gmra.mxu0 %v7302
    %v7393 = vpop.f32.mrf.mxu0
    %v7394 = vadd.f32 0.0, %v7393
    %7395 = vmatmul.f32.gmra.mxu0 %v7309
    %v7396 = vpop.f32.mrf.mxu0
    %v7397 = vadd.f32 0.0, %v7396
    %7398 = vmatmul.f32.gmra.mxu0 %v7316
    %v7399 = vpop.f32.mrf.mxu0
    %v7400 = vadd.f32 0.0, %v7399
    %7401 = vmatmul.f32.gmra.mxu0 %v7323
    %v7402 = vpop.f32.mrf.mxu0
    %v7403 = vadd.f32 0.0, %v7402
    %7404 = vdwg.mxu0
    %v7405 = vadd.f32 %v7163, %v7358
    %v7406 = vadd.f32 %v7164, %v7361
    %v7407 = vadd.f32 %v7165, %v7364
    %v7408 = vadd.f32 %v7166, %v7367
    %v7409 = vadd.f32 %v7167, %v7370
    %v7410 = vadd.f32 %v7168, %v7373
    %v7411 = vadd.f32 %v7169, %v7376
    %v7412 = vadd.f32 %v7170, %v7379
    %v7413 = vadd.f32 %v7171, %v7382
    %v7414 = vadd.f32 %v7172, %v7385
    %v7415 = vadd.f32 %v7173, %v7388
    %v7416 = vadd.f32 %v7174, %v7391
    %v7417 = vadd.f32 %v7175, %v7394
    %v7418 = vadd.f32 %v7176, %v7397
    %v7419 = vadd.f32 %v7177, %v7400
    %v7420 = vadd.f32 %v7178, %v7403
    %s7421 = scalar_lea.vmem %s3, 640
    %v7422 = vld [vmem:[%s7421] sm:$0xff]
    %v7423 = vld [vmem:[%s7421 + $0x8] sm:$0xff]
    %v7424 = vld [vmem:[%s7421 + $0x10] sm:$0xff]
    %v7425 = vld [vmem:[%s7421 + $0x18] sm:$0xff]
    %v7426 = vld [vmem:[%s7421 + $0x20] sm:$0xff]
    %v7427 = vld [vmem:[%s7421 + $0x28] sm:$0xff]
    %v7428 = vld [vmem:[%s7421 + $0x30] sm:$0xff]
    %v7429 = vld [vmem:[%s7421 + $0x38] sm:$0xff]
    %v7430 = vld [vmem:[%s7421 + $0x40] sm:$0xff]
    %v7431 = vld [vmem:[%s7421 + $0x48] sm:$0xff]
    %v7432 = vld [vmem:[%s7421 + $0x50] sm:$0xff]
    %v7433 = vld [vmem:[%s7421 + $0x58] sm:$0xff]
    %v7434 = vld [vmem:[%s7421 + $0x60] sm:$0xff]
    %v7435 = vld [vmem:[%s7421 + $0x68] sm:$0xff]
    %v7436 = vld [vmem:[%s7421 + $0x70] sm:$0xff]
    %v7437 = vld [vmem:[%s7421 + $0x78] sm:$0xff]
    %v7454 = vsel %vm6286, %v5934, %v5933
    %v7455 = vsel %vm6288, %v5935, %v7454
    %v7456 = vsel %vm6290, %v5936, %v7455
    %v7457 = vsel %vm6292, %v5937, %v7456
    %v7458 = vsel %vm6294, %v5938, %v7457
    %v7459 = vsel %vm6296, %v5939, %v7458
    %v7460 = vsel %vm6298, %v5940, %v7459
    %v7461 = vsel %vm6286, %v6078, %v6077
    %v7462 = vsel %vm6288, %v6079, %v7461
    %v7463 = vsel %vm6290, %v6080, %v7462
    %v7464 = vsel %vm6292, %v6081, %v7463
    %v7465 = vsel %vm6294, %v6082, %v7464
    %v7466 = vsel %vm6296, %v6083, %v7465
    %v7467 = vsel %vm6298, %v6084, %v7466
    %7470 = vmatpush.msra.mxu0 %v7437
    %7471 = vmatpush.msra.mxu0 %v7436
    %7472 = vmatpush.msra.mxu0 %v7435
    %7473 = vmatpush.msra.mxu0 %v7434
    %7474 = vmatpush.msra.mxu0 %v7433
    %7475 = vmatpush.msra.mxu0 %v7432
    %7476 = vmatpush.msra.mxu0 %v7431
    %7477 = vmatpush.msra.mxu0 %v7430
    %7478 = vmatpush.msra.mxu0 %v7429
    %7479 = vmatpush.msra.mxu0 %v7428
    %7480 = vmatpush.msra.mxu0 %v7427
    %7481 = vmatpush.msra.mxu0 %v7426
    %7482 = vmatpush.msra.mxu0 %v7425
    %7483 = vmatpush.msra.mxu0 %v7424
    %7484 = vmatpush.msra.mxu0 %v7423
    %7485 = vmatpush.msra.mxu0 %v7422
    %7486 = vmatmul.f32.gmra.mxu0 %v6515
    %v7487 = vpop.f32.mrf.mxu0
    %v7488 = vadd.f32 0.0, %v7487
    %7489 = vmatmul.f32.gmra.mxu0 %v6522
    %v7490 = vpop.f32.mrf.mxu0
    %v7491 = vadd.f32 0.0, %v7490
    %7492 = vmatmul.f32.gmra.mxu0 %v6529
    %v7493 = vpop.f32.mrf.mxu0
    %v7494 = vadd.f32 0.0, %v7493
    %7495 = vmatmul.f32.gmra.mxu0 %v6536
    %v7496 = vpop.f32.mrf.mxu0
    %v7497 = vadd.f32 0.0, %v7496
    %7498 = vmatmul.f32.gmra.mxu0 %v6543
    %v7499 = vpop.f32.mrf.mxu0
    %v7500 = vadd.f32 0.0, %v7499
    %7501 = vmatmul.f32.gmra.mxu0 %v6550
    %v7502 = vpop.f32.mrf.mxu0
    %v7503 = vadd.f32 0.0, %v7502
    %7504 = vmatmul.f32.gmra.mxu0 %v6557
    %v7505 = vpop.f32.mrf.mxu0
    %v7506 = vadd.f32 0.0, %v7505
    %7507 = vmatmul.f32.gmra.mxu0 %v7460
    %v7508 = vpop.f32.mrf.mxu0
    %v7509 = vadd.f32 0.0, %v7508
    %7510 = vmatmul.f32.gmra.mxu0 %v6571
    %v7511 = vpop.f32.mrf.mxu0
    %v7512 = vadd.f32 0.0, %v7511
    %7513 = vmatmul.f32.gmra.mxu0 %v6578
    %v7514 = vpop.f32.mrf.mxu0
    %v7515 = vadd.f32 0.0, %v7514
    %7516 = vmatmul.f32.gmra.mxu0 %v6585
    %v7517 = vpop.f32.mrf.mxu0
    %v7518 = vadd.f32 0.0, %v7517
    %7519 = vmatmul.f32.gmra.mxu0 %v6592
    %v7520 = vpop.f32.mrf.mxu0
    %v7521 = vadd.f32 0.0, %v7520
    %7522 = vmatmul.f32.gmra.mxu0 %v6599
    %v7523 = vpop.f32.mrf.mxu0
    %v7524 = vadd.f32 0.0, %v7523
    %7525 = vmatmul.f32.gmra.mxu0 %v6606
    %v7526 = vpop.f32.mrf.mxu0
    %v7527 = vadd.f32 0.0, %v7526
    %7528 = vmatmul.f32.gmra.mxu0 %v6613
    %v7529 = vpop.f32.mrf.mxu0
    %v7530 = vadd.f32 0.0, %v7529
    %7531 = vmatmul.f32.gmra.mxu0 %v7467
    %v7532 = vpop.f32.mrf.mxu0
    %v7533 = vadd.f32 0.0, %v7532
    %7534 = vdwg.mxu0
    %v7535 = vadd.f32 %v7405, %v7488
    %v7536 = vadd.f32 %v7406, %v7491
    %v7537 = vadd.f32 %v7407, %v7494
    %v7538 = vadd.f32 %v7408, %v7497
    %v7539 = vadd.f32 %v7409, %v7500
    %v7540 = vadd.f32 %v7410, %v7503
    %v7541 = vadd.f32 %v7411, %v7506
    %v7542 = vadd.f32 %v7412, %v7509
    %v7543 = vadd.f32 %v7413, %v7512
    %v7544 = vadd.f32 %v7414, %v7515
    %v7545 = vadd.f32 %v7415, %v7518
    %v7546 = vadd.f32 %v7416, %v7521
    %v7547 = vadd.f32 %v7417, %v7524
    %v7548 = vadd.f32 %v7418, %v7527
    %v7549 = vadd.f32 %v7419, %v7530
    %v7550 = vadd.f32 %v7420, %v7533
    %s7551 = scalar_lea.vmem %s3, 768
    %v7552 = vld [vmem:[%s7551] sm:$0xff]
    %v7553 = vld [vmem:[%s7551 + $0x8] sm:$0xff]
    %v7554 = vld [vmem:[%s7551 + $0x10] sm:$0xff]
    %v7555 = vld [vmem:[%s7551 + $0x18] sm:$0xff]
    %v7556 = vld [vmem:[%s7551 + $0x20] sm:$0xff]
    %v7557 = vld [vmem:[%s7551 + $0x28] sm:$0xff]
    %v7558 = vld [vmem:[%s7551 + $0x30] sm:$0xff]
    %v7559 = vld [vmem:[%s7551 + $0x38] sm:$0xff]
    %v7560 = vld [vmem:[%s7551 + $0x40] sm:$0xff]
    %v7561 = vld [vmem:[%s7551 + $0x48] sm:$0xff]
    %v7562 = vld [vmem:[%s7551 + $0x50] sm:$0xff]
    %v7563 = vld [vmem:[%s7551 + $0x58] sm:$0xff]
    %v7564 = vld [vmem:[%s7551 + $0x60] sm:$0xff]
    %v7565 = vld [vmem:[%s7551 + $0x68] sm:$0xff]
    %v7566 = vld [vmem:[%s7551 + $0x70] sm:$0xff]
    %v7567 = vld [vmem:[%s7551 + $0x78] sm:$0xff]
    %v7570 = vsel %vm6286, %v5935, %v5934
    %v7571 = vsel %vm6288, %v5936, %v7570
    %v7572 = vsel %vm6290, %v5937, %v7571
    %v7573 = vsel %vm6292, %v5938, %v7572
    %v7574 = vsel %vm6294, %v5939, %v7573
    %v7575 = vsel %vm6296, %v5940, %v7574
    %v7576 = vsel %vm6298, %v5941, %v7575
    %v7577 = vsel %vm6286, %v6079, %v6078
    %v7578 = vsel %vm6288, %v6080, %v7577
    %v7579 = vsel %vm6290, %v6081, %v7578
    %v7580 = vsel %vm6292, %v6082, %v7579
    %v7581 = vsel %vm6294, %v6083, %v7580
    %v7582 = vsel %vm6296, %v6084, %v7581
    %v7583 = vsel %vm6298, %v6085, %v7582
    %7586 = vmatpush.msra.mxu0 %v7567
    %7587 = vmatpush.msra.mxu0 %v7566
    %7588 = vmatpush.msra.mxu0 %v7565
    %7589 = vmatpush.msra.mxu0 %v7564
    %7590 = vmatpush.msra.mxu0 %v7563
    %7591 = vmatpush.msra.mxu0 %v7562
    %7592 = vmatpush.msra.mxu0 %v7561
    %7593 = vmatpush.msra.mxu0 %v7560
    %7594 = vmatpush.msra.mxu0 %v7559
    %7595 = vmatpush.msra.mxu0 %v7558
    %7596 = vmatpush.msra.mxu0 %v7557
    %7597 = vmatpush.msra.mxu0 %v7556
    %7598 = vmatpush.msra.mxu0 %v7555
    %7599 = vmatpush.msra.mxu0 %v7554
    %7600 = vmatpush.msra.mxu0 %v7553
    %7601 = vmatpush.msra.mxu0 %v7552
    %7602 = vmatmul.f32.gmra.mxu0 %v6306
    %v7603 = vpop.f32.mrf.mxu0
    %v7604 = vadd.f32 0.0, %v7603
    %7605 = vmatmul.f32.gmra.mxu0 %v6313
    %v7606 = vpop.f32.mrf.mxu0
    %v7607 = vadd.f32 0.0, %v7606
    %7608 = vmatmul.f32.gmra.mxu0 %v6320
    %v7609 = vpop.f32.mrf.mxu0
    %v7610 = vadd.f32 0.0, %v7609
    %7611 = vmatmul.f32.gmra.mxu0 %v6327
    %v7612 = vpop.f32.mrf.mxu0
    %v7613 = vadd.f32 0.0, %v7612
    %7614 = vmatmul.f32.gmra.mxu0 %v6334
    %v7615 = vpop.f32.mrf.mxu0
    %v7616 = vadd.f32 0.0, %v7615
    %7617 = vmatmul.f32.gmra.mxu0 %v6341
    %v7618 = vpop.f32.mrf.mxu0
    %v7619 = vadd.f32 0.0, %v7618
    %7620 = vmatmul.f32.gmra.mxu0 %v6348
    %v7621 = vpop.f32.mrf.mxu0
    %v7622 = vadd.f32 0.0, %v7621
    %7623 = vmatmul.f32.gmra.mxu0 %v7576
    %v7624 = vpop.f32.mrf.mxu0
    %v7625 = vadd.f32 0.0, %v7624
    %7626 = vmatmul.f32.gmra.mxu0 %v6362
    %v7627 = vpop.f32.mrf.mxu0
    %v7628 = vadd.f32 0.0, %v7627
    %7629 = vmatmul.f32.gmra.mxu0 %v6369
    %v7630 = vpop.f32.mrf.mxu0
    %v7631 = vadd.f32 0.0, %v7630
    %7632 = vmatmul.f32.gmra.mxu0 %v6376
    %v7633 = vpop.f32.mrf.mxu0
    %v7634 = vadd.f32 0.0, %v7633
    %7635 = vmatmul.f32.gmra.mxu0 %v6383
    %v7636 = vpop.f32.mrf.mxu0
    %v7637 = vadd.f32 0.0, %v7636
    %7638 = vmatmul.f32.gmra.mxu0 %v6390
    %v7639 = vpop.f32.mrf.mxu0
    %v7640 = vadd.f32 0.0, %v7639
    %7641 = vmatmul.f32.gmra.mxu0 %v6397
    %v7642 = vpop.f32.mrf.mxu0
    %v7643 = vadd.f32 0.0, %v7642
    %7644 = vmatmul.f32.gmra.mxu0 %v6404
    %v7645 = vpop.f32.mrf.mxu0
    %v7646 = vadd.f32 0.0, %v7645
    %7647 = vmatmul.f32.gmra.mxu0 %v7583
    %v7648 = vpop.f32.mrf.mxu0
    %v7649 = vadd.f32 0.0, %v7648
    %7650 = vdwg.mxu0
    %v7651 = vadd.f32 %v7535, %v7604
    %v7652 = vadd.f32 %v7536, %v7607
    %v7653 = vadd.f32 %v7537, %v7610
    %v7654 = vadd.f32 %v7538, %v7613
    %v7655 = vadd.f32 %v7539, %v7616
    %v7656 = vadd.f32 %v7540, %v7619
    %v7657 = vadd.f32 %v7541, %v7622
    %v7658 = vadd.f32 %v7542, %v7625
    %v7659 = vadd.f32 %v7543, %v7628
    %v7660 = vadd.f32 %v7544, %v7631
    %v7661 = vadd.f32 %v7545, %v7634
    %v7662 = vadd.f32 %v7546, %v7637
    %v7663 = vadd.f32 %v7547, %v7640
    %v7664 = vadd.f32 %v7548, %v7643
    %v7665 = vadd.f32 %v7549, %v7646
    %v7666 = vadd.f32 %v7550, %v7649
    %s7667 = scalar_lea.vmem %s3, 896
    %v7668 = vld [vmem:[%s7667] sm:$0xff]
    %v7669 = vld [vmem:[%s7667 + $0x8] sm:$0xff]
    %v7670 = vld [vmem:[%s7667 + $0x10] sm:$0xff]
    %v7671 = vld [vmem:[%s7667 + $0x18] sm:$0xff]
    %v7672 = vld [vmem:[%s7667 + $0x20] sm:$0xff]
    %v7673 = vld [vmem:[%s7667 + $0x28] sm:$0xff]
    %v7674 = vld [vmem:[%s7667 + $0x30] sm:$0xff]
    %v7675 = vld [vmem:[%s7667 + $0x38] sm:$0xff]
    %v7676 = vld [vmem:[%s7667 + $0x40] sm:$0xff]
    %v7677 = vld [vmem:[%s7667 + $0x48] sm:$0xff]
    %v7678 = vld [vmem:[%s7667 + $0x50] sm:$0xff]
    %v7679 = vld [vmem:[%s7667 + $0x58] sm:$0xff]
    %v7680 = vld [vmem:[%s7667 + $0x60] sm:$0xff]
    %v7681 = vld [vmem:[%s7667 + $0x68] sm:$0xff]
    %v7682 = vld [vmem:[%s7667 + $0x70] sm:$0xff]
    %v7683 = vld [vmem:[%s7667 + $0x78] sm:$0xff]
    %v7686 = vsel %vm6286, %v5936, %v5935
    %v7687 = vsel %vm6288, %v5937, %v7686
    %v7688 = vsel %vm6290, %v5938, %v7687
    %v7689 = vsel %vm6292, %v5939, %v7688
    %v7690 = vsel %vm6294, %v5940, %v7689
    %v7691 = vsel %vm6296, %v5941, %v7690
    %v7692 = vsel %vm6298, %v5942, %v7691
    %v7693 = vsel %vm6286, %v6080, %v6079
    %v7694 = vsel %vm6288, %v6081, %v7693
    %v7695 = vsel %vm6290, %v6082, %v7694
    %v7696 = vsel %vm6292, %v6083, %v7695
    %v7697 = vsel %vm6294, %v6084, %v7696
    %v7698 = vsel %vm6296, %v6085, %v7697
    %v7699 = vsel %vm6298, %v6086, %v7698
    %7702 = vmatpush.msra.mxu0 %v7683
    %7703 = vmatpush.msra.mxu0 %v7682
    %7704 = vmatpush.msra.mxu0 %v7681
    %7705 = vmatpush.msra.mxu0 %v7680
    %7706 = vmatpush.msra.mxu0 %v7679
    %7707 = vmatpush.msra.mxu0 %v7678
    %7708 = vmatpush.msra.mxu0 %v7677
    %7709 = vmatpush.msra.mxu0 %v7676
    %7710 = vmatpush.msra.mxu0 %v7675
    %7711 = vmatpush.msra.mxu0 %v7674
    %7712 = vmatpush.msra.mxu0 %v7673
    %7713 = vmatpush.msra.mxu0 %v7672
    %7714 = vmatpush.msra.mxu0 %v7671
    %7715 = vmatpush.msra.mxu0 %v7670
    %7716 = vmatpush.msra.mxu0 %v7669
    %7717 = vmatpush.msra.mxu0 %v7668
    %7718 = vmatmul.f32.gmra.mxu0 %v6741
    %v7719 = vpop.f32.mrf.mxu0
    %v7720 = vadd.f32 0.0, %v7719
    %7721 = vmatmul.f32.gmra.mxu0 %v6748
    %v7722 = vpop.f32.mrf.mxu0
    %v7723 = vadd.f32 0.0, %v7722
    %7724 = vmatmul.f32.gmra.mxu0 %v6755
    %v7725 = vpop.f32.mrf.mxu0
    %v7726 = vadd.f32 0.0, %v7725
    %7727 = vmatmul.f32.gmra.mxu0 %v6762
    %v7728 = vpop.f32.mrf.mxu0
    %v7729 = vadd.f32 0.0, %v7728
    %7730 = vmatmul.f32.gmra.mxu0 %v6769
    %v7731 = vpop.f32.mrf.mxu0
    %v7732 = vadd.f32 0.0, %v7731
    %7733 = vmatmul.f32.gmra.mxu0 %v6776
    %v7734 = vpop.f32.mrf.mxu0
    %v7735 = vadd.f32 0.0, %v7734
    %7736 = vmatmul.f32.gmra.mxu0 %v6783
    %v7737 = vpop.f32.mrf.mxu0
    %v7738 = vadd.f32 0.0, %v7737
    %7739 = vmatmul.f32.gmra.mxu0 %v7692
    %v7740 = vpop.f32.mrf.mxu0
    %v7741 = vadd.f32 0.0, %v7740
    %7742 = vmatmul.f32.gmra.mxu0 %v6797
    %v7743 = vpop.f32.mrf.mxu0
    %v7744 = vadd.f32 0.0, %v7743
    %7745 = vmatmul.f32.gmra.mxu0 %v6804
    %v7746 = vpop.f32.mrf.mxu0
    %v7747 = vadd.f32 0.0, %v7746
    %7748 = vmatmul.f32.gmra.mxu0 %v6811
    %v7749 = vpop.f32.mrf.mxu0
    %v7750 = vadd.f32 0.0, %v7749
    %7751 = vmatmul.f32.gmra.mxu0 %v6818
    %v7752 = vpop.f32.mrf.mxu0
    %v7753 = vadd.f32 0.0, %v7752
    %7754 = vmatmul.f32.gmra.mxu0 %v6825
    %v7755 = vpop.f32.mrf.mxu0
    %v7756 = vadd.f32 0.0, %v7755
    %7757 = vmatmul.f32.gmra.mxu0 %v6832
    %v7758 = vpop.f32.mrf.mxu0
    %v7759 = vadd.f32 0.0, %v7758
    %7760 = vmatmul.f32.gmra.mxu0 %v6839
    %v7761 = vpop.f32.mrf.mxu0
    %v7762 = vadd.f32 0.0, %v7761
    %7763 = vmatmul.f32.gmra.mxu0 %v7699
    %v7764 = vpop.f32.mrf.mxu0
    %v7765 = vadd.f32 0.0, %v7764
    %7766 = vdwg.mxu0
    %v7767 = vadd.f32 %v7651, %v7720
    %v7768 = vadd.f32 %v7652, %v7723
    %v7769 = vadd.f32 %v7653, %v7726
    %v7770 = vadd.f32 %v7654, %v7729
    %v7771 = vadd.f32 %v7655, %v7732
    %v7772 = vadd.f32 %v7656, %v7735
    %v7773 = vadd.f32 %v7657, %v7738
    %v7774 = vadd.f32 %v7658, %v7741
    %v7775 = vadd.f32 %v7659, %v7744
    %v7776 = vadd.f32 %v7660, %v7747
    %v7777 = vadd.f32 %v7661, %v7750
    %v7778 = vadd.f32 %v7662, %v7753
    %v7779 = vadd.f32 %v7663, %v7756
    %v7780 = vadd.f32 %v7664, %v7759
    %v7781 = vadd.f32 %v7665, %v7762
    %v7782 = vadd.f32 %v7666, %v7765
    %s7783 = scalar_lea.vmem %s3, 1024
    %v7784 = vld [vmem:[%s7783] sm:$0xff]
    %v7785 = vld [vmem:[%s7783 + $0x8] sm:$0xff]
    %v7786 = vld [vmem:[%s7783 + $0x10] sm:$0xff]
    %v7787 = vld [vmem:[%s7783 + $0x18] sm:$0xff]
    %v7788 = vld [vmem:[%s7783 + $0x20] sm:$0xff]
    %v7789 = vld [vmem:[%s7783 + $0x28] sm:$0xff]
    %v7790 = vld [vmem:[%s7783 + $0x30] sm:$0xff]
    %v7791 = vld [vmem:[%s7783 + $0x38] sm:$0xff]
    %v7792 = vld [vmem:[%s7783 + $0x40] sm:$0xff]
    %v7793 = vld [vmem:[%s7783 + $0x48] sm:$0xff]
    %v7794 = vld [vmem:[%s7783 + $0x50] sm:$0xff]
    %v7795 = vld [vmem:[%s7783 + $0x58] sm:$0xff]
    %v7796 = vld [vmem:[%s7783 + $0x60] sm:$0xff]
    %v7797 = vld [vmem:[%s7783 + $0x68] sm:$0xff]
    %v7798 = vld [vmem:[%s7783 + $0x70] sm:$0xff]
    %v7799 = vld [vmem:[%s7783 + $0x78] sm:$0xff]
    %v7802 = vsel %vm6286, %v5937, %v5936
    %v7803 = vsel %vm6288, %v5938, %v7802
    %v7804 = vsel %vm6290, %v5939, %v7803
    %v7805 = vsel %vm6292, %v5940, %v7804
    %v7806 = vsel %vm6294, %v5941, %v7805
    %v7807 = vsel %vm6296, %v5942, %v7806
    %v7808 = vsel %vm6298, %v5943, %v7807
    %v7809 = vsel %vm6286, %v6081, %v6080
    %v7810 = vsel %vm6288, %v6082, %v7809
    %v7811 = vsel %vm6290, %v6083, %v7810
    %v7812 = vsel %vm6292, %v6084, %v7811
    %v7813 = vsel %vm6294, %v6085, %v7812
    %v7814 = vsel %vm6296, %v6086, %v7813
    %v7815 = vsel %vm6298, %v6087, %v7814
    %7818 = vmatpush.msra.mxu0 %v7799
    %7819 = vmatpush.msra.mxu0 %v7798
    %7820 = vmatpush.msra.mxu0 %v7797
    %7821 = vmatpush.msra.mxu0 %v7796
    %7822 = vmatpush.msra.mxu0 %v7795
    %7823 = vmatpush.msra.mxu0 %v7794
    %7824 = vmatpush.msra.mxu0 %v7793
    %7825 = vmatpush.msra.mxu0 %v7792
    %7826 = vmatpush.msra.mxu0 %v7791
    %7827 = vmatpush.msra.mxu0 %v7790
    %7828 = vmatpush.msra.mxu0 %v7789
    %7829 = vmatpush.msra.mxu0 %v7788
    %7830 = vmatpush.msra.mxu0 %v7787
    %7831 = vmatpush.msra.mxu0 %v7786
    %7832 = vmatpush.msra.mxu0 %v7785
    %7833 = vmatpush.msra.mxu0 %v7784
    %7834 = vmatmul.f32.gmra.mxu0 %v6983
    %v7835 = vpop.f32.mrf.mxu0
    %v7836 = vadd.f32 0.0, %v7835
    %7837 = vmatmul.f32.gmra.mxu0 %v6990
    %v7838 = vpop.f32.mrf.mxu0
    %v7839 = vadd.f32 0.0, %v7838
    %7840 = vmatmul.f32.gmra.mxu0 %v6997
    %v7841 = vpop.f32.mrf.mxu0
    %v7842 = vadd.f32 0.0, %v7841
    %7843 = vmatmul.f32.gmra.mxu0 %v7004
    %v7844 = vpop.f32.mrf.mxu0
    %v7845 = vadd.f32 0.0, %v7844
    %7846 = vmatmul.f32.gmra.mxu0 %v7011
    %v7847 = vpop.f32.mrf.mxu0
    %v7848 = vadd.f32 0.0, %v7847
    %7849 = vmatmul.f32.gmra.mxu0 %v7018
    %v7850 = vpop.f32.mrf.mxu0
    %v7851 = vadd.f32 0.0, %v7850
    %7852 = vmatmul.f32.gmra.mxu0 %v7025
    %v7853 = vpop.f32.mrf.mxu0
    %v7854 = vadd.f32 0.0, %v7853
    %7855 = vmatmul.f32.gmra.mxu0 %v7808
    %v7856 = vpop.f32.mrf.mxu0
    %v7857 = vadd.f32 0.0, %v7856
    %7858 = vmatmul.f32.gmra.mxu0 %v7039
    %v7859 = vpop.f32.mrf.mxu0
    %v7860 = vadd.f32 0.0, %v7859
    %7861 = vmatmul.f32.gmra.mxu0 %v7046
    %v7862 = vpop.f32.mrf.mxu0
    %v7863 = vadd.f32 0.0, %v7862
    %7864 = vmatmul.f32.gmra.mxu0 %v7053
    %v7865 = vpop.f32.mrf.mxu0
    %v7866 = vadd.f32 0.0, %v7865
    %7867 = vmatmul.f32.gmra.mxu0 %v7060
    %v7868 = vpop.f32.mrf.mxu0
    %v7869 = vadd.f32 0.0, %v7868
    %7870 = vmatmul.f32.gmra.mxu0 %v7067
    %v7871 = vpop.f32.mrf.mxu0
    %v7872 = vadd.f32 0.0, %v7871
    %7873 = vmatmul.f32.gmra.mxu0 %v7074
    %v7874 = vpop.f32.mrf.mxu0
    %v7875 = vadd.f32 0.0, %v7874
    %7876 = vmatmul.f32.gmra.mxu0 %v7081
    %v7877 = vpop.f32.mrf.mxu0
    %v7878 = vadd.f32 0.0, %v7877
    %7879 = vmatmul.f32.gmra.mxu0 %v7815
    %v7880 = vpop.f32.mrf.mxu0
    %v7881 = vadd.f32 0.0, %v7880
    %7882 = vdwg.mxu0
    %v7883 = vadd.f32 %v7767, %v7836
    %v7884 = vadd.f32 %v7768, %v7839
    %v7885 = vadd.f32 %v7769, %v7842
    %v7886 = vadd.f32 %v7770, %v7845
    %v7887 = vadd.f32 %v7771, %v7848
    %v7888 = vadd.f32 %v7772, %v7851
    %v7889 = vadd.f32 %v7773, %v7854
    %v7890 = vadd.f32 %v7774, %v7857
    %v7891 = vadd.f32 %v7775, %v7860
    %v7892 = vadd.f32 %v7776, %v7863
    %v7893 = vadd.f32 %v7777, %v7866
    %v7894 = vadd.f32 %v7778, %v7869
    %v7895 = vadd.f32 %v7779, %v7872
    %v7896 = vadd.f32 %v7780, %v7875
    %v7897 = vadd.f32 %v7781, %v7878
    %v7898 = vadd.f32 %v7782, %v7881
    %s7899 = scalar_lea.vmem %s3, 1152
    %v7900 = vld [vmem:[%s7899] sm:$0xff]
    %v7901 = vld [vmem:[%s7899 + $0x8] sm:$0xff]
    %v7902 = vld [vmem:[%s7899 + $0x10] sm:$0xff]
    %v7903 = vld [vmem:[%s7899 + $0x18] sm:$0xff]
    %v7904 = vld [vmem:[%s7899 + $0x20] sm:$0xff]
    %v7905 = vld [vmem:[%s7899 + $0x28] sm:$0xff]
    %v7906 = vld [vmem:[%s7899 + $0x30] sm:$0xff]
    %v7907 = vld [vmem:[%s7899 + $0x38] sm:$0xff]
    %v7908 = vld [vmem:[%s7899 + $0x40] sm:$0xff]
    %v7909 = vld [vmem:[%s7899 + $0x48] sm:$0xff]
    %v7910 = vld [vmem:[%s7899 + $0x50] sm:$0xff]
    %v7911 = vld [vmem:[%s7899 + $0x58] sm:$0xff]
    %v7912 = vld [vmem:[%s7899 + $0x60] sm:$0xff]
    %v7913 = vld [vmem:[%s7899 + $0x68] sm:$0xff]
    %v7914 = vld [vmem:[%s7899 + $0x70] sm:$0xff]
    %v7915 = vld [vmem:[%s7899 + $0x78] sm:$0xff]
    %v7918 = vsel %vm6286, %v5938, %v5937
    %v7919 = vsel %vm6288, %v5939, %v7918
    %v7920 = vsel %vm6290, %v5940, %v7919
    %v7921 = vsel %vm6292, %v5941, %v7920
    %v7922 = vsel %vm6294, %v5942, %v7921
    %v7923 = vsel %vm6296, %v5943, %v7922
    %v7924 = vsel %vm6298, %v5944, %v7923
    %v7925 = vsel %vm6286, %v6082, %v6081
    %v7926 = vsel %vm6288, %v6083, %v7925
    %v7927 = vsel %vm6290, %v6084, %v7926
    %v7928 = vsel %vm6292, %v6085, %v7927
    %v7929 = vsel %vm6294, %v6086, %v7928
    %v7930 = vsel %vm6296, %v6087, %v7929
    %v7931 = vsel %vm6298, %v6088, %v7930
    %7934 = vmatpush.msra.mxu0 %v7915
    %7935 = vmatpush.msra.mxu0 %v7914
    %7936 = vmatpush.msra.mxu0 %v7913
    %7937 = vmatpush.msra.mxu0 %v7912
    %7938 = vmatpush.msra.mxu0 %v7911
    %7939 = vmatpush.msra.mxu0 %v7910
    %7940 = vmatpush.msra.mxu0 %v7909
    %7941 = vmatpush.msra.mxu0 %v7908
    %7942 = vmatpush.msra.mxu0 %v7907
    %7943 = vmatpush.msra.mxu0 %v7906
    %7944 = vmatpush.msra.mxu0 %v7905
    %7945 = vmatpush.msra.mxu0 %v7904
    %7946 = vmatpush.msra.mxu0 %v7903
    %7947 = vmatpush.msra.mxu0 %v7902
    %7948 = vmatpush.msra.mxu0 %v7901
    %7949 = vmatpush.msra.mxu0 %v7900
    %7950 = vmatmul.f32.gmra.mxu0 %v7225
    %v7951 = vpop.f32.mrf.mxu0
    %v7952 = vadd.f32 0.0, %v7951
    %7953 = vmatmul.f32.gmra.mxu0 %v7232
    %v7954 = vpop.f32.mrf.mxu0
    %v7955 = vadd.f32 0.0, %v7954
    %7956 = vmatmul.f32.gmra.mxu0 %v7239
    %v7957 = vpop.f32.mrf.mxu0
    %v7958 = vadd.f32 0.0, %v7957
    %7959 = vmatmul.f32.gmra.mxu0 %v7246
    %v7960 = vpop.f32.mrf.mxu0
    %v7961 = vadd.f32 0.0, %v7960
    %7962 = vmatmul.f32.gmra.mxu0 %v7253
    %v7963 = vpop.f32.mrf.mxu0
    %v7964 = vadd.f32 0.0, %v7963
    %7965 = vmatmul.f32.gmra.mxu0 %v7260
    %v7966 = vpop.f32.mrf.mxu0
    %v7967 = vadd.f32 0.0, %v7966
    %7968 = vmatmul.f32.gmra.mxu0 %v7267
    %v7969 = vpop.f32.mrf.mxu0
    %v7970 = vadd.f32 0.0, %v7969
    %7971 = vmatmul.f32.gmra.mxu0 %v7924
    %v7972 = vpop.f32.mrf.mxu0
    %v7973 = vadd.f32 0.0, %v7972
    %7974 = vmatmul.f32.gmra.mxu0 %v7281
    %v7975 = vpop.f32.mrf.mxu0
    %v7976 = vadd.f32 0.0, %v7975
    %7977 = vmatmul.f32.gmra.mxu0 %v7288
    %v7978 = vpop.f32.mrf.mxu0
    %v7979 = vadd.f32 0.0, %v7978
    %7980 = vmatmul.f32.gmra.mxu0 %v7295
    %v7981 = vpop.f32.mrf.mxu0
    %v7982 = vadd.f32 0.0, %v7981
    %7983 = vmatmul.f32.gmra.mxu0 %v7302
    %v7984 = vpop.f32.mrf.mxu0
    %v7985 = vadd.f32 0.0, %v7984
    %7986 = vmatmul.f32.gmra.mxu0 %v7309
    %v7987 = vpop.f32.mrf.mxu0
    %v7988 = vadd.f32 0.0, %v7987
    %7989 = vmatmul.f32.gmra.mxu0 %v7316
    %v7990 = vpop.f32.mrf.mxu0
    %v7991 = vadd.f32 0.0, %v7990
    %7992 = vmatmul.f32.gmra.mxu0 %v7323
    %v7993 = vpop.f32.mrf.mxu0
    %v7994 = vadd.f32 0.0, %v7993
    %7995 = vmatmul.f32.gmra.mxu0 %v7931
    %v7996 = vpop.f32.mrf.mxu0
    %v7997 = vadd.f32 0.0, %v7996
    %7998 = vdwg.mxu0
    %v7999 = vadd.f32 %v7883, %v7952
    %v8000 = vadd.f32 %v7884, %v7955
    %v8001 = vadd.f32 %v7885, %v7958
    %v8002 = vadd.f32 %v7886, %v7961
    %v8003 = vadd.f32 %v7887, %v7964
    %v8004 = vadd.f32 %v7888, %v7967
    %v8005 = vadd.f32 %v7889, %v7970
    %v8006 = vadd.f32 %v7890, %v7973
    %v8007 = vadd.f32 %v7891, %v7976
    %v8008 = vadd.f32 %v7892, %v7979
    %v8009 = vadd.f32 %v7893, %v7982
    %v8010 = vadd.f32 %v7894, %v7985
    %v8011 = vadd.f32 %v7895, %v7988
    %v8012 = vadd.f32 %v7896, %v7991
    %v8013 = vadd.f32 %v7897, %v7994
    %v8014 = vadd.f32 %v7898, %v7997
    %s8015 = scalar_lea.vmem %s3, 1280
    %v8016 = vld [vmem:[%s8015] sm:$0xff]
    %v8017 = vld [vmem:[%s8015 + $0x8] sm:$0xff]
    %v8018 = vld [vmem:[%s8015 + $0x10] sm:$0xff]
    %v8019 = vld [vmem:[%s8015 + $0x18] sm:$0xff]
    %v8020 = vld [vmem:[%s8015 + $0x20] sm:$0xff]
    %v8021 = vld [vmem:[%s8015 + $0x28] sm:$0xff]
    %v8022 = vld [vmem:[%s8015 + $0x30] sm:$0xff]
    %v8023 = vld [vmem:[%s8015 + $0x38] sm:$0xff]
    %v8024 = vld [vmem:[%s8015 + $0x40] sm:$0xff]
    %v8025 = vld [vmem:[%s8015 + $0x48] sm:$0xff]
    %v8026 = vld [vmem:[%s8015 + $0x50] sm:$0xff]
    %v8027 = vld [vmem:[%s8015 + $0x58] sm:$0xff]
    %v8028 = vld [vmem:[%s8015 + $0x60] sm:$0xff]
    %v8029 = vld [vmem:[%s8015 + $0x68] sm:$0xff]
    %v8030 = vld [vmem:[%s8015 + $0x70] sm:$0xff]
    %v8031 = vld [vmem:[%s8015 + $0x78] sm:$0xff]
    %v8048 = vsel %vm6286, %v5946, %v5945
    %v8049 = vsel %vm6288, %v5947, %v8048
    %v8050 = vsel %vm6290, %v5948, %v8049
    %v8051 = vsel %vm6292, %v5949, %v8050
    %v8052 = vsel %vm6294, %v5950, %v8051
    %v8053 = vsel %vm6296, %v5951, %v8052
    %v8054 = vsel %vm6298, %v5952, %v8053
    %v8055 = vsel %vm6286, %v6090, %v6089
    %v8056 = vsel %vm6288, %v6091, %v8055
    %v8057 = vsel %vm6290, %v6092, %v8056
    %v8058 = vsel %vm6292, %v6093, %v8057
    %v8059 = vsel %vm6294, %v6094, %v8058
    %v8060 = vsel %vm6296, %v6095, %v8059
    %v8061 = vsel %vm6298, %v6096, %v8060
    %8064 = vmatpush.msra.mxu0 %v8031
    %8065 = vmatpush.msra.mxu0 %v8030
    %8066 = vmatpush.msra.mxu0 %v8029
    %8067 = vmatpush.msra.mxu0 %v8028
    %8068 = vmatpush.msra.mxu0 %v8027
    %8069 = vmatpush.msra.mxu0 %v8026
    %8070 = vmatpush.msra.mxu0 %v8025
    %8071 = vmatpush.msra.mxu0 %v8024
    %8072 = vmatpush.msra.mxu0 %v8023
    %8073 = vmatpush.msra.mxu0 %v8022
    %8074 = vmatpush.msra.mxu0 %v8021
    %8075 = vmatpush.msra.mxu0 %v8020
    %8076 = vmatpush.msra.mxu0 %v8019
    %8077 = vmatpush.msra.mxu0 %v8018
    %8078 = vmatpush.msra.mxu0 %v8017
    %8079 = vmatpush.msra.mxu0 %v8016
    %8080 = vmatmul.f32.gmra.mxu0 %v6522
    %v8081 = vpop.f32.mrf.mxu0
    %v8082 = vadd.f32 0.0, %v8081
    %8083 = vmatmul.f32.gmra.mxu0 %v6529
    %v8084 = vpop.f32.mrf.mxu0
    %v8085 = vadd.f32 0.0, %v8084
    %8086 = vmatmul.f32.gmra.mxu0 %v6536
    %v8087 = vpop.f32.mrf.mxu0
    %v8088 = vadd.f32 0.0, %v8087
    %8089 = vmatmul.f32.gmra.mxu0 %v6543
    %v8090 = vpop.f32.mrf.mxu0
    %v8091 = vadd.f32 0.0, %v8090
    %8092 = vmatmul.f32.gmra.mxu0 %v6550
    %v8093 = vpop.f32.mrf.mxu0
    %v8094 = vadd.f32 0.0, %v8093
    %8095 = vmatmul.f32.gmra.mxu0 %v6557
    %v8096 = vpop.f32.mrf.mxu0
    %v8097 = vadd.f32 0.0, %v8096
    %8098 = vmatmul.f32.gmra.mxu0 %v7460
    %v8099 = vpop.f32.mrf.mxu0
    %v8100 = vadd.f32 0.0, %v8099
    %8101 = vmatmul.f32.gmra.mxu0 %v8054
    %v8102 = vpop.f32.mrf.mxu0
    %v8103 = vadd.f32 0.0, %v8102
    %8104 = vmatmul.f32.gmra.mxu0 %v6578
    %v8105 = vpop.f32.mrf.mxu0
    %v8106 = vadd.f32 0.0, %v8105
    %8107 = vmatmul.f32.gmra.mxu0 %v6585
    %v8108 = vpop.f32.mrf.mxu0
    %v8109 = vadd.f32 0.0, %v8108
    %8110 = vmatmul.f32.gmra.mxu0 %v6592
    %v8111 = vpop.f32.mrf.mxu0
    %v8112 = vadd.f32 0.0, %v8111
    %8113 = vmatmul.f32.gmra.mxu0 %v6599
    %v8114 = vpop.f32.mrf.mxu0
    %v8115 = vadd.f32 0.0, %v8114
    %8116 = vmatmul.f32.gmra.mxu0 %v6606
    %v8117 = vpop.f32.mrf.mxu0
    %v8118 = vadd.f32 0.0, %v8117
    %8119 = vmatmul.f32.gmra.mxu0 %v6613
    %v8120 = vpop.f32.mrf.mxu0
    %v8121 = vadd.f32 0.0, %v8120
    %8122 = vmatmul.f32.gmra.mxu0 %v7467
    %v8123 = vpop.f32.mrf.mxu0
    %v8124 = vadd.f32 0.0, %v8123
    %8125 = vmatmul.f32.gmra.mxu0 %v8061
    %v8126 = vpop.f32.mrf.mxu0
    %v8127 = vadd.f32 0.0, %v8126
    %8128 = vdwg.mxu0
    %v8129 = vadd.f32 %v7999, %v8082
    %v8130 = vadd.f32 %v8000, %v8085
    %v8131 = vadd.f32 %v8001, %v8088
    %v8132 = vadd.f32 %v8002, %v8091
    %v8133 = vadd.f32 %v8003, %v8094
    %v8134 = vadd.f32 %v8004, %v8097
    %v8135 = vadd.f32 %v8005, %v8100
    %v8136 = vadd.f32 %v8006, %v8103
    %v8137 = vadd.f32 %v8007, %v8106
    %v8138 = vadd.f32 %v8008, %v8109
    %v8139 = vadd.f32 %v8009, %v8112
    %v8140 = vadd.f32 %v8010, %v8115
    %v8141 = vadd.f32 %v8011, %v8118
    %v8142 = vadd.f32 %v8012, %v8121
    %v8143 = vadd.f32 %v8013, %v8124
    %v8144 = vadd.f32 %v8014, %v8127
    %s8145 = scalar_lea.vmem %s3, 1408
    %v8146 = vld [vmem:[%s8145] sm:$0xff]
    %v8147 = vld [vmem:[%s8145 + $0x8] sm:$0xff]
    %v8148 = vld [vmem:[%s8145 + $0x10] sm:$0xff]
    %v8149 = vld [vmem:[%s8145 + $0x18] sm:$0xff]
    %v8150 = vld [vmem:[%s8145 + $0x20] sm:$0xff]
    %v8151 = vld [vmem:[%s8145 + $0x28] sm:$0xff]
    %v8152 = vld [vmem:[%s8145 + $0x30] sm:$0xff]
    %v8153 = vld [vmem:[%s8145 + $0x38] sm:$0xff]
    %v8154 = vld [vmem:[%s8145 + $0x40] sm:$0xff]
    %v8155 = vld [vmem:[%s8145 + $0x48] sm:$0xff]
    %v8156 = vld [vmem:[%s8145 + $0x50] sm:$0xff]
    %v8157 = vld [vmem:[%s8145 + $0x58] sm:$0xff]
    %v8158 = vld [vmem:[%s8145 + $0x60] sm:$0xff]
    %v8159 = vld [vmem:[%s8145 + $0x68] sm:$0xff]
    %v8160 = vld [vmem:[%s8145 + $0x70] sm:$0xff]
    %v8161 = vld [vmem:[%s8145 + $0x78] sm:$0xff]
    %v8164 = vsel %vm6286, %v5947, %v5946
    %v8165 = vsel %vm6288, %v5948, %v8164
    %v8166 = vsel %vm6290, %v5949, %v8165
    %v8167 = vsel %vm6292, %v5950, %v8166
    %v8168 = vsel %vm6294, %v5951, %v8167
    %v8169 = vsel %vm6296, %v5952, %v8168
    %v8170 = vsel %vm6298, %v5953, %v8169
    %v8171 = vsel %vm6286, %v6091, %v6090
    %v8172 = vsel %vm6288, %v6092, %v8171
    %v8173 = vsel %vm6290, %v6093, %v8172
    %v8174 = vsel %vm6292, %v6094, %v8173
    %v8175 = vsel %vm6294, %v6095, %v8174
    %v8176 = vsel %vm6296, %v6096, %v8175
    %v8177 = vsel %vm6298, %v6097, %v8176
    %8180 = vmatpush.msra.mxu0 %v8161
    %8181 = vmatpush.msra.mxu0 %v8160
    %8182 = vmatpush.msra.mxu0 %v8159
    %8183 = vmatpush.msra.mxu0 %v8158
    %8184 = vmatpush.msra.mxu0 %v8157
    %8185 = vmatpush.msra.mxu0 %v8156
    %8186 = vmatpush.msra.mxu0 %v8155
    %8187 = vmatpush.msra.mxu0 %v8154
    %8188 = vmatpush.msra.mxu0 %v8153
    %8189 = vmatpush.msra.mxu0 %v8152
    %8190 = vmatpush.msra.mxu0 %v8151
    %8191 = vmatpush.msra.mxu0 %v8150
    %8192 = vmatpush.msra.mxu0 %v8149
    %8193 = vmatpush.msra.mxu0 %v8148
    %8194 = vmatpush.msra.mxu0 %v8147
    %8195 = vmatpush.msra.mxu0 %v8146
    %8196 = vmatmul.f32.gmra.mxu0 %v6313
    %v8197 = vpop.f32.mrf.mxu0
    %v8198 = vadd.f32 0.0, %v8197
    %8199 = vmatmul.f32.gmra.mxu0 %v6320
    %v8200 = vpop.f32.mrf.mxu0
    %v8201 = vadd.f32 0.0, %v8200
    %8202 = vmatmul.f32.gmra.mxu0 %v6327
    %v8203 = vpop.f32.mrf.mxu0
    %v8204 = vadd.f32 0.0, %v8203
    %8205 = vmatmul.f32.gmra.mxu0 %v6334
    %v8206 = vpop.f32.mrf.mxu0
    %v8207 = vadd.f32 0.0, %v8206
    %8208 = vmatmul.f32.gmra.mxu0 %v6341
    %v8209 = vpop.f32.mrf.mxu0
    %v8210 = vadd.f32 0.0, %v8209
    %8211 = vmatmul.f32.gmra.mxu0 %v6348
    %v8212 = vpop.f32.mrf.mxu0
    %v8213 = vadd.f32 0.0, %v8212
    %8214 = vmatmul.f32.gmra.mxu0 %v7576
    %v8215 = vpop.f32.mrf.mxu0
    %v8216 = vadd.f32 0.0, %v8215
    %8217 = vmatmul.f32.gmra.mxu0 %v8170
    %v8218 = vpop.f32.mrf.mxu0
    %v8219 = vadd.f32 0.0, %v8218
    %8220 = vmatmul.f32.gmra.mxu0 %v6369
    %v8221 = vpop.f32.mrf.mxu0
    %v8222 = vadd.f32 0.0, %v8221
    %8223 = vmatmul.f32.gmra.mxu0 %v6376
    %v8224 = vpop.f32.mrf.mxu0
    %v8225 = vadd.f32 0.0, %v8224
    %8226 = vmatmul.f32.gmra.mxu0 %v6383
    %v8227 = vpop.f32.mrf.mxu0
    %v8228 = vadd.f32 0.0, %v8227
    %8229 = vmatmul.f32.gmra.mxu0 %v6390
    %v8230 = vpop.f32.mrf.mxu0
    %v8231 = vadd.f32 0.0, %v8230
    %8232 = vmatmul.f32.gmra.mxu0 %v6397
    %v8233 = vpop.f32.mrf.mxu0
    %v8234 = vadd.f32 0.0, %v8233
    %8235 = vmatmul.f32.gmra.mxu0 %v6404
    %v8236 = vpop.f32.mrf.mxu0
    %v8237 = vadd.f32 0.0, %v8236
    %8238 = vmatmul.f32.gmra.mxu0 %v7583
    %v8239 = vpop.f32.mrf.mxu0
    %v8240 = vadd.f32 0.0, %v8239
    %8241 = vmatmul.f32.gmra.mxu0 %v8177
    %v8242 = vpop.f32.mrf.mxu0
    %v8243 = vadd.f32 0.0, %v8242
    %8244 = vdwg.mxu0
    %v8245 = vadd.f32 %v8129, %v8198
    %v8246 = vadd.f32 %v8130, %v8201
    %v8247 = vadd.f32 %v8131, %v8204
    %v8248 = vadd.f32 %v8132, %v8207
    %v8249 = vadd.f32 %v8133, %v8210
    %v8250 = vadd.f32 %v8134, %v8213
    %v8251 = vadd.f32 %v8135, %v8216
    %v8252 = vadd.f32 %v8136, %v8219
    %v8253 = vadd.f32 %v8137, %v8222
    %v8254 = vadd.f32 %v8138, %v8225
    %v8255 = vadd.f32 %v8139, %v8228
    %v8256 = vadd.f32 %v8140, %v8231
    %v8257 = vadd.f32 %v8141, %v8234
    %v8258 = vadd.f32 %v8142, %v8237
    %v8259 = vadd.f32 %v8143, %v8240
    %v8260 = vadd.f32 %v8144, %v8243
    %s8261 = scalar_lea.vmem %s3, 1536
    %v8262 = vld [vmem:[%s8261] sm:$0xff]
    %v8263 = vld [vmem:[%s8261 + $0x8] sm:$0xff]
    %v8264 = vld [vmem:[%s8261 + $0x10] sm:$0xff]
    %v8265 = vld [vmem:[%s8261 + $0x18] sm:$0xff]
    %v8266 = vld [vmem:[%s8261 + $0x20] sm:$0xff]
    %v8267 = vld [vmem:[%s8261 + $0x28] sm:$0xff]
    %v8268 = vld [vmem:[%s8261 + $0x30] sm:$0xff]
    %v8269 = vld [vmem:[%s8261 + $0x38] sm:$0xff]
    %v8270 = vld [vmem:[%s8261 + $0x40] sm:$0xff]
    %v8271 = vld [vmem:[%s8261 + $0x48] sm:$0xff]
    %v8272 = vld [vmem:[%s8261 + $0x50] sm:$0xff]
    %v8273 = vld [vmem:[%s8261 + $0x58] sm:$0xff]
    %v8274 = vld [vmem:[%s8261 + $0x60] sm:$0xff]
    %v8275 = vld [vmem:[%s8261 + $0x68] sm:$0xff]
    %v8276 = vld [vmem:[%s8261 + $0x70] sm:$0xff]
    %v8277 = vld [vmem:[%s8261 + $0x78] sm:$0xff]
    %v8280 = vsel %vm6286, %v5948, %v5947
    %v8281 = vsel %vm6288, %v5949, %v8280
    %v8282 = vsel %vm6290, %v5950, %v8281
    %v8283 = vsel %vm6292, %v5951, %v8282
    %v8284 = vsel %vm6294, %v5952, %v8283
    %v8285 = vsel %vm6296, %v5953, %v8284
    %v8286 = vsel %vm6298, %v5954, %v8285
    %v8287 = vsel %vm6286, %v6092, %v6091
    %v8288 = vsel %vm6288, %v6093, %v8287
    %v8289 = vsel %vm6290, %v6094, %v8288
    %v8290 = vsel %vm6292, %v6095, %v8289
    %v8291 = vsel %vm6294, %v6096, %v8290
    %v8292 = vsel %vm6296, %v6097, %v8291
    %v8293 = vsel %vm6298, %v6098, %v8292
    %8296 = vmatpush.msra.mxu0 %v8277
    %8297 = vmatpush.msra.mxu0 %v8276
    %8298 = vmatpush.msra.mxu0 %v8275
    %8299 = vmatpush.msra.mxu0 %v8274
    %8300 = vmatpush.msra.mxu0 %v8273
    %8301 = vmatpush.msra.mxu0 %v8272
    %8302 = vmatpush.msra.mxu0 %v8271
    %8303 = vmatpush.msra.mxu0 %v8270
    %8304 = vmatpush.msra.mxu0 %v8269
    %8305 = vmatpush.msra.mxu0 %v8268
    %8306 = vmatpush.msra.mxu0 %v8267
    %8307 = vmatpush.msra.mxu0 %v8266
    %8308 = vmatpush.msra.mxu0 %v8265
    %8309 = vmatpush.msra.mxu0 %v8264
    %8310 = vmatpush.msra.mxu0 %v8263
    %8311 = vmatpush.msra.mxu0 %v8262
    %8312 = vmatmul.f32.gmra.mxu0 %v6748
    %v8313 = vpop.f32.mrf.mxu0
    %v8314 = vadd.f32 0.0, %v8313
    %8315 = vmatmul.f32.gmra.mxu0 %v6755
    %v8316 = vpop.f32.mrf.mxu0
    %v8317 = vadd.f32 0.0, %v8316
    %8318 = vmatmul.f32.gmra.mxu0 %v6762
    %v8319 = vpop.f32.mrf.mxu0
    %v8320 = vadd.f32 0.0, %v8319
    %8321 = vmatmul.f32.gmra.mxu0 %v6769
    %v8322 = vpop.f32.mrf.mxu0
    %v8323 = vadd.f32 0.0, %v8322
    %8324 = vmatmul.f32.gmra.mxu0 %v6776
    %v8325 = vpop.f32.mrf.mxu0
    %v8326 = vadd.f32 0.0, %v8325
    %8327 = vmatmul.f32.gmra.mxu0 %v6783
    %v8328 = vpop.f32.mrf.mxu0
    %v8329 = vadd.f32 0.0, %v8328
    %8330 = vmatmul.f32.gmra.mxu0 %v7692
    %v8331 = vpop.f32.mrf.mxu0
    %v8332 = vadd.f32 0.0, %v8331
    %8333 = vmatmul.f32.gmra.mxu0 %v8286
    %v8334 = vpop.f32.mrf.mxu0
    %v8335 = vadd.f32 0.0, %v8334
    %8336 = vmatmul.f32.gmra.mxu0 %v6804
    %v8337 = vpop.f32.mrf.mxu0
    %v8338 = vadd.f32 0.0, %v8337
    %8339 = vmatmul.f32.gmra.mxu0 %v6811
    %v8340 = vpop.f32.mrf.mxu0
    %v8341 = vadd.f32 0.0, %v8340
    %8342 = vmatmul.f32.gmra.mxu0 %v6818
    %v8343 = vpop.f32.mrf.mxu0
    %v8344 = vadd.f32 0.0, %v8343
    %8345 = vmatmul.f32.gmra.mxu0 %v6825
    %v8346 = vpop.f32.mrf.mxu0
    %v8347 = vadd.f32 0.0, %v8346
    %8348 = vmatmul.f32.gmra.mxu0 %v6832
    %v8349 = vpop.f32.mrf.mxu0
    %v8350 = vadd.f32 0.0, %v8349
    %8351 = vmatmul.f32.gmra.mxu0 %v6839
    %v8352 = vpop.f32.mrf.mxu0
    %v8353 = vadd.f32 0.0, %v8352
    %8354 = vmatmul.f32.gmra.mxu0 %v7699
    %v8355 = vpop.f32.mrf.mxu0
    %v8356 = vadd.f32 0.0, %v8355
    %8357 = vmatmul.f32.gmra.mxu0 %v8293
    %v8358 = vpop.f32.mrf.mxu0
    %v8359 = vadd.f32 0.0, %v8358
    %8360 = vdwg.mxu0
    %v8361 = vadd.f32 %v8245, %v8314
    %v8362 = vadd.f32 %v8246, %v8317
    %v8363 = vadd.f32 %v8247, %v8320
    %v8364 = vadd.f32 %v8248, %v8323
    %v8365 = vadd.f32 %v8249, %v8326
    %v8366 = vadd.f32 %v8250, %v8329
    %v8367 = vadd.f32 %v8251, %v8332
    %v8368 = vadd.f32 %v8252, %v8335
    %v8369 = vadd.f32 %v8253, %v8338
    %v8370 = vadd.f32 %v8254, %v8341
    %v8371 = vadd.f32 %v8255, %v8344
    %v8372 = vadd.f32 %v8256, %v8347
    %v8373 = vadd.f32 %v8257, %v8350
    %v8374 = vadd.f32 %v8258, %v8353
    %v8375 = vadd.f32 %v8259, %v8356
    %v8376 = vadd.f32 %v8260, %v8359
    %s8377 = scalar_lea.vmem %s3, 1664
    %v8378 = vld [vmem:[%s8377] sm:$0xff]
    %v8379 = vld [vmem:[%s8377 + $0x8] sm:$0xff]
    %v8380 = vld [vmem:[%s8377 + $0x10] sm:$0xff]
    %v8381 = vld [vmem:[%s8377 + $0x18] sm:$0xff]
    %v8382 = vld [vmem:[%s8377 + $0x20] sm:$0xff]
    %v8383 = vld [vmem:[%s8377 + $0x28] sm:$0xff]
    %v8384 = vld [vmem:[%s8377 + $0x30] sm:$0xff]
    %v8385 = vld [vmem:[%s8377 + $0x38] sm:$0xff]
    %v8386 = vld [vmem:[%s8377 + $0x40] sm:$0xff]
    %v8387 = vld [vmem:[%s8377 + $0x48] sm:$0xff]
    %v8388 = vld [vmem:[%s8377 + $0x50] sm:$0xff]
    %v8389 = vld [vmem:[%s8377 + $0x58] sm:$0xff]
    %v8390 = vld [vmem:[%s8377 + $0x60] sm:$0xff]
    %v8391 = vld [vmem:[%s8377 + $0x68] sm:$0xff]
    %v8392 = vld [vmem:[%s8377 + $0x70] sm:$0xff]
    %v8393 = vld [vmem:[%s8377 + $0x78] sm:$0xff]
    %v8396 = vsel %vm6286, %v5949, %v5948
    %v8397 = vsel %vm6288, %v5950, %v8396
    %v8398 = vsel %vm6290, %v5951, %v8397
    %v8399 = vsel %vm6292, %v5952, %v8398
    %v8400 = vsel %vm6294, %v5953, %v8399
    %v8401 = vsel %vm6296, %v5954, %v8400
    %v8402 = vsel %vm6298, %v5955, %v8401
    %v8403 = vsel %vm6286, %v6093, %v6092
    %v8404 = vsel %vm6288, %v6094, %v8403
    %v8405 = vsel %vm6290, %v6095, %v8404
    %v8406 = vsel %vm6292, %v6096, %v8405
    %v8407 = vsel %vm6294, %v6097, %v8406
    %v8408 = vsel %vm6296, %v6098, %v8407
    %v8409 = vsel %vm6298, %v6099, %v8408
    %8412 = vmatpush.msra.mxu0 %v8393
    %8413 = vmatpush.msra.mxu0 %v8392
    %8414 = vmatpush.msra.mxu0 %v8391
    %8415 = vmatpush.msra.mxu0 %v8390
    %8416 = vmatpush.msra.mxu0 %v8389
    %8417 = vmatpush.msra.mxu0 %v8388
    %8418 = vmatpush.msra.mxu0 %v8387
    %8419 = vmatpush.msra.mxu0 %v8386
    %8420 = vmatpush.msra.mxu0 %v8385
    %8421 = vmatpush.msra.mxu0 %v8384
    %8422 = vmatpush.msra.mxu0 %v8383
    %8423 = vmatpush.msra.mxu0 %v8382
    %8424 = vmatpush.msra.mxu0 %v8381
    %8425 = vmatpush.msra.mxu0 %v8380
    %8426 = vmatpush.msra.mxu0 %v8379
    %8427 = vmatpush.msra.mxu0 %v8378
    %8428 = vmatmul.f32.gmra.mxu0 %v6990
    %v8429 = vpop.f32.mrf.mxu0
    %v8430 = vadd.f32 0.0, %v8429
    %8431 = vmatmul.f32.gmra.mxu0 %v6997
    %v8432 = vpop.f32.mrf.mxu0
    %v8433 = vadd.f32 0.0, %v8432
    %8434 = vmatmul.f32.gmra.mxu0 %v7004
    %v8435 = vpop.f32.mrf.mxu0
    %v8436 = vadd.f32 0.0, %v8435
    %8437 = vmatmul.f32.gmra.mxu0 %v7011
    %v8438 = vpop.f32.mrf.mxu0
    %v8439 = vadd.f32 0.0, %v8438
    %8440 = vmatmul.f32.gmra.mxu0 %v7018
    %v8441 = vpop.f32.mrf.mxu0
    %v8442 = vadd.f32 0.0, %v8441
    %8443 = vmatmul.f32.gmra.mxu0 %v7025
    %v8444 = vpop.f32.mrf.mxu0
    %v8445 = vadd.f32 0.0, %v8444
    %8446 = vmatmul.f32.gmra.mxu0 %v7808
    %v8447 = vpop.f32.mrf.mxu0
    %v8448 = vadd.f32 0.0, %v8447
    %8449 = vmatmul.f32.gmra.mxu0 %v8402
    %v8450 = vpop.f32.mrf.mxu0
    %v8451 = vadd.f32 0.0, %v8450
    %8452 = vmatmul.f32.gmra.mxu0 %v7046
    %v8453 = vpop.f32.mrf.mxu0
    %v8454 = vadd.f32 0.0, %v8453
    %8455 = vmatmul.f32.gmra.mxu0 %v7053
    %v8456 = vpop.f32.mrf.mxu0
    %v8457 = vadd.f32 0.0, %v8456
    %8458 = vmatmul.f32.gmra.mxu0 %v7060
    %v8459 = vpop.f32.mrf.mxu0
    %v8460 = vadd.f32 0.0, %v8459
    %8461 = vmatmul.f32.gmra.mxu0 %v7067
    %v8462 = vpop.f32.mrf.mxu0
    %v8463 = vadd.f32 0.0, %v8462
    %8464 = vmatmul.f32.gmra.mxu0 %v7074
    %v8465 = vpop.f32.mrf.mxu0
    %v8466 = vadd.f32 0.0, %v8465
    %8467 = vmatmul.f32.gmra.mxu0 %v7081
    %v8468 = vpop.f32.mrf.mxu0
    %v8469 = vadd.f32 0.0, %v8468
    %8470 = vmatmul.f32.gmra.mxu0 %v7815
    %v8471 = vpop.f32.mrf.mxu0
    %v8472 = vadd.f32 0.0, %v8471
    %8473 = vmatmul.f32.gmra.mxu0 %v8409
    %v8474 = vpop.f32.mrf.mxu0
    %v8475 = vadd.f32 0.0, %v8474
    %8476 = vdwg.mxu0
    %v8477 = vadd.f32 %v8361, %v8430
    %v8478 = vadd.f32 %v8362, %v8433
    %v8479 = vadd.f32 %v8363, %v8436
    %v8480 = vadd.f32 %v8364, %v8439
    %v8481 = vadd.f32 %v8365, %v8442
    %v8482 = vadd.f32 %v8366, %v8445
    %v8483 = vadd.f32 %v8367, %v8448
    %v8484 = vadd.f32 %v8368, %v8451
    %v8485 = vadd.f32 %v8369, %v8454
    %v8486 = vadd.f32 %v8370, %v8457
    %v8487 = vadd.f32 %v8371, %v8460
    %v8488 = vadd.f32 %v8372, %v8463
    %v8489 = vadd.f32 %v8373, %v8466
    %v8490 = vadd.f32 %v8374, %v8469
    %v8491 = vadd.f32 %v8375, %v8472
    %v8492 = vadd.f32 %v8376, %v8475
    %s8493 = scalar_lea.vmem %s3, 1792
    %v8494 = vld [vmem:[%s8493] sm:$0xff]
    %v8495 = vld [vmem:[%s8493 + $0x8] sm:$0xff]
    %v8496 = vld [vmem:[%s8493 + $0x10] sm:$0xff]
    %v8497 = vld [vmem:[%s8493 + $0x18] sm:$0xff]
    %v8498 = vld [vmem:[%s8493 + $0x20] sm:$0xff]
    %v8499 = vld [vmem:[%s8493 + $0x28] sm:$0xff]
    %v8500 = vld [vmem:[%s8493 + $0x30] sm:$0xff]
    %v8501 = vld [vmem:[%s8493 + $0x38] sm:$0xff]
    %v8502 = vld [vmem:[%s8493 + $0x40] sm:$0xff]
    %v8503 = vld [vmem:[%s8493 + $0x48] sm:$0xff]
    %v8504 = vld [vmem:[%s8493 + $0x50] sm:$0xff]
    %v8505 = vld [vmem:[%s8493 + $0x58] sm:$0xff]
    %v8506 = vld [vmem:[%s8493 + $0x60] sm:$0xff]
    %v8507 = vld [vmem:[%s8493 + $0x68] sm:$0xff]
    %v8508 = vld [vmem:[%s8493 + $0x70] sm:$0xff]
    %v8509 = vld [vmem:[%s8493 + $0x78] sm:$0xff]
    %v8512 = vsel %vm6286, %v5950, %v5949
    %v8513 = vsel %vm6288, %v5951, %v8512
    %v8514 = vsel %vm6290, %v5952, %v8513
    %v8515 = vsel %vm6292, %v5953, %v8514
    %v8516 = vsel %vm6294, %v5954, %v8515
    %v8517 = vsel %vm6296, %v5955, %v8516
    %v8518 = vsel %vm6298, %v5956, %v8517
    %v8519 = vsel %vm6286, %v6094, %v6093
    %v8520 = vsel %vm6288, %v6095, %v8519
    %v8521 = vsel %vm6290, %v6096, %v8520
    %v8522 = vsel %vm6292, %v6097, %v8521
    %v8523 = vsel %vm6294, %v6098, %v8522
    %v8524 = vsel %vm6296, %v6099, %v8523
    %v8525 = vsel %vm6298, %v6100, %v8524
    %8528 = vmatpush.msra.mxu0 %v8509
    %8529 = vmatpush.msra.mxu0 %v8508
    %8530 = vmatpush.msra.mxu0 %v8507
    %8531 = vmatpush.msra.mxu0 %v8506
    %8532 = vmatpush.msra.mxu0 %v8505
    %8533 = vmatpush.msra.mxu0 %v8504
    %8534 = vmatpush.msra.mxu0 %v8503
    %8535 = vmatpush.msra.mxu0 %v8502
    %8536 = vmatpush.msra.mxu0 %v8501
    %8537 = vmatpush.msra.mxu0 %v8500
    %8538 = vmatpush.msra.mxu0 %v8499
    %8539 = vmatpush.msra.mxu0 %v8498
    %8540 = vmatpush.msra.mxu0 %v8497
    %8541 = vmatpush.msra.mxu0 %v8496
    %8542 = vmatpush.msra.mxu0 %v8495
    %8543 = vmatpush.msra.mxu0 %v8494
    %8544 = vmatmul.f32.gmra.mxu0 %v7232
    %v8545 = vpop.f32.mrf.mxu0
    %v8546 = vadd.f32 0.0, %v8545
    %8547 = vmatmul.f32.gmra.mxu0 %v7239
    %v8548 = vpop.f32.mrf.mxu0
    %v8549 = vadd.f32 0.0, %v8548
    %8550 = vmatmul.f32.gmra.mxu0 %v7246
    %v8551 = vpop.f32.mrf.mxu0
    %v8552 = vadd.f32 0.0, %v8551
    %8553 = vmatmul.f32.gmra.mxu0 %v7253
    %v8554 = vpop.f32.mrf.mxu0
    %v8555 = vadd.f32 0.0, %v8554
    %8556 = vmatmul.f32.gmra.mxu0 %v7260
    %v8557 = vpop.f32.mrf.mxu0
    %v8558 = vadd.f32 0.0, %v8557
    %8559 = vmatmul.f32.gmra.mxu0 %v7267
    %v8560 = vpop.f32.mrf.mxu0
    %v8561 = vadd.f32 0.0, %v8560
    %8562 = vmatmul.f32.gmra.mxu0 %v7924
    %v8563 = vpop.f32.mrf.mxu0
    %v8564 = vadd.f32 0.0, %v8563
    %8565 = vmatmul.f32.gmra.mxu0 %v8518
    %v8566 = vpop.f32.mrf.mxu0
    %v8567 = vadd.f32 0.0, %v8566
    %8568 = vmatmul.f32.gmra.mxu0 %v7288
    %v8569 = vpop.f32.mrf.mxu0
    %v8570 = vadd.f32 0.0, %v8569
    %8571 = vmatmul.f32.gmra.mxu0 %v7295
    %v8572 = vpop.f32.mrf.mxu0
    %v8573 = vadd.f32 0.0, %v8572
    %8574 = vmatmul.f32.gmra.mxu0 %v7302
    %v8575 = vpop.f32.mrf.mxu0
    %v8576 = vadd.f32 0.0, %v8575
    %8577 = vmatmul.f32.gmra.mxu0 %v7309
    %v8578 = vpop.f32.mrf.mxu0
    %v8579 = vadd.f32 0.0, %v8578
    %8580 = vmatmul.f32.gmra.mxu0 %v7316
    %v8581 = vpop.f32.mrf.mxu0
    %v8582 = vadd.f32 0.0, %v8581
    %8583 = vmatmul.f32.gmra.mxu0 %v7323
    %v8584 = vpop.f32.mrf.mxu0
    %v8585 = vadd.f32 0.0, %v8584
    %8586 = vmatmul.f32.gmra.mxu0 %v7931
    %v8587 = vpop.f32.mrf.mxu0
    %v8588 = vadd.f32 0.0, %v8587
    %8589 = vmatmul.f32.gmra.mxu0 %v8525
    %v8590 = vpop.f32.mrf.mxu0
    %v8591 = vadd.f32 0.0, %v8590
    %8592 = vdwg.mxu0
    %v8593 = vadd.f32 %v8477, %v8546
    %v8594 = vadd.f32 %v8478, %v8549
    %v8595 = vadd.f32 %v8479, %v8552
    %v8596 = vadd.f32 %v8480, %v8555
    %v8597 = vadd.f32 %v8481, %v8558
    %v8598 = vadd.f32 %v8482, %v8561
    %v8599 = vadd.f32 %v8483, %v8564
    %v8600 = vadd.f32 %v8484, %v8567
    %v8601 = vadd.f32 %v8485, %v8570
    %v8602 = vadd.f32 %v8486, %v8573
    %v8603 = vadd.f32 %v8487, %v8576
    %v8604 = vadd.f32 %v8488, %v8579
    %v8605 = vadd.f32 %v8489, %v8582
    %v8606 = vadd.f32 %v8490, %v8585
    %v8607 = vadd.f32 %v8491, %v8588
    %v8608 = vadd.f32 %v8492, %v8591
    %s8609 = scalar_lea.vmem %s3, 1920
    %v8610 = vld [vmem:[%s8609] sm:$0xff]
    %v8611 = vld [vmem:[%s8609 + $0x8] sm:$0xff]
    %v8612 = vld [vmem:[%s8609 + $0x10] sm:$0xff]
    %v8613 = vld [vmem:[%s8609 + $0x18] sm:$0xff]
    %v8614 = vld [vmem:[%s8609 + $0x20] sm:$0xff]
    %v8615 = vld [vmem:[%s8609 + $0x28] sm:$0xff]
    %v8616 = vld [vmem:[%s8609 + $0x30] sm:$0xff]
    %v8617 = vld [vmem:[%s8609 + $0x38] sm:$0xff]
    %v8618 = vld [vmem:[%s8609 + $0x40] sm:$0xff]
    %v8619 = vld [vmem:[%s8609 + $0x48] sm:$0xff]
    %v8620 = vld [vmem:[%s8609 + $0x50] sm:$0xff]
    %v8621 = vld [vmem:[%s8609 + $0x58] sm:$0xff]
    %v8622 = vld [vmem:[%s8609 + $0x60] sm:$0xff]
    %v8623 = vld [vmem:[%s8609 + $0x68] sm:$0xff]
    %v8624 = vld [vmem:[%s8609 + $0x70] sm:$0xff]
    %v8625 = vld [vmem:[%s8609 + $0x78] sm:$0xff]
    %v8642 = vsel %vm6286, %v5958, %v5957
    %v8643 = vsel %vm6288, %v5959, %v8642
    %v8644 = vsel %vm6290, %v5960, %v8643
    %v8645 = vsel %vm6292, %v5961, %v8644
    %v8646 = vsel %vm6294, %v5962, %v8645
    %v8647 = vsel %vm6296, %v5963, %v8646
    %v8648 = vsel %vm6298, %v5964, %v8647
    %v8649 = vsel %vm6286, %v6102, %v6101
    %v8650 = vsel %vm6288, %v6103, %v8649
    %v8651 = vsel %vm6290, %v6104, %v8650
    %v8652 = vsel %vm6292, %v6105, %v8651
    %v8653 = vsel %vm6294, %v6106, %v8652
    %v8654 = vsel %vm6296, %v6107, %v8653
    %v8655 = vsel %vm6298, %v6108, %v8654
    %8658 = vmatpush.msra.mxu0 %v8625
    %8659 = vmatpush.msra.mxu0 %v8624
    %8660 = vmatpush.msra.mxu0 %v8623
    %8661 = vmatpush.msra.mxu0 %v8622
    %8662 = vmatpush.msra.mxu0 %v8621
    %8663 = vmatpush.msra.mxu0 %v8620
    %8664 = vmatpush.msra.mxu0 %v8619
    %8665 = vmatpush.msra.mxu0 %v8618
    %8666 = vmatpush.msra.mxu0 %v8617
    %8667 = vmatpush.msra.mxu0 %v8616
    %8668 = vmatpush.msra.mxu0 %v8615
    %8669 = vmatpush.msra.mxu0 %v8614
    %8670 = vmatpush.msra.mxu0 %v8613
    %8671 = vmatpush.msra.mxu0 %v8612
    %8672 = vmatpush.msra.mxu0 %v8611
    %8673 = vmatpush.msra.mxu0 %v8610
    %8674 = vmatmul.f32.gmra.mxu0 %v6529
    %v8675 = vpop.f32.mrf.mxu0
    %v8676 = vadd.f32 0.0, %v8675
    %8677 = vmatmul.f32.gmra.mxu0 %v6536
    %v8678 = vpop.f32.mrf.mxu0
    %v8679 = vadd.f32 0.0, %v8678
    %8680 = vmatmul.f32.gmra.mxu0 %v6543
    %v8681 = vpop.f32.mrf.mxu0
    %v8682 = vadd.f32 0.0, %v8681
    %8683 = vmatmul.f32.gmra.mxu0 %v6550
    %v8684 = vpop.f32.mrf.mxu0
    %v8685 = vadd.f32 0.0, %v8684
    %8686 = vmatmul.f32.gmra.mxu0 %v6557
    %v8687 = vpop.f32.mrf.mxu0
    %v8688 = vadd.f32 0.0, %v8687
    %8689 = vmatmul.f32.gmra.mxu0 %v7460
    %v8690 = vpop.f32.mrf.mxu0
    %v8691 = vadd.f32 0.0, %v8690
    %8692 = vmatmul.f32.gmra.mxu0 %v8054
    %v8693 = vpop.f32.mrf.mxu0
    %v8694 = vadd.f32 0.0, %v8693
    %8695 = vmatmul.f32.gmra.mxu0 %v8648
    %v8696 = vpop.f32.mrf.mxu0
    %v8697 = vadd.f32 0.0, %v8696
    %8698 = vmatmul.f32.gmra.mxu0 %v6585
    %v8699 = vpop.f32.mrf.mxu0
    %v8700 = vadd.f32 0.0, %v8699
    %8701 = vmatmul.f32.gmra.mxu0 %v6592
    %v8702 = vpop.f32.mrf.mxu0
    %v8703 = vadd.f32 0.0, %v8702
    %8704 = vmatmul.f32.gmra.mxu0 %v6599
    %v8705 = vpop.f32.mrf.mxu0
    %v8706 = vadd.f32 0.0, %v8705
    %8707 = vmatmul.f32.gmra.mxu0 %v6606
    %v8708 = vpop.f32.mrf.mxu0
    %v8709 = vadd.f32 0.0, %v8708
    %8710 = vmatmul.f32.gmra.mxu0 %v6613
    %v8711 = vpop.f32.mrf.mxu0
    %v8712 = vadd.f32 0.0, %v8711
    %8713 = vmatmul.f32.gmra.mxu0 %v7467
    %v8714 = vpop.f32.mrf.mxu0
    %v8715 = vadd.f32 0.0, %v8714
    %8716 = vmatmul.f32.gmra.mxu0 %v8061
    %v8717 = vpop.f32.mrf.mxu0
    %v8718 = vadd.f32 0.0, %v8717
    %8719 = vmatmul.f32.gmra.mxu0 %v8655
    %v8720 = vpop.f32.mrf.mxu0
    %v8721 = vadd.f32 0.0, %v8720
    %8722 = vdwg.mxu0
    %v8723 = vadd.f32 %v8593, %v8676
    %v8724 = vadd.f32 %v8594, %v8679
    %v8725 = vadd.f32 %v8595, %v8682
    %v8726 = vadd.f32 %v8596, %v8685
    %v8727 = vadd.f32 %v8597, %v8688
    %v8728 = vadd.f32 %v8598, %v8691
    %v8729 = vadd.f32 %v8599, %v8694
    %v8730 = vadd.f32 %v8600, %v8697
    %v8731 = vadd.f32 %v8601, %v8700
    %v8732 = vadd.f32 %v8602, %v8703
    %v8733 = vadd.f32 %v8603, %v8706
    %v8734 = vadd.f32 %v8604, %v8709
    %v8735 = vadd.f32 %v8605, %v8712
    %v8736 = vadd.f32 %v8606, %v8715
    %v8737 = vadd.f32 %v8607, %v8718
    %v8738 = vadd.f32 %v8608, %v8721
    %s8739 = scalar_lea.vmem %s3, 2048
    %v8740 = vld [vmem:[%s8739] sm:$0xff]
    %v8741 = vld [vmem:[%s8739 + $0x8] sm:$0xff]
    %v8742 = vld [vmem:[%s8739 + $0x10] sm:$0xff]
    %v8743 = vld [vmem:[%s8739 + $0x18] sm:$0xff]
    %v8744 = vld [vmem:[%s8739 + $0x20] sm:$0xff]
    %v8745 = vld [vmem:[%s8739 + $0x28] sm:$0xff]
    %v8746 = vld [vmem:[%s8739 + $0x30] sm:$0xff]
    %v8747 = vld [vmem:[%s8739 + $0x38] sm:$0xff]
    %v8748 = vld [vmem:[%s8739 + $0x40] sm:$0xff]
    %v8749 = vld [vmem:[%s8739 + $0x48] sm:$0xff]
    %v8750 = vld [vmem:[%s8739 + $0x50] sm:$0xff]
    %v8751 = vld [vmem:[%s8739 + $0x58] sm:$0xff]
    %v8752 = vld [vmem:[%s8739 + $0x60] sm:$0xff]
    %v8753 = vld [vmem:[%s8739 + $0x68] sm:$0xff]
    %v8754 = vld [vmem:[%s8739 + $0x70] sm:$0xff]
    %v8755 = vld [vmem:[%s8739 + $0x78] sm:$0xff]
    %v8758 = vsel %vm6286, %v5959, %v5958
    %v8759 = vsel %vm6288, %v5960, %v8758
    %v8760 = vsel %vm6290, %v5961, %v8759
    %v8761 = vsel %vm6292, %v5962, %v8760
    %v8762 = vsel %vm6294, %v5963, %v8761
    %v8763 = vsel %vm6296, %v5964, %v8762
    %v8764 = vsel %vm6298, %v5965, %v8763
    %v8765 = vsel %vm6286, %v6103, %v6102
    %v8766 = vsel %vm6288, %v6104, %v8765
    %v8767 = vsel %vm6290, %v6105, %v8766
    %v8768 = vsel %vm6292, %v6106, %v8767
    %v8769 = vsel %vm6294, %v6107, %v8768
    %v8770 = vsel %vm6296, %v6108, %v8769
    %v8771 = vsel %vm6298, %v6109, %v8770
    %8774 = vmatpush.msra.mxu0 %v8755
    %8775 = vmatpush.msra.mxu0 %v8754
    %8776 = vmatpush.msra.mxu0 %v8753
    %8777 = vmatpush.msra.mxu0 %v8752
    %8778 = vmatpush.msra.mxu0 %v8751
    %8779 = vmatpush.msra.mxu0 %v8750
    %8780 = vmatpush.msra.mxu0 %v8749
    %8781 = vmatpush.msra.mxu0 %v8748
    %8782 = vmatpush.msra.mxu0 %v8747
    %8783 = vmatpush.msra.mxu0 %v8746
    %8784 = vmatpush.msra.mxu0 %v8745
    %8785 = vmatpush.msra.mxu0 %v8744
    %8786 = vmatpush.msra.mxu0 %v8743
    %8787 = vmatpush.msra.mxu0 %v8742
    %8788 = vmatpush.msra.mxu0 %v8741
    %8789 = vmatpush.msra.mxu0 %v8740
    %8790 = vmatmul.f32.gmra.mxu0 %v6320
    %v8791 = vpop.f32.mrf.mxu0
    %v8792 = vadd.f32 0.0, %v8791
    %8793 = vmatmul.f32.gmra.mxu0 %v6327
    %v8794 = vpop.f32.mrf.mxu0
    %v8795 = vadd.f32 0.0, %v8794
    %8796 = vmatmul.f32.gmra.mxu0 %v6334
    %v8797 = vpop.f32.mrf.mxu0
    %v8798 = vadd.f32 0.0, %v8797
    %8799 = vmatmul.f32.gmra.mxu0 %v6341
    %v8800 = vpop.f32.mrf.mxu0
    %v8801 = vadd.f32 0.0, %v8800
    %8802 = vmatmul.f32.gmra.mxu0 %v6348
    %v8803 = vpop.f32.mrf.mxu0
    %v8804 = vadd.f32 0.0, %v8803
    %8805 = vmatmul.f32.gmra.mxu0 %v7576
    %v8806 = vpop.f32.mrf.mxu0
    %v8807 = vadd.f32 0.0, %v8806
    %8808 = vmatmul.f32.gmra.mxu0 %v8170
    %v8809 = vpop.f32.mrf.mxu0
    %v8810 = vadd.f32 0.0, %v8809
    %8811 = vmatmul.f32.gmra.mxu0 %v8764
    %v8812 = vpop.f32.mrf.mxu0
    %v8813 = vadd.f32 0.0, %v8812
    %8814 = vmatmul.f32.gmra.mxu0 %v6376
    %v8815 = vpop.f32.mrf.mxu0
    %v8816 = vadd.f32 0.0, %v8815
    %8817 = vmatmul.f32.gmra.mxu0 %v6383
    %v8818 = vpop.f32.mrf.mxu0
    %v8819 = vadd.f32 0.0, %v8818
    %8820 = vmatmul.f32.gmra.mxu0 %v6390
    %v8821 = vpop.f32.mrf.mxu0
    %v8822 = vadd.f32 0.0, %v8821
    %8823 = vmatmul.f32.gmra.mxu0 %v6397
    %v8824 = vpop.f32.mrf.mxu0
    %v8825 = vadd.f32 0.0, %v8824
    %8826 = vmatmul.f32.gmra.mxu0 %v6404
    %v8827 = vpop.f32.mrf.mxu0
    %v8828 = vadd.f32 0.0, %v8827
    %8829 = vmatmul.f32.gmra.mxu0 %v7583
    %v8830 = vpop.f32.mrf.mxu0
    %v8831 = vadd.f32 0.0, %v8830
    %8832 = vmatmul.f32.gmra.mxu0 %v8177
    %v8833 = vpop.f32.mrf.mxu0
    %v8834 = vadd.f32 0.0, %v8833
    %8835 = vmatmul.f32.gmra.mxu0 %v8771
    %v8836 = vpop.f32.mrf.mxu0
    %v8837 = vadd.f32 0.0, %v8836
    %8838 = vdwg.mxu0
    %v8839 = vadd.f32 %v8723, %v8792
    %v8840 = vadd.f32 %v8724, %v8795
    %v8841 = vadd.f32 %v8725, %v8798
    %v8842 = vadd.f32 %v8726, %v8801
    %v8843 = vadd.f32 %v8727, %v8804
    %v8844 = vadd.f32 %v8728, %v8807
    %v8845 = vadd.f32 %v8729, %v8810
    %v8846 = vadd.f32 %v8730, %v8813
    %v8847 = vadd.f32 %v8731, %v8816
    %v8848 = vadd.f32 %v8732, %v8819
    %v8849 = vadd.f32 %v8733, %v8822
    %v8850 = vadd.f32 %v8734, %v8825
    %v8851 = vadd.f32 %v8735, %v8828
    %v8852 = vadd.f32 %v8736, %v8831
    %v8853 = vadd.f32 %v8737, %v8834
    %v8854 = vadd.f32 %v8738, %v8837
    %s8855 = scalar_lea.vmem %s3, 2176
    %v8856 = vld [vmem:[%s8855] sm:$0xff]
    %v8857 = vld [vmem:[%s8855 + $0x8] sm:$0xff]
    %v8858 = vld [vmem:[%s8855 + $0x10] sm:$0xff]
    %v8859 = vld [vmem:[%s8855 + $0x18] sm:$0xff]
    %v8860 = vld [vmem:[%s8855 + $0x20] sm:$0xff]
    %v8861 = vld [vmem:[%s8855 + $0x28] sm:$0xff]
    %v8862 = vld [vmem:[%s8855 + $0x30] sm:$0xff]
    %v8863 = vld [vmem:[%s8855 + $0x38] sm:$0xff]
    %v8864 = vld [vmem:[%s8855 + $0x40] sm:$0xff]
    %v8865 = vld [vmem:[%s8855 + $0x48] sm:$0xff]
    %v8866 = vld [vmem:[%s8855 + $0x50] sm:$0xff]
    %v8867 = vld [vmem:[%s8855 + $0x58] sm:$0xff]
    %v8868 = vld [vmem:[%s8855 + $0x60] sm:$0xff]
    %v8869 = vld [vmem:[%s8855 + $0x68] sm:$0xff]
    %v8870 = vld [vmem:[%s8855 + $0x70] sm:$0xff]
    %v8871 = vld [vmem:[%s8855 + $0x78] sm:$0xff]
    %v8874 = vsel %vm6286, %v5960, %v5959
    %v8875 = vsel %vm6288, %v5961, %v8874
    %v8876 = vsel %vm6290, %v5962, %v8875
    %v8877 = vsel %vm6292, %v5963, %v8876
    %v8878 = vsel %vm6294, %v5964, %v8877
    %v8879 = vsel %vm6296, %v5965, %v8878
    %v8880 = vsel %vm6298, %v5966, %v8879
    %v8881 = vsel %vm6286, %v6104, %v6103
    %v8882 = vsel %vm6288, %v6105, %v8881
    %v8883 = vsel %vm6290, %v6106, %v8882
    %v8884 = vsel %vm6292, %v6107, %v8883
    %v8885 = vsel %vm6294, %v6108, %v8884
    %v8886 = vsel %vm6296, %v6109, %v8885
    %v8887 = vsel %vm6298, %v6110, %v8886
    %8890 = vmatpush.msra.mxu0 %v8871
    %8891 = vmatpush.msra.mxu0 %v8870
    %8892 = vmatpush.msra.mxu0 %v8869
    %8893 = vmatpush.msra.mxu0 %v8868
    %8894 = vmatpush.msra.mxu0 %v8867
    %8895 = vmatpush.msra.mxu0 %v8866
    %8896 = vmatpush.msra.mxu0 %v8865
    %8897 = vmatpush.msra.mxu0 %v8864
    %8898 = vmatpush.msra.mxu0 %v8863
    %8899 = vmatpush.msra.mxu0 %v8862
    %8900 = vmatpush.msra.mxu0 %v8861
    %8901 = vmatpush.msra.mxu0 %v8860
    %8902 = vmatpush.msra.mxu0 %v8859
    %8903 = vmatpush.msra.mxu0 %v8858
    %8904 = vmatpush.msra.mxu0 %v8857
    %8905 = vmatpush.msra.mxu0 %v8856
    %8906 = vmatmul.f32.gmra.mxu0 %v6755
    %v8907 = vpop.f32.mrf.mxu0
    %v8908 = vadd.f32 0.0, %v8907
    %8909 = vmatmul.f32.gmra.mxu0 %v6762
    %v8910 = vpop.f32.mrf.mxu0
    %v8911 = vadd.f32 0.0, %v8910
    %8912 = vmatmul.f32.gmra.mxu0 %v6769
    %v8913 = vpop.f32.mrf.mxu0
    %v8914 = vadd.f32 0.0, %v8913
    %8915 = vmatmul.f32.gmra.mxu0 %v6776
    %v8916 = vpop.f32.mrf.mxu0
    %v8917 = vadd.f32 0.0, %v8916
    %8918 = vmatmul.f32.gmra.mxu0 %v6783
    %v8919 = vpop.f32.mrf.mxu0
    %v8920 = vadd.f32 0.0, %v8919
    %8921 = vmatmul.f32.gmra.mxu0 %v7692
    %v8922 = vpop.f32.mrf.mxu0
    %v8923 = vadd.f32 0.0, %v8922
    %8924 = vmatmul.f32.gmra.mxu0 %v8286
    %v8925 = vpop.f32.mrf.mxu0
    %v8926 = vadd.f32 0.0, %v8925
    %8927 = vmatmul.f32.gmra.mxu0 %v8880
    %v8928 = vpop.f32.mrf.mxu0
    %v8929 = vadd.f32 0.0, %v8928
    %8930 = vmatmul.f32.gmra.mxu0 %v6811
    %v8931 = vpop.f32.mrf.mxu0
    %v8932 = vadd.f32 0.0, %v8931
    %8933 = vmatmul.f32.gmra.mxu0 %v6818
    %v8934 = vpop.f32.mrf.mxu0
    %v8935 = vadd.f32 0.0, %v8934
    %8936 = vmatmul.f32.gmra.mxu0 %v6825
    %v8937 = vpop.f32.mrf.mxu0
    %v8938 = vadd.f32 0.0, %v8937
    %8939 = vmatmul.f32.gmra.mxu0 %v6832
    %v8940 = vpop.f32.mrf.mxu0
    %v8941 = vadd.f32 0.0, %v8940
    %8942 = vmatmul.f32.gmra.mxu0 %v6839
    %v8943 = vpop.f32.mrf.mxu0
    %v8944 = vadd.f32 0.0, %v8943
    %8945 = vmatmul.f32.gmra.mxu0 %v7699
    %v8946 = vpop.f32.mrf.mxu0
    %v8947 = vadd.f32 0.0, %v8946
    %8948 = vmatmul.f32.gmra.mxu0 %v8293
    %v8949 = vpop.f32.mrf.mxu0
    %v8950 = vadd.f32 0.0, %v8949
    %8951 = vmatmul.f32.gmra.mxu0 %v8887
    %v8952 = vpop.f32.mrf.mxu0
    %v8953 = vadd.f32 0.0, %v8952
    %8954 = vdwg.mxu0
    %v8955 = vadd.f32 %v8839, %v8908
    %v8956 = vadd.f32 %v8840, %v8911
    %v8957 = vadd.f32 %v8841, %v8914
    %v8958 = vadd.f32 %v8842, %v8917
    %v8959 = vadd.f32 %v8843, %v8920
    %v8960 = vadd.f32 %v8844, %v8923
    %v8961 = vadd.f32 %v8845, %v8926
    %v8962 = vadd.f32 %v8846, %v8929
    %v8963 = vadd.f32 %v8847, %v8932
    %v8964 = vadd.f32 %v8848, %v8935
    %v8965 = vadd.f32 %v8849, %v8938
    %v8966 = vadd.f32 %v8850, %v8941
    %v8967 = vadd.f32 %v8851, %v8944
    %v8968 = vadd.f32 %v8852, %v8947
    %v8969 = vadd.f32 %v8853, %v8950
    %v8970 = vadd.f32 %v8854, %v8953
    %s8971 = scalar_lea.vmem %s3, 2304
    %v8972 = vld [vmem:[%s8971] sm:$0xff]
    %v8973 = vld [vmem:[%s8971 + $0x8] sm:$0xff]
    %v8974 = vld [vmem:[%s8971 + $0x10] sm:$0xff]
    %v8975 = vld [vmem:[%s8971 + $0x18] sm:$0xff]
    %v8976 = vld [vmem:[%s8971 + $0x20] sm:$0xff]
    %v8977 = vld [vmem:[%s8971 + $0x28] sm:$0xff]
    %v8978 = vld [vmem:[%s8971 + $0x30] sm:$0xff]
    %v8979 = vld [vmem:[%s8971 + $0x38] sm:$0xff]
    %v8980 = vld [vmem:[%s8971 + $0x40] sm:$0xff]
    %v8981 = vld [vmem:[%s8971 + $0x48] sm:$0xff]
    %v8982 = vld [vmem:[%s8971 + $0x50] sm:$0xff]
    %v8983 = vld [vmem:[%s8971 + $0x58] sm:$0xff]
    %v8984 = vld [vmem:[%s8971 + $0x60] sm:$0xff]
    %v8985 = vld [vmem:[%s8971 + $0x68] sm:$0xff]
    %v8986 = vld [vmem:[%s8971 + $0x70] sm:$0xff]
    %v8987 = vld [vmem:[%s8971 + $0x78] sm:$0xff]
    %v8990 = vsel %vm6286, %v5961, %v5960
    %v8991 = vsel %vm6288, %v5962, %v8990
    %v8992 = vsel %vm6290, %v5963, %v8991
    %v8993 = vsel %vm6292, %v5964, %v8992
    %v8994 = vsel %vm6294, %v5965, %v8993
    %v8995 = vsel %vm6296, %v5966, %v8994
    %v8996 = vsel %vm6298, %v5967, %v8995
    %v8997 = vsel %vm6286, %v6105, %v6104
    %v8998 = vsel %vm6288, %v6106, %v8997
    %v8999 = vsel %vm6290, %v6107, %v8998
    %v9000 = vsel %vm6292, %v6108, %v8999
    %v9001 = vsel %vm6294, %v6109, %v9000
    %v9002 = vsel %vm6296, %v6110, %v9001
    %v9003 = vsel %vm6298, %v6111, %v9002
    %9006 = vmatpush.msra.mxu0 %v8987
    %9007 = vmatpush.msra.mxu0 %v8986
    %9008 = vmatpush.msra.mxu0 %v8985
    %9009 = vmatpush.msra.mxu0 %v8984
    %9010 = vmatpush.msra.mxu0 %v8983
    %9011 = vmatpush.msra.mxu0 %v8982
    %9012 = vmatpush.msra.mxu0 %v8981
    %9013 = vmatpush.msra.mxu0 %v8980
    %9014 = vmatpush.msra.mxu0 %v8979
    %9015 = vmatpush.msra.mxu0 %v8978
    %9016 = vmatpush.msra.mxu0 %v8977
    %9017 = vmatpush.msra.mxu0 %v8976
    %9018 = vmatpush.msra.mxu0 %v8975
    %9019 = vmatpush.msra.mxu0 %v8974
    %9020 = vmatpush.msra.mxu0 %v8973
    %9021 = vmatpush.msra.mxu0 %v8972
    %9022 = vmatmul.f32.gmra.mxu0 %v6997
    %v9023 = vpop.f32.mrf.mxu0
    %v9024 = vadd.f32 0.0, %v9023
    %9025 = vmatmul.f32.gmra.mxu0 %v7004
    %v9026 = vpop.f32.mrf.mxu0
    %v9027 = vadd.f32 0.0, %v9026
    %9028 = vmatmul.f32.gmra.mxu0 %v7011
    %v9029 = vpop.f32.mrf.mxu0
    %v9030 = vadd.f32 0.0, %v9029
    %9031 = vmatmul.f32.gmra.mxu0 %v7018
    %v9032 = vpop.f32.mrf.mxu0
    %v9033 = vadd.f32 0.0, %v9032
    %9034 = vmatmul.f32.gmra.mxu0 %v7025
    %v9035 = vpop.f32.mrf.mxu0
    %v9036 = vadd.f32 0.0, %v9035
    %9037 = vmatmul.f32.gmra.mxu0 %v7808
    %v9038 = vpop.f32.mrf.mxu0
    %v9039 = vadd.f32 0.0, %v9038
    %9040 = vmatmul.f32.gmra.mxu0 %v8402
    %v9041 = vpop.f32.mrf.mxu0
    %v9042 = vadd.f32 0.0, %v9041
    %9043 = vmatmul.f32.gmra.mxu0 %v8996
    %v9044 = vpop.f32.mrf.mxu0
    %v9045 = vadd.f32 0.0, %v9044
    %9046 = vmatmul.f32.gmra.mxu0 %v7053
    %v9047 = vpop.f32.mrf.mxu0
    %v9048 = vadd.f32 0.0, %v9047
    %9049 = vmatmul.f32.gmra.mxu0 %v7060
    %v9050 = vpop.f32.mrf.mxu0
    %v9051 = vadd.f32 0.0, %v9050
    %9052 = vmatmul.f32.gmra.mxu0 %v7067
    %v9053 = vpop.f32.mrf.mxu0
    %v9054 = vadd.f32 0.0, %v9053
    %9055 = vmatmul.f32.gmra.mxu0 %v7074
    %v9056 = vpop.f32.mrf.mxu0
    %v9057 = vadd.f32 0.0, %v9056
    %9058 = vmatmul.f32.gmra.mxu0 %v7081
    %v9059 = vpop.f32.mrf.mxu0
    %v9060 = vadd.f32 0.0, %v9059
    %9061 = vmatmul.f32.gmra.mxu0 %v7815
    %v9062 = vpop.f32.mrf.mxu0
    %v9063 = vadd.f32 0.0, %v9062
    %9064 = vmatmul.f32.gmra.mxu0 %v8409
    %v9065 = vpop.f32.mrf.mxu0
    %v9066 = vadd.f32 0.0, %v9065
    %9067 = vmatmul.f32.gmra.mxu0 %v9003
    %v9068 = vpop.f32.mrf.mxu0
    %v9069 = vadd.f32 0.0, %v9068
    %9070 = vdwg.mxu0
    %v9071 = vadd.f32 %v8955, %v9024
    %v9072 = vadd.f32 %v8956, %v9027
    %v9073 = vadd.f32 %v8957, %v9030
    %v9074 = vadd.f32 %v8958, %v9033
    %v9075 = vadd.f32 %v8959, %v9036
    %v9076 = vadd.f32 %v8960, %v9039
    %v9077 = vadd.f32 %v8961, %v9042
    %v9078 = vadd.f32 %v8962, %v9045
    %v9079 = vadd.f32 %v8963, %v9048
    %v9080 = vadd.f32 %v8964, %v9051
    %v9081 = vadd.f32 %v8965, %v9054
    %v9082 = vadd.f32 %v8966, %v9057
    %v9083 = vadd.f32 %v8967, %v9060
    %v9084 = vadd.f32 %v8968, %v9063
    %v9085 = vadd.f32 %v8969, %v9066
    %v9086 = vadd.f32 %v8970, %v9069
    %s9087 = scalar_lea.vmem %s3, 2432
    %v9088 = vld [vmem:[%s9087] sm:$0xff]
    %v9089 = vld [vmem:[%s9087 + $0x8] sm:$0xff]
    %v9090 = vld [vmem:[%s9087 + $0x10] sm:$0xff]
    %v9091 = vld [vmem:[%s9087 + $0x18] sm:$0xff]
    %v9092 = vld [vmem:[%s9087 + $0x20] sm:$0xff]
    %v9093 = vld [vmem:[%s9087 + $0x28] sm:$0xff]
    %v9094 = vld [vmem:[%s9087 + $0x30] sm:$0xff]
    %v9095 = vld [vmem:[%s9087 + $0x38] sm:$0xff]
    %v9096 = vld [vmem:[%s9087 + $0x40] sm:$0xff]
    %v9097 = vld [vmem:[%s9087 + $0x48] sm:$0xff]
    %v9098 = vld [vmem:[%s9087 + $0x50] sm:$0xff]
    %v9099 = vld [vmem:[%s9087 + $0x58] sm:$0xff]
    %v9100 = vld [vmem:[%s9087 + $0x60] sm:$0xff]
    %v9101 = vld [vmem:[%s9087 + $0x68] sm:$0xff]
    %v9102 = vld [vmem:[%s9087 + $0x70] sm:$0xff]
    %v9103 = vld [vmem:[%s9087 + $0x78] sm:$0xff]
    %v9106 = vsel %vm6286, %v5962, %v5961
    %v9107 = vsel %vm6288, %v5963, %v9106
    %v9108 = vsel %vm6290, %v5964, %v9107
    %v9109 = vsel %vm6292, %v5965, %v9108
    %v9110 = vsel %vm6294, %v5966, %v9109
    %v9111 = vsel %vm6296, %v5967, %v9110
    %v9112 = vsel %vm6298, %v5968, %v9111
    %v9113 = vsel %vm6286, %v6106, %v6105
    %v9114 = vsel %vm6288, %v6107, %v9113
    %v9115 = vsel %vm6290, %v6108, %v9114
    %v9116 = vsel %vm6292, %v6109, %v9115
    %v9117 = vsel %vm6294, %v6110, %v9116
    %v9118 = vsel %vm6296, %v6111, %v9117
    %v9119 = vsel %vm6298, %v6112, %v9118
    %9122 = vmatpush.msra.mxu0 %v9103
    %9123 = vmatpush.msra.mxu0 %v9102
    %9124 = vmatpush.msra.mxu0 %v9101
    %9125 = vmatpush.msra.mxu0 %v9100
    %9126 = vmatpush.msra.mxu0 %v9099
    %9127 = vmatpush.msra.mxu0 %v9098
    %9128 = vmatpush.msra.mxu0 %v9097
    %9129 = vmatpush.msra.mxu0 %v9096
    %9130 = vmatpush.msra.mxu0 %v9095
    %9131 = vmatpush.msra.mxu0 %v9094
    %9132 = vmatpush.msra.mxu0 %v9093
    %9133 = vmatpush.msra.mxu0 %v9092
    %9134 = vmatpush.msra.mxu0 %v9091
    %9135 = vmatpush.msra.mxu0 %v9090
    %9136 = vmatpush.msra.mxu0 %v9089
    %9137 = vmatpush.msra.mxu0 %v9088
    %9138 = vmatmul.f32.gmra.mxu0 %v7239
    %v9139 = vpop.f32.mrf.mxu0
    %v9140 = vadd.f32 0.0, %v9139
    %9141 = vmatmul.f32.gmra.mxu0 %v7246
    %v9142 = vpop.f32.mrf.mxu0
    %v9143 = vadd.f32 0.0, %v9142
    %9144 = vmatmul.f32.gmra.mxu0 %v7253
    %v9145 = vpop.f32.mrf.mxu0
    %v9146 = vadd.f32 0.0, %v9145
    %9147 = vmatmul.f32.gmra.mxu0 %v7260
    %v9148 = vpop.f32.mrf.mxu0
    %v9149 = vadd.f32 0.0, %v9148
    %9150 = vmatmul.f32.gmra.mxu0 %v7267
    %v9151 = vpop.f32.mrf.mxu0
    %v9152 = vadd.f32 0.0, %v9151
    %9153 = vmatmul.f32.gmra.mxu0 %v7924
    %v9154 = vpop.f32.mrf.mxu0
    %v9155 = vadd.f32 0.0, %v9154
    %9156 = vmatmul.f32.gmra.mxu0 %v8518
    %v9157 = vpop.f32.mrf.mxu0
    %v9158 = vadd.f32 0.0, %v9157
    %9159 = vmatmul.f32.gmra.mxu0 %v9112
    %v9160 = vpop.f32.mrf.mxu0
    %v9161 = vadd.f32 0.0, %v9160
    %9162 = vmatmul.f32.gmra.mxu0 %v7295
    %v9163 = vpop.f32.mrf.mxu0
    %v9164 = vadd.f32 0.0, %v9163
    %9165 = vmatmul.f32.gmra.mxu0 %v7302
    %v9166 = vpop.f32.mrf.mxu0
    %v9167 = vadd.f32 0.0, %v9166
    %9168 = vmatmul.f32.gmra.mxu0 %v7309
    %v9169 = vpop.f32.mrf.mxu0
    %v9170 = vadd.f32 0.0, %v9169
    %9171 = vmatmul.f32.gmra.mxu0 %v7316
    %v9172 = vpop.f32.mrf.mxu0
    %v9173 = vadd.f32 0.0, %v9172
    %9174 = vmatmul.f32.gmra.mxu0 %v7323
    %v9175 = vpop.f32.mrf.mxu0
    %v9176 = vadd.f32 0.0, %v9175
    %9177 = vmatmul.f32.gmra.mxu0 %v7931
    %v9178 = vpop.f32.mrf.mxu0
    %v9179 = vadd.f32 0.0, %v9178
    %9180 = vmatmul.f32.gmra.mxu0 %v8525
    %v9181 = vpop.f32.mrf.mxu0
    %v9182 = vadd.f32 0.0, %v9181
    %9183 = vmatmul.f32.gmra.mxu0 %v9119
    %v9184 = vpop.f32.mrf.mxu0
    %v9185 = vadd.f32 0.0, %v9184
    %9186 = vdwg.mxu0
    %v9187 = vadd.f32 %v9071, %v9140
    %v9188 = vadd.f32 %v9072, %v9143
    %v9189 = vadd.f32 %v9073, %v9146
    %v9190 = vadd.f32 %v9074, %v9149
    %v9191 = vadd.f32 %v9075, %v9152
    %v9192 = vadd.f32 %v9076, %v9155
    %v9193 = vadd.f32 %v9077, %v9158
    %v9194 = vadd.f32 %v9078, %v9161
    %v9195 = vadd.f32 %v9079, %v9164
    %v9196 = vadd.f32 %v9080, %v9167
    %v9197 = vadd.f32 %v9081, %v9170
    %v9198 = vadd.f32 %v9082, %v9173
    %v9199 = vadd.f32 %v9083, %v9176
    %v9200 = vadd.f32 %v9084, %v9179
    %v9201 = vadd.f32 %v9085, %v9182
    %v9202 = vadd.f32 %v9086, %v9185
    %s9203 = scalar_lea.vmem %s3, 2560
    %v9204 = vld [vmem:[%s9203] sm:$0xff]
    %v9205 = vld [vmem:[%s9203 + $0x8] sm:$0xff]
    %v9206 = vld [vmem:[%s9203 + $0x10] sm:$0xff]
    %v9207 = vld [vmem:[%s9203 + $0x18] sm:$0xff]
    %v9208 = vld [vmem:[%s9203 + $0x20] sm:$0xff]
    %v9209 = vld [vmem:[%s9203 + $0x28] sm:$0xff]
    %v9210 = vld [vmem:[%s9203 + $0x30] sm:$0xff]
    %v9211 = vld [vmem:[%s9203 + $0x38] sm:$0xff]
    %v9212 = vld [vmem:[%s9203 + $0x40] sm:$0xff]
    %v9213 = vld [vmem:[%s9203 + $0x48] sm:$0xff]
    %v9214 = vld [vmem:[%s9203 + $0x50] sm:$0xff]
    %v9215 = vld [vmem:[%s9203 + $0x58] sm:$0xff]
    %v9216 = vld [vmem:[%s9203 + $0x60] sm:$0xff]
    %v9217 = vld [vmem:[%s9203 + $0x68] sm:$0xff]
    %v9218 = vld [vmem:[%s9203 + $0x70] sm:$0xff]
    %v9219 = vld [vmem:[%s9203 + $0x78] sm:$0xff]
    %v9236 = vsel %vm6286, %v5970, %v5969
    %v9237 = vsel %vm6288, %v5971, %v9236
    %v9238 = vsel %vm6290, %v5972, %v9237
    %v9239 = vsel %vm6292, %v5973, %v9238
    %v9240 = vsel %vm6294, %v5974, %v9239
    %v9241 = vsel %vm6296, %v5975, %v9240
    %v9242 = vsel %vm6298, %v5976, %v9241
    %v9243 = vsel %vm6286, %v6114, %v6113
    %v9244 = vsel %vm6288, %v6115, %v9243
    %v9245 = vsel %vm6290, %v6116, %v9244
    %v9246 = vsel %vm6292, %v6117, %v9245
    %v9247 = vsel %vm6294, %v6118, %v9246
    %v9248 = vsel %vm6296, %v6119, %v9247
    %v9249 = vsel %vm6298, %v6120, %v9248
    %9252 = vmatpush.msra.mxu0 %v9219
    %9253 = vmatpush.msra.mxu0 %v9218
    %9254 = vmatpush.msra.mxu0 %v9217
    %9255 = vmatpush.msra.mxu0 %v9216
    %9256 = vmatpush.msra.mxu0 %v9215
    %9257 = vmatpush.msra.mxu0 %v9214
    %9258 = vmatpush.msra.mxu0 %v9213
    %9259 = vmatpush.msra.mxu0 %v9212
    %9260 = vmatpush.msra.mxu0 %v9211
    %9261 = vmatpush.msra.mxu0 %v9210
    %9262 = vmatpush.msra.mxu0 %v9209
    %9263 = vmatpush.msra.mxu0 %v9208
    %9264 = vmatpush.msra.mxu0 %v9207
    %9265 = vmatpush.msra.mxu0 %v9206
    %9266 = vmatpush.msra.mxu0 %v9205
    %9267 = vmatpush.msra.mxu0 %v9204
    %9268 = vmatmul.f32.gmra.mxu0 %v6536
    %v9269 = vpop.f32.mrf.mxu0
    %v9270 = vadd.f32 0.0, %v9269
    %9271 = vmatmul.f32.gmra.mxu0 %v6543
    %v9272 = vpop.f32.mrf.mxu0
    %v9273 = vadd.f32 0.0, %v9272
    %9274 = vmatmul.f32.gmra.mxu0 %v6550
    %v9275 = vpop.f32.mrf.mxu0
    %v9276 = vadd.f32 0.0, %v9275
    %9277 = vmatmul.f32.gmra.mxu0 %v6557
    %v9278 = vpop.f32.mrf.mxu0
    %v9279 = vadd.f32 0.0, %v9278
    %9280 = vmatmul.f32.gmra.mxu0 %v7460
    %v9281 = vpop.f32.mrf.mxu0
    %v9282 = vadd.f32 0.0, %v9281
    %9283 = vmatmul.f32.gmra.mxu0 %v8054
    %v9284 = vpop.f32.mrf.mxu0
    %v9285 = vadd.f32 0.0, %v9284
    %9286 = vmatmul.f32.gmra.mxu0 %v8648
    %v9287 = vpop.f32.mrf.mxu0
    %v9288 = vadd.f32 0.0, %v9287
    %9289 = vmatmul.f32.gmra.mxu0 %v9242
    %v9290 = vpop.f32.mrf.mxu0
    %v9291 = vadd.f32 0.0, %v9290
    %9292 = vmatmul.f32.gmra.mxu0 %v6592
    %v9293 = vpop.f32.mrf.mxu0
    %v9294 = vadd.f32 0.0, %v9293
    %9295 = vmatmul.f32.gmra.mxu0 %v6599
    %v9296 = vpop.f32.mrf.mxu0
    %v9297 = vadd.f32 0.0, %v9296
    %9298 = vmatmul.f32.gmra.mxu0 %v6606
    %v9299 = vpop.f32.mrf.mxu0
    %v9300 = vadd.f32 0.0, %v9299
    %9301 = vmatmul.f32.gmra.mxu0 %v6613
    %v9302 = vpop.f32.mrf.mxu0
    %v9303 = vadd.f32 0.0, %v9302
    %9304 = vmatmul.f32.gmra.mxu0 %v7467
    %v9305 = vpop.f32.mrf.mxu0
    %v9306 = vadd.f32 0.0, %v9305
    %9307 = vmatmul.f32.gmra.mxu0 %v8061
    %v9308 = vpop.f32.mrf.mxu0
    %v9309 = vadd.f32 0.0, %v9308
    %9310 = vmatmul.f32.gmra.mxu0 %v8655
    %v9311 = vpop.f32.mrf.mxu0
    %v9312 = vadd.f32 0.0, %v9311
    %9313 = vmatmul.f32.gmra.mxu0 %v9249
    %v9314 = vpop.f32.mrf.mxu0
    %v9315 = vadd.f32 0.0, %v9314
    %9316 = vdwg.mxu0
    %v9317 = vadd.f32 %v9187, %v9270
    %v9318 = vadd.f32 %v9188, %v9273
    %v9319 = vadd.f32 %v9189, %v9276
    %v9320 = vadd.f32 %v9190, %v9279
    %v9321 = vadd.f32 %v9191, %v9282
    %v9322 = vadd.f32 %v9192, %v9285
    %v9323 = vadd.f32 %v9193, %v9288
    %v9324 = vadd.f32 %v9194, %v9291
    %v9325 = vadd.f32 %v9195, %v9294
    %v9326 = vadd.f32 %v9196, %v9297
    %v9327 = vadd.f32 %v9197, %v9300
    %v9328 = vadd.f32 %v9198, %v9303
    %v9329 = vadd.f32 %v9199, %v9306
    %v9330 = vadd.f32 %v9200, %v9309
    %v9331 = vadd.f32 %v9201, %v9312
    %v9332 = vadd.f32 %v9202, %v9315
    %s9333 = scalar_lea.vmem %s3, 2688
    %v9334 = vld [vmem:[%s9333] sm:$0xff]
    %v9335 = vld [vmem:[%s9333 + $0x8] sm:$0xff]
    %v9336 = vld [vmem:[%s9333 + $0x10] sm:$0xff]
    %v9337 = vld [vmem:[%s9333 + $0x18] sm:$0xff]
    %v9338 = vld [vmem:[%s9333 + $0x20] sm:$0xff]
    %v9339 = vld [vmem:[%s9333 + $0x28] sm:$0xff]
    %v9340 = vld [vmem:[%s9333 + $0x30] sm:$0xff]
    %v9341 = vld [vmem:[%s9333 + $0x38] sm:$0xff]
    %v9342 = vld [vmem:[%s9333 + $0x40] sm:$0xff]
    %v9343 = vld [vmem:[%s9333 + $0x48] sm:$0xff]
    %v9344 = vld [vmem:[%s9333 + $0x50] sm:$0xff]
    %v9345 = vld [vmem:[%s9333 + $0x58] sm:$0xff]
    %v9346 = vld [vmem:[%s9333 + $0x60] sm:$0xff]
    %v9347 = vld [vmem:[%s9333 + $0x68] sm:$0xff]
    %v9348 = vld [vmem:[%s9333 + $0x70] sm:$0xff]
    %v9349 = vld [vmem:[%s9333 + $0x78] sm:$0xff]
    %v9352 = vsel %vm6286, %v5971, %v5970
    %v9353 = vsel %vm6288, %v5972, %v9352
    %v9354 = vsel %vm6290, %v5973, %v9353
    %v9355 = vsel %vm6292, %v5974, %v9354
    %v9356 = vsel %vm6294, %v5975, %v9355
    %v9357 = vsel %vm6296, %v5976, %v9356
    %v9358 = vsel %vm6298, %v5977, %v9357
    %v9359 = vsel %vm6286, %v6115, %v6114
    %v9360 = vsel %vm6288, %v6116, %v9359
    %v9361 = vsel %vm6290, %v6117, %v9360
    %v9362 = vsel %vm6292, %v6118, %v9361
    %v9363 = vsel %vm6294, %v6119, %v9362
    %v9364 = vsel %vm6296, %v6120, %v9363
    %v9365 = vsel %vm6298, %v6121, %v9364
    %9368 = vmatpush.msra.mxu0 %v9349
    %9369 = vmatpush.msra.mxu0 %v9348
    %9370 = vmatpush.msra.mxu0 %v9347
    %9371 = vmatpush.msra.mxu0 %v9346
    %9372 = vmatpush.msra.mxu0 %v9345
    %9373 = vmatpush.msra.mxu0 %v9344
    %9374 = vmatpush.msra.mxu0 %v9343
    %9375 = vmatpush.msra.mxu0 %v9342
    %9376 = vmatpush.msra.mxu0 %v9341
    %9377 = vmatpush.msra.mxu0 %v9340
    %9378 = vmatpush.msra.mxu0 %v9339
    %9379 = vmatpush.msra.mxu0 %v9338
    %9380 = vmatpush.msra.mxu0 %v9337
    %9381 = vmatpush.msra.mxu0 %v9336
    %9382 = vmatpush.msra.mxu0 %v9335
    %9383 = vmatpush.msra.mxu0 %v9334
    %9384 = vmatmul.f32.gmra.mxu0 %v6327
    %v9385 = vpop.f32.mrf.mxu0
    %v9386 = vadd.f32 0.0, %v9385
    %9387 = vmatmul.f32.gmra.mxu0 %v6334
    %v9388 = vpop.f32.mrf.mxu0
    %v9389 = vadd.f32 0.0, %v9388
    %9390 = vmatmul.f32.gmra.mxu0 %v6341
    %v9391 = vpop.f32.mrf.mxu0
    %v9392 = vadd.f32 0.0, %v9391
    %9393 = vmatmul.f32.gmra.mxu0 %v6348
    %v9394 = vpop.f32.mrf.mxu0
    %v9395 = vadd.f32 0.0, %v9394
    %9396 = vmatmul.f32.gmra.mxu0 %v7576
    %v9397 = vpop.f32.mrf.mxu0
    %v9398 = vadd.f32 0.0, %v9397
    %9399 = vmatmul.f32.gmra.mxu0 %v8170
    %v9400 = vpop.f32.mrf.mxu0
    %v9401 = vadd.f32 0.0, %v9400
    %9402 = vmatmul.f32.gmra.mxu0 %v8764
    %v9403 = vpop.f32.mrf.mxu0
    %v9404 = vadd.f32 0.0, %v9403
    %9405 = vmatmul.f32.gmra.mxu0 %v9358
    %v9406 = vpop.f32.mrf.mxu0
    %v9407 = vadd.f32 0.0, %v9406
    %9408 = vmatmul.f32.gmra.mxu0 %v6383
    %v9409 = vpop.f32.mrf.mxu0
    %v9410 = vadd.f32 0.0, %v9409
    %9411 = vmatmul.f32.gmra.mxu0 %v6390
    %v9412 = vpop.f32.mrf.mxu0
    %v9413 = vadd.f32 0.0, %v9412
    %9414 = vmatmul.f32.gmra.mxu0 %v6397
    %v9415 = vpop.f32.mrf.mxu0
    %v9416 = vadd.f32 0.0, %v9415
    %9417 = vmatmul.f32.gmra.mxu0 %v6404
    %v9418 = vpop.f32.mrf.mxu0
    %v9419 = vadd.f32 0.0, %v9418
    %9420 = vmatmul.f32.gmra.mxu0 %v7583
    %v9421 = vpop.f32.mrf.mxu0
    %v9422 = vadd.f32 0.0, %v9421
    %9423 = vmatmul.f32.gmra.mxu0 %v8177
    %v9424 = vpop.f32.mrf.mxu0
    %v9425 = vadd.f32 0.0, %v9424
    %9426 = vmatmul.f32.gmra.mxu0 %v8771
    %v9427 = vpop.f32.mrf.mxu0
    %v9428 = vadd.f32 0.0, %v9427
    %9429 = vmatmul.f32.gmra.mxu0 %v9365
    %v9430 = vpop.f32.mrf.mxu0
    %v9431 = vadd.f32 0.0, %v9430
    %9432 = vdwg.mxu0
    %v9433 = vadd.f32 %v9317, %v9386
    %v9434 = vadd.f32 %v9318, %v9389
    %v9435 = vadd.f32 %v9319, %v9392
    %v9436 = vadd.f32 %v9320, %v9395
    %v9437 = vadd.f32 %v9321, %v9398
    %v9438 = vadd.f32 %v9322, %v9401
    %v9439 = vadd.f32 %v9323, %v9404
    %v9440 = vadd.f32 %v9324, %v9407
    %v9441 = vadd.f32 %v9325, %v9410
    %v9442 = vadd.f32 %v9326, %v9413
    %v9443 = vadd.f32 %v9327, %v9416
    %v9444 = vadd.f32 %v9328, %v9419
    %v9445 = vadd.f32 %v9329, %v9422
    %v9446 = vadd.f32 %v9330, %v9425
    %v9447 = vadd.f32 %v9331, %v9428
    %v9448 = vadd.f32 %v9332, %v9431
    %s9449 = scalar_lea.vmem %s3, 2816
    %v9450 = vld [vmem:[%s9449] sm:$0xff]
    %v9451 = vld [vmem:[%s9449 + $0x8] sm:$0xff]
    %v9452 = vld [vmem:[%s9449 + $0x10] sm:$0xff]
    %v9453 = vld [vmem:[%s9449 + $0x18] sm:$0xff]
    %v9454 = vld [vmem:[%s9449 + $0x20] sm:$0xff]
    %v9455 = vld [vmem:[%s9449 + $0x28] sm:$0xff]
    %v9456 = vld [vmem:[%s9449 + $0x30] sm:$0xff]
    %v9457 = vld [vmem:[%s9449 + $0x38] sm:$0xff]
    %v9458 = vld [vmem:[%s9449 + $0x40] sm:$0xff]
    %v9459 = vld [vmem:[%s9449 + $0x48] sm:$0xff]
    %v9460 = vld [vmem:[%s9449 + $0x50] sm:$0xff]
    %v9461 = vld [vmem:[%s9449 + $0x58] sm:$0xff]
    %v9462 = vld [vmem:[%s9449 + $0x60] sm:$0xff]
    %v9463 = vld [vmem:[%s9449 + $0x68] sm:$0xff]
    %v9464 = vld [vmem:[%s9449 + $0x70] sm:$0xff]
    %v9465 = vld [vmem:[%s9449 + $0x78] sm:$0xff]
    %v9468 = vsel %vm6286, %v5972, %v5971
    %v9469 = vsel %vm6288, %v5973, %v9468
    %v9470 = vsel %vm6290, %v5974, %v9469
    %v9471 = vsel %vm6292, %v5975, %v9470
    %v9472 = vsel %vm6294, %v5976, %v9471
    %v9473 = vsel %vm6296, %v5977, %v9472
    %v9474 = vsel %vm6298, %v5978, %v9473
    %v9475 = vsel %vm6286, %v6116, %v6115
    %v9476 = vsel %vm6288, %v6117, %v9475
    %v9477 = vsel %vm6290, %v6118, %v9476
    %v9478 = vsel %vm6292, %v6119, %v9477
    %v9479 = vsel %vm6294, %v6120, %v9478
    %v9480 = vsel %vm6296, %v6121, %v9479
    %v9481 = vsel %vm6298, %v6122, %v9480
    %9484 = vmatpush.msra.mxu0 %v9465
    %9485 = vmatpush.msra.mxu0 %v9464
    %9486 = vmatpush.msra.mxu0 %v9463
    %9487 = vmatpush.msra.mxu0 %v9462
    %9488 = vmatpush.msra.mxu0 %v9461
    %9489 = vmatpush.msra.mxu0 %v9460
    %9490 = vmatpush.msra.mxu0 %v9459
    %9491 = vmatpush.msra.mxu0 %v9458
    %9492 = vmatpush.msra.mxu0 %v9457
    %9493 = vmatpush.msra.mxu0 %v9456
    %9494 = vmatpush.msra.mxu0 %v9455
    %9495 = vmatpush.msra.mxu0 %v9454
    %9496 = vmatpush.msra.mxu0 %v9453
    %9497 = vmatpush.msra.mxu0 %v9452
    %9498 = vmatpush.msra.mxu0 %v9451
    %9499 = vmatpush.msra.mxu0 %v9450
    %9500 = vmatmul.f32.gmra.mxu0 %v6762
    %v9501 = vpop.f32.mrf.mxu0
    %v9502 = vadd.f32 0.0, %v9501
    %9503 = vmatmul.f32.gmra.mxu0 %v6769
    %v9504 = vpop.f32.mrf.mxu0
    %v9505 = vadd.f32 0.0, %v9504
    %9506 = vmatmul.f32.gmra.mxu0 %v6776
    %v9507 = vpop.f32.mrf.mxu0
    %v9508 = vadd.f32 0.0, %v9507
    %9509 = vmatmul.f32.gmra.mxu0 %v6783
    %v9510 = vpop.f32.mrf.mxu0
    %v9511 = vadd.f32 0.0, %v9510
    %9512 = vmatmul.f32.gmra.mxu0 %v7692
    %v9513 = vpop.f32.mrf.mxu0
    %v9514 = vadd.f32 0.0, %v9513
    %9515 = vmatmul.f32.gmra.mxu0 %v8286
    %v9516 = vpop.f32.mrf.mxu0
    %v9517 = vadd.f32 0.0, %v9516
    %9518 = vmatmul.f32.gmra.mxu0 %v8880
    %v9519 = vpop.f32.mrf.mxu0
    %v9520 = vadd.f32 0.0, %v9519
    %9521 = vmatmul.f32.gmra.mxu0 %v9474
    %v9522 = vpop.f32.mrf.mxu0
    %v9523 = vadd.f32 0.0, %v9522
    %9524 = vmatmul.f32.gmra.mxu0 %v6818
    %v9525 = vpop.f32.mrf.mxu0
    %v9526 = vadd.f32 0.0, %v9525
    %9527 = vmatmul.f32.gmra.mxu0 %v6825
    %v9528 = vpop.f32.mrf.mxu0
    %v9529 = vadd.f32 0.0, %v9528
    %9530 = vmatmul.f32.gmra.mxu0 %v6832
    %v9531 = vpop.f32.mrf.mxu0
    %v9532 = vadd.f32 0.0, %v9531
    %9533 = vmatmul.f32.gmra.mxu0 %v6839
    %v9534 = vpop.f32.mrf.mxu0
    %v9535 = vadd.f32 0.0, %v9534
    %9536 = vmatmul.f32.gmra.mxu0 %v7699
    %v9537 = vpop.f32.mrf.mxu0
    %v9538 = vadd.f32 0.0, %v9537
    %9539 = vmatmul.f32.gmra.mxu0 %v8293
    %v9540 = vpop.f32.mrf.mxu0
    %v9541 = vadd.f32 0.0, %v9540
    %9542 = vmatmul.f32.gmra.mxu0 %v8887
    %v9543 = vpop.f32.mrf.mxu0
    %v9544 = vadd.f32 0.0, %v9543
    %9545 = vmatmul.f32.gmra.mxu0 %v9481
    %v9546 = vpop.f32.mrf.mxu0
    %v9547 = vadd.f32 0.0, %v9546
    %9548 = vdwg.mxu0
    %v9549 = vadd.f32 %v9433, %v9502
    %v9550 = vadd.f32 %v9434, %v9505
    %v9551 = vadd.f32 %v9435, %v9508
    %v9552 = vadd.f32 %v9436, %v9511
    %v9553 = vadd.f32 %v9437, %v9514
    %v9554 = vadd.f32 %v9438, %v9517
    %v9555 = vadd.f32 %v9439, %v9520
    %v9556 = vadd.f32 %v9440, %v9523
    %v9557 = vadd.f32 %v9441, %v9526
    %v9558 = vadd.f32 %v9442, %v9529
    %v9559 = vadd.f32 %v9443, %v9532
    %v9560 = vadd.f32 %v9444, %v9535
    %v9561 = vadd.f32 %v9445, %v9538
    %v9562 = vadd.f32 %v9446, %v9541
    %v9563 = vadd.f32 %v9447, %v9544
    %v9564 = vadd.f32 %v9448, %v9547
    %s9565 = scalar_lea.vmem %s3, 2944
    %v9566 = vld [vmem:[%s9565] sm:$0xff]
    %v9567 = vld [vmem:[%s9565 + $0x8] sm:$0xff]
    %v9568 = vld [vmem:[%s9565 + $0x10] sm:$0xff]
    %v9569 = vld [vmem:[%s9565 + $0x18] sm:$0xff]
    %v9570 = vld [vmem:[%s9565 + $0x20] sm:$0xff]
    %v9571 = vld [vmem:[%s9565 + $0x28] sm:$0xff]
    %v9572 = vld [vmem:[%s9565 + $0x30] sm:$0xff]
    %v9573 = vld [vmem:[%s9565 + $0x38] sm:$0xff]
    %v9574 = vld [vmem:[%s9565 + $0x40] sm:$0xff]
    %v9575 = vld [vmem:[%s9565 + $0x48] sm:$0xff]
    %v9576 = vld [vmem:[%s9565 + $0x50] sm:$0xff]
    %v9577 = vld [vmem:[%s9565 + $0x58] sm:$0xff]
    %v9578 = vld [vmem:[%s9565 + $0x60] sm:$0xff]
    %v9579 = vld [vmem:[%s9565 + $0x68] sm:$0xff]
    %v9580 = vld [vmem:[%s9565 + $0x70] sm:$0xff]
    %v9581 = vld [vmem:[%s9565 + $0x78] sm:$0xff]
    %v9584 = vsel %vm6286, %v5973, %v5972
    %v9585 = vsel %vm6288, %v5974, %v9584
    %v9586 = vsel %vm6290, %v5975, %v9585
    %v9587 = vsel %vm6292, %v5976, %v9586
    %v9588 = vsel %vm6294, %v5977, %v9587
    %v9589 = vsel %vm6296, %v5978, %v9588
    %v9590 = vsel %vm6298, %v5979, %v9589
    %v9591 = vsel %vm6286, %v6117, %v6116
    %v9592 = vsel %vm6288, %v6118, %v9591
    %v9593 = vsel %vm6290, %v6119, %v9592
    %v9594 = vsel %vm6292, %v6120, %v9593
    %v9595 = vsel %vm6294, %v6121, %v9594
    %v9596 = vsel %vm6296, %v6122, %v9595
    %v9597 = vsel %vm6298, %v6123, %v9596
    %9600 = vmatpush.msra.mxu0 %v9581
    %9601 = vmatpush.msra.mxu0 %v9580
    %9602 = vmatpush.msra.mxu0 %v9579
    %9603 = vmatpush.msra.mxu0 %v9578
    %9604 = vmatpush.msra.mxu0 %v9577
    %9605 = vmatpush.msra.mxu0 %v9576
    %9606 = vmatpush.msra.mxu0 %v9575
    %9607 = vmatpush.msra.mxu0 %v9574
    %9608 = vmatpush.msra.mxu0 %v9573
    %9609 = vmatpush.msra.mxu0 %v9572
    %9610 = vmatpush.msra.mxu0 %v9571
    %9611 = vmatpush.msra.mxu0 %v9570
    %9612 = vmatpush.msra.mxu0 %v9569
    %9613 = vmatpush.msra.mxu0 %v9568
    %9614 = vmatpush.msra.mxu0 %v9567
    %9615 = vmatpush.msra.mxu0 %v9566
    %9616 = vmatmul.f32.gmra.mxu0 %v7004
    %v9617 = vpop.f32.mrf.mxu0
    %v9618 = vadd.f32 0.0, %v9617
    %9619 = vmatmul.f32.gmra.mxu0 %v7011
    %v9620 = vpop.f32.mrf.mxu0
    %v9621 = vadd.f32 0.0, %v9620
    %9622 = vmatmul.f32.gmra.mxu0 %v7018
    %v9623 = vpop.f32.mrf.mxu0
    %v9624 = vadd.f32 0.0, %v9623
    %9625 = vmatmul.f32.gmra.mxu0 %v7025
    %v9626 = vpop.f32.mrf.mxu0
    %v9627 = vadd.f32 0.0, %v9626
    %9628 = vmatmul.f32.gmra.mxu0 %v7808
    %v9629 = vpop.f32.mrf.mxu0
    %v9630 = vadd.f32 0.0, %v9629
    %9631 = vmatmul.f32.gmra.mxu0 %v8402
    %v9632 = vpop.f32.mrf.mxu0
    %v9633 = vadd.f32 0.0, %v9632
    %9634 = vmatmul.f32.gmra.mxu0 %v8996
    %v9635 = vpop.f32.mrf.mxu0
    %v9636 = vadd.f32 0.0, %v9635
    %9637 = vmatmul.f32.gmra.mxu0 %v9590
    %v9638 = vpop.f32.mrf.mxu0
    %v9639 = vadd.f32 0.0, %v9638
    %9640 = vmatmul.f32.gmra.mxu0 %v7060
    %v9641 = vpop.f32.mrf.mxu0
    %v9642 = vadd.f32 0.0, %v9641
    %9643 = vmatmul.f32.gmra.mxu0 %v7067
    %v9644 = vpop.f32.mrf.mxu0
    %v9645 = vadd.f32 0.0, %v9644
    %9646 = vmatmul.f32.gmra.mxu0 %v7074
    %v9647 = vpop.f32.mrf.mxu0
    %v9648 = vadd.f32 0.0, %v9647
    %9649 = vmatmul.f32.gmra.mxu0 %v7081
    %v9650 = vpop.f32.mrf.mxu0
    %v9651 = vadd.f32 0.0, %v9650
    %9652 = vmatmul.f32.gmra.mxu0 %v7815
    %v9653 = vpop.f32.mrf.mxu0
    %v9654 = vadd.f32 0.0, %v9653
    %9655 = vmatmul.f32.gmra.mxu0 %v8409
    %v9656 = vpop.f32.mrf.mxu0
    %v9657 = vadd.f32 0.0, %v9656
    %9658 = vmatmul.f32.gmra.mxu0 %v9003
    %v9659 = vpop.f32.mrf.mxu0
    %v9660 = vadd.f32 0.0, %v9659
    %9661 = vmatmul.f32.gmra.mxu0 %v9597
    %v9662 = vpop.f32.mrf.mxu0
    %v9663 = vadd.f32 0.0, %v9662
    %9664 = vdwg.mxu0
    %v9665 = vadd.f32 %v9549, %v9618
    %v9666 = vadd.f32 %v9550, %v9621
    %v9667 = vadd.f32 %v9551, %v9624
    %v9668 = vadd.f32 %v9552, %v9627
    %v9669 = vadd.f32 %v9553, %v9630
    %v9670 = vadd.f32 %v9554, %v9633
    %v9671 = vadd.f32 %v9555, %v9636
    %v9672 = vadd.f32 %v9556, %v9639
    %v9673 = vadd.f32 %v9557, %v9642
    %v9674 = vadd.f32 %v9558, %v9645
    %v9675 = vadd.f32 %v9559, %v9648
    %v9676 = vadd.f32 %v9560, %v9651
    %v9677 = vadd.f32 %v9561, %v9654
    %v9678 = vadd.f32 %v9562, %v9657
    %v9679 = vadd.f32 %v9563, %v9660
    %v9680 = vadd.f32 %v9564, %v9663
    %s9681 = scalar_lea.vmem %s3, 3072
    %v9682 = vld [vmem:[%s9681] sm:$0xff]
    %v9683 = vld [vmem:[%s9681 + $0x8] sm:$0xff]
    %v9684 = vld [vmem:[%s9681 + $0x10] sm:$0xff]
    %v9685 = vld [vmem:[%s9681 + $0x18] sm:$0xff]
    %v9686 = vld [vmem:[%s9681 + $0x20] sm:$0xff]
    %v9687 = vld [vmem:[%s9681 + $0x28] sm:$0xff]
    %v9688 = vld [vmem:[%s9681 + $0x30] sm:$0xff]
    %v9689 = vld [vmem:[%s9681 + $0x38] sm:$0xff]
    %v9690 = vld [vmem:[%s9681 + $0x40] sm:$0xff]
    %v9691 = vld [vmem:[%s9681 + $0x48] sm:$0xff]
    %v9692 = vld [vmem:[%s9681 + $0x50] sm:$0xff]
    %v9693 = vld [vmem:[%s9681 + $0x58] sm:$0xff]
    %v9694 = vld [vmem:[%s9681 + $0x60] sm:$0xff]
    %v9695 = vld [vmem:[%s9681 + $0x68] sm:$0xff]
    %v9696 = vld [vmem:[%s9681 + $0x70] sm:$0xff]
    %v9697 = vld [vmem:[%s9681 + $0x78] sm:$0xff]
    %v9700 = vsel %vm6286, %v5974, %v5973
    %v9701 = vsel %vm6288, %v5975, %v9700
    %v9702 = vsel %vm6290, %v5976, %v9701
    %v9703 = vsel %vm6292, %v5977, %v9702
    %v9704 = vsel %vm6294, %v5978, %v9703
    %v9705 = vsel %vm6296, %v5979, %v9704
    %v9706 = vsel %vm6298, %v5980, %v9705
    %v9707 = vsel %vm6286, %v6118, %v6117
    %v9708 = vsel %vm6288, %v6119, %v9707
    %v9709 = vsel %vm6290, %v6120, %v9708
    %v9710 = vsel %vm6292, %v6121, %v9709
    %v9711 = vsel %vm6294, %v6122, %v9710
    %v9712 = vsel %vm6296, %v6123, %v9711
    %v9713 = vsel %vm6298, %v6124, %v9712
    %9716 = vmatpush.msra.mxu0 %v9697
    %9717 = vmatpush.msra.mxu0 %v9696
    %9718 = vmatpush.msra.mxu0 %v9695
    %9719 = vmatpush.msra.mxu0 %v9694
    %9720 = vmatpush.msra.mxu0 %v9693
    %9721 = vmatpush.msra.mxu0 %v9692
    %9722 = vmatpush.msra.mxu0 %v9691
    %9723 = vmatpush.msra.mxu0 %v9690
    %9724 = vmatpush.msra.mxu0 %v9689
    %9725 = vmatpush.msra.mxu0 %v9688
    %9726 = vmatpush.msra.mxu0 %v9687
    %9727 = vmatpush.msra.mxu0 %v9686
    %9728 = vmatpush.msra.mxu0 %v9685
    %9729 = vmatpush.msra.mxu0 %v9684
    %9730 = vmatpush.msra.mxu0 %v9683
    %9731 = vmatpush.msra.mxu0 %v9682
    %9732 = vmatmul.f32.gmra.mxu0 %v7246
    %v9733 = vpop.f32.mrf.mxu0
    %v9734 = vadd.f32 0.0, %v9733
    %9735 = vmatmul.f32.gmra.mxu0 %v7253
    %v9736 = vpop.f32.mrf.mxu0
    %v9737 = vadd.f32 0.0, %v9736
    %9738 = vmatmul.f32.gmra.mxu0 %v7260
    %v9739 = vpop.f32.mrf.mxu0
    %v9740 = vadd.f32 0.0, %v9739
    %9741 = vmatmul.f32.gmra.mxu0 %v7267
    %v9742 = vpop.f32.mrf.mxu0
    %v9743 = vadd.f32 0.0, %v9742
    %9744 = vmatmul.f32.gmra.mxu0 %v7924
    %v9745 = vpop.f32.mrf.mxu0
    %v9746 = vadd.f32 0.0, %v9745
    %9747 = vmatmul.f32.gmra.mxu0 %v8518
    %v9748 = vpop.f32.mrf.mxu0
    %v9749 = vadd.f32 0.0, %v9748
    %9750 = vmatmul.f32.gmra.mxu0 %v9112
    %v9751 = vpop.f32.mrf.mxu0
    %v9752 = vadd.f32 0.0, %v9751
    %9753 = vmatmul.f32.gmra.mxu0 %v9706
    %v9754 = vpop.f32.mrf.mxu0
    %v9755 = vadd.f32 0.0, %v9754
    %9756 = vmatmul.f32.gmra.mxu0 %v7302
    %v9757 = vpop.f32.mrf.mxu0
    %v9758 = vadd.f32 0.0, %v9757
    %9759 = vmatmul.f32.gmra.mxu0 %v7309
    %v9760 = vpop.f32.mrf.mxu0
    %v9761 = vadd.f32 0.0, %v9760
    %9762 = vmatmul.f32.gmra.mxu0 %v7316
    %v9763 = vpop.f32.mrf.mxu0
    %v9764 = vadd.f32 0.0, %v9763
    %9765 = vmatmul.f32.gmra.mxu0 %v7323
    %v9766 = vpop.f32.mrf.mxu0
    %v9767 = vadd.f32 0.0, %v9766
    %9768 = vmatmul.f32.gmra.mxu0 %v7931
    %v9769 = vpop.f32.mrf.mxu0
    %v9770 = vadd.f32 0.0, %v9769
    %9771 = vmatmul.f32.gmra.mxu0 %v8525
    %v9772 = vpop.f32.mrf.mxu0
    %v9773 = vadd.f32 0.0, %v9772
    %9774 = vmatmul.f32.gmra.mxu0 %v9119
    %v9775 = vpop.f32.mrf.mxu0
    %v9776 = vadd.f32 0.0, %v9775
    %9777 = vmatmul.f32.gmra.mxu0 %v9713
    %v9778 = vpop.f32.mrf.mxu0
    %v9779 = vadd.f32 0.0, %v9778
    %9780 = vdwg.mxu0
    %v9781 = vadd.f32 %v9665, %v9734
    %v9782 = vadd.f32 %v9666, %v9737
    %v9783 = vadd.f32 %v9667, %v9740
    %v9784 = vadd.f32 %v9668, %v9743
    %v9785 = vadd.f32 %v9669, %v9746
    %v9786 = vadd.f32 %v9670, %v9749
    %v9787 = vadd.f32 %v9671, %v9752
    %v9788 = vadd.f32 %v9672, %v9755
    %v9789 = vadd.f32 %v9673, %v9758
    %v9790 = vadd.f32 %v9674, %v9761
    %v9791 = vadd.f32 %v9675, %v9764
    %v9792 = vadd.f32 %v9676, %v9767
    %v9793 = vadd.f32 %v9677, %v9770
    %v9794 = vadd.f32 %v9678, %v9773
    %v9795 = vadd.f32 %v9679, %v9776
    %v9796 = vadd.f32 %v9680, %v9779
    %v9797 = vld [vmem:[%s4] sm:$0x1]
    %v9799 = vperm.slane %v9797, 0
    %v9801 = vadd.f32 %v9781, %v9799
    %v9802 = vadd.f32 %v9782, %v9799
    %v9803 = vadd.f32 %v9783, %v9799
    %v9804 = vadd.f32 %v9784, %v9799
    %v9805 = vadd.f32 %v9785, %v9799
    %v9806 = vadd.f32 %v9786, %v9799
    %v9807 = vadd.f32 %v9787, %v9799
    %v9808 = vadd.f32 %v9788, %v9799
    %v9809 = vadd.f32 %v9789, %v9799
    %v9810 = vadd.f32 %v9790, %v9799
    %v9811 = vadd.f32 %v9791, %v9799
    %v9812 = vadd.f32 %v9792, %v9799
    %v9813 = vadd.f32 %v9793, %v9799
    %v9814 = vadd.f32 %v9794, %v9799
    %v9815 = vadd.f32 %v9795, %v9799
    %v9816 = vadd.f32 %v9796, %v9799
    %v9817 = vmax.f32 %v9801, 0.0
    %v9818 = vmax.f32 %v9802, 0.0
    %v9819 = vmax.f32 %v9803, 0.0
    %v9820 = vmax.f32 %v9804, 0.0
    %v9821 = vmax.f32 %v9805, 0.0
    %v9822 = vmax.f32 %v9806, 0.0
    %v9823 = vmax.f32 %v9807, 0.0
    %v9824 = vmax.f32 %v9808, 0.0
    %v9825 = vmax.f32 %v9809, 0.0
    %v9826 = vmax.f32 %v9810, 0.0
    %v9827 = vmax.f32 %v9811, 0.0
    %v9828 = vmax.f32 %v9812, 0.0
    %v9829 = vmax.f32 %v9813, 0.0
    %v9830 = vmax.f32 %v9814, 0.0
    %v9831 = vmax.f32 %v9815, 0.0
    %v9832 = vmax.f32 %v9816, 0.0
    %v9849 = vrot.slane %v9817, 2
    %v9850 = vrot.slane %v9817, 4
    %v9851 = vrot.slane %v9817, 6
    %v9852 = vrot.slane %v9818, 2
    %v9853 = vrot.slane %v9818, 4
    %v9854 = vrot.slane %v9818, 6
    %v9855 = vrot.slane %v9819, 2
    %v9856 = vrot.slane %v9819, 4
    %v9857 = vrot.slane %v9819, 6
    %v9858 = vrot.slane %v9820, 2
    %v9859 = vrot.slane %v9820, 4
    %v9860 = vrot.slane %v9820, 6
    %v9861 = vrot.slane %v9821, 2
    %v9862 = vrot.slane %v9821, 4
    %v9863 = vrot.slane %v9821, 6
    %v9864 = vrot.slane %v9822, 2
    %v9865 = vrot.slane %v9822, 4
    %v9866 = vrot.slane %v9822, 6
    %v9867 = vrot.slane %v9823, 2
    %v9868 = vrot.slane %v9823, 4
    %v9869 = vrot.slane %v9823, 6
    %v9870 = vrot.slane %v9824, 2
    %v9871 = vrot.slane %v9824, 4
    %v9872 = vrot.slane %v9824, 6
    %v9873 = vrot.slane %v9825, 2
    %v9874 = vrot.slane %v9825, 4
    %v9875 = vrot.slane %v9825, 6
    %v9876 = vrot.slane %v9826, 2
    %v9877 = vrot.slane %v9826, 4
    %v9878 = vrot.slane %v9826, 6
    %v9879 = vrot.slane %v9827, 2
    %v9880 = vrot.slane %v9827, 4
    %v9881 = vrot.slane %v9827, 6
    %v9882 = vrot.slane %v9828, 2
    %v9883 = vrot.slane %v9828, 4
    %v9884 = vrot.slane %v9828, 6
    %v9885 = vrot.slane %v9829, 2
    %v9886 = vrot.slane %v9829, 4
    %v9887 = vrot.slane %v9829, 6
    %v9888 = vrot.slane %v9830, 2
    %v9889 = vrot.slane %v9830, 4
    %v9890 = vrot.slane %v9830, 6
    %v9891 = vrot.slane %v9831, 2
    %v9892 = vrot.slane %v9831, 4
    %v9893 = vrot.slane %v9831, 6
    %v9894 = vrot.slane %v9832, 2
    %v9895 = vrot.slane %v9832, 4
    %v9896 = vrot.slane %v9832, 6
    %v9945 = vsel %vm1804, %v9817, -inf
    %v9946 = vrot.slane %v9945, 4
    %v9947 = vmax.f32 %v9945, %v9946
    %v9948 = vrot.slane %v9947, 2
    %v9949 = vmax.f32 %v9947, %v9948
    %v9950 = vrot.slane %v9949, 1
    %v9951 = vmax.f32 %v9949, %v9950
    %v9952 = vsel %vm1804, %v9849, -inf
    %v9953 = vrot.slane %v9952, 4
    %v9954 = vmax.f32 %v9952, %v9953
    %v9955 = vrot.slane %v9954, 2
    %v9956 = vmax.f32 %v9954, %v9955
    %v9957 = vrot.slane %v9956, 1
    %v9958 = vmax.f32 %v9956, %v9957
    %v9959 = vsel %vm1804, %v9850, -inf
    %v9960 = vrot.slane %v9959, 4
    %v9961 = vmax.f32 %v9959, %v9960
    %v9962 = vrot.slane %v9961, 2
    %v9963 = vmax.f32 %v9961, %v9962
    %v9964 = vrot.slane %v9963, 1
    %v9965 = vmax.f32 %v9963, %v9964
    %v9966 = vsel %vm1804, %v9851, -inf
    %v9967 = vrot.slane %v9966, 4
    %v9968 = vmax.f32 %v9966, %v9967
    %v9969 = vrot.slane %v9968, 2
    %v9970 = vmax.f32 %v9968, %v9969
    %v9971 = vrot.slane %v9970, 1
    %v9972 = vmax.f32 %v9970, %v9971
    %v9973 = vsel %vm1804, %v9818, -inf
    %v9974 = vrot.slane %v9973, 4
    %v9975 = vmax.f32 %v9973, %v9974
    %v9976 = vrot.slane %v9975, 2
    %v9977 = vmax.f32 %v9975, %v9976
    %v9978 = vrot.slane %v9977, 1
    %v9979 = vmax.f32 %v9977, %v9978
    %v9980 = vsel %vm1804, %v9852, -inf
    %v9981 = vrot.slane %v9980, 4
    %v9982 = vmax.f32 %v9980, %v9981
    %v9983 = vrot.slane %v9982, 2
    %v9984 = vmax.f32 %v9982, %v9983
    %v9985 = vrot.slane %v9984, 1
    %v9986 = vmax.f32 %v9984, %v9985
    %v9987 = vsel %vm1804, %v9853, -inf
    %v9988 = vrot.slane %v9987, 4
    %v9989 = vmax.f32 %v9987, %v9988
    %v9990 = vrot.slane %v9989, 2
    %v9991 = vmax.f32 %v9989, %v9990
    %v9992 = vrot.slane %v9991, 1
    %v9993 = vmax.f32 %v9991, %v9992
    %v9994 = vsel %vm1804, %v9854, -inf
    %v9995 = vrot.slane %v9994, 4
    %v9996 = vmax.f32 %v9994, %v9995
    %v9997 = vrot.slane %v9996, 2
    %v9998 = vmax.f32 %v9996, %v9997
    %v9999 = vrot.slane %v9998, 1
    %v10000 = vmax.f32 %v9998, %v9999
    %v10001 = vsel %vm1804, %v9819, -inf
    %v10002 = vrot.slane %v10001, 4
    %v10003 = vmax.f32 %v10001, %v10002
    %v10004 = vrot.slane %v10003, 2
    %v10005 = vmax.f32 %v10003, %v10004
    %v10006 = vrot.slane %v10005, 1
    %v10007 = vmax.f32 %v10005, %v10006
    %v10008 = vsel %vm1804, %v9855, -inf
    %v10009 = vrot.slane %v10008, 4
    %v10010 = vmax.f32 %v10008, %v10009
    %v10011 = vrot.slane %v10010, 2
    %v10012 = vmax.f32 %v10010, %v10011
    %v10013 = vrot.slane %v10012, 1
    %v10014 = vmax.f32 %v10012, %v10013
    %v10015 = vsel %vm1804, %v9856, -inf
    %v10016 = vrot.slane %v10015, 4
    %v10017 = vmax.f32 %v10015, %v10016
    %v10018 = vrot.slane %v10017, 2
    %v10019 = vmax.f32 %v10017, %v10018
    %v10020 = vrot.slane %v10019, 1
    %v10021 = vmax.f32 %v10019, %v10020
    %v10022 = vsel %vm1804, %v9857, -inf
    %v10023 = vrot.slane %v10022, 4
    %v10024 = vmax.f32 %v10022, %v10023
    %v10025 = vrot.slane %v10024, 2
    %v10026 = vmax.f32 %v10024, %v10025
    %v10027 = vrot.slane %v10026, 1
    %v10028 = vmax.f32 %v10026, %v10027
    %v10029 = vsel %vm1804, %v9820, -inf
    %v10030 = vrot.slane %v10029, 4
    %v10031 = vmax.f32 %v10029, %v10030
    %v10032 = vrot.slane %v10031, 2
    %v10033 = vmax.f32 %v10031, %v10032
    %v10034 = vrot.slane %v10033, 1
    %v10035 = vmax.f32 %v10033, %v10034
    %v10036 = vsel %vm1804, %v9858, -inf
    %v10037 = vrot.slane %v10036, 4
    %v10038 = vmax.f32 %v10036, %v10037
    %v10039 = vrot.slane %v10038, 2
    %v10040 = vmax.f32 %v10038, %v10039
    %v10041 = vrot.slane %v10040, 1
    %v10042 = vmax.f32 %v10040, %v10041
    %v10043 = vsel %vm1804, %v9859, -inf
    %v10044 = vrot.slane %v10043, 4
    %v10045 = vmax.f32 %v10043, %v10044
    %v10046 = vrot.slane %v10045, 2
    %v10047 = vmax.f32 %v10045, %v10046
    %v10048 = vrot.slane %v10047, 1
    %v10049 = vmax.f32 %v10047, %v10048
    %v10050 = vsel %vm1804, %v9860, -inf
    %v10051 = vrot.slane %v10050, 4
    %v10052 = vmax.f32 %v10050, %v10051
    %v10053 = vrot.slane %v10052, 2
    %v10054 = vmax.f32 %v10052, %v10053
    %v10055 = vrot.slane %v10054, 1
    %v10056 = vmax.f32 %v10054, %v10055
    %v10057 = vsel %vm1804, %v9821, -inf
    %v10058 = vrot.slane %v10057, 4
    %v10059 = vmax.f32 %v10057, %v10058
    %v10060 = vrot.slane %v10059, 2
    %v10061 = vmax.f32 %v10059, %v10060
    %v10062 = vrot.slane %v10061, 1
    %v10063 = vmax.f32 %v10061, %v10062
    %v10064 = vsel %vm1804, %v9861, -inf
    %v10065 = vrot.slane %v10064, 4
    %v10066 = vmax.f32 %v10064, %v10065
    %v10067 = vrot.slane %v10066, 2
    %v10068 = vmax.f32 %v10066, %v10067
    %v10069 = vrot.slane %v10068, 1
    %v10070 = vmax.f32 %v10068, %v10069
    %v10071 = vsel %vm1804, %v9862, -inf
    %v10072 = vrot.slane %v10071, 4
    %v10073 = vmax.f32 %v10071, %v10072
    %v10074 = vrot.slane %v10073, 2
    %v10075 = vmax.f32 %v10073, %v10074
    %v10076 = vrot.slane %v10075, 1
    %v10077 = vmax.f32 %v10075, %v10076
    %v10078 = vsel %vm1804, %v9863, -inf
    %v10079 = vrot.slane %v10078, 4
    %v10080 = vmax.f32 %v10078, %v10079
    %v10081 = vrot.slane %v10080, 2
    %v10082 = vmax.f32 %v10080, %v10081
    %v10083 = vrot.slane %v10082, 1
    %v10084 = vmax.f32 %v10082, %v10083
    %v10085 = vsel %vm1804, %v9822, -inf
    %v10086 = vrot.slane %v10085, 4
    %v10087 = vmax.f32 %v10085, %v10086
    %v10088 = vrot.slane %v10087, 2
    %v10089 = vmax.f32 %v10087, %v10088
    %v10090 = vrot.slane %v10089, 1
    %v10091 = vmax.f32 %v10089, %v10090
    %v10092 = vsel %vm1804, %v9864, -inf
    %v10093 = vrot.slane %v10092, 4
    %v10094 = vmax.f32 %v10092, %v10093
    %v10095 = vrot.slane %v10094, 2
    %v10096 = vmax.f32 %v10094, %v10095
    %v10097 = vrot.slane %v10096, 1
    %v10098 = vmax.f32 %v10096, %v10097
    %v10099 = vsel %vm1804, %v9865, -inf
    %v10100 = vrot.slane %v10099, 4
    %v10101 = vmax.f32 %v10099, %v10100
    %v10102 = vrot.slane %v10101, 2
    %v10103 = vmax.f32 %v10101, %v10102
    %v10104 = vrot.slane %v10103, 1
    %v10105 = vmax.f32 %v10103, %v10104
    %v10106 = vsel %vm1804, %v9866, -inf
    %v10107 = vrot.slane %v10106, 4
    %v10108 = vmax.f32 %v10106, %v10107
    %v10109 = vrot.slane %v10108, 2
    %v10110 = vmax.f32 %v10108, %v10109
    %v10111 = vrot.slane %v10110, 1
    %v10112 = vmax.f32 %v10110, %v10111
    %v10113 = vsel %vm1804, %v9823, -inf
    %v10114 = vrot.slane %v10113, 4
    %v10115 = vmax.f32 %v10113, %v10114
    %v10116 = vrot.slane %v10115, 2
    %v10117 = vmax.f32 %v10115, %v10116
    %v10118 = vrot.slane %v10117, 1
    %v10119 = vmax.f32 %v10117, %v10118
    %v10120 = vsel %vm1804, %v9867, -inf
    %v10121 = vrot.slane %v10120, 4
    %v10122 = vmax.f32 %v10120, %v10121
    %v10123 = vrot.slane %v10122, 2
    %v10124 = vmax.f32 %v10122, %v10123
    %v10125 = vrot.slane %v10124, 1
    %v10126 = vmax.f32 %v10124, %v10125
    %v10127 = vsel %vm1804, %v9868, -inf
    %v10128 = vrot.slane %v10127, 4
    %v10129 = vmax.f32 %v10127, %v10128
    %v10130 = vrot.slane %v10129, 2
    %v10131 = vmax.f32 %v10129, %v10130
    %v10132 = vrot.slane %v10131, 1
    %v10133 = vmax.f32 %v10131, %v10132
    %v10134 = vsel %vm1804, %v9869, -inf
    %v10135 = vrot.slane %v10134, 4
    %v10136 = vmax.f32 %v10134, %v10135
    %v10137 = vrot.slane %v10136, 2
    %v10138 = vmax.f32 %v10136, %v10137
    %v10139 = vrot.slane %v10138, 1
    %v10140 = vmax.f32 %v10138, %v10139
    %v10141 = vsel %vm1804, %v9824, -inf
    %v10142 = vrot.slane %v10141, 4
    %v10143 = vmax.f32 %v10141, %v10142
    %v10144 = vrot.slane %v10143, 2
    %v10145 = vmax.f32 %v10143, %v10144
    %v10146 = vrot.slane %v10145, 1
    %v10147 = vmax.f32 %v10145, %v10146
    %v10148 = vsel %vm1804, %v9870, -inf
    %v10149 = vrot.slane %v10148, 4
    %v10150 = vmax.f32 %v10148, %v10149
    %v10151 = vrot.slane %v10150, 2
    %v10152 = vmax.f32 %v10150, %v10151
    %v10153 = vrot.slane %v10152, 1
    %v10154 = vmax.f32 %v10152, %v10153
    %v10155 = vsel %vm1804, %v9871, -inf
    %v10156 = vrot.slane %v10155, 4
    %v10157 = vmax.f32 %v10155, %v10156
    %v10158 = vrot.slane %v10157, 2
    %v10159 = vmax.f32 %v10157, %v10158
    %v10160 = vrot.slane %v10159, 1
    %v10161 = vmax.f32 %v10159, %v10160
    %v10162 = vsel %vm1804, %v9872, -inf
    %v10163 = vrot.slane %v10162, 4
    %v10164 = vmax.f32 %v10162, %v10163
    %v10165 = vrot.slane %v10164, 2
    %v10166 = vmax.f32 %v10164, %v10165
    %v10167 = vrot.slane %v10166, 1
    %v10168 = vmax.f32 %v10166, %v10167
    %v10169 = vsel %vm1804, %v9825, -inf
    %v10170 = vrot.slane %v10169, 4
    %v10171 = vmax.f32 %v10169, %v10170
    %v10172 = vrot.slane %v10171, 2
    %v10173 = vmax.f32 %v10171, %v10172
    %v10174 = vrot.slane %v10173, 1
    %v10175 = vmax.f32 %v10173, %v10174
    %v10176 = vsel %vm1804, %v9873, -inf
    %v10177 = vrot.slane %v10176, 4
    %v10178 = vmax.f32 %v10176, %v10177
    %v10179 = vrot.slane %v10178, 2
    %v10180 = vmax.f32 %v10178, %v10179
    %v10181 = vrot.slane %v10180, 1
    %v10182 = vmax.f32 %v10180, %v10181
    %v10183 = vsel %vm1804, %v9874, -inf
    %v10184 = vrot.slane %v10183, 4
    %v10185 = vmax.f32 %v10183, %v10184
    %v10186 = vrot.slane %v10185, 2
    %v10187 = vmax.f32 %v10185, %v10186
    %v10188 = vrot.slane %v10187, 1
    %v10189 = vmax.f32 %v10187, %v10188
    %v10190 = vsel %vm1804, %v9875, -inf
    %v10191 = vrot.slane %v10190, 4
    %v10192 = vmax.f32 %v10190, %v10191
    %v10193 = vrot.slane %v10192, 2
    %v10194 = vmax.f32 %v10192, %v10193
    %v10195 = vrot.slane %v10194, 1
    %v10196 = vmax.f32 %v10194, %v10195
    %v10197 = vsel %vm1804, %v9826, -inf
    %v10198 = vrot.slane %v10197, 4
    %v10199 = vmax.f32 %v10197, %v10198
    %v10200 = vrot.slane %v10199, 2
    %v10201 = vmax.f32 %v10199, %v10200
    %v10202 = vrot.slane %v10201, 1
    %v10203 = vmax.f32 %v10201, %v10202
    %v10204 = vsel %vm1804, %v9876, -inf
    %v10205 = vrot.slane %v10204, 4
    %v10206 = vmax.f32 %v10204, %v10205
    %v10207 = vrot.slane %v10206, 2
    %v10208 = vmax.f32 %v10206, %v10207
    %v10209 = vrot.slane %v10208, 1
    %v10210 = vmax.f32 %v10208, %v10209
    %v10211 = vsel %vm1804, %v9877, -inf
    %v10212 = vrot.slane %v10211, 4
    %v10213 = vmax.f32 %v10211, %v10212
    %v10214 = vrot.slane %v10213, 2
    %v10215 = vmax.f32 %v10213, %v10214
    %v10216 = vrot.slane %v10215, 1
    %v10217 = vmax.f32 %v10215, %v10216
    %v10218 = vsel %vm1804, %v9878, -inf
    %v10219 = vrot.slane %v10218, 4
    %v10220 = vmax.f32 %v10218, %v10219
    %v10221 = vrot.slane %v10220, 2
    %v10222 = vmax.f32 %v10220, %v10221
    %v10223 = vrot.slane %v10222, 1
    %v10224 = vmax.f32 %v10222, %v10223
    %v10225 = vsel %vm1804, %v9827, -inf
    %v10226 = vrot.slane %v10225, 4
    %v10227 = vmax.f32 %v10225, %v10226
    %v10228 = vrot.slane %v10227, 2
    %v10229 = vmax.f32 %v10227, %v10228
    %v10230 = vrot.slane %v10229, 1
    %v10231 = vmax.f32 %v10229, %v10230
    %v10232 = vsel %vm1804, %v9879, -inf
    %v10233 = vrot.slane %v10232, 4
    %v10234 = vmax.f32 %v10232, %v10233
    %v10235 = vrot.slane %v10234, 2
    %v10236 = vmax.f32 %v10234, %v10235
    %v10237 = vrot.slane %v10236, 1
    %v10238 = vmax.f32 %v10236, %v10237
    %v10239 = vsel %vm1804, %v9880, -inf
    %v10240 = vrot.slane %v10239, 4
    %v10241 = vmax.f32 %v10239, %v10240
    %v10242 = vrot.slane %v10241, 2
    %v10243 = vmax.f32 %v10241, %v10242
    %v10244 = vrot.slane %v10243, 1
    %v10245 = vmax.f32 %v10243, %v10244
    %v10246 = vsel %vm1804, %v9881, -inf
    %v10247 = vrot.slane %v10246, 4
    %v10248 = vmax.f32 %v10246, %v10247
    %v10249 = vrot.slane %v10248, 2
    %v10250 = vmax.f32 %v10248, %v10249
    %v10251 = vrot.slane %v10250, 1
    %v10252 = vmax.f32 %v10250, %v10251
    %v10253 = vsel %vm1804, %v9828, -inf
    %v10254 = vrot.slane %v10253, 4
    %v10255 = vmax.f32 %v10253, %v10254
    %v10256 = vrot.slane %v10255, 2
    %v10257 = vmax.f32 %v10255, %v10256
    %v10258 = vrot.slane %v10257, 1
    %v10259 = vmax.f32 %v10257, %v10258
    %v10260 = vsel %vm1804, %v9882, -inf
    %v10261 = vrot.slane %v10260, 4
    %v10262 = vmax.f32 %v10260, %v10261
    %v10263 = vrot.slane %v10262, 2
    %v10264 = vmax.f32 %v10262, %v10263
    %v10265 = vrot.slane %v10264, 1
    %v10266 = vmax.f32 %v10264, %v10265
    %v10267 = vsel %vm1804, %v9883, -inf
    %v10268 = vrot.slane %v10267, 4
    %v10269 = vmax.f32 %v10267, %v10268
    %v10270 = vrot.slane %v10269, 2
    %v10271 = vmax.f32 %v10269, %v10270
    %v10272 = vrot.slane %v10271, 1
    %v10273 = vmax.f32 %v10271, %v10272
    %v10274 = vsel %vm1804, %v9884, -inf
    %v10275 = vrot.slane %v10274, 4
    %v10276 = vmax.f32 %v10274, %v10275
    %v10277 = vrot.slane %v10276, 2
    %v10278 = vmax.f32 %v10276, %v10277
    %v10279 = vrot.slane %v10278, 1
    %v10280 = vmax.f32 %v10278, %v10279
    %v10281 = vsel %vm1804, %v9829, -inf
    %v10282 = vrot.slane %v10281, 4
    %v10283 = vmax.f32 %v10281, %v10282
    %v10284 = vrot.slane %v10283, 2
    %v10285 = vmax.f32 %v10283, %v10284
    %v10286 = vrot.slane %v10285, 1
    %v10287 = vmax.f32 %v10285, %v10286
    %v10288 = vsel %vm1804, %v9885, -inf
    %v10289 = vrot.slane %v10288, 4
    %v10290 = vmax.f32 %v10288, %v10289
    %v10291 = vrot.slane %v10290, 2
    %v10292 = vmax.f32 %v10290, %v10291
    %v10293 = vrot.slane %v10292, 1
    %v10294 = vmax.f32 %v10292, %v10293
    %v10295 = vsel %vm1804, %v9886, -inf
    %v10296 = vrot.slane %v10295, 4
    %v10297 = vmax.f32 %v10295, %v10296
    %v10298 = vrot.slane %v10297, 2
    %v10299 = vmax.f32 %v10297, %v10298
    %v10300 = vrot.slane %v10299, 1
    %v10301 = vmax.f32 %v10299, %v10300
    %v10302 = vsel %vm1804, %v9887, -inf
    %v10303 = vrot.slane %v10302, 4
    %v10304 = vmax.f32 %v10302, %v10303
    %v10305 = vrot.slane %v10304, 2
    %v10306 = vmax.f32 %v10304, %v10305
    %v10307 = vrot.slane %v10306, 1
    %v10308 = vmax.f32 %v10306, %v10307
    %v10309 = vsel %vm1804, %v9830, -inf
    %v10310 = vrot.slane %v10309, 4
    %v10311 = vmax.f32 %v10309, %v10310
    %v10312 = vrot.slane %v10311, 2
    %v10313 = vmax.f32 %v10311, %v10312
    %v10314 = vrot.slane %v10313, 1
    %v10315 = vmax.f32 %v10313, %v10314
    %v10316 = vsel %vm1804, %v9888, -inf
    %v10317 = vrot.slane %v10316, 4
    %v10318 = vmax.f32 %v10316, %v10317
    %v10319 = vrot.slane %v10318, 2
    %v10320 = vmax.f32 %v10318, %v10319
    %v10321 = vrot.slane %v10320, 1
    %v10322 = vmax.f32 %v10320, %v10321
    %v10323 = vsel %vm1804, %v9889, -inf
    %v10324 = vrot.slane %v10323, 4
    %v10325 = vmax.f32 %v10323, %v10324
    %v10326 = vrot.slane %v10325, 2
    %v10327 = vmax.f32 %v10325, %v10326
    %v10328 = vrot.slane %v10327, 1
    %v10329 = vmax.f32 %v10327, %v10328
    %v10330 = vsel %vm1804, %v9890, -inf
    %v10331 = vrot.slane %v10330, 4
    %v10332 = vmax.f32 %v10330, %v10331
    %v10333 = vrot.slane %v10332, 2
    %v10334 = vmax.f32 %v10332, %v10333
    %v10335 = vrot.slane %v10334, 1
    %v10336 = vmax.f32 %v10334, %v10335
    %v10337 = vsel %vm1804, %v9831, -inf
    %v10338 = vrot.slane %v10337, 4
    %v10339 = vmax.f32 %v10337, %v10338
    %v10340 = vrot.slane %v10339, 2
    %v10341 = vmax.f32 %v10339, %v10340
    %v10342 = vrot.slane %v10341, 1
    %v10343 = vmax.f32 %v10341, %v10342
    %v10344 = vsel %vm1804, %v9891, -inf
    %v10345 = vrot.slane %v10344, 4
    %v10346 = vmax.f32 %v10344, %v10345
    %v10347 = vrot.slane %v10346, 2
    %v10348 = vmax.f32 %v10346, %v10347
    %v10349 = vrot.slane %v10348, 1
    %v10350 = vmax.f32 %v10348, %v10349
    %v10351 = vsel %vm1804, %v9892, -inf
    %v10352 = vrot.slane %v10351, 4
    %v10353 = vmax.f32 %v10351, %v10352
    %v10354 = vrot.slane %v10353, 2
    %v10355 = vmax.f32 %v10353, %v10354
    %v10356 = vrot.slane %v10355, 1
    %v10357 = vmax.f32 %v10355, %v10356
    %v10358 = vsel %vm1804, %v9893, -inf
    %v10359 = vrot.slane %v10358, 4
    %v10360 = vmax.f32 %v10358, %v10359
    %v10361 = vrot.slane %v10360, 2
    %v10362 = vmax.f32 %v10360, %v10361
    %v10363 = vrot.slane %v10362, 1
    %v10364 = vmax.f32 %v10362, %v10363
    %v10365 = vsel %vm1804, %v9832, -inf
    %v10366 = vrot.slane %v10365, 4
    %v10367 = vmax.f32 %v10365, %v10366
    %v10368 = vrot.slane %v10367, 2
    %v10369 = vmax.f32 %v10367, %v10368
    %v10370 = vrot.slane %v10369, 1
    %v10371 = vmax.f32 %v10369, %v10370
    %v10372 = vsel %vm1804, %v9894, -inf
    %v10373 = vrot.slane %v10372, 4
    %v10374 = vmax.f32 %v10372, %v10373
    %v10375 = vrot.slane %v10374, 2
    %v10376 = vmax.f32 %v10374, %v10375
    %v10377 = vrot.slane %v10376, 1
    %v10378 = vmax.f32 %v10376, %v10377
    %v10379 = vsel %vm1804, %v9895, -inf
    %v10380 = vrot.slane %v10379, 4
    %v10381 = vmax.f32 %v10379, %v10380
    %v10382 = vrot.slane %v10381, 2
    %v10383 = vmax.f32 %v10381, %v10382
    %v10384 = vrot.slane %v10383, 1
    %v10385 = vmax.f32 %v10383, %v10384
    %v10386 = vsel %vm1804, %v9896, -inf
    %v10387 = vrot.slane %v10386, 4
    %v10388 = vmax.f32 %v10386, %v10387
    %v10389 = vrot.slane %v10388, 2
    %v10390 = vmax.f32 %v10388, %v10389
    %v10391 = vrot.slane %v10390, 1
    %v10392 = vmax.f32 %v10390, %v10391
    %v10393 = vmax.f32 %v9951, %v9979
    %v10394 = vmax.f32 %v9958, %v9986
    %v10395 = vmax.f32 %v9965, %v9993
    %v10396 = vmax.f32 %v9972, %v10000
    %v10397 = vmax.f32 %v10007, %v10035
    %v10398 = vmax.f32 %v10014, %v10042
    %v10399 = vmax.f32 %v10021, %v10049
    %v10400 = vmax.f32 %v10028, %v10056
    %v10401 = vmax.f32 %v10063, %v10091
    %v10402 = vmax.f32 %v10070, %v10098
    %v10403 = vmax.f32 %v10077, %v10105
    %v10404 = vmax.f32 %v10084, %v10112
    %v10405 = vmax.f32 %v10119, %v10147
    %v10406 = vmax.f32 %v10126, %v10154
    %v10407 = vmax.f32 %v10133, %v10161
    %v10408 = vmax.f32 %v10140, %v10168
    %v10409 = vmax.f32 %v10175, %v10203
    %v10410 = vmax.f32 %v10182, %v10210
    %v10411 = vmax.f32 %v10189, %v10217
    %v10412 = vmax.f32 %v10196, %v10224
    %v10413 = vmax.f32 %v10231, %v10259
    %v10414 = vmax.f32 %v10238, %v10266
    %v10415 = vmax.f32 %v10245, %v10273
    %v10416 = vmax.f32 %v10252, %v10280
    %v10417 = vmax.f32 %v10287, %v10315
    %v10418 = vmax.f32 %v10294, %v10322
    %v10419 = vmax.f32 %v10301, %v10329
    %v10420 = vmax.f32 %v10308, %v10336
    %v10421 = vmax.f32 %v10343, %v10371
    %v10422 = vmax.f32 %v10350, %v10378
    %v10423 = vmax.f32 %v10357, %v10385
    %v10424 = vmax.f32 %v10364, %v10392
    %v10425 = vld [vmem:[%s5] sm:$0xff]
    %v10426 = vld [vmem:[%s5 + $0x8] sm:$0xff]
    %v10427 = vld [vmem:[%s5 + $0x10] sm:$0xff]
    %v10428 = vld [vmem:[%s5 + $0x18] sm:$0xff]
    %v10429 = vld [vmem:[%s5 + $0x20] sm:$0xff]
    %v10430 = vld [vmem:[%s5 + $0x28] sm:$0xff]
    %v10431 = vld [vmem:[%s5 + $0x30] sm:$0xff]
    %v10432 = vld [vmem:[%s5 + $0x38] sm:$0xff]
    %v10433 = vld [vmem:[%s5 + $0x40] sm:$0xff]
    %v10434 = vld [vmem:[%s5 + $0x48] sm:$0xff]
    %v10435 = vld [vmem:[%s5 + $0x50] sm:$0xff]
    %v10436 = vld [vmem:[%s5 + $0x58] sm:$0xff]
    %v10437 = vld [vmem:[%s5 + $0x60] sm:$0xff]
    %v10438 = vld [vmem:[%s5 + $0x68] sm:$0xff]
    %v10439 = vld [vmem:[%s5 + $0x70] sm:$0xff]
    %v10440 = vld [vmem:[%s5 + $0x78] sm:$0xff]
    %s10441 = scalar_lea.vmem %s5, 128
    %v10442 = vld [vmem:[%s10441] sm:$0xff]
    %v10443 = vld [vmem:[%s10441 + $0x8] sm:$0xff]
    %v10444 = vld [vmem:[%s10441 + $0x10] sm:$0xff]
    %v10445 = vld [vmem:[%s10441 + $0x18] sm:$0xff]
    %v10446 = vld [vmem:[%s10441 + $0x20] sm:$0xff]
    %v10447 = vld [vmem:[%s10441 + $0x28] sm:$0xff]
    %v10448 = vld [vmem:[%s10441 + $0x30] sm:$0xff]
    %v10449 = vld [vmem:[%s10441 + $0x38] sm:$0xff]
    %v10450 = vld [vmem:[%s10441 + $0x40] sm:$0xff]
    %v10451 = vld [vmem:[%s10441 + $0x48] sm:$0xff]
    %v10452 = vld [vmem:[%s10441 + $0x50] sm:$0xff]
    %v10453 = vld [vmem:[%s10441 + $0x58] sm:$0xff]
    %v10454 = vld [vmem:[%s10441 + $0x60] sm:$0xff]
    %v10455 = vld [vmem:[%s10441 + $0x68] sm:$0xff]
    %v10456 = vld [vmem:[%s10441 + $0x70] sm:$0xff]
    %v10457 = vld [vmem:[%s10441 + $0x78] sm:$0xff]
    %v10460 = vsel %vm6286, %v10410, %v10394
    %10462 = vmatpush.msra.mxu0 %v10457
    %10463 = vmatpush.msra.mxu0 %v10456
    %10464 = vmatpush.msra.mxu0 %v10455
    %10465 = vmatpush.msra.mxu0 %v10454
    %10466 = vmatpush.msra.mxu0 %v10453
    %10467 = vmatpush.msra.mxu0 %v10452
    %10468 = vmatpush.msra.mxu0 %v10451
    %10469 = vmatpush.msra.mxu0 %v10450
    %10470 = vmatpush.msra.mxu0 %v10449
    %10471 = vmatpush.msra.mxu0 %v10448
    %10472 = vmatpush.msra.mxu0 %v10447
    %10473 = vmatpush.msra.mxu0 %v10446
    %10474 = vmatpush.msra.mxu0 %v10445
    %10475 = vmatpush.msra.mxu0 %v10444
    %10476 = vmatpush.msra.mxu0 %v10443
    %10477 = vmatpush.msra.mxu0 %v10442
    %10478 = vmatmul.f32.gmra.mxu0 %v10460
    %v10479 = vpop.f32.mrf.mxu0
    %v10480 = vadd.f32 0.0, %v10479
    %10481 = vdwg.mxu0
    %v10484 = vsel %vm6286, %v10409, %v10393
    %10486 = vmatpush.msra.mxu0 %v10440
    %10487 = vmatpush.msra.mxu0 %v10439
    %10488 = vmatpush.msra.mxu0 %v10438
    %10489 = vmatpush.msra.mxu0 %v10437
    %10490 = vmatpush.msra.mxu0 %v10436
    %10491 = vmatpush.msra.mxu0 %v10435
    %10492 = vmatpush.msra.mxu0 %v10434
    %10493 = vmatpush.msra.mxu0 %v10433
    %10494 = vmatpush.msra.mxu0 %v10432
    %10495 = vmatpush.msra.mxu0 %v10431
    %10496 = vmatpush.msra.mxu0 %v10430
    %10497 = vmatpush.msra.mxu0 %v10429
    %10498 = vmatpush.msra.mxu0 %v10428
    %10499 = vmatpush.msra.mxu0 %v10427
    %10500 = vmatpush.msra.mxu0 %v10426
    %10501 = vmatpush.msra.mxu0 %v10425
    %10502 = vmatmul.f32.gmra.mxu0 %v10484
    %v10503 = vpop.f32.mrf.mxu0
    %v10504 = vadd.f32 %v10480, %v10503
    %10505 = vdwg.mxu0
    %s10506 = scalar_lea.vmem %s5, 256
    %v10507 = vld [vmem:[%s10506] sm:$0xff]
    %v10508 = vld [vmem:[%s10506 + $0x8] sm:$0xff]
    %v10509 = vld [vmem:[%s10506 + $0x10] sm:$0xff]
    %v10510 = vld [vmem:[%s10506 + $0x18] sm:$0xff]
    %v10511 = vld [vmem:[%s10506 + $0x20] sm:$0xff]
    %v10512 = vld [vmem:[%s10506 + $0x28] sm:$0xff]
    %v10513 = vld [vmem:[%s10506 + $0x30] sm:$0xff]
    %v10514 = vld [vmem:[%s10506 + $0x38] sm:$0xff]
    %v10515 = vld [vmem:[%s10506 + $0x40] sm:$0xff]
    %v10516 = vld [vmem:[%s10506 + $0x48] sm:$0xff]
    %v10517 = vld [vmem:[%s10506 + $0x50] sm:$0xff]
    %v10518 = vld [vmem:[%s10506 + $0x58] sm:$0xff]
    %v10519 = vld [vmem:[%s10506 + $0x60] sm:$0xff]
    %v10520 = vld [vmem:[%s10506 + $0x68] sm:$0xff]
    %v10521 = vld [vmem:[%s10506 + $0x70] sm:$0xff]
    %v10522 = vld [vmem:[%s10506 + $0x78] sm:$0xff]
    %v10525 = vsel %vm6286, %v10411, %v10395
    %10527 = vmatpush.msra.mxu0 %v10522
    %10528 = vmatpush.msra.mxu0 %v10521
    %10529 = vmatpush.msra.mxu0 %v10520
    %10530 = vmatpush.msra.mxu0 %v10519
    %10531 = vmatpush.msra.mxu0 %v10518
    %10532 = vmatpush.msra.mxu0 %v10517
    %10533 = vmatpush.msra.mxu0 %v10516
    %10534 = vmatpush.msra.mxu0 %v10515
    %10535 = vmatpush.msra.mxu0 %v10514
    %10536 = vmatpush.msra.mxu0 %v10513
    %10537 = vmatpush.msra.mxu0 %v10512
    %10538 = vmatpush.msra.mxu0 %v10511
    %10539 = vmatpush.msra.mxu0 %v10510
    %10540 = vmatpush.msra.mxu0 %v10509
    %10541 = vmatpush.msra.mxu0 %v10508
    %10542 = vmatpush.msra.mxu0 %v10507
    %10543 = vmatmul.f32.gmra.mxu0 %v10525
    %v10544 = vpop.f32.mrf.mxu0
    %v10545 = vadd.f32 0.0, %v10544
    %10546 = vdwg.mxu0
    %v10547 = vadd.f32 %v10504, %v10545
    %s10548 = scalar_lea.vmem %s5, 384
    %v10549 = vld [vmem:[%s10548] sm:$0xff]
    %v10550 = vld [vmem:[%s10548 + $0x8] sm:$0xff]
    %v10551 = vld [vmem:[%s10548 + $0x10] sm:$0xff]
    %v10552 = vld [vmem:[%s10548 + $0x18] sm:$0xff]
    %v10553 = vld [vmem:[%s10548 + $0x20] sm:$0xff]
    %v10554 = vld [vmem:[%s10548 + $0x28] sm:$0xff]
    %v10555 = vld [vmem:[%s10548 + $0x30] sm:$0xff]
    %v10556 = vld [vmem:[%s10548 + $0x38] sm:$0xff]
    %v10557 = vld [vmem:[%s10548 + $0x40] sm:$0xff]
    %v10558 = vld [vmem:[%s10548 + $0x48] sm:$0xff]
    %v10559 = vld [vmem:[%s10548 + $0x50] sm:$0xff]
    %v10560 = vld [vmem:[%s10548 + $0x58] sm:$0xff]
    %v10561 = vld [vmem:[%s10548 + $0x60] sm:$0xff]
    %v10562 = vld [vmem:[%s10548 + $0x68] sm:$0xff]
    %v10563 = vld [vmem:[%s10548 + $0x70] sm:$0xff]
    %v10564 = vld [vmem:[%s10548 + $0x78] sm:$0xff]
    %v10567 = vsel %vm6286, %v10412, %v10396
    %10569 = vmatpush.msra.mxu0 %v10564
    %10570 = vmatpush.msra.mxu0 %v10563
    %10571 = vmatpush.msra.mxu0 %v10562
    %10572 = vmatpush.msra.mxu0 %v10561
    %10573 = vmatpush.msra.mxu0 %v10560
    %10574 = vmatpush.msra.mxu0 %v10559
    %10575 = vmatpush.msra.mxu0 %v10558
    %10576 = vmatpush.msra.mxu0 %v10557
    %10577 = vmatpush.msra.mxu0 %v10556
    %10578 = vmatpush.msra.mxu0 %v10555
    %10579 = vmatpush.msra.mxu0 %v10554
    %10580 = vmatpush.msra.mxu0 %v10553
    %10581 = vmatpush.msra.mxu0 %v10552
    %10582 = vmatpush.msra.mxu0 %v10551
    %10583 = vmatpush.msra.mxu0 %v10550
    %10584 = vmatpush.msra.mxu0 %v10549
    %10585 = vmatmul.f32.gmra.mxu0 %v10567
    %v10586 = vpop.f32.mrf.mxu0
    %v10587 = vadd.f32 0.0, %v10586
    %10588 = vdwg.mxu0
    %v10589 = vadd.f32 %v10547, %v10587
    %s10590 = scalar_lea.vmem %s5, 512
    %v10591 = vld [vmem:[%s10590] sm:$0xff]
    %v10592 = vld [vmem:[%s10590 + $0x8] sm:$0xff]
    %v10593 = vld [vmem:[%s10590 + $0x10] sm:$0xff]
    %v10594 = vld [vmem:[%s10590 + $0x18] sm:$0xff]
    %v10595 = vld [vmem:[%s10590 + $0x20] sm:$0xff]
    %v10596 = vld [vmem:[%s10590 + $0x28] sm:$0xff]
    %v10597 = vld [vmem:[%s10590 + $0x30] sm:$0xff]
    %v10598 = vld [vmem:[%s10590 + $0x38] sm:$0xff]
    %v10599 = vld [vmem:[%s10590 + $0x40] sm:$0xff]
    %v10600 = vld [vmem:[%s10590 + $0x48] sm:$0xff]
    %v10601 = vld [vmem:[%s10590 + $0x50] sm:$0xff]
    %v10602 = vld [vmem:[%s10590 + $0x58] sm:$0xff]
    %v10603 = vld [vmem:[%s10590 + $0x60] sm:$0xff]
    %v10604 = vld [vmem:[%s10590 + $0x68] sm:$0xff]
    %v10605 = vld [vmem:[%s10590 + $0x70] sm:$0xff]
    %v10606 = vld [vmem:[%s10590 + $0x78] sm:$0xff]
    %v10609 = vsel %vm6286, %v10413, %v10397
    %10611 = vmatpush.msra.mxu0 %v10606
    %10612 = vmatpush.msra.mxu0 %v10605
    %10613 = vmatpush.msra.mxu0 %v10604
    %10614 = vmatpush.msra.mxu0 %v10603
    %10615 = vmatpush.msra.mxu0 %v10602
    %10616 = vmatpush.msra.mxu0 %v10601
    %10617 = vmatpush.msra.mxu0 %v10600
    %10618 = vmatpush.msra.mxu0 %v10599
    %10619 = vmatpush.msra.mxu0 %v10598
    %10620 = vmatpush.msra.mxu0 %v10597
    %10621 = vmatpush.msra.mxu0 %v10596
    %10622 = vmatpush.msra.mxu0 %v10595
    %10623 = vmatpush.msra.mxu0 %v10594
    %10624 = vmatpush.msra.mxu0 %v10593
    %10625 = vmatpush.msra.mxu0 %v10592
    %10626 = vmatpush.msra.mxu0 %v10591
    %10627 = vmatmul.f32.gmra.mxu0 %v10609
    %v10628 = vpop.f32.mrf.mxu0
    %v10629 = vadd.f32 0.0, %v10628
    %10630 = vdwg.mxu0
    %v10631 = vadd.f32 %v10589, %v10629
    %s10632 = scalar_lea.vmem %s5, 640
    %v10633 = vld [vmem:[%s10632] sm:$0xff]
    %v10634 = vld [vmem:[%s10632 + $0x8] sm:$0xff]
    %v10635 = vld [vmem:[%s10632 + $0x10] sm:$0xff]
    %v10636 = vld [vmem:[%s10632 + $0x18] sm:$0xff]
    %v10637 = vld [vmem:[%s10632 + $0x20] sm:$0xff]
    %v10638 = vld [vmem:[%s10632 + $0x28] sm:$0xff]
    %v10639 = vld [vmem:[%s10632 + $0x30] sm:$0xff]
    %v10640 = vld [vmem:[%s10632 + $0x38] sm:$0xff]
    %v10641 = vld [vmem:[%s10632 + $0x40] sm:$0xff]
    %v10642 = vld [vmem:[%s10632 + $0x48] sm:$0xff]
    %v10643 = vld [vmem:[%s10632 + $0x50] sm:$0xff]
    %v10644 = vld [vmem:[%s10632 + $0x58] sm:$0xff]
    %v10645 = vld [vmem:[%s10632 + $0x60] sm:$0xff]
    %v10646 = vld [vmem:[%s10632 + $0x68] sm:$0xff]
    %v10647 = vld [vmem:[%s10632 + $0x70] sm:$0xff]
    %v10648 = vld [vmem:[%s10632 + $0x78] sm:$0xff]
    %v10651 = vsel %vm6286, %v10414, %v10398
    %10653 = vmatpush.msra.mxu0 %v10648
    %10654 = vmatpush.msra.mxu0 %v10647
    %10655 = vmatpush.msra.mxu0 %v10646
    %10656 = vmatpush.msra.mxu0 %v10645
    %10657 = vmatpush.msra.mxu0 %v10644
    %10658 = vmatpush.msra.mxu0 %v10643
    %10659 = vmatpush.msra.mxu0 %v10642
    %10660 = vmatpush.msra.mxu0 %v10641
    %10661 = vmatpush.msra.mxu0 %v10640
    %10662 = vmatpush.msra.mxu0 %v10639
    %10663 = vmatpush.msra.mxu0 %v10638
    %10664 = vmatpush.msra.mxu0 %v10637
    %10665 = vmatpush.msra.mxu0 %v10636
    %10666 = vmatpush.msra.mxu0 %v10635
    %10667 = vmatpush.msra.mxu0 %v10634
    %10668 = vmatpush.msra.mxu0 %v10633
    %10669 = vmatmul.f32.gmra.mxu0 %v10651
    %v10670 = vpop.f32.mrf.mxu0
    %v10671 = vadd.f32 0.0, %v10670
    %10672 = vdwg.mxu0
    %v10673 = vadd.f32 %v10631, %v10671
    %s10674 = scalar_lea.vmem %s5, 768
    %v10675 = vld [vmem:[%s10674] sm:$0xff]
    %v10676 = vld [vmem:[%s10674 + $0x8] sm:$0xff]
    %v10677 = vld [vmem:[%s10674 + $0x10] sm:$0xff]
    %v10678 = vld [vmem:[%s10674 + $0x18] sm:$0xff]
    %v10679 = vld [vmem:[%s10674 + $0x20] sm:$0xff]
    %v10680 = vld [vmem:[%s10674 + $0x28] sm:$0xff]
    %v10681 = vld [vmem:[%s10674 + $0x30] sm:$0xff]
    %v10682 = vld [vmem:[%s10674 + $0x38] sm:$0xff]
    %v10683 = vld [vmem:[%s10674 + $0x40] sm:$0xff]
    %v10684 = vld [vmem:[%s10674 + $0x48] sm:$0xff]
    %v10685 = vld [vmem:[%s10674 + $0x50] sm:$0xff]
    %v10686 = vld [vmem:[%s10674 + $0x58] sm:$0xff]
    %v10687 = vld [vmem:[%s10674 + $0x60] sm:$0xff]
    %v10688 = vld [vmem:[%s10674 + $0x68] sm:$0xff]
    %v10689 = vld [vmem:[%s10674 + $0x70] sm:$0xff]
    %v10690 = vld [vmem:[%s10674 + $0x78] sm:$0xff]
    %v10693 = vsel %vm6286, %v10415, %v10399
    %10695 = vmatpush.msra.mxu0 %v10690
    %10696 = vmatpush.msra.mxu0 %v10689
    %10697 = vmatpush.msra.mxu0 %v10688
    %10698 = vmatpush.msra.mxu0 %v10687
    %10699 = vmatpush.msra.mxu0 %v10686
    %10700 = vmatpush.msra.mxu0 %v10685
    %10701 = vmatpush.msra.mxu0 %v10684
    %10702 = vmatpush.msra.mxu0 %v10683
    %10703 = vmatpush.msra.mxu0 %v10682
    %10704 = vmatpush.msra.mxu0 %v10681
    %10705 = vmatpush.msra.mxu0 %v10680
    %10706 = vmatpush.msra.mxu0 %v10679
    %10707 = vmatpush.msra.mxu0 %v10678
    %10708 = vmatpush.msra.mxu0 %v10677
    %10709 = vmatpush.msra.mxu0 %v10676
    %10710 = vmatpush.msra.mxu0 %v10675
    %10711 = vmatmul.f32.gmra.mxu0 %v10693
    %v10712 = vpop.f32.mrf.mxu0
    %v10713 = vadd.f32 0.0, %v10712
    %10714 = vdwg.mxu0
    %v10715 = vadd.f32 %v10673, %v10713
    %s10716 = scalar_lea.vmem %s5, 896
    %v10717 = vld [vmem:[%s10716] sm:$0xff]
    %v10718 = vld [vmem:[%s10716 + $0x8] sm:$0xff]
    %v10719 = vld [vmem:[%s10716 + $0x10] sm:$0xff]
    %v10720 = vld [vmem:[%s10716 + $0x18] sm:$0xff]
    %v10721 = vld [vmem:[%s10716 + $0x20] sm:$0xff]
    %v10722 = vld [vmem:[%s10716 + $0x28] sm:$0xff]
    %v10723 = vld [vmem:[%s10716 + $0x30] sm:$0xff]
    %v10724 = vld [vmem:[%s10716 + $0x38] sm:$0xff]
    %v10725 = vld [vmem:[%s10716 + $0x40] sm:$0xff]
    %v10726 = vld [vmem:[%s10716 + $0x48] sm:$0xff]
    %v10727 = vld [vmem:[%s10716 + $0x50] sm:$0xff]
    %v10728 = vld [vmem:[%s10716 + $0x58] sm:$0xff]
    %v10729 = vld [vmem:[%s10716 + $0x60] sm:$0xff]
    %v10730 = vld [vmem:[%s10716 + $0x68] sm:$0xff]
    %v10731 = vld [vmem:[%s10716 + $0x70] sm:$0xff]
    %v10732 = vld [vmem:[%s10716 + $0x78] sm:$0xff]
    %v10735 = vsel %vm6286, %v10416, %v10400
    %10737 = vmatpush.msra.mxu0 %v10732
    %10738 = vmatpush.msra.mxu0 %v10731
    %10739 = vmatpush.msra.mxu0 %v10730
    %10740 = vmatpush.msra.mxu0 %v10729
    %10741 = vmatpush.msra.mxu0 %v10728
    %10742 = vmatpush.msra.mxu0 %v10727
    %10743 = vmatpush.msra.mxu0 %v10726
    %10744 = vmatpush.msra.mxu0 %v10725
    %10745 = vmatpush.msra.mxu0 %v10724
    %10746 = vmatpush.msra.mxu0 %v10723
    %10747 = vmatpush.msra.mxu0 %v10722
    %10748 = vmatpush.msra.mxu0 %v10721
    %10749 = vmatpush.msra.mxu0 %v10720
    %10750 = vmatpush.msra.mxu0 %v10719
    %10751 = vmatpush.msra.mxu0 %v10718
    %10752 = vmatpush.msra.mxu0 %v10717
    %10753 = vmatmul.f32.gmra.mxu0 %v10735
    %v10754 = vpop.f32.mrf.mxu0
    %v10755 = vadd.f32 0.0, %v10754
    %10756 = vdwg.mxu0
    %v10757 = vadd.f32 %v10715, %v10755
    %s10758 = scalar_lea.vmem %s5, 1024
    %v10759 = vld [vmem:[%s10758] sm:$0xff]
    %v10760 = vld [vmem:[%s10758 + $0x8] sm:$0xff]
    %v10761 = vld [vmem:[%s10758 + $0x10] sm:$0xff]
    %v10762 = vld [vmem:[%s10758 + $0x18] sm:$0xff]
    %v10763 = vld [vmem:[%s10758 + $0x20] sm:$0xff]
    %v10764 = vld [vmem:[%s10758 + $0x28] sm:$0xff]
    %v10765 = vld [vmem:[%s10758 + $0x30] sm:$0xff]
    %v10766 = vld [vmem:[%s10758 + $0x38] sm:$0xff]
    %v10767 = vld [vmem:[%s10758 + $0x40] sm:$0xff]
    %v10768 = vld [vmem:[%s10758 + $0x48] sm:$0xff]
    %v10769 = vld [vmem:[%s10758 + $0x50] sm:$0xff]
    %v10770 = vld [vmem:[%s10758 + $0x58] sm:$0xff]
    %v10771 = vld [vmem:[%s10758 + $0x60] sm:$0xff]
    %v10772 = vld [vmem:[%s10758 + $0x68] sm:$0xff]
    %v10773 = vld [vmem:[%s10758 + $0x70] sm:$0xff]
    %v10774 = vld [vmem:[%s10758 + $0x78] sm:$0xff]
    %v10777 = vsel %vm6286, %v10417, %v10401
    %10779 = vmatpush.msra.mxu0 %v10774
    %10780 = vmatpush.msra.mxu0 %v10773
    %10781 = vmatpush.msra.mxu0 %v10772
    %10782 = vmatpush.msra.mxu0 %v10771
    %10783 = vmatpush.msra.mxu0 %v10770
    %10784 = vmatpush.msra.mxu0 %v10769
    %10785 = vmatpush.msra.mxu0 %v10768
    %10786 = vmatpush.msra.mxu0 %v10767
    %10787 = vmatpush.msra.mxu0 %v10766
    %10788 = vmatpush.msra.mxu0 %v10765
    %10789 = vmatpush.msra.mxu0 %v10764
    %10790 = vmatpush.msra.mxu0 %v10763
    %10791 = vmatpush.msra.mxu0 %v10762
    %10792 = vmatpush.msra.mxu0 %v10761
    %10793 = vmatpush.msra.mxu0 %v10760
    %10794 = vmatpush.msra.mxu0 %v10759
    %10795 = vmatmul.f32.gmra.mxu0 %v10777
    %v10796 = vpop.f32.mrf.mxu0
    %v10797 = vadd.f32 0.0, %v10796
    %10798 = vdwg.mxu0
    %v10799 = vadd.f32 %v10757, %v10797
    %s10800 = scalar_lea.vmem %s5, 1152
    %v10801 = vld [vmem:[%s10800] sm:$0xff]
    %v10802 = vld [vmem:[%s10800 + $0x8] sm:$0xff]
    %v10803 = vld [vmem:[%s10800 + $0x10] sm:$0xff]
    %v10804 = vld [vmem:[%s10800 + $0x18] sm:$0xff]
    %v10805 = vld [vmem:[%s10800 + $0x20] sm:$0xff]
    %v10806 = vld [vmem:[%s10800 + $0x28] sm:$0xff]
    %v10807 = vld [vmem:[%s10800 + $0x30] sm:$0xff]
    %v10808 = vld [vmem:[%s10800 + $0x38] sm:$0xff]
    %v10809 = vld [vmem:[%s10800 + $0x40] sm:$0xff]
    %v10810 = vld [vmem:[%s10800 + $0x48] sm:$0xff]
    %v10811 = vld [vmem:[%s10800 + $0x50] sm:$0xff]
    %v10812 = vld [vmem:[%s10800 + $0x58] sm:$0xff]
    %v10813 = vld [vmem:[%s10800 + $0x60] sm:$0xff]
    %v10814 = vld [vmem:[%s10800 + $0x68] sm:$0xff]
    %v10815 = vld [vmem:[%s10800 + $0x70] sm:$0xff]
    %v10816 = vld [vmem:[%s10800 + $0x78] sm:$0xff]
    %v10819 = vsel %vm6286, %v10418, %v10402
    %10821 = vmatpush.msra.mxu0 %v10816
    %10822 = vmatpush.msra.mxu0 %v10815
    %10823 = vmatpush.msra.mxu0 %v10814
    %10824 = vmatpush.msra.mxu0 %v10813
    %10825 = vmatpush.msra.mxu0 %v10812
    %10826 = vmatpush.msra.mxu0 %v10811
    %10827 = vmatpush.msra.mxu0 %v10810
    %10828 = vmatpush.msra.mxu0 %v10809
    %10829 = vmatpush.msra.mxu0 %v10808
    %10830 = vmatpush.msra.mxu0 %v10807
    %10831 = vmatpush.msra.mxu0 %v10806
    %10832 = vmatpush.msra.mxu0 %v10805
    %10833 = vmatpush.msra.mxu0 %v10804
    %10834 = vmatpush.msra.mxu0 %v10803
    %10835 = vmatpush.msra.mxu0 %v10802
    %10836 = vmatpush.msra.mxu0 %v10801
    %10837 = vmatmul.f32.gmra.mxu0 %v10819
    %v10838 = vpop.f32.mrf.mxu0
    %v10839 = vadd.f32 0.0, %v10838
    %10840 = vdwg.mxu0
    %v10841 = vadd.f32 %v10799, %v10839
    %s10842 = scalar_lea.vmem %s5, 1280
    %v10843 = vld [vmem:[%s10842] sm:$0xff]
    %v10844 = vld [vmem:[%s10842 + $0x8] sm:$0xff]
    %v10845 = vld [vmem:[%s10842 + $0x10] sm:$0xff]
    %v10846 = vld [vmem:[%s10842 + $0x18] sm:$0xff]
    %v10847 = vld [vmem:[%s10842 + $0x20] sm:$0xff]
    %v10848 = vld [vmem:[%s10842 + $0x28] sm:$0xff]
    %v10849 = vld [vmem:[%s10842 + $0x30] sm:$0xff]
    %v10850 = vld [vmem:[%s10842 + $0x38] sm:$0xff]
    %v10851 = vld [vmem:[%s10842 + $0x40] sm:$0xff]
    %v10852 = vld [vmem:[%s10842 + $0x48] sm:$0xff]
    %v10853 = vld [vmem:[%s10842 + $0x50] sm:$0xff]
    %v10854 = vld [vmem:[%s10842 + $0x58] sm:$0xff]
    %v10855 = vld [vmem:[%s10842 + $0x60] sm:$0xff]
    %v10856 = vld [vmem:[%s10842 + $0x68] sm:$0xff]
    %v10857 = vld [vmem:[%s10842 + $0x70] sm:$0xff]
    %v10858 = vld [vmem:[%s10842 + $0x78] sm:$0xff]
    %v10861 = vsel %vm6286, %v10419, %v10403
    %10863 = vmatpush.msra.mxu0 %v10858
    %10864 = vmatpush.msra.mxu0 %v10857
    %10865 = vmatpush.msra.mxu0 %v10856
    %10866 = vmatpush.msra.mxu0 %v10855
    %10867 = vmatpush.msra.mxu0 %v10854
    %10868 = vmatpush.msra.mxu0 %v10853
    %10869 = vmatpush.msra.mxu0 %v10852
    %10870 = vmatpush.msra.mxu0 %v10851
    %10871 = vmatpush.msra.mxu0 %v10850
    %10872 = vmatpush.msra.mxu0 %v10849
    %10873 = vmatpush.msra.mxu0 %v10848
    %10874 = vmatpush.msra.mxu0 %v10847
    %10875 = vmatpush.msra.mxu0 %v10846
    %10876 = vmatpush.msra.mxu0 %v10845
    %10877 = vmatpush.msra.mxu0 %v10844
    %10878 = vmatpush.msra.mxu0 %v10843
    %10879 = vmatmul.f32.gmra.mxu0 %v10861
    %v10880 = vpop.f32.mrf.mxu0
    %v10881 = vadd.f32 0.0, %v10880
    %10882 = vdwg.mxu0
    %v10883 = vadd.f32 %v10841, %v10881
    %s10884 = scalar_lea.vmem %s5, 1408
    %v10885 = vld [vmem:[%s10884] sm:$0xff]
    %v10886 = vld [vmem:[%s10884 + $0x8] sm:$0xff]
    %v10887 = vld [vmem:[%s10884 + $0x10] sm:$0xff]
    %v10888 = vld [vmem:[%s10884 + $0x18] sm:$0xff]
    %v10889 = vld [vmem:[%s10884 + $0x20] sm:$0xff]
    %v10890 = vld [vmem:[%s10884 + $0x28] sm:$0xff]
    %v10891 = vld [vmem:[%s10884 + $0x30] sm:$0xff]
    %v10892 = vld [vmem:[%s10884 + $0x38] sm:$0xff]
    %v10893 = vld [vmem:[%s10884 + $0x40] sm:$0xff]
    %v10894 = vld [vmem:[%s10884 + $0x48] sm:$0xff]
    %v10895 = vld [vmem:[%s10884 + $0x50] sm:$0xff]
    %v10896 = vld [vmem:[%s10884 + $0x58] sm:$0xff]
    %v10897 = vld [vmem:[%s10884 + $0x60] sm:$0xff]
    %v10898 = vld [vmem:[%s10884 + $0x68] sm:$0xff]
    %v10899 = vld [vmem:[%s10884 + $0x70] sm:$0xff]
    %v10900 = vld [vmem:[%s10884 + $0x78] sm:$0xff]
    %v10903 = vsel %vm6286, %v10420, %v10404
    %10905 = vmatpush.msra.mxu0 %v10900
    %10906 = vmatpush.msra.mxu0 %v10899
    %10907 = vmatpush.msra.mxu0 %v10898
    %10908 = vmatpush.msra.mxu0 %v10897
    %10909 = vmatpush.msra.mxu0 %v10896
    %10910 = vmatpush.msra.mxu0 %v10895
    %10911 = vmatpush.msra.mxu0 %v10894
    %10912 = vmatpush.msra.mxu0 %v10893
    %10913 = vmatpush.msra.mxu0 %v10892
    %10914 = vmatpush.msra.mxu0 %v10891
    %10915 = vmatpush.msra.mxu0 %v10890
    %10916 = vmatpush.msra.mxu0 %v10889
    %10917 = vmatpush.msra.mxu0 %v10888
    %10918 = vmatpush.msra.mxu0 %v10887
    %10919 = vmatpush.msra.mxu0 %v10886
    %10920 = vmatpush.msra.mxu0 %v10885
    %10921 = vmatmul.f32.gmra.mxu0 %v10903
    %v10922 = vpop.f32.mrf.mxu0
    %v10923 = vadd.f32 0.0, %v10922
    %10924 = vdwg.mxu0
    %v10925 = vadd.f32 %v10883, %v10923
    %s10926 = scalar_lea.vmem %s5, 1536
    %v10927 = vld [vmem:[%s10926] sm:$0xff]
    %v10928 = vld [vmem:[%s10926 + $0x8] sm:$0xff]
    %v10929 = vld [vmem:[%s10926 + $0x10] sm:$0xff]
    %v10930 = vld [vmem:[%s10926 + $0x18] sm:$0xff]
    %v10931 = vld [vmem:[%s10926 + $0x20] sm:$0xff]
    %v10932 = vld [vmem:[%s10926 + $0x28] sm:$0xff]
    %v10933 = vld [vmem:[%s10926 + $0x30] sm:$0xff]
    %v10934 = vld [vmem:[%s10926 + $0x38] sm:$0xff]
    %v10935 = vld [vmem:[%s10926 + $0x40] sm:$0xff]
    %v10936 = vld [vmem:[%s10926 + $0x48] sm:$0xff]
    %v10937 = vld [vmem:[%s10926 + $0x50] sm:$0xff]
    %v10938 = vld [vmem:[%s10926 + $0x58] sm:$0xff]
    %v10939 = vld [vmem:[%s10926 + $0x60] sm:$0xff]
    %v10940 = vld [vmem:[%s10926 + $0x68] sm:$0xff]
    %v10941 = vld [vmem:[%s10926 + $0x70] sm:$0xff]
    %v10942 = vld [vmem:[%s10926 + $0x78] sm:$0xff]
    %v10945 = vsel %vm6286, %v10421, %v10405
    %10947 = vmatpush.msra.mxu0 %v10942
    %10948 = vmatpush.msra.mxu0 %v10941
    %10949 = vmatpush.msra.mxu0 %v10940
    %10950 = vmatpush.msra.mxu0 %v10939
    %10951 = vmatpush.msra.mxu0 %v10938
    %10952 = vmatpush.msra.mxu0 %v10937
    %10953 = vmatpush.msra.mxu0 %v10936
    %10954 = vmatpush.msra.mxu0 %v10935
    %10955 = vmatpush.msra.mxu0 %v10934
    %10956 = vmatpush.msra.mxu0 %v10933
    %10957 = vmatpush.msra.mxu0 %v10932
    %10958 = vmatpush.msra.mxu0 %v10931
    %10959 = vmatpush.msra.mxu0 %v10930
    %10960 = vmatpush.msra.mxu0 %v10929
    %10961 = vmatpush.msra.mxu0 %v10928
    %10962 = vmatpush.msra.mxu0 %v10927
    %10963 = vmatmul.f32.gmra.mxu0 %v10945
    %v10964 = vpop.f32.mrf.mxu0
    %v10965 = vadd.f32 0.0, %v10964
    %10966 = vdwg.mxu0
    %v10967 = vadd.f32 %v10925, %v10965
    %s10968 = scalar_lea.vmem %s5, 1664
    %v10969 = vld [vmem:[%s10968] sm:$0xff]
    %v10970 = vld [vmem:[%s10968 + $0x8] sm:$0xff]
    %v10971 = vld [vmem:[%s10968 + $0x10] sm:$0xff]
    %v10972 = vld [vmem:[%s10968 + $0x18] sm:$0xff]
    %v10973 = vld [vmem:[%s10968 + $0x20] sm:$0xff]
    %v10974 = vld [vmem:[%s10968 + $0x28] sm:$0xff]
    %v10975 = vld [vmem:[%s10968 + $0x30] sm:$0xff]
    %v10976 = vld [vmem:[%s10968 + $0x38] sm:$0xff]
    %v10977 = vld [vmem:[%s10968 + $0x40] sm:$0xff]
    %v10978 = vld [vmem:[%s10968 + $0x48] sm:$0xff]
    %v10979 = vld [vmem:[%s10968 + $0x50] sm:$0xff]
    %v10980 = vld [vmem:[%s10968 + $0x58] sm:$0xff]
    %v10981 = vld [vmem:[%s10968 + $0x60] sm:$0xff]
    %v10982 = vld [vmem:[%s10968 + $0x68] sm:$0xff]
    %v10983 = vld [vmem:[%s10968 + $0x70] sm:$0xff]
    %v10984 = vld [vmem:[%s10968 + $0x78] sm:$0xff]
    %v10987 = vsel %vm6286, %v10422, %v10406
    %10989 = vmatpush.msra.mxu0 %v10984
    %10990 = vmatpush.msra.mxu0 %v10983
    %10991 = vmatpush.msra.mxu0 %v10982
    %10992 = vmatpush.msra.mxu0 %v10981
    %10993 = vmatpush.msra.mxu0 %v10980
    %10994 = vmatpush.msra.mxu0 %v10979
    %10995 = vmatpush.msra.mxu0 %v10978
    %10996 = vmatpush.msra.mxu0 %v10977
    %10997 = vmatpush.msra.mxu0 %v10976
    %10998 = vmatpush.msra.mxu0 %v10975
    %10999 = vmatpush.msra.mxu0 %v10974
    %11000 = vmatpush.msra.mxu0 %v10973
    %11001 = vmatpush.msra.mxu0 %v10972
    %11002 = vmatpush.msra.mxu0 %v10971
    %11003 = vmatpush.msra.mxu0 %v10970
    %11004 = vmatpush.msra.mxu0 %v10969
    %11005 = vmatmul.f32.gmra.mxu0 %v10987
    %v11006 = vpop.f32.mrf.mxu0
    %v11007 = vadd.f32 0.0, %v11006
    %11008 = vdwg.mxu0
    %v11009 = vadd.f32 %v10967, %v11007
    %s11010 = scalar_lea.vmem %s5, 1792
    %v11011 = vld [vmem:[%s11010] sm:$0xff]
    %v11012 = vld [vmem:[%s11010 + $0x8] sm:$0xff]
    %v11013 = vld [vmem:[%s11010 + $0x10] sm:$0xff]
    %v11014 = vld [vmem:[%s11010 + $0x18] sm:$0xff]
    %v11015 = vld [vmem:[%s11010 + $0x20] sm:$0xff]
    %v11016 = vld [vmem:[%s11010 + $0x28] sm:$0xff]
    %v11017 = vld [vmem:[%s11010 + $0x30] sm:$0xff]
    %v11018 = vld [vmem:[%s11010 + $0x38] sm:$0xff]
    %v11019 = vld [vmem:[%s11010 + $0x40] sm:$0xff]
    %v11020 = vld [vmem:[%s11010 + $0x48] sm:$0xff]
    %v11021 = vld [vmem:[%s11010 + $0x50] sm:$0xff]
    %v11022 = vld [vmem:[%s11010 + $0x58] sm:$0xff]
    %v11023 = vld [vmem:[%s11010 + $0x60] sm:$0xff]
    %v11024 = vld [vmem:[%s11010 + $0x68] sm:$0xff]
    %v11025 = vld [vmem:[%s11010 + $0x70] sm:$0xff]
    %v11026 = vld [vmem:[%s11010 + $0x78] sm:$0xff]
    %v11029 = vsel %vm6286, %v10423, %v10407
    %11031 = vmatpush.msra.mxu0 %v11026
    %11032 = vmatpush.msra.mxu0 %v11025
    %11033 = vmatpush.msra.mxu0 %v11024
    %11034 = vmatpush.msra.mxu0 %v11023
    %11035 = vmatpush.msra.mxu0 %v11022
    %11036 = vmatpush.msra.mxu0 %v11021
    %11037 = vmatpush.msra.mxu0 %v11020
    %11038 = vmatpush.msra.mxu0 %v11019
    %11039 = vmatpush.msra.mxu0 %v11018
    %11040 = vmatpush.msra.mxu0 %v11017
    %11041 = vmatpush.msra.mxu0 %v11016
    %11042 = vmatpush.msra.mxu0 %v11015
    %11043 = vmatpush.msra.mxu0 %v11014
    %11044 = vmatpush.msra.mxu0 %v11013
    %11045 = vmatpush.msra.mxu0 %v11012
    %11046 = vmatpush.msra.mxu0 %v11011
    %11047 = vmatmul.f32.gmra.mxu0 %v11029
    %v11048 = vpop.f32.mrf.mxu0
    %v11049 = vadd.f32 0.0, %v11048
    %11050 = vdwg.mxu0
    %v11051 = vadd.f32 %v11009, %v11049
    %s11052 = scalar_lea.vmem %s5, 1920
    %v11053 = vld [vmem:[%s11052] sm:$0xff]
    %v11054 = vld [vmem:[%s11052 + $0x8] sm:$0xff]
    %v11055 = vld [vmem:[%s11052 + $0x10] sm:$0xff]
    %v11056 = vld [vmem:[%s11052 + $0x18] sm:$0xff]
    %v11057 = vld [vmem:[%s11052 + $0x20] sm:$0xff]
    %v11058 = vld [vmem:[%s11052 + $0x28] sm:$0xff]
    %v11059 = vld [vmem:[%s11052 + $0x30] sm:$0xff]
    %v11060 = vld [vmem:[%s11052 + $0x38] sm:$0xff]
    %v11061 = vld [vmem:[%s11052 + $0x40] sm:$0xff]
    %v11062 = vld [vmem:[%s11052 + $0x48] sm:$0xff]
    %v11063 = vld [vmem:[%s11052 + $0x50] sm:$0xff]
    %v11064 = vld [vmem:[%s11052 + $0x58] sm:$0xff]
    %v11065 = vld [vmem:[%s11052 + $0x60] sm:$0xff]
    %v11066 = vld [vmem:[%s11052 + $0x68] sm:$0xff]
    %v11067 = vld [vmem:[%s11052 + $0x70] sm:$0xff]
    %v11068 = vld [vmem:[%s11052 + $0x78] sm:$0xff]
    %v11071 = vsel %vm6286, %v10424, %v10408
    %11073 = vmatpush.msra.mxu0 %v11068
    %11074 = vmatpush.msra.mxu0 %v11067
    %11075 = vmatpush.msra.mxu0 %v11066
    %11076 = vmatpush.msra.mxu0 %v11065
    %11077 = vmatpush.msra.mxu0 %v11064
    %11078 = vmatpush.msra.mxu0 %v11063
    %11079 = vmatpush.msra.mxu0 %v11062
    %11080 = vmatpush.msra.mxu0 %v11061
    %11081 = vmatpush.msra.mxu0 %v11060
    %11082 = vmatpush.msra.mxu0 %v11059
    %11083 = vmatpush.msra.mxu0 %v11058
    %11084 = vmatpush.msra.mxu0 %v11057
    %11085 = vmatpush.msra.mxu0 %v11056
    %11086 = vmatpush.msra.mxu0 %v11055
    %11087 = vmatpush.msra.mxu0 %v11054
    %11088 = vmatpush.msra.mxu0 %v11053
    %11089 = vmatmul.f32.gmra.mxu0 %v11071
    %v11090 = vpop.f32.mrf.mxu0
    %v11091 = vadd.f32 0.0, %v11090
    %11092 = vdwg.mxu0
    %v11093 = vadd.f32 %v11051, %v11091
    %v11094 = vld [vmem:[%s6] sm:$0x1]
    %v11096 = vperm.slane %v11094, 0
    %v11098 = vadd.f32 %v11093, %v11096
    %v11099 = vmax.f32 %v11098, 0.0
    %v11100 = vld [vmem:[%s7] sm:$0xff]
    %v11101 = vld [vmem:[%s7 + $0x8] sm:$0xff]
    %v11102 = vld [vmem:[%s7 + $0x10] sm:$0xff]
    %v11103 = vld [vmem:[%s7 + $0x18] sm:$0xff]
    %v11104 = vld [vmem:[%s7 + $0x20] sm:$0xff]
    %v11105 = vld [vmem:[%s7 + $0x28] sm:$0xff]
    %v11106 = vld [vmem:[%s7 + $0x30] sm:$0xff]
    %v11107 = vld [vmem:[%s7 + $0x38] sm:$0xff]
    %v11108 = vld [vmem:[%s7 + $0x40] sm:$0xff]
    %v11109 = vld [vmem:[%s7 + $0x48] sm:$0xff]
    %v11110 = vld [vmem:[%s7 + $0x50] sm:$0xff]
    %v11111 = vld [vmem:[%s7 + $0x58] sm:$0xff]
    %v11112 = vld [vmem:[%s7 + $0x60] sm:$0xff]
    %v11113 = vld [vmem:[%s7 + $0x68] sm:$0xff]
    %v11114 = vld [vmem:[%s7 + $0x70] sm:$0xff]
    %v11115 = vld [vmem:[%s7 + $0x78] sm:$0xff]
    %v11116 = vld [vmem:[%s8] sm:$0x1]
    %v11118 = vperm.slane %v11116, 0
    %11120 = vmatpush.msra.mxu0 %v11115
    %11121 = vmatpush.msra.mxu0 %v11114
    %11122 = vmatpush.msra.mxu0 %v11113
    %11123 = vmatpush.msra.mxu0 %v11112
    %11124 = vmatpush.msra.mxu0 %v11111
    %11125 = vmatpush.msra.mxu0 %v11110
    %11126 = vmatpush.msra.mxu0 %v11109
    %11127 = vmatpush.msra.mxu0 %v11108
    %11128 = vmatpush.msra.mxu0 %v11107
    %11129 = vmatpush.msra.mxu0 %v11106
    %11130 = vmatpush.msra.mxu0 %v11105
    %11131 = vmatpush.msra.mxu0 %v11104
    %11132 = vmatpush.msra.mxu0 %v11103
    %11133 = vmatpush.msra.mxu0 %v11102
    %11134 = vmatpush.msra.mxu0 %v11101
    %11135 = vmatpush.msra.mxu0 %v11100
    %11136 = vmatmul.f32.gmra.mxu0 %v11099
    %v11137 = vpop.f32.mrf.mxu0
    %v11138 = vadd.f32 %v11118, %v11137
    %11139 = vdwg.mxu0
    %v11140 = vmax.f32 %v11138, 0.0
    %v11141 = vld [vmem:[%s9] sm:$0xff]
    %v11142 = vld [vmem:[%s9 + $0x8] sm:$0xff]
    %v11143 = vld [vmem:[%s9 + $0x10] sm:$0xff]
    %v11144 = vld [vmem:[%s9 + $0x18] sm:$0xff]
    %v11145 = vld [vmem:[%s9 + $0x20] sm:$0xff]
    %v11146 = vld [vmem:[%s9 + $0x28] sm:$0xff]
    %v11147 = vld [vmem:[%s9 + $0x30] sm:$0xff]
    %v11148 = vld [vmem:[%s9 + $0x38] sm:$0xff]
    %v11149 = vld [vmem:[%s9 + $0x40] sm:$0xff]
    %v11150 = vld [vmem:[%s9 + $0x48] sm:$0xff]
    %v11151 = vld [vmem:[%s9 + $0x50] sm:$0xff]
    %v11152 = vld [vmem:[%s9 + $0x58] sm:$0xff]
    %v11153 = vld [vmem:[%s9 + $0x60] sm:$0xff]
    %v11154 = vld [vmem:[%s9 + $0x68] sm:$0xff]
    %v11155 = vld [vmem:[%s9 + $0x70] sm:$0xff]
    %v11156 = vld [vmem:[%s9 + $0x78] sm:$0xff]
    %v11157 = vld [vmem:[%s10] sm:$0x1]
    %v11159 = vperm.slane %v11157, 0
    %11161 = vmatpush.msra.mxu0 %v11156
    %11162 = vmatpush.msra.mxu0 %v11155
    %11163 = vmatpush.msra.mxu0 %v11154
    %11164 = vmatpush.msra.mxu0 %v11153
    %11165 = vmatpush.msra.mxu0 %v11152
    %11166 = vmatpush.msra.mxu0 %v11151
    %11167 = vmatpush.msra.mxu0 %v11150
    %11168 = vmatpush.msra.mxu0 %v11149
    %11169 = vmatpush.msra.mxu0 %v11148
    %11170 = vmatpush.msra.mxu0 %v11147
    %11171 = vmatpush.msra.mxu0 %v11146
    %11172 = vmatpush.msra.mxu0 %v11145
    %11173 = vmatpush.msra.mxu0 %v11144
    %11174 = vmatpush.msra.mxu0 %v11143
    %11175 = vmatpush.msra.mxu0 %v11142
    %11176 = vmatpush.msra.mxu0 %v11141
    %11177 = vmatmul.f32.gmra.mxu0 %v11140
    %v11178 = vpop.f32.mrf.mxu0
    %v11179 = vadd.f32 %v11159, %v11178
    %11180 = vdwg.mxu0
    %11181 = vst [vmem:[#allocation2] sm:$0x3] %v11179
    // Predicated region
    $region46: #{simple_cnn_forward.1} parent=1 // pred_check
      _
    $region47: #{simple_cnn_forward.1} parent=1 // pred_check_branch
      %11183 = sbr.rel (0) target = $region49
    $region48: #{simple_cnn_forward.1} parent=1 // pred_region
      %11185 = vsyncadd [#allocation3], 0
      %s11187 = sshll.u32 [#allocation2], 4
      %s11188 = int_to_ptr.vmem [resolvable:$true] %s11187
      %s11189 = sshll.u32 %s11, 4
      %s11190 = int_to_ptr.hbm [resolvable:$true] %s11189
      %11192 = dma.vmem_to_hbm [thread:$0]  %s11188, 32, %s11190, [#allocation3]
    $region49: #{simple_cnn_forward.1} parent=1 // pred_fallthru
      _
    // Predicated region
    $region50: #{simple_cnn_forward.1} parent=1 // pred_check
      _
    $region51: #{simple_cnn_forward.1} parent=1 // pred_check_branch
      %11194 = sbr.rel (0) target = $region53
    $region52: #{simple_cnn_forward.1} parent=1 // pred_region
      %11196 = dma.done [#allocation3], 32
    $region53: #{simple_cnn_forward.1} parent=1 // pred_fallthru
      _
    %11197 = vsyncpa [#allocation3], 1

</llo_original>
